<compile_context>
chip_gen: v5e
topology: v5e:2x2
jax: 0.10.0
libtpu: 0.0.40
codegen_flags: <defaults>
</compile_context>

<pallas_src>
import functools

import jax
import jax.numpy as jnp
from jax.experimental import pallas as pl
from jax.experimental.pallas import tpu as pltpu


# ----------------------------------------------------------------------------
# Helpers
# ----------------------------------------------------------------------------
def _pick_tile(total, target, quantum):
    """Largest divisor of `total` that is a multiple of `quantum` and <= target.

    Falls back to `total` itself (a full-dim block is always legal)."""
    best = None
    t = quantum
    limit = min(total, target)
    while t <= limit:
        if total % t == 0:
            best = t
        t += quantum
    return best if best is not None else total


# ----------------------------------------------------------------------------
# Kernel 1: fused (convfirst·up0) + up1 + up2 1x1 convs + LeakyReLU, VMEM-resident
#   bf16 operands, f32 accumulation; intermediates never leave VMEM.
# ----------------------------------------------------------------------------
def _fused_stack_kernel(*refs, slope, n_layers):
    x_ref = refs[0]
    o_ref = refs[-1]
    wb = refs[1:-1]                       # (w0, b0, w1, b1, ...)
    y = x_ref[...]                        # (tm, Cin0) bf16
    for idx in range(n_layers):
        w_ref = wb[2 * idx]
        b_ref = wb[2 * idx + 1]
        acc = jnp.dot(y, w_ref[...], preferred_element_type=jnp.float32)
        acc = acc + b_ref[...]            # f32 bias / epilogue
        acc = jnp.where(acc >= 0.0, acc, slope * acc)   # LeakyReLU after every layer
        if idx < n_layers - 1:
            y = acc.astype(jnp.bfloat16)  # keep next MXU operand bf16
        else:
            y = acc
    o_ref[...] = y.astype(o_ref.dtype)


def fused_generator_stack(x_rows, weights, biases, *, slope=0.2):
    """Chain of 1x1 convs over channels-last rows: (M, C0) -> (M, C_last)."""
    M, c0 = x_rows.shape
    m8 = pl.cdiv(M, 8) * 8                # sublane quantum
    tm = min(m8, 1024)                    # big row tiles when M is large
    mp = pl.cdiv(m8, tm) * tm
    x_rows = x_rows.astype(jnp.bfloat16)
    if mp != M:
        x_rows = jnp.pad(x_rows, ((0, mp - M), (0, 0)))
    c_last = weights[-1].shape[1]

    in_specs = [pl.BlockSpec((tm, c0), lambda i: (i, 0))]
    args = [x_rows]
    for w, b in zip(weights, biases):
        in_specs.append(pl.BlockSpec(w.shape, lambda i: (0, 0)))
        in_specs.append(pl.BlockSpec((1, w.shape[1]), lambda i: (0, 0)))
        args.append(w.astype(jnp.bfloat16))
        args.append(b.reshape(1, -1).astype(jnp.float32))

    flops = 2 * mp * sum(int(w.shape[0]) * int(w.shape[1]) for w in weights)
    bytes_acc = (2 * mp * c0 + 4 * mp * c_last
                 + sum(2 * int(w.size) + 4 * int(b.size)
                       for w, b in zip(weights, biases)))

    out = pl.pallas_call(
        functools.partial(_fused_stack_kernel, slope=slope, n_layers=len(weights)),
        out_shape=jax.ShapeDtypeStruct((mp, c_last), jnp.float32),
        grid_spec=pltpu.PrefetchScalarGridSpec(
            num_scalar_prefetch=0,
            grid=(mp // tm,),
            in_specs=in_specs,
            out_specs=pl.BlockSpec((tm, c_last), lambda i: (i, 0)),
        ),
        compiler_params=pltpu.CompilerParams(
            dimension_semantics=("parallel",),
            vmem_limit_bytes=32 * 1024 * 1024,
        ),
        cost_estimate=pl.CostEstimate(
            flops=flops, transcendentals=0, bytes_accessed=bytes_acc),
    )(*args)
    return out[:M]


# ----------------------------------------------------------------------------
# Kernel 2: convlast (Conv1d) as a TRANSPOSED, K-streamed matmul + bias + sigmoid
#   out^T[b*T+t, co] = sum_{ci,ko} seq[b, ci, t+ko] * w[co, ci, ko]
#   M = B*T (full-dim rows), N = Cout = nch (lane-dense, split for 2 TCs),
#   K = Cin*Kf streamed in 2 blocks.  bf16 operands, f32 VMEM accumulator.
# ----------------------------------------------------------------------------
def _conv1d_matmul_kernel(x_ref, w_ref, b_ref, o_ref, acc_ref):
    k = pl.program_id(1)

    @pl.when(k == 0)
    def _():
        acc_ref[...] = jnp.zeros_like(acc_ref)

    acc_ref[...] += jnp.dot(x_ref[...], w_ref[...],
                            preferred_element_type=jnp.float32)

    @pl.when(k == pl.num_programs(1) - 1)
    def _():
        y = acc_ref[...] + b_ref[...]          # f32 epilogue; bias along lanes
        o_ref[...] = jax.nn.sigmoid(y).astype(o_ref.dtype)


def conv1d_sigmoid_matmul(x_rows, w_t, bias):
    """(Ncol, K) @ (K, Cout) + bias, sigmoid.  Weight streamed along K."""
    ncol, K = x_rows.shape
    k2, cout = w_t.shape
    assert K == k2, (x_rows.shape, w_t.shape)

    tn = _pick_tile(cout, 128, 128)    # 2 channel tiles -> both v7x TCs busy
    tk = _pick_tile(K, 3840, 128)      # 2 K steps; ~1 MB bf16 weight blocks
    grid = (cout // tn, K // tk)

    bias_row = bias.reshape(1, cout).astype(jnp.float32)
    flops = 2 * ncol * K * cout
    bytes_acc = (int(w_t.size) * w_t.dtype.itemsize
                 + int(x_rows.size) * x_rows.dtype.itemsize
                 + ncol * cout * 4 + cout * 4)

    return pl.pallas_call(
        _conv1d_matmul_kernel,
        out_shape=jax.ShapeDtypeStruct((ncol, cout), jnp.float32),
        grid_spec=pltpu.PrefetchScalarGridSpec(
            num_scalar_prefetch=0,
            grid=grid,
            in_specs=[
                pl.BlockSpec((ncol, tk), lambda i, k: (0, k)),   # im2col rows
                pl.BlockSpec((tk, tn), lambda i, k: (k, i)),     # weight (streamed)
                pl.BlockSpec((1, tn), lambda i, k: (0, i)),      # bias (lanes)
            ],
            out_specs=pl.BlockSpec((ncol, tn), lambda i, k: (0, i)),
            scratch_shapes=[pltpu.VMEM((ncol, tn), jnp.float32)],
        ),
        compiler_params=pltpu.CompilerParams(
            dimension_semantics=("parallel", "arbitrary"),
            vmem_limit_bytes=32 * 1024 * 1024,
        ),
        cost_estimate=pl.CostEstimate(
            flops=flops, transcendentals=ncol * cout, bytes_accessed=bytes_acc),
    )(x_rows, w_t, bias_row)


# ----------------------------------------------------------------------------
# Parameter init (deterministic, synthetic; shapes follow the nn.Module)
# ----------------------------------------------------------------------------
def init_params(key, in_feat, out_feat, img_size, scale_factor):
    final_size = img_size * scale_factor ** 3
    final_kernel = 32 - out_feat + 1                 # Conv1d kernel size
    nch = final_size ** 2                            # Conv1d in/out channels
    keys = jax.random.split(key, 10)

    # Raw per-layer parameters (torch-equivalent, channels-last weight layout).
    w_first = 0.05 * jax.random.normal(keys[0], (in_feat, 256), jnp.float32)
    b_first = 0.01 * jax.random.normal(keys[1], (256,), jnp.float32)
    ups = []
    for i, (ci, co) in enumerate([(256, 128), (128, 64), (64, 32)]):
        w = 0.05 * jax.random.normal(keys[2 + 2 * i], (ci, co), jnp.float32)
        b = 0.01 * jax.random.normal(keys[3 + 2 * i], (co,), jnp.float32)
        ups.append((w, b))

    params = {}
    # Fold convfirst into the first up-conv (no activation between them):
    #   x@Wf+bf then (.)@W0+b0  ==  x@(Wf@W0) + (bf@W0 + b0)   (exact in f32)
    w_fold0 = w_first @ ups[0][0]                        # (in_feat, 128)
    b_fold0 = b_first @ ups[0][0] + ups[0][1]            # (128,)
    params["w_fold0"] = w_fold0.astype(jnp.bfloat16)
    params["b_fold0"] = b_fold0.astype(jnp.float32)
    params["w_up1"] = ups[1][0].astype(jnp.bfloat16)
    params["b_up1"] = ups[1][1].astype(jnp.float32)
    params["w_up2"] = ups[2][0].astype(jnp.bfloat16)
    params["b_up2"] = ups[2][1].astype(jnp.float32)

    # convlast: Conv1d(nch, nch, kernel=final_kernel), torch layout (Cout,Cin,Kf).
    # Pre-transposed/flattened ONCE to (Cin*Kf, Cout) and cast to bf16 so the
    # kernel streams it directly.  (Keep f32 here if bit-closeness to torch
    # matters; bf16 operands + f32 accumulation give small pre-sigmoid drift.)
    w_last = 0.02 * jax.random.normal(keys[8], (nch, nch, final_kernel), jnp.float32)
    params["w_lastT"] = (w_last.transpose(1, 2, 0)
                         .reshape(nch * final_kernel, nch).astype(jnp.bfloat16))
    params["b_last"] = 0.01 * jax.random.normal(keys[9], (nch,), jnp.float32)
    return params


# ----------------------------------------------------------------------------
# Forward pass (matches torch semantics exactly)
# ----------------------------------------------------------------------------
@functools.partial(jax.jit, static_argnames=("scale_factor", "out_feat", "final_size"))
def cnn_forward(z, params, *, scale_factor, out_feat, final_size):
    B, cin0, h0, w0 = z.shape
    s3 = scale_factor ** 3
    assert final_size == h0 * s3

    # ---- fused (convfirst·up0) + up1 + up2 at the ORIGINAL resolution -------
    x_rows = jnp.transpose(z, (0, 2, 3, 1)).reshape(B * h0 * w0, cin0)
    weights = [params["w_fold0"], params["w_up1"], params["w_up2"]]
    biases = [params["b_fold0"], params["b_up1"], params["b_up2"]]
    y = fused_generator_stack(x_rows, weights, biases, slope=0.2)   # (B*h0*w0, 32)
    c_last = y.shape[1]                                             # 32

    # ---- single nearest upsample by scale_factor**3 (layout glue, plain JAX)
    img = jnp.transpose(y.reshape(B, h0, w0, c_last), (0, 3, 1, 2))  # (B, 32, h0, w0)
    img = jnp.repeat(jnp.repeat(img, s3, axis=2), s3, axis=3)        # (B, 32, fs, fs)

    # ---- torch: img.view(B, -1, 32) is a raw row-major reshape of NCHW memory
    nch = final_size * final_size
    seq = img.reshape(B, nch, c_last)                                # (B, nch, 32)

    # ---- convlast (Conv1d) + Sigmoid ----------------------------------------
    kf = c_last - out_feat + 1                                       # kernel size
    T = c_last - kf + 1                                              # = out_feat
    # im2col rows (transposed layout): x[b*T+t, ci*kf+ko] = seq[b, ci, t+ko]
    windows = jnp.stack([seq[:, :, t:t + kf] for t in range(T)], axis=1)  # (B,T,nch,kf)
    x_col = windows.reshape(B * T, nch * kf).astype(jnp.bfloat16)

    out_rows = conv1d_sigmoid_matmul(x_col, params["w_lastT"],
                                     params["b_last"])               # (B*T, nch) f32
    # (B*T, nch) -> (B, nch, T): torch Conv1d output layout (NCT)
    out_nct = out_rows.reshape(B, T, nch).transpose(0, 2, 1)
    # torch: .view(B, -1, final_size, final_size) — raw reshape of (nch, T)
    return out_nct.reshape(B, out_feat, final_size, final_size)


# ----------------------------------------------------------------------------
if __name__ == "__main__":
    opt = {"in_feat": 4, "out_feat": 3, "img_size": 2, "scale_factor": 2}
    final_size = opt["img_size"] * opt["scale_factor"] ** 3   # 2 * 2**3 = 16

    key = jax.random.PRNGKey(0)
    kp, kz = jax.random.split(key)
    params = init_params(kp, opt["in_feat"], opt["out_feat"],
                         opt["img_size"], opt["scale_factor"])
    z = jax.random.normal(
        kz, (2, opt["in_feat"], opt["img_size"], opt["img_size"]), jnp.float32)

    out = cnn_forward(z, params,
                      scale_factor=opt["scale_factor"],
                      out_feat=opt["out_feat"],
                      final_size=final_size)
    out = jax.block_until_ready(out)

    assert out.shape == (2, opt["out_feat"], final_size, final_size), out.shape
    assert bool(jnp.all((out >= 0.0) & (out <= 1.0)))   # sigmoid range sanity check
    print("KERNEL_OK")
</pallas_src>

<mosaic_0001>
module attributes {stable_mosaic.version = 11 : i64} {
  func.func @_fused_stack_kernel(%arg0: i32, %arg1: memref<8x4xbf16, #tpu.memory_space<vmem>>, %arg2: memref<4x128xbf16, #tpu.memory_space<vmem>>, %arg3: memref<1x128xf32, #tpu.memory_space<vmem>>, %arg4: memref<128x64xbf16, #tpu.memory_space<vmem>>, %arg5: memref<1x64xf32, #tpu.memory_space<vmem>>, %arg6: memref<64x32xbf16, #tpu.memory_space<vmem>>, %arg7: memref<1x32xf32, #tpu.memory_space<vmem>>, %arg8: memref<8x32xf32, #tpu.memory_space<vmem>>) attributes {dimension_semantics = [#tpu.dimension_semantics<parallel>], iteration_bounds = array<i64: 1>, scalar_prefetch = 0 : i64, scratch_operands = 0 : i64, tpu.core_type = #tpu.core_type<tc>, window_params = [{transform_indices = @transform_0, window_bounds = array<i64: 8, 4>}, {pipeline_mode = #tpu.pipeline_mode<synchronous>, transform_indices = @transform_1, window_bounds = array<i64: 4, 128>}, {pipeline_mode = #tpu.pipeline_mode<synchronous>, transform_indices = @transform_2, window_bounds = array<i64: 1, 128>}, {pipeline_mode = #tpu.pipeline_mode<synchronous>, transform_indices = @transform_3, window_bounds = array<i64: 128, 64>}, {pipeline_mode = #tpu.pipeline_mode<synchronous>, transform_indices = @transform_4, window_bounds = array<i64: 1, 64>}, {pipeline_mode = #tpu.pipeline_mode<synchronous>, transform_indices = @transform_5, window_bounds = array<i64: 64, 32>}, {pipeline_mode = #tpu.pipeline_mode<synchronous>, transform_indices = @transform_6, window_bounds = array<i64: 1, 32>}, {transform_indices = @transform_7, window_bounds = array<i64: 8, 32>}]} {
    %c0 = arith.constant 0 : index
    %c0_0 = arith.constant 0 : index
    %0 = vector.load %arg1[%c0, %c0_0] : memref<8x4xbf16, #tpu.memory_space<vmem>>, vector<8x4xbf16>
    %c0_1 = arith.constant 0 : index
    %c0_2 = arith.constant 0 : index
    %1 = vector.load %arg2[%c0_1, %c0_2] : memref<4x128xbf16, #tpu.memory_space<vmem>>, vector<4x128xbf16>
    %cst = arith.constant dense<0.000000e+00> : vector<8x128xf32>
    %2 = tpu.matmul %0, %1, %cst {dimension_numbers = #tpu.dot_dimension_numbers<[1], [0], [0], [1], [0, 0, 1, 1], [], []>} : vector<8x4xbf16>, vector<4x128xbf16>, vector<8x128xf32> -> vector<8x128xf32>
    %c0_3 = arith.constant 0 : index
    %c0_4 = arith.constant 0 : index
    %3 = vector.load %arg3[%c0_3, %c0_4] : memref<1x128xf32, #tpu.memory_space<vmem>>, vector<1x128xf32>
    %4 = vector.broadcast %3 : vector<1x128xf32> to vector<8x128xf32>
    %5 = arith.addf %2, %4 : vector<8x128xf32>
    %cst_5 = arith.constant 0.000000e+00 : f32
    %6 = vector.broadcast %cst_5 : f32 to vector<8x128xf32>
    %7 = arith.cmpf oge, %5, %6 : vector<8x128xf32>
    %cst_6 = arith.constant 2.000000e-01 : f32
    %8 = vector.broadcast %cst_6 : f32 to vector<8x128xf32>
    %9 = arith.mulf %8, %5 : vector<8x128xf32>
    %10 = arith.select %7, %5, %9 : vector<8x128xi1>, vector<8x128xf32>
    %11 = arith.truncf %10 : vector<8x128xf32> to vector<8x128xbf16>
    %c0_7 = arith.constant 0 : index
    %c0_8 = arith.constant 0 : index
    %12 = vector.load %arg4[%c0_7, %c0_8] : memref<128x64xbf16, #tpu.memory_space<vmem>>, vector<128x64xbf16>
    %cst_9 = arith.constant dense<0.000000e+00> : vector<8x64xf32>
    %13 = tpu.matmul %11, %12, %cst_9 {dimension_numbers = #tpu.dot_dimension_numbers<[1], [0], [0], [1], [0, 0, 1, 1], [], []>} : vector<8x128xbf16>, vector<128x64xbf16>, vector<8x64xf32> -> vector<8x64xf32>
    %c0_10 = arith.constant 0 : index
    %c0_11 = arith.constant 0 : index
    %14 = vector.load %arg5[%c0_10, %c0_11] : memref<1x64xf32, #tpu.memory_space<vmem>>, vector<1x64xf32>
    %15 = vector.broadcast %14 : vector<1x64xf32> to vector<8x64xf32>
    %16 = arith.addf %13, %15 : vector<8x64xf32>
    %cst_12 = arith.constant 0.000000e+00 : f32
    %17 = vector.broadcast %cst_12 : f32 to vector<8x64xf32>
    %18 = arith.cmpf oge, %16, %17 : vector<8x64xf32>
    %cst_13 = arith.constant 2.000000e-01 : f32
    %19 = vector.broadcast %cst_13 : f32 to vector<8x64xf32>
    %20 = arith.mulf %19, %16 : vector<8x64xf32>
    %21 = arith.select %18, %16, %20 : vector<8x64xi1>, vector<8x64xf32>
    %22 = arith.truncf %21 : vector<8x64xf32> to vector<8x64xbf16>
    %c0_14 = arith.constant 0 : index
    %c0_15 = arith.constant 0 : index
    %23 = vector.load %arg6[%c0_14, %c0_15] : memref<64x32xbf16, #tpu.memory_space<vmem>>, vector<64x32xbf16>
    %cst_16 = arith.constant dense<0.000000e+00> : vector<8x32xf32>
    %24 = tpu.matmul %22, %23, %cst_16 {dimension_numbers = #tpu.dot_dimension_numbers<[1], [0], [0], [1], [0, 0, 1, 1], [], []>} : vector<8x64xbf16>, vector<64x32xbf16>, vector<8x32xf32> -> vector<8x32xf32>
    %c0_17 = arith.constant 0 : index
    %c0_18 = arith.constant 0 : index
    %25 = vector.load %arg7[%c0_17, %c0_18] : memref<1x32xf32, #tpu.memory_space<vmem>>, vector<1x32xf32>
    %26 = vector.broadcast %25 : vector<1x32xf32> to vector<8x32xf32>
    %27 = arith.addf %24, %26 : vector<8x32xf32>
    %cst_19 = arith.constant 0.000000e+00 : f32
    %28 = vector.broadcast %cst_19 : f32 to vector<8x32xf32>
    %29 = arith.cmpf oge, %27, %28 : vector<8x32xf32>
    %cst_20 = arith.constant 2.000000e-01 : f32
    %30 = vector.broadcast %cst_20 : f32 to vector<8x32xf32>
    %31 = arith.mulf %30, %27 : vector<8x32xf32>
    %32 = arith.select %29, %27, %31 : vector<8x32xi1>, vector<8x32xf32>
    %c0_21 = arith.constant 0 : index
    %c0_22 = arith.constant 0 : index
    %33 = vector.load %arg8[%c0_21, %c0_22] : memref<8x32xf32, #tpu.memory_space<vmem>>, vector<8x32xf32>
    tpu.vector_store %arg8[%c0_21, %c0_22], %32 {strides = array<i32>} : memref<8x32xf32, #tpu.memory_space<vmem>>, vector<8x32xf32>,
    return
  }
  func.func @transform_0(%arg0: i32) -> (i32, i32) {
    %c0_i32 = arith.constant 0 : i32
    %c0_i32_0 = arith.constant 0 : i32
    return %arg0, %c0_i32 : i32, i32
  }
  func.func @transform_1(%arg0: i32) -> (i32, i32) {
    %c0_i32 = arith.constant 0 : i32
    %c0_i32_0 = arith.constant 0 : i32
    %c0_i32_1 = arith.constant 0 : i32
    return %c0_i32, %c0_i32_0 : i32, i32
  }
  func.func @transform_2(%arg0: i32) -> (i32, i32) {
    %c0_i32 = arith.constant 0 : i32
    %c0_i32_0 = arith.constant 0 : i32
    %c0_i32_1 = arith.constant 0 : i32
    return %c0_i32, %c0_i32_0 : i32, i32
  }
  func.func @transform_3(%arg0: i32) -> (i32, i32) {
    %c0_i32 = arith.constant 0 : i32
    %c0_i32_0 = arith.constant 0 : i32
    %c0_i32_1 = arith.constant 0 : i32
    return %c0_i32, %c0_i32_0 : i32, i32
  }
  func.func @transform_4(%arg0: i32) -> (i32, i32) {
    %c0_i32 = arith.constant 0 : i32
    %c0_i32_0 = arith.constant 0 : i32
    %c0_i32_1 = arith.constant 0 : i32
    return %c0_i32, %c0_i32_0 : i32, i32
  }
  func.func @transform_5(%arg0: i32) -> (i32, i32) {
    %c0_i32 = arith.constant 0 : i32
    %c0_i32_0 = arith.constant 0 : i32
    %c0_i32_1 = arith.constant 0 : i32
    return %c0_i32, %c0_i32_0 : i32, i32
  }
  func.func @transform_6(%arg0: i32) -> (i32, i32) {
    %c0_i32 = arith.constant 0 : i32
    %c0_i32_0 = arith.constant 0 : i32
    %c0_i32_1 = arith.constant 0 : i32
    return %c0_i32, %c0_i32_0 : i32, i32
  }
  func.func @transform_7(%arg0: i32) -> (i32, i32) {
    %c0_i32 = arith.constant 0 : i32
    %c0_i32_0 = arith.constant 0 : i32
    return %arg0, %c0_i32 : i32, i32
  }
}

module attributes {stable_mosaic.version = 11 : i64} {
  func.func @_conv1d_matmul_kernel(%arg0: i32, %arg1: i32, %arg2: memref<6x3840xbf16, #tpu.memory_space<vmem>>, %arg3: memref<3840x128xbf16, #tpu.memory_space<vmem>>, %arg4: memref<1x128xf32, #tpu.memory_space<vmem>>, %arg5: memref<6x128xf32, #tpu.memory_space<vmem>>, %arg6: memref<6x128xf32, #tpu.memory_space<vmem>>) attributes {dimension_semantics = [#tpu.dimension_semantics<parallel>, #tpu.dimension_semantics<arbitrary>], iteration_bounds = array<i64: 2, 2>, scalar_prefetch = 0 : i64, scratch_operands = 1 : i64, tpu.core_type = #tpu.core_type<tc>, window_params = [{transform_indices = @transform_0, window_bounds = array<i64: 6, 3840>}, {transform_indices = @transform_1, window_bounds = array<i64: 3840, 128>}, {transform_indices = @transform_2, window_bounds = array<i64: 1, 128>}, {transform_indices = @transform_3, window_bounds = array<i64: 6, 128>}]} {
    %c0_i32 = arith.constant 0 : i32
    %0 = arith.cmpi eq, %arg1, %c0_i32 : i32
    %1 = arith.extui %0 : i1 to i32
    %c0_i32_0 = arith.constant 0 : i32
    %2 = arith.cmpi ne, %1, %c0_i32_0 : i32
    scf.if %2 {
      %cst_9 = arith.constant 0.000000e+00 : f32
      %12 = vector.broadcast %cst_9 : f32 to vector<6x128xf32>
      %c0_10 = arith.constant 0 : index
      %c0_11 = arith.constant 0 : index
      %13 = vector.load %arg6[%c0_10, %c0_11] : memref<6x128xf32, #tpu.memory_space<vmem>>, vector<6x128xf32>
      tpu.vector_store %arg6[%c0_10, %c0_11], %12 {strides = array<i32>} : memref<6x128xf32, #tpu.memory_space<vmem>>, vector<6x128xf32>,
    } else {
    }
    %c0 = arith.constant 0 : index
    %c0_1 = arith.constant 0 : index
    %3 = vector.load %arg6[%c0, %c0_1] : memref<6x128xf32, #tpu.memory_space<vmem>>, vector<6x128xf32>
    %c0_2 = arith.constant 0 : index
    %c0_3 = arith.constant 0 : index
    %4 = vector.load %arg2[%c0_2, %c0_3] : memref<6x3840xbf16, #tpu.memory_space<vmem>>, vector<6x3840xbf16>
    %c0_4 = arith.constant 0 : index
    %c0_5 = arith.constant 0 : index
    %5 = vector.load %arg3[%c0_4, %c0_5] : memref<3840x128xbf16, #tpu.memory_space<vmem>>, vector<3840x128xbf16>
    %cst = arith.constant dense<0.000000e+00> : vector<6x128xf32>
    %6 = tpu.matmul %4, %5, %cst {dimension_numbers = #tpu.dot_dimension_numbers<[1], [0], [0], [1], [0, 0, 1, 1], [], []>} : vector<6x3840xbf16>, vector<3840x128xbf16>, vector<6x128xf32> -> vector<6x128xf32>
    %7 = arith.addf %3, %6 : vector<6x128xf32>
    %c0_6 = arith.constant 0 : index
    %c0_7 = arith.constant 0 : index
    %8 = vector.load %arg6[%c0_6, %c0_7] : memref<6x128xf32, #tpu.memory_space<vmem>>, vector<6x128xf32>
    tpu.vector_store %arg6[%c0_6, %c0_7], %7 {strides = array<i32>} : memref<6x128xf32, #tpu.memory_space<vmem>>, vector<6x128xf32>,
    %c1_i32 = arith.constant 1 : i32
    %9 = arith.cmpi eq, %arg1, %c1_i32 : i32
    %10 = arith.extui %9 : i1 to i32
    %c0_i32_8 = arith.constant 0 : i32
    %11 = arith.cmpi ne, %10, %c0_i32_8 : i32
    scf.if %11 {
      %c0_9 = arith.constant 0 : index
      %c0_10 = arith.constant 0 : index
      %12 = vector.load %arg6[%c0_9, %c0_10] : memref<6x128xf32, #tpu.memory_space<vmem>>, vector<6x128xf32>
      %c0_11 = arith.constant 0 : index
      %c0_12 = arith.constant 0 : index
      %13 = vector.load %arg4[%c0_11, %c0_12] : memref<1x128xf32, #tpu.memory_space<vmem>>, vector<1x128xf32>
      %14 = vector.broadcast %13 : vector<1x128xf32> to vector<6x128xf32>
      %15 = arith.addf %12, %14 : vector<6x128xf32>
      %16 = arith.negf %15 : vector<6x128xf32>
      %17 = math.exp %16 : vector<6x128xf32>
      %cst_13 = arith.constant 1.000000e+00 : f32
      %18 = vector.broadcast %cst_13 : f32 to vector<6x128xf32>
      %19 = arith.addf %18, %17 : vector<6x128xf32>
      %20 = arith.divf %18, %19 : vector<6x128xf32>
      %c0_14 = arith.constant 0 : index
      %c0_15 = arith.constant 0 : index
      %21 = vector.load %arg5[%c0_14, %c0_15] : memref<6x128xf32, #tpu.memory_space<vmem>>, vector<6x128xf32>
      tpu.vector_store %arg5[%c0_14, %c0_15], %20 {strides = array<i32>} : memref<6x128xf32, #tpu.memory_space<vmem>>, vector<6x128xf32>,
    } else {
    }
    return
  }
  func.func @transform_0(%arg0: i32, %arg1: i32) -> (i32, i32) {
    %c0_i32 = arith.constant 0 : i32
    %c0_i32_0 = arith.constant 0 : i32
    return %c0_i32, %arg1 : i32, i32
  }
  func.func @transform_1(%arg0: i32, %arg1: i32) -> (i32, i32) {
    %c0_i32 = arith.constant 0 : i32
    return %arg1, %arg0 : i32, i32
  }
  func.func @transform_2(%arg0: i32, %arg1: i32) -> (i32, i32) {
    %c0_i32 = arith.constant 0 : i32
    %c0_i32_0 = arith.constant 0 : i32
    return %c0_i32, %arg0 : i32, i32
  }
  func.func @transform_3(%arg0: i32, %arg1: i32) -> (i32, i32) {
    %c0_i32 = arith.constant 0 : i32
    %c0_i32_0 = arith.constant 0 : i32
    return %c0_i32, %arg0 : i32, i32
  }
}

</mosaic_0001>

<llo_original>
// kernel: cnn_forward.2
$region0: #{cnn_forward.2}
  #allocation0 [shape = 'u32[]', space=smem, size = 0x4, offset = 0x4, fixed_abs, tag = 'smem constant byte address 0x4 - core index']
  #allocation1 [shape = 'u32[72,128]{1,0:T(1,128)}', space=vmem, size = 0x9000, scoped, tag = 'internal scratch']
  %s0 = inlined_call_operand.vmem [shape: bf16[8,4], index: 0, kind: input, shape index: {}]
  %s1 = inlined_call_operand.hbm [shape: bf16[4,128], index: 1, kind: input, shape index: {}]
  %s2 = inlined_call_operand.hbm [shape: f32[1,128], index: 2, kind: input, shape index: {}]
  %s3 = inlined_call_operand.vmem [shape: bf16[128,64], index: 3, kind: input, shape index: {}]
  %s4 = inlined_call_operand.hbm [shape: f32[1,64], index: 4, kind: input, shape index: {}]
  %s5 = inlined_call_operand.vmem [shape: bf16[64,32], index: 5, kind: input, shape index: {}]
  %s6 = inlined_call_operand.hbm [shape: f32[1,32], index: 6, kind: input, shape index: {}]
  %s7 = inlined_call_operand.vmem [shape: f32[8,32], index: 7, kind: output, shape index: {}]
  %s8 = sld [smem:[#allocation0]]
  $region54: #{cnn_forward.2} parent=0
    _
  %s10 = ssub.s32 1, %s8
  %s11 = scalar_select 0, %s10, %s8
  $region1: #{cnn_forward.2} parent=0
    #allocation2 [shape = 'u8[1024]{0}', space=vmem, size = 0x400, scoped, tag = 'input window, operand 1, single buffered']
    #allocation3 [shape = 's32[1]{0}', space=sflag, size = 0x4, scoped, tag = 'scoped memory for cnn_forward.2']
    #allocation4 [shape = 'u8[512]{0}', space=vmem, size = 0x400, scoped, tag = 'input window, operand 2, single buffered']
    #allocation5 [shape = 's32[1]{0}', space=sflag, size = 0x4, scoped, tag = 'scoped memory for cnn_forward.2']
    #allocation6 [shape = 'u8[512]{0}', space=vmem, size = 0x400, scoped, tag = 'input window, operand 4, single buffered']
    #allocation7 [shape = 'u8[512]{0}', space=vmem, size = 0x400, scoped, tag = 'input window, operand 6, single buffered']
    #allocation8 [shape = 's32[1]{0}', space=sflag, size = 0x4, scoped, tag = 'scoped memory for cnn_forward.2']
    %12 = vsyncpa [#allocation3], 0
    %13 = vsyncpa [#allocation5], 0
    %14 = vsyncpa [#allocation8], 0
    // Predicated region
    $region2: #{cnn_forward.2} parent=1 // pred_check
      _
    $region3: #{cnn_forward.2} parent=1 // pred_check_branch
      %16 = sbr.rel (0) target = $region5
    $region4: #{cnn_forward.2} parent=1 // pred_region
      _
    $region5: #{cnn_forward.2} parent=1 // pred_fallthru
      _
    // Predicated region
    $region6: #{cnn_forward.2} parent=1 // pred_check
      _
    $region7: #{cnn_forward.2} parent=1 // pred_check_branch
      %18 = sbr.rel (0) target = $region9
    $region8: #{cnn_forward.2} parent=1 // pred_region
      %20 = vsyncadd [#allocation3], 0
      %s22 = sshll.u32 %s1, 4
      %s23 = int_to_ptr.hbm [resolvable:$true] %s22
      %s24 = sshll.u32 [#allocation2], 4
      %s25 = int_to_ptr.vmem [resolvable:$true] %s24
      %27 = dma.hbm_to_vmem [thread:$0]  %s23, 32, %s25, [#allocation3]
    $region9: #{cnn_forward.2} parent=1 // pred_fallthru
      _
    // Predicated region
    $region10: #{cnn_forward.2} parent=1 // pred_check
      _
    $region11: #{cnn_forward.2} parent=1 // pred_check_branch
      %29 = sbr.rel (0) target = $region13
    $region12: #{cnn_forward.2} parent=1 // pred_region
      %31 = vsyncadd [#allocation5], 0
      %s33 = sshll.u32 %s2, 4
      %s34 = int_to_ptr.hbm [resolvable:$true] %s33
      %s35 = sshll.u32 [#allocation4], 4
      %s36 = int_to_ptr.vmem [resolvable:$true] %s35
      %38 = dma.hbm_to_vmem [thread:$0]  %s34, 16, %s36, [#allocation5]
    $region13: #{cnn_forward.2} parent=1 // pred_fallthru
      _
    // Predicated region
    $region14: #{cnn_forward.2} parent=1 // pred_check
      _
    $region15: #{cnn_forward.2} parent=1 // pred_check_branch
      %40 = sbr.rel (0) target = $region17
    $region16: #{cnn_forward.2} parent=1 // pred_region
      _
    $region17: #{cnn_forward.2} parent=1 // pred_fallthru
      _
    // Predicated region
    $region18: #{cnn_forward.2} parent=1 // pred_check
      _
    $region19: #{cnn_forward.2} parent=1 // pred_check_branch
      %42 = sbr.rel (0) target = $region21
    $region20: #{cnn_forward.2} parent=1 // pred_region
      %44 = vsyncadd [#allocation5], 0
      %s46 = sshll.u32 %s4, 4
      %s47 = int_to_ptr.hbm [resolvable:$true] %s46
      %s48 = sshll.u32 [#allocation6], 4
      %s49 = int_to_ptr.vmem [resolvable:$true] %s48
      %51 = dma.hbm_to_vmem [thread:$0]  %s47, 16, %s49, [#allocation5]
    $region21: #{cnn_forward.2} parent=1 // pred_fallthru
      _
    // Predicated region
    $region22: #{cnn_forward.2} parent=1 // pred_check
      _
    $region23: #{cnn_forward.2} parent=1 // pred_check_branch
      %53 = sbr.rel (0) target = $region25
    $region24: #{cnn_forward.2} parent=1 // pred_region
      _
    $region25: #{cnn_forward.2} parent=1 // pred_fallthru
      _
    // Predicated region
    $region26: #{cnn_forward.2} parent=1 // pred_check
      _
    $region27: #{cnn_forward.2} parent=1 // pred_check_branch
      %55 = sbr.rel (0) target = $region29
    $region28: #{cnn_forward.2} parent=1 // pred_region
      %57 = vsyncadd [#allocation8], 0
      %s59 = sshll.u32 %s6, 4
      %s60 = int_to_ptr.hbm [resolvable:$true] %s59
      %s61 = sshll.u32 [#allocation7], 4
      %s62 = int_to_ptr.vmem [resolvable:$true] %s61
      %64 = dma.hbm_to_vmem [thread:$0]  %s60, 16, %s62, [#allocation8]
    $region29: #{cnn_forward.2} parent=1 // pred_fallthru
      _
    // Predicated region
    $region30: #{cnn_forward.2} parent=1 // pred_check
      _
    $region31: #{cnn_forward.2} parent=1 // pred_check_branch
      %66 = sbr.rel (0) target = $region33
    $region32: #{cnn_forward.2} parent=1 // pred_region
      %68 = dma.done [#allocation3], 32
    $region33: #{cnn_forward.2} parent=1 // pred_fallthru
      _
    // Predicated region
    $region34: #{cnn_forward.2} parent=1 // pred_check
      _
    $region35: #{cnn_forward.2} parent=1 // pred_check_branch
      %70 = sbr.rel (0) target = $region37
    $region36: #{cnn_forward.2} parent=1 // pred_region
      %72 = dma.done [#allocation5], 16
    $region37: #{cnn_forward.2} parent=1 // pred_fallthru
      _
    // Predicated region
    $region38: #{cnn_forward.2} parent=1 // pred_check
      _
    $region39: #{cnn_forward.2} parent=1 // pred_check_branch
      %74 = sbr.rel (0) target = $region41
    $region40: #{cnn_forward.2} parent=1 // pred_region
      %76 = dma.done [#allocation5], 16
    $region41: #{cnn_forward.2} parent=1 // pred_fallthru
      _
    // Predicated region
    $region42: #{cnn_forward.2} parent=1 // pred_check
      _
    $region43: #{cnn_forward.2} parent=1 // pred_check_branch
      %78 = sbr.rel (0) target = $region45
    $region44: #{cnn_forward.2} parent=1 // pred_region
      %80 = dma.done [#allocation8], 16
    $region45: #{cnn_forward.2} parent=1 // pred_fallthru
      _
    %v82 = vld [vmem:[%s0] sm:$0xf]
    %v83 = vld [vmem:[#allocation2] sm:$0x3]
    %v84 = vld [vmem:[#allocation4] sm:$0x1]
    %v86 = vperm.slane %v84, 0
    %vm88 = vcmask 31744
    %v90 = vsel %vm88, %v82, 0
    %vm92 = vcmask 1041408
    %v94 = vsel %vm92, %v83, 0
    %96 = vmatpush.bf16.msra.mxu0 0
    %97 = vmatpush.bf16.msra.mxu0 0
    %98 = vmatpush.bf16.msra.mxu0 0
    %99 = vmatpush.bf16.msra.mxu0 0
    %100 = vmatpush.bf16.msra.mxu0 0
    %101 = vmatpush.bf16.msra.mxu0 0
    %102 = vmatpush.bf16.msra.mxu0 0
    %103 = vmatpush.bf16.msra.mxu0 %v94
    %104 = vmatmul.bf16.gmra.mxu0 %v90
    %v105 = vpop.f32.mrf.mxu0
    %v106 = vadd.f32 %v86, %v105
    %v107 = vpop.f32.mrf.mxu0
    %108 = vdwg.mxu0
    %vm109 = vcmp.ge.f32.partialorder %v106, 0.0
    %v110 = vmul.f32 %v106, 0.2
    %v111 = vsel %vm109, %v106, %v110
    %v112 = vpack.c.bf16 %v111, %v111
    %v113 = vld [vmem:[%s3] sm:$0xf]
    %v114 = vld [vmem:[%s3 + $0x4] sm:$0xf]
    %v115 = vld [vmem:[%s3 + $0x8] sm:$0xf]
    %v116 = vld [vmem:[%s3 + $0xc] sm:$0xf]
    %v117 = vld [vmem:[%s3 + $0x10] sm:$0xf]
    %v118 = vld [vmem:[%s3 + $0x14] sm:$0xf]
    %v119 = vld [vmem:[%s3 + $0x18] sm:$0xf]
    %v120 = vld [vmem:[%s3 + $0x1c] sm:$0xf]
    %v121 = vld [vmem:[%s3 + $0x20] sm:$0xf]
    %v122 = vld [vmem:[%s3 + $0x24] sm:$0xf]
    %v123 = vld [vmem:[%s3 + $0x28] sm:$0xf]
    %v124 = vld [vmem:[%s3 + $0x2c] sm:$0xf]
    %v125 = vld [vmem:[%s3 + $0x30] sm:$0xf]
    %v126 = vld [vmem:[%s3 + $0x34] sm:$0xf]
    %v127 = vld [vmem:[%s3 + $0x38] sm:$0xf]
    %v128 = vld [vmem:[%s3 + $0x3c] sm:$0xf]
    %v129 = vld [vmem:[#allocation6] sm:$0x1]
    %v131 = vperm.slane %v129, 0
    %v149 = vunpack.c.l.b16 %v113
    %v150 = vunpack.c.l.b16 %v114
    %v151 = vunpack.c.l.b16 %v115
    %v152 = vunpack.c.l.b16 %v116
    %v153 = vunpack.c.l.b16 %v117
    %v154 = vunpack.c.l.b16 %v118
    %v155 = vunpack.c.l.b16 %v119
    %v156 = vunpack.c.l.b16 %v120
    %v157 = vunpack.c.l.b16 %v121
    %v158 = vunpack.c.l.b16 %v122
    %v159 = vunpack.c.l.b16 %v123
    %v160 = vunpack.c.l.b16 %v124
    %v161 = vunpack.c.l.b16 %v125
    %v162 = vunpack.c.l.b16 %v126
    %v163 = vunpack.c.l.b16 %v127
    %v164 = vunpack.c.l.b16 %v128
    %v165 = vpack.c.b16 %v150, %v149
    %v166 = vpack.c.b16 %v152, %v151
    %v167 = vpack.c.b16 %v154, %v153
    %v168 = vpack.c.b16 %v156, %v155
    %v169 = vpack.c.b16 %v158, %v157
    %v170 = vpack.c.b16 %v160, %v159
    %v171 = vpack.c.b16 %v162, %v161
    %v172 = vpack.c.b16 %v164, %v163
    %181 = vmatpush.bf16.msra.mxu0 %v172
    %182 = vmatpush.bf16.msra.mxu0 %v171
    %183 = vmatpush.bf16.msra.mxu0 %v170
    %184 = vmatpush.bf16.msra.mxu0 %v169
    %185 = vmatpush.bf16.msra.mxu0 %v168
    %186 = vmatpush.bf16.msra.mxu0 %v167
    %187 = vmatpush.bf16.msra.mxu0 %v166
    %188 = vmatpush.bf16.msra.mxu0 %v165
    %189 = vmatmul.bf16.gmra.mxu0 %v112
    %v190 = vpop.f32.mrf.mxu0
    %v191 = vadd.f32 %v131, %v190
    %v192 = vpop.f32.mrf.mxu0
    %193 = vdwg.mxu0
    %vm194 = vcmp.ge.f32.partialorder %v191, 0.0
    %v195 = vmul.f32 %v191, 0.2
    %v196 = vsel %vm194, %v191, %v195
    %v197 = vpack.c.bf16 %v196, %v196
    %v198 = vld [vmem:[%s5] sm:$0xf]
    %v199 = vld [vmem:[%s5 + $0x4] sm:$0xf]
    %v200 = vld [vmem:[%s5 + $0x8] sm:$0xf]
    %v201 = vld [vmem:[%s5 + $0xc] sm:$0xf]
    %v202 = vld [vmem:[%s5 + $0x10] sm:$0xf]
    %v203 = vld [vmem:[%s5 + $0x14] sm:$0xf]
    %v204 = vld [vmem:[%s5 + $0x18] sm:$0xf]
    %v205 = vld [vmem:[%s5 + $0x1c] sm:$0xf]
    %v206 = vld [vmem:[#allocation7] sm:$0x1]
    %v208 = vperm.slane %v206, 0
    %v218 = vunpack.c.l.b16 %v198
    %v219 = vunpack.c.l.b16 %v199
    %v220 = vunpack.c.l.b16 %v200
    %v221 = vunpack.c.l.b16 %v201
    %v222 = vunpack.c.l.b16 %v202
    %v223 = vunpack.c.l.b16 %v203
    %v224 = vunpack.c.l.b16 %v204
    %v225 = vunpack.c.l.b16 %v205
    %v226 = vpack.c.b16 %v219, %v218
    %v227 = vpack.c.b16 %v221, %v220
    %v228 = vpack.c.b16 %v223, %v222
    %v229 = vpack.c.b16 %v225, %v224
    %vm234 = vcmask 523264
    %v236 = vsel %vm234, %v197, 0
    %238 = vmatpush.bf16.msra.mxu0 0
    %239 = vmatpush.bf16.msra.mxu0 0
    %240 = vmatpush.bf16.msra.mxu0 0
    %241 = vmatpush.bf16.msra.mxu0 0
    %242 = vmatpush.bf16.msra.mxu0 %v229
    %243 = vmatpush.bf16.msra.mxu0 %v228
    %244 = vmatpush.bf16.msra.mxu0 %v227
    %245 = vmatpush.bf16.msra.mxu0 %v226
    %246 = vmatmul.bf16.gmra.mxu0 %v236
    %v247 = vpop.f32.mrf.mxu0
    %v248 = vadd.f32 %v208, %v247
    %v249 = vpop.f32.mrf.mxu0
    %250 = vdwg.mxu0
    %vm251 = vcmp.ge.f32.partialorder %v248, 0.0
    %v252 = vmul.f32 %v248, 0.2
    %v253 = vsel %vm251, %v248, %v252
    %vm254 = vcmask 261120
    %255 = vst.msk [vmem:[%s7] sm:$0xff] %vm254, %v253
    // Predicated region
    $region46: #{cnn_forward.2} parent=1 // pred_check
      _
    $region47: #{cnn_forward.2} parent=1 // pred_check_branch
      %257 = sbr.rel (0) target = $region49
    $region48: #{cnn_forward.2} parent=1 // pred_region
      _
    $region49: #{cnn_forward.2} parent=1 // pred_fallthru
      _
    // Predicated region
    $region50: #{cnn_forward.2} parent=1 // pred_check
      _
    $region51: #{cnn_forward.2} parent=1 // pred_check_branch
      %259 = sbr.rel (0) target = $region53
    $region52: #{cnn_forward.2} parent=1 // pred_region
      _
    $region53: #{cnn_forward.2} parent=1 // pred_fallthru
      _
    %260 = vsyncpa [#allocation3], 1
    %261 = vsyncpa [#allocation5], 1
    %262 = vsyncpa [#allocation8], 1

// kernel: cnn_forward.3
$region0: #{cnn_forward.3}
  #allocation0 [shape = 'u32[]', space=smem, size = 0x4, offset = 0x4, fixed_abs, tag = 'smem constant byte address 0x4 - core index']
  #allocation1 [shape = 'u32[72,128]{1,0:T(1,128)}', space=vmem, size = 0x9000, scoped, tag = 'internal scratch']
  #allocation2 [shape = 'f32[6,128]{1,0:T(8,128)}', space=vmem, size = 0x1000, scoped, tag = 'scratch operand']
  %s0 = inlined_call_operand.vmem [shape: bf16[6,7680], index: 0, kind: input, shape index: {}]
  %s1 = inlined_call_operand.vmem [shape: bf16[7680,256], index: 1, kind: input, shape index: {}]
  %s2 = inlined_call_operand.vmem [shape: f32[1,256], index: 2, kind: input, shape index: {}]
  %s3 = inlined_call_operand.vmem [shape: f32[6,256], index: 3, kind: output, shape index: {}]
  %s4 = sld [smem:[#allocation0]]
  $region105: #{cnn_forward.3} parent=0
    _
  %s6 = ssub.s32 1, %s4
  %s7 = scalar_select 0, %s6, %s4
  $region1: #{cnn_forward.3} parent=0
    #allocation3 [shape = 'u8[1966080]{0}', space=vmem, size = 0x1e0000, scoped, tag = 'input window, operand 1']
    loop: start=0, step=1, limit=6
    $region2: #{cnn_forward.3} parent=1 // loop_pre_header
      _
    $region3: #{cnn_forward.3} parent=1 // loop_header
      %s9 = sphi 0, %s13
      %p10 = scmp.ge.s32.totalorder %s9, 6
      %s16 = sphi 0, %s28
      %s17 = sphi 0, %s24
      %s18 = sphi 0, %s16
      %s19 = sphi 0, %s17
      %s20 = sphi 0, %s18
      %s21 = sphi 0, %s19
      %s31 = sphi 0, %s33
      %s34 = sphi 0, %s31
      %s35 = sphi 0, %s34
      %s51 = sphi 0, %s35
      %s59 = sphi 0, %s61
      %s62 = sphi 0, %s59
      %s63 = sphi 0, %s62
      %s79 = sphi 0, %s63
      %s85 = sphi 0, %s87
      %s88 = sphi 0, %s85
      %s89 = sphi 0, %s88
      %s105 = sphi 0, %s89
      %s111 = sphi 0, %s113
      %s114 = sphi 0, %s111
      %s115 = sphi 0, %s114
      %s131 = sphi 0, %s115
    $region4: #{cnn_forward.3} parent=1 // loop_header_branch
      %12 = sbr.rel (%p10) target = $region8
    $region5: #{cnn_forward.3} parent=1 // loop_body
      %s14 = ssub.s32 %s9, 1
      %s15 = ssub.s32 %s9, 2
      %s22 = sadd.s32 1, %s17
      %p23 = scmp.ge.s32.totalorder %s22, 2
      %s24 = scalar_select %p23, 0, %s22
      %s25 = sadd.s32 1, %s16
      %s26 = scalar_select %p23, %s25, %s16
      %p27 = scmp.ge.s32.totalorder %s26, 2
      %s28 = scalar_select %p27, 0, %s26
      %s29 = ssub.s32 %s17, %s24
      %p30 = scmp.eq.s32.totalorder %s29, 0
      %s32 = sadd.s32 %s31, 1
      %s33 = scalar_select %p30, %s31, %s32
      %p36 = pneg %p30
      %p37 = scmp.eq.s32.totalorder %s9, 3
      %p38 = por %p36, %p37
      %p39 = scmp.ne.s32.totalorder %s31, %s34
      %p40 = scmp.eq.s32.totalorder %s9, 0
      %p41 = por %p39, %p40
      %p42 = scmp.ne.s32.totalorder %s31, %s34
      %p43 = scmp.eq.s32.totalorder %s14, 3
      %p44 = por %p42, %p43
      %p45 = scmp.ne.s32.totalorder %s34, %s35
      %p46 = scmp.eq.s32.totalorder %s14, 0
      %p47 = por %p45, %p46
      %p48 = scmp.ne.s32.totalorder %s34, %s35
      %p49 = scmp.eq.s32.totalorder %s15, 3
      %p50 = por %p48, %p49
      %p52 = scmp.ne.s32.totalorder %s35, %s51
      %p53 = scmp.eq.s32.totalorder %s15, 0
      %p54 = por %p52, %p53
      %s55 = ssub.s32 %s17, %s24
      %s56 = ssub.s32 %s16, %s28
      %s57 = sor.u32 %s55, %s56
      %p58 = scmp.eq.s32.totalorder %s57, 0
      %s60 = sadd.s32 %s59, 1
      %s61 = scalar_select %p58, %s59, %s60
      %p64 = pneg %p58
      %p65 = scmp.eq.s32.totalorder %s9, 3
      %p66 = por %p64, %p65
      %p67 = scmp.ne.s32.totalorder %s59, %s62
      %p68 = scmp.eq.s32.totalorder %s9, 0
      %p69 = por %p67, %p68
      %p70 = scmp.ne.s32.totalorder %s59, %s62
      %p71 = scmp.eq.s32.totalorder %s14, 3
      %p72 = por %p70, %p71
      %p73 = scmp.ne.s32.totalorder %s62, %s63
      %p74 = scmp.eq.s32.totalorder %s14, 0
      %p75 = por %p73, %p74
      %p76 = scmp.ne.s32.totalorder %s62, %s63
      %p77 = scmp.eq.s32.totalorder %s15, 3
      %p78 = por %p76, %p77
      %p80 = scmp.ne.s32.totalorder %s63, %s79
      %p81 = scmp.eq.s32.totalorder %s15, 0
      %p82 = por %p80, %p81
      %s83 = ssub.s32 %s16, %s28
      %p84 = scmp.eq.s32.totalorder %s83, 0
      %s86 = sadd.s32 %s85, 1
      %s87 = scalar_select %p84, %s85, %s86
      %p90 = pneg %p84
      %p91 = scmp.eq.s32.totalorder %s9, 3
      %p92 = por %p90, %p91
      %p93 = scmp.ne.s32.totalorder %s85, %s88
      %p94 = scmp.eq.s32.totalorder %s9, 0
      %p95 = por %p93, %p94
      %p96 = scmp.ne.s32.totalorder %s85, %s88
      %p97 = scmp.eq.s32.totalorder %s14, 3
      %p98 = por %p96, %p97
      %p99 = scmp.ne.s32.totalorder %s88, %s89
      %p100 = scmp.eq.s32.totalorder %s14, 0
      %p101 = por %p99, %p100
      %p102 = scmp.ne.s32.totalorder %s88, %s89
      %p103 = scmp.eq.s32.totalorder %s15, 3
      %p104 = por %p102, %p103
      %p106 = scmp.ne.s32.totalorder %s89, %s105
      %p107 = scmp.eq.s32.totalorder %s15, 0
      %p108 = por %p106, %p107
      %s109 = ssub.s32 %s16, %s28
      %p110 = scmp.eq.s32.totalorder %s109, 0
      %s112 = sadd.s32 %s111, 1
      %s113 = scalar_select %p110, %s111, %s112
      %p116 = pneg %p110
      %p117 = scmp.eq.s32.totalorder %s9, 3
      %p118 = por %p116, %p117
      %p119 = scmp.ne.s32.totalorder %s111, %s114
      %p120 = scmp.eq.s32.totalorder %s9, 0
      %p121 = por %p119, %p120
      %p122 = scmp.ne.s32.totalorder %s111, %s114
      %p123 = scmp.eq.s32.totalorder %s14, 3
      %p124 = por %p122, %p123
      %p125 = scmp.ne.s32.totalorder %s114, %s115
      %p126 = scmp.eq.s32.totalorder %s14, 0
      %p127 = por %p125, %p126
      %p128 = scmp.ne.s32.totalorder %s114, %s115
      %p129 = scmp.eq.s32.totalorder %s15, 3
      %p130 = por %p128, %p129
      %p132 = scmp.ne.s32.totalorder %s115, %s131
      %p133 = scmp.eq.s32.totalorder %s15, 0
      %p134 = por %p132, %p133
      %p135 = scmp.le.s32.totalorder 1, %s9
      %p136 = scmp.lt.s32.totalorder %s9, 5
      %p137 = pnand %p135, %p136
      %p138 = pneg %p137
      // Predicated region
      $region9: #{cnn_forward.3} parent=5 // pred_check
        _
      $region10: #{cnn_forward.3} parent=5 // pred_check_branch
        %140 = sbr.rel (%p137) target = $region12
      $region11: #{cnn_forward.3} parent=5 // pred_region
        %s141 = ssub.s32 %s9, 1
      $region12: #{cnn_forward.3} parent=5 // pred_fallthru
        _
      %p142 = scmp.lt.s32.totalorder %s9, 4
      // Predicated region
      $region13: #{cnn_forward.3} parent=5 // pred_check
        %p143 = pneg %p142
      $region14: #{cnn_forward.3} parent=5 // pred_check_branch
        %145 = sbr.rel (%p143) target = $region16
      $region15: #{cnn_forward.3} parent=5 // pred_region
        // Predicated region
        $region17: #{cnn_forward.3} parent=15 // pred_check
          %p146 = pneg %p41
        $region18: #{cnn_forward.3} parent=15 // pred_check_branch
          %148 = sbr.rel (%p146) target = $region20
        $region19: #{cnn_forward.3} parent=15 // pred_region
          %s149 = smul.u32 30, %s17
          %p150 = scmp.lt.s32.totalorder %s149, 59
          %s151 = scalar_select %p150, %s149, 59
          %s152 = smul.addr %s151, 4
          %s153 = scalar_lea.vmem %s0, %s152
          %s154 = smul.u32 30, %s17
        $region20: #{cnn_forward.3} parent=15 // pred_fallthru
          _
        // Predicated region
        $region21: #{cnn_forward.3} parent=15 // pred_check
          %p155 = pneg %p69
        $region22: #{cnn_forward.3} parent=15 // pred_check_branch
          %157 = sbr.rel (%p155) target = $region24
        $region23: #{cnn_forward.3} parent=15 // pred_region
          %s158 = sand.u32 %s59, 1
          %s159 = sand.u32 %s59, 1
          %s160 = smul.addr %s159, 1920
          %s161 = scalar_lea.vmem [#allocation3], %s160
          %s162 = smul.u32 480, %s17
          %s163 = smul.addr %s162, 2
          %s164 = sadd.s32 %s16, %s163
          %s165 = smul.addr %s164, 4
          %s166 = scalar_lea.vmem %s1, %s165
          // Predicated region
          $region25: #{cnn_forward.3} parent=23 // pred_check
            _
          $region26: #{cnn_forward.3} parent=23 // pred_check_branch
            %168 = sbr.rel (0) target = $region28
          $region27: #{cnn_forward.3} parent=23 // pred_region
            // Predicated region
            $region29: #{cnn_forward.3} parent=27 // pred_check
              _
            $region30: #{cnn_forward.3} parent=27 // pred_check_branch
              %170 = sbr.rel target = $region32
            $region31: #{cnn_forward.3} parent=27 // pred_region
              // Predicated region
              $region44: #{cnn_forward.3} parent=31 // pred_check
                _
              $region45: #{cnn_forward.3} parent=31 // pred_check_branch
                %1144 = sbr.rel target = $region47
              $region46: #{cnn_forward.3} parent=31 // pred_region
                loop: start=0, step=1, limit=0
                $region48: #{cnn_forward.3} parent=46 // loop_pre_header
                  _
                $region49: #{cnn_forward.3} parent=46 // loop_header
                  %s1146 = sphi 0, %s1150
                  %p1147 = scmp.ge.s32.totalorder %s1146, 0
                  %s1151 = sphi 0, %s2116
                  %s1152 = sphi %s166, %s2119
                  %s1153 = sphi %s161, %s2120
                $region50: #{cnn_forward.3} parent=46 // loop_header_branch
                  %1149 = sbr.rel (%p1147) target = $region54
                $region51: #{cnn_forward.3} parent=46 // loop_body
                  %v1154 = vld [vmem:[%s1152] sm:$0xff]
                  %1155 = vst [vmem:[%s1153] sm:$0xff] %v1154
                  %v1156 = vld [vmem:[%s1152 + $0x8] sm:$0xff]
                  %1157 = vst [vmem:[%s1153 + $0x4] sm:$0xff] %v1156
                  %v1158 = vld [vmem:[%s1152 + $0x10] sm:$0xff]
                  %1159 = vst [vmem:[%s1153 + $0x8] sm:$0xff] %v1158
                  %v1160 = vld [vmem:[%s1152 + $0x18] sm:$0xff]
                  %1161 = vst [vmem:[%s1153 + $0xc] sm:$0xff] %v1160
                  %v1162 = vld [vmem:[%s1152 + $0x20] sm:$0xff]
                  %1163 = vst [vmem:[%s1153 + $0x10] sm:$0xff] %v1162
                  %v1164 = vld [vmem:[%s1152 + $0x28] sm:$0xff]
                  %1165 = vst [vmem:[%s1153 + $0x14] sm:$0xff] %v1164
                  %v1166 = vld [vmem:[%s1152 + $0x30] sm:$0xff]
                  %1167 = vst [vmem:[%s1153 + $0x18] sm:$0xff] %v1166
                  %v1168 = vld [vmem:[%s1152 + $0x38] sm:$0xff]
                  %1169 = vst [vmem:[%s1153 + $0x1c] sm:$0xff] %v1168
                  %v1170 = vld [vmem:[%s1152 + $0x40] sm:$0xff]
                  %1171 = vst [vmem:[%s1153 + $0x20] sm:$0xff] %v1170
                  %v1172 = vld [vmem:[%s1152 + $0x48] sm:$0xff]
                  %1173 = vst [vmem:[%s1153 + $0x24] sm:$0xff] %v1172
                  %v1174 = vld [vmem:[%s1152 + $0x50] sm:$0xff]
                  %1175 = vst [vmem:[%s1153 + $0x28] sm:$0xff] %v1174
                  %v1176 = vld [vmem:[%s1152 + $0x58] sm:$0xff]
                  %1177 = vst [vmem:[%s1153 + $0x2c] sm:$0xff] %v1176
                  %v1178 = vld [vmem:[%s1152 + $0x60] sm:$0xff]
                  %1179 = vst [vmem:[%s1153 + $0x30] sm:$0xff] %v1178
                  %v1180 = vld [vmem:[%s1152 + $0x68] sm:$0xff]
                  %1181 = vst [vmem:[%s1153 + $0x34] sm:$0xff] %v1180
                  %v1182 = vld [vmem:[%s1152 + $0x70] sm:$0xff]
                  %1183 = vst [vmem:[%s1153 + $0x38] sm:$0xff] %v1182
                  %v1184 = vld [vmem:[%s1152 + $0x78] sm:$0xff]
                  %1185 = vst [vmem:[%s1153 + $0x3c] sm:$0xff] %v1184
                  %v1186 = vld [vmem:[%s1152 + $0x80] sm:$0xff]
                  %1187 = vst [vmem:[%s1153 + $0x40] sm:$0xff] %v1186
                  %v1188 = vld [vmem:[%s1152 + $0x88] sm:$0xff]
                  %1189 = vst [vmem:[%s1153 + $0x44] sm:$0xff] %v1188
                  %v1190 = vld [vmem:[%s1152 + $0x90] sm:$0xff]
                  %1191 = vst [vmem:[%s1153 + $0x48] sm:$0xff] %v1190
                  %v1192 = vld [vmem:[%s1152 + $0x98] sm:$0xff]
                  %1193 = vst [vmem:[%s1153 + $0x4c] sm:$0xff] %v1192
                  %v1194 = vld [vmem:[%s1152 + $0xa0] sm:$0xff]
                  %1195 = vst [vmem:[%s1153 + $0x50] sm:$0xff] %v1194
                  %v1196 = vld [vmem:[%s1152 + $0xa8] sm:$0xff]
                  %1197 = vst [vmem:[%s1153 + $0x54] sm:$0xff] %v1196
                  %v1198 = vld [vmem:[%s1152 + $0xb0] sm:$0xff]
                  %1199 = vst [vmem:[%s1153 + $0x58] sm:$0xff] %v1198
                  %v1200 = vld [vmem:[%s1152 + $0xb8] sm:$0xff]
                  %1201 = vst [vmem:[%s1153 + $0x5c] sm:$0xff] %v1200
                  %v1202 = vld [vmem:[%s1152 + $0xc0] sm:$0xff]
                  %1203 = vst [vmem:[%s1153 + $0x60] sm:$0xff] %v1202
                  %v1204 = vld [vmem:[%s1152 + $0xc8] sm:$0xff]
                  %1205 = vst [vmem:[%s1153 + $0x64] sm:$0xff] %v1204
                  %v1206 = vld [vmem:[%s1152 + $0xd0] sm:$0xff]
                  %1207 = vst [vmem:[%s1153 + $0x68] sm:$0xff] %v1206
                  %v1208 = vld [vmem:[%s1152 + $0xd8] sm:$0xff]
                  %1209 = vst [vmem:[%s1153 + $0x6c] sm:$0xff] %v1208
                  %v1210 = vld [vmem:[%s1152 + $0xe0] sm:$0xff]
                  %1211 = vst [vmem:[%s1153 + $0x70] sm:$0xff] %v1210
                  %v1212 = vld [vmem:[%s1152 + $0xe8] sm:$0xff]
                  %1213 = vst [vmem:[%s1153 + $0x74] sm:$0xff] %v1212
                  %v1214 = vld [vmem:[%s1152 + $0xf0] sm:$0xff]
                  %1215 = vst [vmem:[%s1153 + $0x78] sm:$0xff] %v1214
                  %v1216 = vld [vmem:[%s1152 + $0xf8] sm:$0xff]
                  %1217 = vst [vmem:[%s1153 + $0x7c] sm:$0xff] %v1216
                  %v1218 = vld [vmem:[%s1152 + $0x100] sm:$0xff]
                  %1219 = vst [vmem:[%s1153 + $0x80] sm:$0xff] %v1218
                  %v1220 = vld [vmem:[%s1152 + $0x108] sm:$0xff]
                  %1221 = vst [vmem:[%s1153 + $0x84] sm:$0xff] %v1220
                  %v1222 = vld [vmem:[%s1152 + $0x110] sm:$0xff]
                  %1223 = vst [vmem:[%s1153 + $0x88] sm:$0xff] %v1222
                  %v1224 = vld [vmem:[%s1152 + $0x118] sm:$0xff]
                  %1225 = vst [vmem:[%s1153 + $0x8c] sm:$0xff] %v1224
                  %v1226 = vld [vmem:[%s1152 + $0x120] sm:$0xff]
                  %1227 = vst [vmem:[%s1153 + $0x90] sm:$0xff] %v1226
                  %v1228 = vld [vmem:[%s1152 + $0x128] sm:$0xff]
                  %1229 = vst [vmem:[%s1153 + $0x94] sm:$0xff] %v1228
                  %v1230 = vld [vmem:[%s1152 + $0x130] sm:$0xff]
                  %1231 = vst [vmem:[%s1153 + $0x98] sm:$0xff] %v1230
                  %v1232 = vld [vmem:[%s1152 + $0x138] sm:$0xff]
                  %1233 = vst [vmem:[%s1153 + $0x9c] sm:$0xff] %v1232
                  %v1234 = vld [vmem:[%s1152 + $0x140] sm:$0xff]
                  %1235 = vst [vmem:[%s1153 + $0xa0] sm:$0xff] %v1234
                  %v1236 = vld [vmem:[%s1152 + $0x148] sm:$0xff]
                  %1237 = vst [vmem:[%s1153 + $0xa4] sm:$0xff] %v1236
                  %v1238 = vld [vmem:[%s1152 + $0x150] sm:$0xff]
                  %1239 = vst [vmem:[%s1153 + $0xa8] sm:$0xff] %v1238
                  %v1240 = vld [vmem:[%s1152 + $0x158] sm:$0xff]
                  %1241 = vst [vmem:[%s1153 + $0xac] sm:$0xff] %v1240
                  %v1242 = vld [vmem:[%s1152 + $0x160] sm:$0xff]
                  %1243 = vst [vmem:[%s1153 + $0xb0] sm:$0xff] %v1242
                  %v1244 = vld [vmem:[%s1152 + $0x168] sm:$0xff]
                  %1245 = vst [vmem:[%s1153 + $0xb4] sm:$0xff] %v1244
                  %v1246 = vld [vmem:[%s1152 + $0x170] sm:$0xff]
                  %1247 = vst [vmem:[%s1153 + $0xb8] sm:$0xff] %v1246
                  %v1248 = vld [vmem:[%s1152 + $0x178] sm:$0xff]
                  %1249 = vst [vmem:[%s1153 + $0xbc] sm:$0xff] %v1248
                  %v1250 = vld [vmem:[%s1152 + $0x180] sm:$0xff]
                  %1251 = vst [vmem:[%s1153 + $0xc0] sm:$0xff] %v1250
                  %v1252 = vld [vmem:[%s1152 + $0x188] sm:$0xff]
                  %1253 = vst [vmem:[%s1153 + $0xc4] sm:$0xff] %v1252
                  %v1254 = vld [vmem:[%s1152 + $0x190] sm:$0xff]
                  %1255 = vst [vmem:[%s1153 + $0xc8] sm:$0xff] %v1254
                  %v1256 = vld [vmem:[%s1152 + $0x198] sm:$0xff]
                  %1257 = vst [vmem:[%s1153 + $0xcc] sm:$0xff] %v1256
                  %v1258 = vld [vmem:[%s1152 + $0x1a0] sm:$0xff]
                  %1259 = vst [vmem:[%s1153 + $0xd0] sm:$0xff] %v1258
                  %v1260 = vld [vmem:[%s1152 + $0x1a8] sm:$0xff]
                  %1261 = vst [vmem:[%s1153 + $0xd4] sm:$0xff] %v1260
                  %v1262 = vld [vmem:[%s1152 + $0x1b0] sm:$0xff]
                  %1263 = vst [vmem:[%s1153 + $0xd8] sm:$0xff] %v1262
                  %v1264 = vld [vmem:[%s1152 + $0x1b8] sm:$0xff]
                  %1265 = vst [vmem:[%s1153 + $0xdc] sm:$0xff] %v1264
                  %v1266 = vld [vmem:[%s1152 + $0x1c0] sm:$0xff]
                  %1267 = vst [vmem:[%s1153 + $0xe0] sm:$0xff] %v1266
                  %v1268 = vld [vmem:[%s1152 + $0x1c8] sm:$0xff]
                  %1269 = vst [vmem:[%s1153 + $0xe4] sm:$0xff] %v1268
                  %v1270 = vld [vmem:[%s1152 + $0x1d0] sm:$0xff]
                  %1271 = vst [vmem:[%s1153 + $0xe8] sm:$0xff] %v1270
                  %v1272 = vld [vmem:[%s1152 + $0x1d8] sm:$0xff]
                  %1273 = vst [vmem:[%s1153 + $0xec] sm:$0xff] %v1272
                  %v1274 = vld [vmem:[%s1152 + $0x1e0] sm:$0xff]
                  %1275 = vst [vmem:[%s1153 + $0xf0] sm:$0xff] %v1274
                  %v1276 = vld [vmem:[%s1152 + $0x1e8] sm:$0xff]
                  %1277 = vst [vmem:[%s1153 + $0xf4] sm:$0xff] %v1276
                  %v1278 = vld [vmem:[%s1152 + $0x1f0] sm:$0xff]
                  %1279 = vst [vmem:[%s1153 + $0xf8] sm:$0xff] %v1278
                  %v1280 = vld [vmem:[%s1152 + $0x1f8] sm:$0xff]
                  %1281 = vst [vmem:[%s1153 + $0xfc] sm:$0xff] %v1280
                  %v1282 = vld [vmem:[%s1152 + $0x200] sm:$0xff]
                  %1283 = vst [vmem:[%s1153 + $0x100] sm:$0xff] %v1282
                  %v1284 = vld [vmem:[%s1152 + $0x208] sm:$0xff]
                  %1285 = vst [vmem:[%s1153 + $0x104] sm:$0xff] %v1284
                  %v1286 = vld [vmem:[%s1152 + $0x210] sm:$0xff]
                  %1287 = vst [vmem:[%s1153 + $0x108] sm:$0xff] %v1286
                  %v1288 = vld [vmem:[%s1152 + $0x218] sm:$0xff]
                  %1289 = vst [vmem:[%s1153 + $0x10c] sm:$0xff] %v1288
                  %v1290 = vld [vmem:[%s1152 + $0x220] sm:$0xff]
                  %1291 = vst [vmem:[%s1153 + $0x110] sm:$0xff] %v1290
                  %v1292 = vld [vmem:[%s1152 + $0x228] sm:$0xff]
                  %1293 = vst [vmem:[%s1153 + $0x114] sm:$0xff] %v1292
                  %v1294 = vld [vmem:[%s1152 + $0x230] sm:$0xff]
                  %1295 = vst [vmem:[%s1153 + $0x118] sm:$0xff] %v1294
                  %v1296 = vld [vmem:[%s1152 + $0x238] sm:$0xff]
                  %1297 = vst [vmem:[%s1153 + $0x11c] sm:$0xff] %v1296
                  %v1298 = vld [vmem:[%s1152 + $0x240] sm:$0xff]
                  %1299 = vst [vmem:[%s1153 + $0x120] sm:$0xff] %v1298
                  %v1300 = vld [vmem:[%s1152 + $0x248] sm:$0xff]
                  %1301 = vst [vmem:[%s1153 + $0x124] sm:$0xff] %v1300
                  %v1302 = vld [vmem:[%s1152 + $0x250] sm:$0xff]
                  %1303 = vst [vmem:[%s1153 + $0x128] sm:$0xff] %v1302
                  %v1304 = vld [vmem:[%s1152 + $0x258] sm:$0xff]
                  %1305 = vst [vmem:[%s1153 + $0x12c] sm:$0xff] %v1304
                  %v1306 = vld [vmem:[%s1152 + $0x260] sm:$0xff]
                  %1307 = vst [vmem:[%s1153 + $0x130] sm:$0xff] %v1306
                  %v1308 = vld [vmem:[%s1152 + $0x268] sm:$0xff]
                  %1309 = vst [vmem:[%s1153 + $0x134] sm:$0xff] %v1308
                  %v1310 = vld [vmem:[%s1152 + $0x270] sm:$0xff]
                  %1311 = vst [vmem:[%s1153 + $0x138] sm:$0xff] %v1310
                  %v1312 = vld [vmem:[%s1152 + $0x278] sm:$0xff]
                  %1313 = vst [vmem:[%s1153 + $0x13c] sm:$0xff] %v1312
                  %v1314 = vld [vmem:[%s1152 + $0x280] sm:$0xff]
                  %1315 = vst [vmem:[%s1153 + $0x140] sm:$0xff] %v1314
                  %v1316 = vld [vmem:[%s1152 + $0x288] sm:$0xff]
                  %1317 = vst [vmem:[%s1153 + $0x144] sm:$0xff] %v1316
                  %v1318 = vld [vmem:[%s1152 + $0x290] sm:$0xff]
                  %1319 = vst [vmem:[%s1153 + $0x148] sm:$0xff] %v1318
                  %v1320 = vld [vmem:[%s1152 + $0x298] sm:$0xff]
                  %1321 = vst [vmem:[%s1153 + $0x14c] sm:$0xff] %v1320
                  %v1322 = vld [vmem:[%s1152 + $0x2a0] sm:$0xff]
                  %1323 = vst [vmem:[%s1153 + $0x150] sm:$0xff] %v1322
                  %v1324 = vld [vmem:[%s1152 + $0x2a8] sm:$0xff]
                  %1325 = vst [vmem:[%s1153 + $0x154] sm:$0xff] %v1324
                  %v1326 = vld [vmem:[%s1152 + $0x2b0] sm:$0xff]
                  %1327 = vst [vmem:[%s1153 + $0x158] sm:$0xff] %v1326
                  %v1328 = vld [vmem:[%s1152 + $0x2b8] sm:$0xff]
                  %1329 = vst [vmem:[%s1153 + $0x15c] sm:$0xff] %v1328
                  %v1330 = vld [vmem:[%s1152 + $0x2c0] sm:$0xff]
                  %1331 = vst [vmem:[%s1153 + $0x160] sm:$0xff] %v1330
                  %v1332 = vld [vmem:[%s1152 + $0x2c8] sm:$0xff]
                  %1333 = vst [vmem:[%s1153 + $0x164] sm:$0xff] %v1332
                  %v1334 = vld [vmem:[%s1152 + $0x2d0] sm:$0xff]
                  %1335 = vst [vmem:[%s1153 + $0x168] sm:$0xff] %v1334
                  %v1336 = vld [vmem:[%s1152 + $0x2d8] sm:$0xff]
                  %1337 = vst [vmem:[%s1153 + $0x16c] sm:$0xff] %v1336
                  %v1338 = vld [vmem:[%s1152 + $0x2e0] sm:$0xff]
                  %1339 = vst [vmem:[%s1153 + $0x170] sm:$0xff] %v1338
                  %v1340 = vld [vmem:[%s1152 + $0x2e8] sm:$0xff]
                  %1341 = vst [vmem:[%s1153 + $0x174] sm:$0xff] %v1340
                  %v1342 = vld [vmem:[%s1152 + $0x2f0] sm:$0xff]
                  %1343 = vst [vmem:[%s1153 + $0x178] sm:$0xff] %v1342
                  %v1344 = vld [vmem:[%s1152 + $0x2f8] sm:$0xff]
                  %1345 = vst [vmem:[%s1153 + $0x17c] sm:$0xff] %v1344
                  %v1346 = vld [vmem:[%s1152 + $0x300] sm:$0xff]
                  %1347 = vst [vmem:[%s1153 + $0x180] sm:$0xff] %v1346
                  %v1348 = vld [vmem:[%s1152 + $0x308] sm:$0xff]
                  %1349 = vst [vmem:[%s1153 + $0x184] sm:$0xff] %v1348
                  %v1350 = vld [vmem:[%s1152 + $0x310] sm:$0xff]
                  %1351 = vst [vmem:[%s1153 + $0x188] sm:$0xff] %v1350
                  %v1352 = vld [vmem:[%s1152 + $0x318] sm:$0xff]
                  %1353 = vst [vmem:[%s1153 + $0x18c] sm:$0xff] %v1352
                  %v1354 = vld [vmem:[%s1152 + $0x320] sm:$0xff]
                  %1355 = vst [vmem:[%s1153 + $0x190] sm:$0xff] %v1354
                  %v1356 = vld [vmem:[%s1152 + $0x328] sm:$0xff]
                  %1357 = vst [vmem:[%s1153 + $0x194] sm:$0xff] %v1356
                  %v1358 = vld [vmem:[%s1152 + $0x330] sm:$0xff]
                  %1359 = vst [vmem:[%s1153 + $0x198] sm:$0xff] %v1358
                  %v1360 = vld [vmem:[%s1152 + $0x338] sm:$0xff]
                  %1361 = vst [vmem:[%s1153 + $0x19c] sm:$0xff] %v1360
                  %v1362 = vld [vmem:[%s1152 + $0x340] sm:$0xff]
                  %1363 = vst [vmem:[%s1153 + $0x1a0] sm:$0xff] %v1362
                  %v1364 = vld [vmem:[%s1152 + $0x348] sm:$0xff]
                  %1365 = vst [vmem:[%s1153 + $0x1a4] sm:$0xff] %v1364
                  %v1366 = vld [vmem:[%s1152 + $0x350] sm:$0xff]
                  %1367 = vst [vmem:[%s1153 + $0x1a8] sm:$0xff] %v1366
                  %v1368 = vld [vmem:[%s1152 + $0x358] sm:$0xff]
                  %1369 = vst [vmem:[%s1153 + $0x1ac] sm:$0xff] %v1368
                  %v1370 = vld [vmem:[%s1152 + $0x360] sm:$0xff]
                  %1371 = vst [vmem:[%s1153 + $0x1b0] sm:$0xff] %v1370
                  %v1372 = vld [vmem:[%s1152 + $0x368] sm:$0xff]
                  %1373 = vst [vmem:[%s1153 + $0x1b4] sm:$0xff] %v1372
                  %v1374 = vld [vmem:[%s1152 + $0x370] sm:$0xff]
                  %1375 = vst [vmem:[%s1153 + $0x1b8] sm:$0xff] %v1374
                  %v1376 = vld [vmem:[%s1152 + $0x378] sm:$0xff]
                  %1377 = vst [vmem:[%s1153 + $0x1bc] sm:$0xff] %v1376
                  %v1378 = vld [vmem:[%s1152 + $0x380] sm:$0xff]
                  %1379 = vst [vmem:[%s1153 + $0x1c0] sm:$0xff] %v1378
                  %v1380 = vld [vmem:[%s1152 + $0x388] sm:$0xff]
                  %1381 = vst [vmem:[%s1153 + $0x1c4] sm:$0xff] %v1380
                  %v1382 = vld [vmem:[%s1152 + $0x390] sm:$0xff]
                  %1383 = vst [vmem:[%s1153 + $0x1c8] sm:$0xff] %v1382
                  %v1384 = vld [vmem:[%s1152 + $0x398] sm:$0xff]
                  %1385 = vst [vmem:[%s1153 + $0x1cc] sm:$0xff] %v1384
                  %v1386 = vld [vmem:[%s1152 + $0x3a0] sm:$0xff]
                  %1387 = vst [vmem:[%s1153 + $0x1d0] sm:$0xff] %v1386
                  %v1388 = vld [vmem:[%s1152 + $0x3a8] sm:$0xff]
                  %1389 = vst [vmem:[%s1153 + $0x1d4] sm:$0xff] %v1388
                  %v1390 = vld [vmem:[%s1152 + $0x3b0] sm:$0xff]
                  %1391 = vst [vmem:[%s1153 + $0x1d8] sm:$0xff] %v1390
                  %v1392 = vld [vmem:[%s1152 + $0x3b8] sm:$0xff]
                  %1393 = vst [vmem:[%s1153 + $0x1dc] sm:$0xff] %v1392
                  %v1394 = vld [vmem:[%s1152 + $0x3c0] sm:$0xff]
                  %1395 = vst [vmem:[%s1153 + $0x1e0] sm:$0xff] %v1394
                  %v1396 = vld [vmem:[%s1152 + $0x3c8] sm:$0xff]
                  %1397 = vst [vmem:[%s1153 + $0x1e4] sm:$0xff] %v1396
                  %v1398 = vld [vmem:[%s1152 + $0x3d0] sm:$0xff]
                  %1399 = vst [vmem:[%s1153 + $0x1e8] sm:$0xff] %v1398
                  %v1400 = vld [vmem:[%s1152 + $0x3d8] sm:$0xff]
                  %1401 = vst [vmem:[%s1153 + $0x1ec] sm:$0xff] %v1400
                  %v1402 = vld [vmem:[%s1152 + $0x3e0] sm:$0xff]
                  %1403 = vst [vmem:[%s1153 + $0x1f0] sm:$0xff] %v1402
                  %v1404 = vld [vmem:[%s1152 + $0x3e8] sm:$0xff]
                  %1405 = vst [vmem:[%s1153 + $0x1f4] sm:$0xff] %v1404
                  %v1406 = vld [vmem:[%s1152 + $0x3f0] sm:$0xff]
                  %1407 = vst [vmem:[%s1153 + $0x1f8] sm:$0xff] %v1406
                  %v1408 = vld [vmem:[%s1152 + $0x3f8] sm:$0xff]
                  %1409 = vst [vmem:[%s1153 + $0x1fc] sm:$0xff] %v1408
                  %v1410 = vld [vmem:[%s1152 + $0x400] sm:$0xff]
                  %1411 = vst [vmem:[%s1153 + $0x200] sm:$0xff] %v1410
                  %v1412 = vld [vmem:[%s1152 + $0x408] sm:$0xff]
                  %1413 = vst [vmem:[%s1153 + $0x204] sm:$0xff] %v1412
                  %v1414 = vld [vmem:[%s1152 + $0x410] sm:$0xff]
                  %1415 = vst [vmem:[%s1153 + $0x208] sm:$0xff] %v1414
                  %v1416 = vld [vmem:[%s1152 + $0x418] sm:$0xff]
                  %1417 = vst [vmem:[%s1153 + $0x20c] sm:$0xff] %v1416
                  %v1418 = vld [vmem:[%s1152 + $0x420] sm:$0xff]
                  %1419 = vst [vmem:[%s1153 + $0x210] sm:$0xff] %v1418
                  %v1420 = vld [vmem:[%s1152 + $0x428] sm:$0xff]
                  %1421 = vst [vmem:[%s1153 + $0x214] sm:$0xff] %v1420
                  %v1422 = vld [vmem:[%s1152 + $0x430] sm:$0xff]
                  %1423 = vst [vmem:[%s1153 + $0x218] sm:$0xff] %v1422
                  %v1424 = vld [vmem:[%s1152 + $0x438] sm:$0xff]
                  %1425 = vst [vmem:[%s1153 + $0x21c] sm:$0xff] %v1424
                  %v1426 = vld [vmem:[%s1152 + $0x440] sm:$0xff]
                  %1427 = vst [vmem:[%s1153 + $0x220] sm:$0xff] %v1426
                  %v1428 = vld [vmem:[%s1152 + $0x448] sm:$0xff]
                  %1429 = vst [vmem:[%s1153 + $0x224] sm:$0xff] %v1428
                  %v1430 = vld [vmem:[%s1152 + $0x450] sm:$0xff]
                  %1431 = vst [vmem:[%s1153 + $0x228] sm:$0xff] %v1430
                  %v1432 = vld [vmem:[%s1152 + $0x458] sm:$0xff]
                  %1433 = vst [vmem:[%s1153 + $0x22c] sm:$0xff] %v1432
                  %v1434 = vld [vmem:[%s1152 + $0x460] sm:$0xff]
                  %1435 = vst [vmem:[%s1153 + $0x230] sm:$0xff] %v1434
                  %v1436 = vld [vmem:[%s1152 + $0x468] sm:$0xff]
                  %1437 = vst [vmem:[%s1153 + $0x234] sm:$0xff] %v1436
                  %v1438 = vld [vmem:[%s1152 + $0x470] sm:$0xff]
                  %1439 = vst [vmem:[%s1153 + $0x238] sm:$0xff] %v1438
                  %v1440 = vld [vmem:[%s1152 + $0x478] sm:$0xff]
                  %1441 = vst [vmem:[%s1153 + $0x23c] sm:$0xff] %v1440
                  %v1442 = vld [vmem:[%s1152 + $0x480] sm:$0xff]
                  %1443 = vst [vmem:[%s1153 + $0x240] sm:$0xff] %v1442
                  %v1444 = vld [vmem:[%s1152 + $0x488] sm:$0xff]
                  %1445 = vst [vmem:[%s1153 + $0x244] sm:$0xff] %v1444
                  %v1446 = vld [vmem:[%s1152 + $0x490] sm:$0xff]
                  %1447 = vst [vmem:[%s1153 + $0x248] sm:$0xff] %v1446
                  %v1448 = vld [vmem:[%s1152 + $0x498] sm:$0xff]
                  %1449 = vst [vmem:[%s1153 + $0x24c] sm:$0xff] %v1448
                  %v1450 = vld [vmem:[%s1152 + $0x4a0] sm:$0xff]
                  %1451 = vst [vmem:[%s1153 + $0x250] sm:$0xff] %v1450
                  %v1452 = vld [vmem:[%s1152 + $0x4a8] sm:$0xff]
                  %1453 = vst [vmem:[%s1153 + $0x254] sm:$0xff] %v1452
                  %v1454 = vld [vmem:[%s1152 + $0x4b0] sm:$0xff]
                  %1455 = vst [vmem:[%s1153 + $0x258] sm:$0xff] %v1454
                  %v1456 = vld [vmem:[%s1152 + $0x4b8] sm:$0xff]
                  %1457 = vst [vmem:[%s1153 + $0x25c] sm:$0xff] %v1456
                  %v1458 = vld [vmem:[%s1152 + $0x4c0] sm:$0xff]
                  %1459 = vst [vmem:[%s1153 + $0x260] sm:$0xff] %v1458
                  %v1460 = vld [vmem:[%s1152 + $0x4c8] sm:$0xff]
                  %1461 = vst [vmem:[%s1153 + $0x264] sm:$0xff] %v1460
                  %v1462 = vld [vmem:[%s1152 + $0x4d0] sm:$0xff]
                  %1463 = vst [vmem:[%s1153 + $0x268] sm:$0xff] %v1462
                  %v1464 = vld [vmem:[%s1152 + $0x4d8] sm:$0xff]
                  %1465 = vst [vmem:[%s1153 + $0x26c] sm:$0xff] %v1464
                  %v1466 = vld [vmem:[%s1152 + $0x4e0] sm:$0xff]
                  %1467 = vst [vmem:[%s1153 + $0x270] sm:$0xff] %v1466
                  %v1468 = vld [vmem:[%s1152 + $0x4e8] sm:$0xff]
                  %1469 = vst [vmem:[%s1153 + $0x274] sm:$0xff] %v1468
                  %v1470 = vld [vmem:[%s1152 + $0x4f0] sm:$0xff]
                  %1471 = vst [vmem:[%s1153 + $0x278] sm:$0xff] %v1470
                  %v1472 = vld [vmem:[%s1152 + $0x4f8] sm:$0xff]
                  %1473 = vst [vmem:[%s1153 + $0x27c] sm:$0xff] %v1472
                  %v1474 = vld [vmem:[%s1152 + $0x500] sm:$0xff]
                  %1475 = vst [vmem:[%s1153 + $0x280] sm:$0xff] %v1474
                  %v1476 = vld [vmem:[%s1152 + $0x508] sm:$0xff]
                  %1477 = vst [vmem:[%s1153 + $0x284] sm:$0xff] %v1476
                  %v1478 = vld [vmem:[%s1152 + $0x510] sm:$0xff]
                  %1479 = vst [vmem:[%s1153 + $0x288] sm:$0xff] %v1478
                  %v1480 = vld [vmem:[%s1152 + $0x518] sm:$0xff]
                  %1481 = vst [vmem:[%s1153 + $0x28c] sm:$0xff] %v1480
                  %v1482 = vld [vmem:[%s1152 + $0x520] sm:$0xff]
                  %1483 = vst [vmem:[%s1153 + $0x290] sm:$0xff] %v1482
                  %v1484 = vld [vmem:[%s1152 + $0x528] sm:$0xff]
                  %1485 = vst [vmem:[%s1153 + $0x294] sm:$0xff] %v1484
                  %v1486 = vld [vmem:[%s1152 + $0x530] sm:$0xff]
                  %1487 = vst [vmem:[%s1153 + $0x298] sm:$0xff] %v1486
                  %v1488 = vld [vmem:[%s1152 + $0x538] sm:$0xff]
                  %1489 = vst [vmem:[%s1153 + $0x29c] sm:$0xff] %v1488
                  %v1490 = vld [vmem:[%s1152 + $0x540] sm:$0xff]
                  %1491 = vst [vmem:[%s1153 + $0x2a0] sm:$0xff] %v1490
                  %v1492 = vld [vmem:[%s1152 + $0x548] sm:$0xff]
                  %1493 = vst [vmem:[%s1153 + $0x2a4] sm:$0xff] %v1492
                  %v1494 = vld [vmem:[%s1152 + $0x550] sm:$0xff]
                  %1495 = vst [vmem:[%s1153 + $0x2a8] sm:$0xff] %v1494
                  %v1496 = vld [vmem:[%s1152 + $0x558] sm:$0xff]
                  %1497 = vst [vmem:[%s1153 + $0x2ac] sm:$0xff] %v1496
                  %v1498 = vld [vmem:[%s1152 + $0x560] sm:$0xff]
                  %1499 = vst [vmem:[%s1153 + $0x2b0] sm:$0xff] %v1498
                  %v1500 = vld [vmem:[%s1152 + $0x568] sm:$0xff]
                  %1501 = vst [vmem:[%s1153 + $0x2b4] sm:$0xff] %v1500
                  %v1502 = vld [vmem:[%s1152 + $0x570] sm:$0xff]
                  %1503 = vst [vmem:[%s1153 + $0x2b8] sm:$0xff] %v1502
                  %v1504 = vld [vmem:[%s1152 + $0x578] sm:$0xff]
                  %1505 = vst [vmem:[%s1153 + $0x2bc] sm:$0xff] %v1504
                  %v1506 = vld [vmem:[%s1152 + $0x580] sm:$0xff]
                  %1507 = vst [vmem:[%s1153 + $0x2c0] sm:$0xff] %v1506
                  %v1508 = vld [vmem:[%s1152 + $0x588] sm:$0xff]
                  %1509 = vst [vmem:[%s1153 + $0x2c4] sm:$0xff] %v1508
                  %v1510 = vld [vmem:[%s1152 + $0x590] sm:$0xff]
                  %1511 = vst [vmem:[%s1153 + $0x2c8] sm:$0xff] %v1510
                  %v1512 = vld [vmem:[%s1152 + $0x598] sm:$0xff]
                  %1513 = vst [vmem:[%s1153 + $0x2cc] sm:$0xff] %v1512
                  %v1514 = vld [vmem:[%s1152 + $0x5a0] sm:$0xff]
                  %1515 = vst [vmem:[%s1153 + $0x2d0] sm:$0xff] %v1514
                  %v1516 = vld [vmem:[%s1152 + $0x5a8] sm:$0xff]
                  %1517 = vst [vmem:[%s1153 + $0x2d4] sm:$0xff] %v1516
                  %v1518 = vld [vmem:[%s1152 + $0x5b0] sm:$0xff]
                  %1519 = vst [vmem:[%s1153 + $0x2d8] sm:$0xff] %v1518
                  %v1520 = vld [vmem:[%s1152 + $0x5b8] sm:$0xff]
                  %1521 = vst [vmem:[%s1153 + $0x2dc] sm:$0xff] %v1520
                  %v1522 = vld [vmem:[%s1152 + $0x5c0] sm:$0xff]
                  %1523 = vst [vmem:[%s1153 + $0x2e0] sm:$0xff] %v1522
                  %v1524 = vld [vmem:[%s1152 + $0x5c8] sm:$0xff]
                  %1525 = vst [vmem:[%s1153 + $0x2e4] sm:$0xff] %v1524
                  %v1526 = vld [vmem:[%s1152 + $0x5d0] sm:$0xff]
                  %1527 = vst [vmem:[%s1153 + $0x2e8] sm:$0xff] %v1526
                  %v1528 = vld [vmem:[%s1152 + $0x5d8] sm:$0xff]
                  %1529 = vst [vmem:[%s1153 + $0x2ec] sm:$0xff] %v1528
                  %v1530 = vld [vmem:[%s1152 + $0x5e0] sm:$0xff]
                  %1531 = vst [vmem:[%s1153 + $0x2f0] sm:$0xff] %v1530
                  %v1532 = vld [vmem:[%s1152 + $0x5e8] sm:$0xff]
                  %1533 = vst [vmem:[%s1153 + $0x2f4] sm:$0xff] %v1532
                  %v1534 = vld [vmem:[%s1152 + $0x5f0] sm:$0xff]
                  %1535 = vst [vmem:[%s1153 + $0x2f8] sm:$0xff] %v1534
                  %v1536 = vld [vmem:[%s1152 + $0x5f8] sm:$0xff]
                  %1537 = vst [vmem:[%s1153 + $0x2fc] sm:$0xff] %v1536
                  %v1538 = vld [vmem:[%s1152 + $0x600] sm:$0xff]
                  %1539 = vst [vmem:[%s1153 + $0x300] sm:$0xff] %v1538
                  %v1540 = vld [vmem:[%s1152 + $0x608] sm:$0xff]
                  %1541 = vst [vmem:[%s1153 + $0x304] sm:$0xff] %v1540
                  %v1542 = vld [vmem:[%s1152 + $0x610] sm:$0xff]
                  %1543 = vst [vmem:[%s1153 + $0x308] sm:$0xff] %v1542
                  %v1544 = vld [vmem:[%s1152 + $0x618] sm:$0xff]
                  %1545 = vst [vmem:[%s1153 + $0x30c] sm:$0xff] %v1544
                  %v1546 = vld [vmem:[%s1152 + $0x620] sm:$0xff]
                  %1547 = vst [vmem:[%s1153 + $0x310] sm:$0xff] %v1546
                  %v1548 = vld [vmem:[%s1152 + $0x628] sm:$0xff]
                  %1549 = vst [vmem:[%s1153 + $0x314] sm:$0xff] %v1548
                  %v1550 = vld [vmem:[%s1152 + $0x630] sm:$0xff]
                  %1551 = vst [vmem:[%s1153 + $0x318] sm:$0xff] %v1550
                  %v1552 = vld [vmem:[%s1152 + $0x638] sm:$0xff]
                  %1553 = vst [vmem:[%s1153 + $0x31c] sm:$0xff] %v1552
                  %v1554 = vld [vmem:[%s1152 + $0x640] sm:$0xff]
                  %1555 = vst [vmem:[%s1153 + $0x320] sm:$0xff] %v1554
                  %v1556 = vld [vmem:[%s1152 + $0x648] sm:$0xff]
                  %1557 = vst [vmem:[%s1153 + $0x324] sm:$0xff] %v1556
                  %v1558 = vld [vmem:[%s1152 + $0x650] sm:$0xff]
                  %1559 = vst [vmem:[%s1153 + $0x328] sm:$0xff] %v1558
                  %v1560 = vld [vmem:[%s1152 + $0x658] sm:$0xff]
                  %1561 = vst [vmem:[%s1153 + $0x32c] sm:$0xff] %v1560
                  %v1562 = vld [vmem:[%s1152 + $0x660] sm:$0xff]
                  %1563 = vst [vmem:[%s1153 + $0x330] sm:$0xff] %v1562
                  %v1564 = vld [vmem:[%s1152 + $0x668] sm:$0xff]
                  %1565 = vst [vmem:[%s1153 + $0x334] sm:$0xff] %v1564
                  %v1566 = vld [vmem:[%s1152 + $0x670] sm:$0xff]
                  %1567 = vst [vmem:[%s1153 + $0x338] sm:$0xff] %v1566
                  %v1568 = vld [vmem:[%s1152 + $0x678] sm:$0xff]
                  %1569 = vst [vmem:[%s1153 + $0x33c] sm:$0xff] %v1568
                  %v1570 = vld [vmem:[%s1152 + $0x680] sm:$0xff]
                  %1571 = vst [vmem:[%s1153 + $0x340] sm:$0xff] %v1570
                  %v1572 = vld [vmem:[%s1152 + $0x688] sm:$0xff]
                  %1573 = vst [vmem:[%s1153 + $0x344] sm:$0xff] %v1572
                  %v1574 = vld [vmem:[%s1152 + $0x690] sm:$0xff]
                  %1575 = vst [vmem:[%s1153 + $0x348] sm:$0xff] %v1574
                  %v1576 = vld [vmem:[%s1152 + $0x698] sm:$0xff]
                  %1577 = vst [vmem:[%s1153 + $0x34c] sm:$0xff] %v1576
                  %v1578 = vld [vmem:[%s1152 + $0x6a0] sm:$0xff]
                  %1579 = vst [vmem:[%s1153 + $0x350] sm:$0xff] %v1578
                  %v1580 = vld [vmem:[%s1152 + $0x6a8] sm:$0xff]
                  %1581 = vst [vmem:[%s1153 + $0x354] sm:$0xff] %v1580
                  %v1582 = vld [vmem:[%s1152 + $0x6b0] sm:$0xff]
                  %1583 = vst [vmem:[%s1153 + $0x358] sm:$0xff] %v1582
                  %v1584 = vld [vmem:[%s1152 + $0x6b8] sm:$0xff]
                  %1585 = vst [vmem:[%s1153 + $0x35c] sm:$0xff] %v1584
                  %v1586 = vld [vmem:[%s1152 + $0x6c0] sm:$0xff]
                  %1587 = vst [vmem:[%s1153 + $0x360] sm:$0xff] %v1586
                  %v1588 = vld [vmem:[%s1152 + $0x6c8] sm:$0xff]
                  %1589 = vst [vmem:[%s1153 + $0x364] sm:$0xff] %v1588
                  %v1590 = vld [vmem:[%s1152 + $0x6d0] sm:$0xff]
                  %1591 = vst [vmem:[%s1153 + $0x368] sm:$0xff] %v1590
                  %v1592 = vld [vmem:[%s1152 + $0x6d8] sm:$0xff]
                  %1593 = vst [vmem:[%s1153 + $0x36c] sm:$0xff] %v1592
                  %v1594 = vld [vmem:[%s1152 + $0x6e0] sm:$0xff]
                  %1595 = vst [vmem:[%s1153 + $0x370] sm:$0xff] %v1594
                  %v1596 = vld [vmem:[%s1152 + $0x6e8] sm:$0xff]
                  %1597 = vst [vmem:[%s1153 + $0x374] sm:$0xff] %v1596
                  %v1598 = vld [vmem:[%s1152 + $0x6f0] sm:$0xff]
                  %1599 = vst [vmem:[%s1153 + $0x378] sm:$0xff] %v1598
                  %v1600 = vld [vmem:[%s1152 + $0x6f8] sm:$0xff]
                  %1601 = vst [vmem:[%s1153 + $0x37c] sm:$0xff] %v1600
                  %v1602 = vld [vmem:[%s1152 + $0x700] sm:$0xff]
                  %1603 = vst [vmem:[%s1153 + $0x380] sm:$0xff] %v1602
                  %v1604 = vld [vmem:[%s1152 + $0x708] sm:$0xff]
                  %1605 = vst [vmem:[%s1153 + $0x384] sm:$0xff] %v1604
                  %v1606 = vld [vmem:[%s1152 + $0x710] sm:$0xff]
                  %1607 = vst [vmem:[%s1153 + $0x388] sm:$0xff] %v1606
                  %v1608 = vld [vmem:[%s1152 + $0x718] sm:$0xff]
                  %1609 = vst [vmem:[%s1153 + $0x38c] sm:$0xff] %v1608
                  %v1610 = vld [vmem:[%s1152 + $0x720] sm:$0xff]
                  %1611 = vst [vmem:[%s1153 + $0x390] sm:$0xff] %v1610
                  %v1612 = vld [vmem:[%s1152 + $0x728] sm:$0xff]
                  %1613 = vst [vmem:[%s1153 + $0x394] sm:$0xff] %v1612
                  %v1614 = vld [vmem:[%s1152 + $0x730] sm:$0xff]
                  %1615 = vst [vmem:[%s1153 + $0x398] sm:$0xff] %v1614
                  %v1616 = vld [vmem:[%s1152 + $0x738] sm:$0xff]
                  %1617 = vst [vmem:[%s1153 + $0x39c] sm:$0xff] %v1616
                  %v1618 = vld [vmem:[%s1152 + $0x740] sm:$0xff]
                  %1619 = vst [vmem:[%s1153 + $0x3a0] sm:$0xff] %v1618
                  %v1620 = vld [vmem:[%s1152 + $0x748] sm:$0xff]
                  %1621 = vst [vmem:[%s1153 + $0x3a4] sm:$0xff] %v1620
                  %v1622 = vld [vmem:[%s1152 + $0x750] sm:$0xff]
                  %1623 = vst [vmem:[%s1153 + $0x3a8] sm:$0xff] %v1622
                  %v1624 = vld [vmem:[%s1152 + $0x758] sm:$0xff]
                  %1625 = vst [vmem:[%s1153 + $0x3ac] sm:$0xff] %v1624
                  %v1626 = vld [vmem:[%s1152 + $0x760] sm:$0xff]
                  %1627 = vst [vmem:[%s1153 + $0x3b0] sm:$0xff] %v1626
                  %v1628 = vld [vmem:[%s1152 + $0x768] sm:$0xff]
                  %1629 = vst [vmem:[%s1153 + $0x3b4] sm:$0xff] %v1628
                  %v1630 = vld [vmem:[%s1152 + $0x770] sm:$0xff]
                  %1631 = vst [vmem:[%s1153 + $0x3b8] sm:$0xff] %v1630
                  %v1632 = vld [vmem:[%s1152 + $0x778] sm:$0xff]
                  %1633 = vst [vmem:[%s1153 + $0x3bc] sm:$0xff] %v1632
                  %v1634 = vld [vmem:[%s1152 + $0x780] sm:$0xff]
                  %1635 = vst [vmem:[%s1153 + $0x3c0] sm:$0xff] %v1634
                  %v1636 = vld [vmem:[%s1152 + $0x788] sm:$0xff]
                  %1637 = vst [vmem:[%s1153 + $0x3c4] sm:$0xff] %v1636
                  %v1638 = vld [vmem:[%s1152 + $0x790] sm:$0xff]
                  %1639 = vst [vmem:[%s1153 + $0x3c8] sm:$0xff] %v1638
                  %v1640 = vld [vmem:[%s1152 + $0x798] sm:$0xff]
                  %1641 = vst [vmem:[%s1153 + $0x3cc] sm:$0xff] %v1640
                  %v1642 = vld [vmem:[%s1152 + $0x7a0] sm:$0xff]
                  %1643 = vst [vmem:[%s1153 + $0x3d0] sm:$0xff] %v1642
                  %v1644 = vld [vmem:[%s1152 + $0x7a8] sm:$0xff]
                  %1645 = vst [vmem:[%s1153 + $0x3d4] sm:$0xff] %v1644
                  %v1646 = vld [vmem:[%s1152 + $0x7b0] sm:$0xff]
                  %1647 = vst [vmem:[%s1153 + $0x3d8] sm:$0xff] %v1646
                  %v1648 = vld [vmem:[%s1152 + $0x7b8] sm:$0xff]
                  %1649 = vst [vmem:[%s1153 + $0x3dc] sm:$0xff] %v1648
                  %v1650 = vld [vmem:[%s1152 + $0x7c0] sm:$0xff]
                  %1651 = vst [vmem:[%s1153 + $0x3e0] sm:$0xff] %v1650
                  %v1652 = vld [vmem:[%s1152 + $0x7c8] sm:$0xff]
                  %1653 = vst [vmem:[%s1153 + $0x3e4] sm:$0xff] %v1652
                  %v1654 = vld [vmem:[%s1152 + $0x7d0] sm:$0xff]
                  %1655 = vst [vmem:[%s1153 + $0x3e8] sm:$0xff] %v1654
                  %v1656 = vld [vmem:[%s1152 + $0x7d8] sm:$0xff]
                  %1657 = vst [vmem:[%s1153 + $0x3ec] sm:$0xff] %v1656
                  %v1658 = vld [vmem:[%s1152 + $0x7e0] sm:$0xff]
                  %1659 = vst [vmem:[%s1153 + $0x3f0] sm:$0xff] %v1658
                  %v1660 = vld [vmem:[%s1152 + $0x7e8] sm:$0xff]
                  %1661 = vst [vmem:[%s1153 + $0x3f4] sm:$0xff] %v1660
                  %v1662 = vld [vmem:[%s1152 + $0x7f0] sm:$0xff]
                  %1663 = vst [vmem:[%s1153 + $0x3f8] sm:$0xff] %v1662
                  %v1664 = vld [vmem:[%s1152 + $0x7f8] sm:$0xff]
                  %1665 = vst [vmem:[%s1153 + $0x3fc] sm:$0xff] %v1664
                  %v1666 = vld [vmem:[%s1152 + $0x800] sm:$0xff]
                  %1667 = vst [vmem:[%s1153 + $0x400] sm:$0xff] %v1666
                  %v1668 = vld [vmem:[%s1152 + $0x808] sm:$0xff]
                  %1669 = vst [vmem:[%s1153 + $0x404] sm:$0xff] %v1668
                  %v1670 = vld [vmem:[%s1152 + $0x810] sm:$0xff]
                  %1671 = vst [vmem:[%s1153 + $0x408] sm:$0xff] %v1670
                  %v1672 = vld [vmem:[%s1152 + $0x818] sm:$0xff]
                  %1673 = vst [vmem:[%s1153 + $0x40c] sm:$0xff] %v1672
                  %v1674 = vld [vmem:[%s1152 + $0x820] sm:$0xff]
                  %1675 = vst [vmem:[%s1153 + $0x410] sm:$0xff] %v1674
                  %v1676 = vld [vmem:[%s1152 + $0x828] sm:$0xff]
                  %1677 = vst [vmem:[%s1153 + $0x414] sm:$0xff] %v1676
                  %v1678 = vld [vmem:[%s1152 + $0x830] sm:$0xff]
                  %1679 = vst [vmem:[%s1153 + $0x418] sm:$0xff] %v1678
                  %v1680 = vld [vmem:[%s1152 + $0x838] sm:$0xff]
                  %1681 = vst [vmem:[%s1153 + $0x41c] sm:$0xff] %v1680
                  %v1682 = vld [vmem:[%s1152 + $0x840] sm:$0xff]
                  %1683 = vst [vmem:[%s1153 + $0x420] sm:$0xff] %v1682
                  %v1684 = vld [vmem:[%s1152 + $0x848] sm:$0xff]
                  %1685 = vst [vmem:[%s1153 + $0x424] sm:$0xff] %v1684
                  %v1686 = vld [vmem:[%s1152 + $0x850] sm:$0xff]
                  %1687 = vst [vmem:[%s1153 + $0x428] sm:$0xff] %v1686
                  %v1688 = vld [vmem:[%s1152 + $0x858] sm:$0xff]
                  %1689 = vst [vmem:[%s1153 + $0x42c] sm:$0xff] %v1688
                  %v1690 = vld [vmem:[%s1152 + $0x860] sm:$0xff]
                  %1691 = vst [vmem:[%s1153 + $0x430] sm:$0xff] %v1690
                  %v1692 = vld [vmem:[%s1152 + $0x868] sm:$0xff]
                  %1693 = vst [vmem:[%s1153 + $0x434] sm:$0xff] %v1692
                  %v1694 = vld [vmem:[%s1152 + $0x870] sm:$0xff]
                  %1695 = vst [vmem:[%s1153 + $0x438] sm:$0xff] %v1694
                  %v1696 = vld [vmem:[%s1152 + $0x878] sm:$0xff]
                  %1697 = vst [vmem:[%s1153 + $0x43c] sm:$0xff] %v1696
                  %v1698 = vld [vmem:[%s1152 + $0x880] sm:$0xff]
                  %1699 = vst [vmem:[%s1153 + $0x440] sm:$0xff] %v1698
                  %v1700 = vld [vmem:[%s1152 + $0x888] sm:$0xff]
                  %1701 = vst [vmem:[%s1153 + $0x444] sm:$0xff] %v1700
                  %v1702 = vld [vmem:[%s1152 + $0x890] sm:$0xff]
                  %1703 = vst [vmem:[%s1153 + $0x448] sm:$0xff] %v1702
                  %v1704 = vld [vmem:[%s1152 + $0x898] sm:$0xff]
                  %1705 = vst [vmem:[%s1153 + $0x44c] sm:$0xff] %v1704
                  %v1706 = vld [vmem:[%s1152 + $0x8a0] sm:$0xff]
                  %1707 = vst [vmem:[%s1153 + $0x450] sm:$0xff] %v1706
                  %v1708 = vld [vmem:[%s1152 + $0x8a8] sm:$0xff]
                  %1709 = vst [vmem:[%s1153 + $0x454] sm:$0xff] %v1708
                  %v1710 = vld [vmem:[%s1152 + $0x8b0] sm:$0xff]
                  %1711 = vst [vmem:[%s1153 + $0x458] sm:$0xff] %v1710
                  %v1712 = vld [vmem:[%s1152 + $0x8b8] sm:$0xff]
                  %1713 = vst [vmem:[%s1153 + $0x45c] sm:$0xff] %v1712
                  %v1714 = vld [vmem:[%s1152 + $0x8c0] sm:$0xff]
                  %1715 = vst [vmem:[%s1153 + $0x460] sm:$0xff] %v1714
                  %v1716 = vld [vmem:[%s1152 + $0x8c8] sm:$0xff]
                  %1717 = vst [vmem:[%s1153 + $0x464] sm:$0xff] %v1716
                  %v1718 = vld [vmem:[%s1152 + $0x8d0] sm:$0xff]
                  %1719 = vst [vmem:[%s1153 + $0x468] sm:$0xff] %v1718
                  %v1720 = vld [vmem:[%s1152 + $0x8d8] sm:$0xff]
                  %1721 = vst [vmem:[%s1153 + $0x46c] sm:$0xff] %v1720
                  %v1722 = vld [vmem:[%s1152 + $0x8e0] sm:$0xff]
                  %1723 = vst [vmem:[%s1153 + $0x470] sm:$0xff] %v1722
                  %v1724 = vld [vmem:[%s1152 + $0x8e8] sm:$0xff]
                  %1725 = vst [vmem:[%s1153 + $0x474] sm:$0xff] %v1724
                  %v1726 = vld [vmem:[%s1152 + $0x8f0] sm:$0xff]
                  %1727 = vst [vmem:[%s1153 + $0x478] sm:$0xff] %v1726
                  %v1728 = vld [vmem:[%s1152 + $0x8f8] sm:$0xff]
                  %1729 = vst [vmem:[%s1153 + $0x47c] sm:$0xff] %v1728
                  %v1730 = vld [vmem:[%s1152 + $0x900] sm:$0xff]
                  %1731 = vst [vmem:[%s1153 + $0x480] sm:$0xff] %v1730
                  %v1732 = vld [vmem:[%s1152 + $0x908] sm:$0xff]
                  %1733 = vst [vmem:[%s1153 + $0x484] sm:$0xff] %v1732
                  %v1734 = vld [vmem:[%s1152 + $0x910] sm:$0xff]
                  %1735 = vst [vmem:[%s1153 + $0x488] sm:$0xff] %v1734
                  %v1736 = vld [vmem:[%s1152 + $0x918] sm:$0xff]
                  %1737 = vst [vmem:[%s1153 + $0x48c] sm:$0xff] %v1736
                  %v1738 = vld [vmem:[%s1152 + $0x920] sm:$0xff]
                  %1739 = vst [vmem:[%s1153 + $0x490] sm:$0xff] %v1738
                  %v1740 = vld [vmem:[%s1152 + $0x928] sm:$0xff]
                  %1741 = vst [vmem:[%s1153 + $0x494] sm:$0xff] %v1740
                  %v1742 = vld [vmem:[%s1152 + $0x930] sm:$0xff]
                  %1743 = vst [vmem:[%s1153 + $0x498] sm:$0xff] %v1742
                  %v1744 = vld [vmem:[%s1152 + $0x938] sm:$0xff]
                  %1745 = vst [vmem:[%s1153 + $0x49c] sm:$0xff] %v1744
                  %v1746 = vld [vmem:[%s1152 + $0x940] sm:$0xff]
                  %1747 = vst [vmem:[%s1153 + $0x4a0] sm:$0xff] %v1746
                  %v1748 = vld [vmem:[%s1152 + $0x948] sm:$0xff]
                  %1749 = vst [vmem:[%s1153 + $0x4a4] sm:$0xff] %v1748
                  %v1750 = vld [vmem:[%s1152 + $0x950] sm:$0xff]
                  %1751 = vst [vmem:[%s1153 + $0x4a8] sm:$0xff] %v1750
                  %v1752 = vld [vmem:[%s1152 + $0x958] sm:$0xff]
                  %1753 = vst [vmem:[%s1153 + $0x4ac] sm:$0xff] %v1752
                  %v1754 = vld [vmem:[%s1152 + $0x960] sm:$0xff]
                  %1755 = vst [vmem:[%s1153 + $0x4b0] sm:$0xff] %v1754
                  %v1756 = vld [vmem:[%s1152 + $0x968] sm:$0xff]
                  %1757 = vst [vmem:[%s1153 + $0x4b4] sm:$0xff] %v1756
                  %v1758 = vld [vmem:[%s1152 + $0x970] sm:$0xff]
                  %1759 = vst [vmem:[%s1153 + $0x4b8] sm:$0xff] %v1758
                  %v1760 = vld [vmem:[%s1152 + $0x978] sm:$0xff]
                  %1761 = vst [vmem:[%s1153 + $0x4bc] sm:$0xff] %v1760
                  %v1762 = vld [vmem:[%s1152 + $0x980] sm:$0xff]
                  %1763 = vst [vmem:[%s1153 + $0x4c0] sm:$0xff] %v1762
                  %v1764 = vld [vmem:[%s1152 + $0x988] sm:$0xff]
                  %1765 = vst [vmem:[%s1153 + $0x4c4] sm:$0xff] %v1764
                  %v1766 = vld [vmem:[%s1152 + $0x990] sm:$0xff]
                  %1767 = vst [vmem:[%s1153 + $0x4c8] sm:$0xff] %v1766
                  %v1768 = vld [vmem:[%s1152 + $0x998] sm:$0xff]
                  %1769 = vst [vmem:[%s1153 + $0x4cc] sm:$0xff] %v1768
                  %v1770 = vld [vmem:[%s1152 + $0x9a0] sm:$0xff]
                  %1771 = vst [vmem:[%s1153 + $0x4d0] sm:$0xff] %v1770
                  %v1772 = vld [vmem:[%s1152 + $0x9a8] sm:$0xff]
                  %1773 = vst [vmem:[%s1153 + $0x4d4] sm:$0xff] %v1772
                  %v1774 = vld [vmem:[%s1152 + $0x9b0] sm:$0xff]
                  %1775 = vst [vmem:[%s1153 + $0x4d8] sm:$0xff] %v1774
                  %v1776 = vld [vmem:[%s1152 + $0x9b8] sm:$0xff]
                  %1777 = vst [vmem:[%s1153 + $0x4dc] sm:$0xff] %v1776
                  %v1778 = vld [vmem:[%s1152 + $0x9c0] sm:$0xff]
                  %1779 = vst [vmem:[%s1153 + $0x4e0] sm:$0xff] %v1778
                  %v1780 = vld [vmem:[%s1152 + $0x9c8] sm:$0xff]
                  %1781 = vst [vmem:[%s1153 + $0x4e4] sm:$0xff] %v1780
                  %v1782 = vld [vmem:[%s1152 + $0x9d0] sm:$0xff]
                  %1783 = vst [vmem:[%s1153 + $0x4e8] sm:$0xff] %v1782
                  %v1784 = vld [vmem:[%s1152 + $0x9d8] sm:$0xff]
                  %1785 = vst [vmem:[%s1153 + $0x4ec] sm:$0xff] %v1784
                  %v1786 = vld [vmem:[%s1152 + $0x9e0] sm:$0xff]
                  %1787 = vst [vmem:[%s1153 + $0x4f0] sm:$0xff] %v1786
                  %v1788 = vld [vmem:[%s1152 + $0x9e8] sm:$0xff]
                  %1789 = vst [vmem:[%s1153 + $0x4f4] sm:$0xff] %v1788
                  %v1790 = vld [vmem:[%s1152 + $0x9f0] sm:$0xff]
                  %1791 = vst [vmem:[%s1153 + $0x4f8] sm:$0xff] %v1790
                  %v1792 = vld [vmem:[%s1152 + $0x9f8] sm:$0xff]
                  %1793 = vst [vmem:[%s1153 + $0x4fc] sm:$0xff] %v1792
                  %v1794 = vld [vmem:[%s1152 + $0xa00] sm:$0xff]
                  %1795 = vst [vmem:[%s1153 + $0x500] sm:$0xff] %v1794
                  %v1796 = vld [vmem:[%s1152 + $0xa08] sm:$0xff]
                  %1797 = vst [vmem:[%s1153 + $0x504] sm:$0xff] %v1796
                  %v1798 = vld [vmem:[%s1152 + $0xa10] sm:$0xff]
                  %1799 = vst [vmem:[%s1153 + $0x508] sm:$0xff] %v1798
                  %v1800 = vld [vmem:[%s1152 + $0xa18] sm:$0xff]
                  %1801 = vst [vmem:[%s1153 + $0x50c] sm:$0xff] %v1800
                  %v1802 = vld [vmem:[%s1152 + $0xa20] sm:$0xff]
                  %1803 = vst [vmem:[%s1153 + $0x510] sm:$0xff] %v1802
                  %v1804 = vld [vmem:[%s1152 + $0xa28] sm:$0xff]
                  %1805 = vst [vmem:[%s1153 + $0x514] sm:$0xff] %v1804
                  %v1806 = vld [vmem:[%s1152 + $0xa30] sm:$0xff]
                  %1807 = vst [vmem:[%s1153 + $0x518] sm:$0xff] %v1806
                  %v1808 = vld [vmem:[%s1152 + $0xa38] sm:$0xff]
                  %1809 = vst [vmem:[%s1153 + $0x51c] sm:$0xff] %v1808
                  %v1810 = vld [vmem:[%s1152 + $0xa40] sm:$0xff]
                  %1811 = vst [vmem:[%s1153 + $0x520] sm:$0xff] %v1810
                  %v1812 = vld [vmem:[%s1152 + $0xa48] sm:$0xff]
                  %1813 = vst [vmem:[%s1153 + $0x524] sm:$0xff] %v1812
                  %v1814 = vld [vmem:[%s1152 + $0xa50] sm:$0xff]
                  %1815 = vst [vmem:[%s1153 + $0x528] sm:$0xff] %v1814
                  %v1816 = vld [vmem:[%s1152 + $0xa58] sm:$0xff]
                  %1817 = vst [vmem:[%s1153 + $0x52c] sm:$0xff] %v1816
                  %v1818 = vld [vmem:[%s1152 + $0xa60] sm:$0xff]
                  %1819 = vst [vmem:[%s1153 + $0x530] sm:$0xff] %v1818
                  %v1820 = vld [vmem:[%s1152 + $0xa68] sm:$0xff]
                  %1821 = vst [vmem:[%s1153 + $0x534] sm:$0xff] %v1820
                  %v1822 = vld [vmem:[%s1152 + $0xa70] sm:$0xff]
                  %1823 = vst [vmem:[%s1153 + $0x538] sm:$0xff] %v1822
                  %v1824 = vld [vmem:[%s1152 + $0xa78] sm:$0xff]
                  %1825 = vst [vmem:[%s1153 + $0x53c] sm:$0xff] %v1824
                  %v1826 = vld [vmem:[%s1152 + $0xa80] sm:$0xff]
                  %1827 = vst [vmem:[%s1153 + $0x540] sm:$0xff] %v1826
                  %v1828 = vld [vmem:[%s1152 + $0xa88] sm:$0xff]
                  %1829 = vst [vmem:[%s1153 + $0x544] sm:$0xff] %v1828
                  %v1830 = vld [vmem:[%s1152 + $0xa90] sm:$0xff]
                  %1831 = vst [vmem:[%s1153 + $0x548] sm:$0xff] %v1830
                  %v1832 = vld [vmem:[%s1152 + $0xa98] sm:$0xff]
                  %1833 = vst [vmem:[%s1153 + $0x54c] sm:$0xff] %v1832
                  %v1834 = vld [vmem:[%s1152 + $0xaa0] sm:$0xff]
                  %1835 = vst [vmem:[%s1153 + $0x550] sm:$0xff] %v1834
                  %v1836 = vld [vmem:[%s1152 + $0xaa8] sm:$0xff]
                  %1837 = vst [vmem:[%s1153 + $0x554] sm:$0xff] %v1836
                  %v1838 = vld [vmem:[%s1152 + $0xab0] sm:$0xff]
                  %1839 = vst [vmem:[%s1153 + $0x558] sm:$0xff] %v1838
                  %v1840 = vld [vmem:[%s1152 + $0xab8] sm:$0xff]
                  %1841 = vst [vmem:[%s1153 + $0x55c] sm:$0xff] %v1840
                  %v1842 = vld [vmem:[%s1152 + $0xac0] sm:$0xff]
                  %1843 = vst [vmem:[%s1153 + $0x560] sm:$0xff] %v1842
                  %v1844 = vld [vmem:[%s1152 + $0xac8] sm:$0xff]
                  %1845 = vst [vmem:[%s1153 + $0x564] sm:$0xff] %v1844
                  %v1846 = vld [vmem:[%s1152 + $0xad0] sm:$0xff]
                  %1847 = vst [vmem:[%s1153 + $0x568] sm:$0xff] %v1846
                  %v1848 = vld [vmem:[%s1152 + $0xad8] sm:$0xff]
                  %1849 = vst [vmem:[%s1153 + $0x56c] sm:$0xff] %v1848
                  %v1850 = vld [vmem:[%s1152 + $0xae0] sm:$0xff]
                  %1851 = vst [vmem:[%s1153 + $0x570] sm:$0xff] %v1850
                  %v1852 = vld [vmem:[%s1152 + $0xae8] sm:$0xff]
                  %1853 = vst [vmem:[%s1153 + $0x574] sm:$0xff] %v1852
                  %v1854 = vld [vmem:[%s1152 + $0xaf0] sm:$0xff]
                  %1855 = vst [vmem:[%s1153 + $0x578] sm:$0xff] %v1854
                  %v1856 = vld [vmem:[%s1152 + $0xaf8] sm:$0xff]
                  %1857 = vst [vmem:[%s1153 + $0x57c] sm:$0xff] %v1856
                  %v1858 = vld [vmem:[%s1152 + $0xb00] sm:$0xff]
                  %1859 = vst [vmem:[%s1153 + $0x580] sm:$0xff] %v1858
                  %v1860 = vld [vmem:[%s1152 + $0xb08] sm:$0xff]
                  %1861 = vst [vmem:[%s1153 + $0x584] sm:$0xff] %v1860
                  %v1862 = vld [vmem:[%s1152 + $0xb10] sm:$0xff]
                  %1863 = vst [vmem:[%s1153 + $0x588] sm:$0xff] %v1862
                  %v1864 = vld [vmem:[%s1152 + $0xb18] sm:$0xff]
                  %1865 = vst [vmem:[%s1153 + $0x58c] sm:$0xff] %v1864
                  %v1866 = vld [vmem:[%s1152 + $0xb20] sm:$0xff]
                  %1867 = vst [vmem:[%s1153 + $0x590] sm:$0xff] %v1866
                  %v1868 = vld [vmem:[%s1152 + $0xb28] sm:$0xff]
                  %1869 = vst [vmem:[%s1153 + $0x594] sm:$0xff] %v1868
                  %v1870 = vld [vmem:[%s1152 + $0xb30] sm:$0xff]
                  %1871 = vst [vmem:[%s1153 + $0x598] sm:$0xff] %v1870
                  %v1872 = vld [vmem:[%s1152 + $0xb38] sm:$0xff]
                  %1873 = vst [vmem:[%s1153 + $0x59c] sm:$0xff] %v1872
                  %v1874 = vld [vmem:[%s1152 + $0xb40] sm:$0xff]
                  %1875 = vst [vmem:[%s1153 + $0x5a0] sm:$0xff] %v1874
                  %v1876 = vld [vmem:[%s1152 + $0xb48] sm:$0xff]
                  %1877 = vst [vmem:[%s1153 + $0x5a4] sm:$0xff] %v1876
                  %v1878 = vld [vmem:[%s1152 + $0xb50] sm:$0xff]
                  %1879 = vst [vmem:[%s1153 + $0x5a8] sm:$0xff] %v1878
                  %v1880 = vld [vmem:[%s1152 + $0xb58] sm:$0xff]
                  %1881 = vst [vmem:[%s1153 + $0x5ac] sm:$0xff] %v1880
                  %v1882 = vld [vmem:[%s1152 + $0xb60] sm:$0xff]
                  %1883 = vst [vmem:[%s1153 + $0x5b0] sm:$0xff] %v1882
                  %v1884 = vld [vmem:[%s1152 + $0xb68] sm:$0xff]
                  %1885 = vst [vmem:[%s1153 + $0x5b4] sm:$0xff] %v1884
                  %v1886 = vld [vmem:[%s1152 + $0xb70] sm:$0xff]
                  %1887 = vst [vmem:[%s1153 + $0x5b8] sm:$0xff] %v1886
                  %v1888 = vld [vmem:[%s1152 + $0xb78] sm:$0xff]
                  %1889 = vst [vmem:[%s1153 + $0x5bc] sm:$0xff] %v1888
                  %v1890 = vld [vmem:[%s1152 + $0xb80] sm:$0xff]
                  %1891 = vst [vmem:[%s1153 + $0x5c0] sm:$0xff] %v1890
                  %v1892 = vld [vmem:[%s1152 + $0xb88] sm:$0xff]
                  %1893 = vst [vmem:[%s1153 + $0x5c4] sm:$0xff] %v1892
                  %v1894 = vld [vmem:[%s1152 + $0xb90] sm:$0xff]
                  %1895 = vst [vmem:[%s1153 + $0x5c8] sm:$0xff] %v1894
                  %v1896 = vld [vmem:[%s1152 + $0xb98] sm:$0xff]
                  %1897 = vst [vmem:[%s1153 + $0x5cc] sm:$0xff] %v1896
                  %v1898 = vld [vmem:[%s1152 + $0xba0] sm:$0xff]
                  %1899 = vst [vmem:[%s1153 + $0x5d0] sm:$0xff] %v1898
                  %v1900 = vld [vmem:[%s1152 + $0xba8] sm:$0xff]
                  %1901 = vst [vmem:[%s1153 + $0x5d4] sm:$0xff] %v1900
                  %v1902 = vld [vmem:[%s1152 + $0xbb0] sm:$0xff]
                  %1903 = vst [vmem:[%s1153 + $0x5d8] sm:$0xff] %v1902
                  %v1904 = vld [vmem:[%s1152 + $0xbb8] sm:$0xff]
                  %1905 = vst [vmem:[%s1153 + $0x5dc] sm:$0xff] %v1904
                  %v1906 = vld [vmem:[%s1152 + $0xbc0] sm:$0xff]
                  %1907 = vst [vmem:[%s1153 + $0x5e0] sm:$0xff] %v1906
                  %v1908 = vld [vmem:[%s1152 + $0xbc8] sm:$0xff]
                  %1909 = vst [vmem:[%s1153 + $0x5e4] sm:$0xff] %v1908
                  %v1910 = vld [vmem:[%s1152 + $0xbd0] sm:$0xff]
                  %1911 = vst [vmem:[%s1153 + $0x5e8] sm:$0xff] %v1910
                  %v1912 = vld [vmem:[%s1152 + $0xbd8] sm:$0xff]
                  %1913 = vst [vmem:[%s1153 + $0x5ec] sm:$0xff] %v1912
                  %v1914 = vld [vmem:[%s1152 + $0xbe0] sm:$0xff]
                  %1915 = vst [vmem:[%s1153 + $0x5f0] sm:$0xff] %v1914
                  %v1916 = vld [vmem:[%s1152 + $0xbe8] sm:$0xff]
                  %1917 = vst [vmem:[%s1153 + $0x5f4] sm:$0xff] %v1916
                  %v1918 = vld [vmem:[%s1152 + $0xbf0] sm:$0xff]
                  %1919 = vst [vmem:[%s1153 + $0x5f8] sm:$0xff] %v1918
                  %v1920 = vld [vmem:[%s1152 + $0xbf8] sm:$0xff]
                  %1921 = vst [vmem:[%s1153 + $0x5fc] sm:$0xff] %v1920
                  %v1922 = vld [vmem:[%s1152 + $0xc00] sm:$0xff]
                  %1923 = vst [vmem:[%s1153 + $0x600] sm:$0xff] %v1922
                  %v1924 = vld [vmem:[%s1152 + $0xc08] sm:$0xff]
                  %1925 = vst [vmem:[%s1153 + $0x604] sm:$0xff] %v1924
                  %v1926 = vld [vmem:[%s1152 + $0xc10] sm:$0xff]
                  %1927 = vst [vmem:[%s1153 + $0x608] sm:$0xff] %v1926
                  %v1928 = vld [vmem:[%s1152 + $0xc18] sm:$0xff]
                  %1929 = vst [vmem:[%s1153 + $0x60c] sm:$0xff] %v1928
                  %v1930 = vld [vmem:[%s1152 + $0xc20] sm:$0xff]
                  %1931 = vst [vmem:[%s1153 + $0x610] sm:$0xff] %v1930
                  %v1932 = vld [vmem:[%s1152 + $0xc28] sm:$0xff]
                  %1933 = vst [vmem:[%s1153 + $0x614] sm:$0xff] %v1932
                  %v1934 = vld [vmem:[%s1152 + $0xc30] sm:$0xff]
                  %1935 = vst [vmem:[%s1153 + $0x618] sm:$0xff] %v1934
                  %v1936 = vld [vmem:[%s1152 + $0xc38] sm:$0xff]
                  %1937 = vst [vmem:[%s1153 + $0x61c] sm:$0xff] %v1936
                  %v1938 = vld [vmem:[%s1152 + $0xc40] sm:$0xff]
                  %1939 = vst [vmem:[%s1153 + $0x620] sm:$0xff] %v1938
                  %v1940 = vld [vmem:[%s1152 + $0xc48] sm:$0xff]
                  %1941 = vst [vmem:[%s1153 + $0x624] sm:$0xff] %v1940
                  %v1942 = vld [vmem:[%s1152 + $0xc50] sm:$0xff]
                  %1943 = vst [vmem:[%s1153 + $0x628] sm:$0xff] %v1942
                  %v1944 = vld [vmem:[%s1152 + $0xc58] sm:$0xff]
                  %1945 = vst [vmem:[%s1153 + $0x62c] sm:$0xff] %v1944
                  %v1946 = vld [vmem:[%s1152 + $0xc60] sm:$0xff]
                  %1947 = vst [vmem:[%s1153 + $0x630] sm:$0xff] %v1946
                  %v1948 = vld [vmem:[%s1152 + $0xc68] sm:$0xff]
                  %1949 = vst [vmem:[%s1153 + $0x634] sm:$0xff] %v1948
                  %v1950 = vld [vmem:[%s1152 + $0xc70] sm:$0xff]
                  %1951 = vst [vmem:[%s1153 + $0x638] sm:$0xff] %v1950
                  %v1952 = vld [vmem:[%s1152 + $0xc78] sm:$0xff]
                  %1953 = vst [vmem:[%s1153 + $0x63c] sm:$0xff] %v1952
                  %v1954 = vld [vmem:[%s1152 + $0xc80] sm:$0xff]
                  %1955 = vst [vmem:[%s1153 + $0x640] sm:$0xff] %v1954
                  %v1956 = vld [vmem:[%s1152 + $0xc88] sm:$0xff]
                  %1957 = vst [vmem:[%s1153 + $0x644] sm:$0xff] %v1956
                  %v1958 = vld [vmem:[%s1152 + $0xc90] sm:$0xff]
                  %1959 = vst [vmem:[%s1153 + $0x648] sm:$0xff] %v1958
                  %v1960 = vld [vmem:[%s1152 + $0xc98] sm:$0xff]
                  %1961 = vst [vmem:[%s1153 + $0x64c] sm:$0xff] %v1960
                  %v1962 = vld [vmem:[%s1152 + $0xca0] sm:$0xff]
                  %1963 = vst [vmem:[%s1153 + $0x650] sm:$0xff] %v1962
                  %v1964 = vld [vmem:[%s1152 + $0xca8] sm:$0xff]
                  %1965 = vst [vmem:[%s1153 + $0x654] sm:$0xff] %v1964
                  %v1966 = vld [vmem:[%s1152 + $0xcb0] sm:$0xff]
                  %1967 = vst [vmem:[%s1153 + $0x658] sm:$0xff] %v1966
                  %v1968 = vld [vmem:[%s1152 + $0xcb8] sm:$0xff]
                  %1969 = vst [vmem:[%s1153 + $0x65c] sm:$0xff] %v1968
                  %v1970 = vld [vmem:[%s1152 + $0xcc0] sm:$0xff]
                  %1971 = vst [vmem:[%s1153 + $0x660] sm:$0xff] %v1970
                  %v1972 = vld [vmem:[%s1152 + $0xcc8] sm:$0xff]
                  %1973 = vst [vmem:[%s1153 + $0x664] sm:$0xff] %v1972
                  %v1974 = vld [vmem:[%s1152 + $0xcd0] sm:$0xff]
                  %1975 = vst [vmem:[%s1153 + $0x668] sm:$0xff] %v1974
                  %v1976 = vld [vmem:[%s1152 + $0xcd8] sm:$0xff]
                  %1977 = vst [vmem:[%s1153 + $0x66c] sm:$0xff] %v1976
                  %v1978 = vld [vmem:[%s1152 + $0xce0] sm:$0xff]
                  %1979 = vst [vmem:[%s1153 + $0x670] sm:$0xff] %v1978
                  %v1980 = vld [vmem:[%s1152 + $0xce8] sm:$0xff]
                  %1981 = vst [vmem:[%s1153 + $0x674] sm:$0xff] %v1980
                  %v1982 = vld [vmem:[%s1152 + $0xcf0] sm:$0xff]
                  %1983 = vst [vmem:[%s1153 + $0x678] sm:$0xff] %v1982
                  %v1984 = vld [vmem:[%s1152 + $0xcf8] sm:$0xff]
                  %1985 = vst [vmem:[%s1153 + $0x67c] sm:$0xff] %v1984
                  %v1986 = vld [vmem:[%s1152 + $0xd00] sm:$0xff]
                  %1987 = vst [vmem:[%s1153 + $0x680] sm:$0xff] %v1986
                  %v1988 = vld [vmem:[%s1152 + $0xd08] sm:$0xff]
                  %1989 = vst [vmem:[%s1153 + $0x684] sm:$0xff] %v1988
                  %v1990 = vld [vmem:[%s1152 + $0xd10] sm:$0xff]
                  %1991 = vst [vmem:[%s1153 + $0x688] sm:$0xff] %v1990
                  %v1992 = vld [vmem:[%s1152 + $0xd18] sm:$0xff]
                  %1993 = vst [vmem:[%s1153 + $0x68c] sm:$0xff] %v1992
                  %v1994 = vld [vmem:[%s1152 + $0xd20] sm:$0xff]
                  %1995 = vst [vmem:[%s1153 + $0x690] sm:$0xff] %v1994
                  %v1996 = vld [vmem:[%s1152 + $0xd28] sm:$0xff]
                  %1997 = vst [vmem:[%s1153 + $0x694] sm:$0xff] %v1996
                  %v1998 = vld [vmem:[%s1152 + $0xd30] sm:$0xff]
                  %1999 = vst [vmem:[%s1153 + $0x698] sm:$0xff] %v1998
                  %v2000 = vld [vmem:[%s1152 + $0xd38] sm:$0xff]
                  %2001 = vst [vmem:[%s1153 + $0x69c] sm:$0xff] %v2000
                  %v2002 = vld [vmem:[%s1152 + $0xd40] sm:$0xff]
                  %2003 = vst [vmem:[%s1153 + $0x6a0] sm:$0xff] %v2002
                  %v2004 = vld [vmem:[%s1152 + $0xd48] sm:$0xff]
                  %2005 = vst [vmem:[%s1153 + $0x6a4] sm:$0xff] %v2004
                  %v2006 = vld [vmem:[%s1152 + $0xd50] sm:$0xff]
                  %2007 = vst [vmem:[%s1153 + $0x6a8] sm:$0xff] %v2006
                  %v2008 = vld [vmem:[%s1152 + $0xd58] sm:$0xff]
                  %2009 = vst [vmem:[%s1153 + $0x6ac] sm:$0xff] %v2008
                  %v2010 = vld [vmem:[%s1152 + $0xd60] sm:$0xff]
                  %2011 = vst [vmem:[%s1153 + $0x6b0] sm:$0xff] %v2010
                  %v2012 = vld [vmem:[%s1152 + $0xd68] sm:$0xff]
                  %2013 = vst [vmem:[%s1153 + $0x6b4] sm:$0xff] %v2012
                  %v2014 = vld [vmem:[%s1152 + $0xd70] sm:$0xff]
                  %2015 = vst [vmem:[%s1153 + $0x6b8] sm:$0xff] %v2014
                  %v2016 = vld [vmem:[%s1152 + $0xd78] sm:$0xff]
                  %2017 = vst [vmem:[%s1153 + $0x6bc] sm:$0xff] %v2016
                  %v2018 = vld [vmem:[%s1152 + $0xd80] sm:$0xff]
                  %2019 = vst [vmem:[%s1153 + $0x6c0] sm:$0xff] %v2018
                  %v2020 = vld [vmem:[%s1152 + $0xd88] sm:$0xff]
                  %2021 = vst [vmem:[%s1153 + $0x6c4] sm:$0xff] %v2020
                  %v2022 = vld [vmem:[%s1152 + $0xd90] sm:$0xff]
                  %2023 = vst [vmem:[%s1153 + $0x6c8] sm:$0xff] %v2022
                  %v2024 = vld [vmem:[%s1152 + $0xd98] sm:$0xff]
                  %2025 = vst [vmem:[%s1153 + $0x6cc] sm:$0xff] %v2024
                  %v2026 = vld [vmem:[%s1152 + $0xda0] sm:$0xff]
                  %2027 = vst [vmem:[%s1153 + $0x6d0] sm:$0xff] %v2026
                  %v2028 = vld [vmem:[%s1152 + $0xda8] sm:$0xff]
                  %2029 = vst [vmem:[%s1153 + $0x6d4] sm:$0xff] %v2028
                  %v2030 = vld [vmem:[%s1152 + $0xdb0] sm:$0xff]
                  %2031 = vst [vmem:[%s1153 + $0x6d8] sm:$0xff] %v2030
                  %v2032 = vld [vmem:[%s1152 + $0xdb8] sm:$0xff]
                  %2033 = vst [vmem:[%s1153 + $0x6dc] sm:$0xff] %v2032
                  %v2034 = vld [vmem:[%s1152 + $0xdc0] sm:$0xff]
                  %2035 = vst [vmem:[%s1153 + $0x6e0] sm:$0xff] %v2034
                  %v2036 = vld [vmem:[%s1152 + $0xdc8] sm:$0xff]
                  %2037 = vst [vmem:[%s1153 + $0x6e4] sm:$0xff] %v2036
                  %v2038 = vld [vmem:[%s1152 + $0xdd0] sm:$0xff]
                  %2039 = vst [vmem:[%s1153 + $0x6e8] sm:$0xff] %v2038
                  %v2040 = vld [vmem:[%s1152 + $0xdd8] sm:$0xff]
                  %2041 = vst [vmem:[%s1153 + $0x6ec] sm:$0xff] %v2040
                  %v2042 = vld [vmem:[%s1152 + $0xde0] sm:$0xff]
                  %2043 = vst [vmem:[%s1153 + $0x6f0] sm:$0xff] %v2042
                  %v2044 = vld [vmem:[%s1152 + $0xde8] sm:$0xff]
                  %2045 = vst [vmem:[%s1153 + $0x6f4] sm:$0xff] %v2044
                  %v2046 = vld [vmem:[%s1152 + $0xdf0] sm:$0xff]
                  %2047 = vst [vmem:[%s1153 + $0x6f8] sm:$0xff] %v2046
                  %v2048 = vld [vmem:[%s1152 + $0xdf8] sm:$0xff]
                  %2049 = vst [vmem:[%s1153 + $0x6fc] sm:$0xff] %v2048
                  %v2050 = vld [vmem:[%s1152 + $0xe00] sm:$0xff]
                  %2051 = vst [vmem:[%s1153 + $0x700] sm:$0xff] %v2050
                  %v2052 = vld [vmem:[%s1152 + $0xe08] sm:$0xff]
                  %2053 = vst [vmem:[%s1153 + $0x704] sm:$0xff] %v2052
                  %v2054 = vld [vmem:[%s1152 + $0xe10] sm:$0xff]
                  %2055 = vst [vmem:[%s1153 + $0x708] sm:$0xff] %v2054
                  %v2056 = vld [vmem:[%s1152 + $0xe18] sm:$0xff]
                  %2057 = vst [vmem:[%s1153 + $0x70c] sm:$0xff] %v2056
                  %v2058 = vld [vmem:[%s1152 + $0xe20] sm:$0xff]
                  %2059 = vst [vmem:[%s1153 + $0x710] sm:$0xff] %v2058
                  %v2060 = vld [vmem:[%s1152 + $0xe28] sm:$0xff]
                  %2061 = vst [vmem:[%s1153 + $0x714] sm:$0xff] %v2060
                  %v2062 = vld [vmem:[%s1152 + $0xe30] sm:$0xff]
                  %2063 = vst [vmem:[%s1153 + $0x718] sm:$0xff] %v2062
                  %v2064 = vld [vmem:[%s1152 + $0xe38] sm:$0xff]
                  %2065 = vst [vmem:[%s1153 + $0x71c] sm:$0xff] %v2064
                  %v2066 = vld [vmem:[%s1152 + $0xe40] sm:$0xff]
                  %2067 = vst [vmem:[%s1153 + $0x720] sm:$0xff] %v2066
                  %v2068 = vld [vmem:[%s1152 + $0xe48] sm:$0xff]
                  %2069 = vst [vmem:[%s1153 + $0x724] sm:$0xff] %v2068
                  %v2070 = vld [vmem:[%s1152 + $0xe50] sm:$0xff]
                  %2071 = vst [vmem:[%s1153 + $0x728] sm:$0xff] %v2070
                  %v2072 = vld [vmem:[%s1152 + $0xe58] sm:$0xff]
                  %2073 = vst [vmem:[%s1153 + $0x72c] sm:$0xff] %v2072
                  %v2074 = vld [vmem:[%s1152 + $0xe60] sm:$0xff]
                  %2075 = vst [vmem:[%s1153 + $0x730] sm:$0xff] %v2074
                  %v2076 = vld [vmem:[%s1152 + $0xe68] sm:$0xff]
                  %2077 = vst [vmem:[%s1153 + $0x734] sm:$0xff] %v2076
                  %v2078 = vld [vmem:[%s1152 + $0xe70] sm:$0xff]
                  %2079 = vst [vmem:[%s1153 + $0x738] sm:$0xff] %v2078
                  %v2080 = vld [vmem:[%s1152 + $0xe78] sm:$0xff]
                  %2081 = vst [vmem:[%s1153 + $0x73c] sm:$0xff] %v2080
                  %v2082 = vld [vmem:[%s1152 + $0xe80] sm:$0xff]
                  %2083 = vst [vmem:[%s1153 + $0x740] sm:$0xff] %v2082
                  %v2084 = vld [vmem:[%s1152 + $0xe88] sm:$0xff]
                  %2085 = vst [vmem:[%s1153 + $0x744] sm:$0xff] %v2084
                  %v2086 = vld [vmem:[%s1152 + $0xe90] sm:$0xff]
                  %2087 = vst [vmem:[%s1153 + $0x748] sm:$0xff] %v2086
                  %v2088 = vld [vmem:[%s1152 + $0xe98] sm:$0xff]
                  %2089 = vst [vmem:[%s1153 + $0x74c] sm:$0xff] %v2088
                  %v2090 = vld [vmem:[%s1152 + $0xea0] sm:$0xff]
                  %2091 = vst [vmem:[%s1153 + $0x750] sm:$0xff] %v2090
                  %v2092 = vld [vmem:[%s1152 + $0xea8] sm:$0xff]
                  %2093 = vst [vmem:[%s1153 + $0x754] sm:$0xff] %v2092
                  %v2094 = vld [vmem:[%s1152 + $0xeb0] sm:$0xff]
                  %2095 = vst [vmem:[%s1153 + $0x758] sm:$0xff] %v2094
                  %v2096 = vld [vmem:[%s1152 + $0xeb8] sm:$0xff]
                  %2097 = vst [vmem:[%s1153 + $0x75c] sm:$0xff] %v2096
                  %v2098 = vld [vmem:[%s1152 + $0xec0] sm:$0xff]
                  %2099 = vst [vmem:[%s1153 + $0x760] sm:$0xff] %v2098
                  %v2100 = vld [vmem:[%s1152 + $0xec8] sm:$0xff]
                  %2101 = vst [vmem:[%s1153 + $0x764] sm:$0xff] %v2100
                  %v2102 = vld [vmem:[%s1152 + $0xed0] sm:$0xff]
                  %2103 = vst [vmem:[%s1153 + $0x768] sm:$0xff] %v2102
                  %v2104 = vld [vmem:[%s1152 + $0xed8] sm:$0xff]
                  %2105 = vst [vmem:[%s1153 + $0x76c] sm:$0xff] %v2104
                  %v2106 = vld [vmem:[%s1152 + $0xee0] sm:$0xff]
                  %2107 = vst [vmem:[%s1153 + $0x770] sm:$0xff] %v2106
                  %v2108 = vld [vmem:[%s1152 + $0xee8] sm:$0xff]
                  %2109 = vst [vmem:[%s1153 + $0x774] sm:$0xff] %v2108
                  %v2110 = vld [vmem:[%s1152 + $0xef0] sm:$0xff]
                  %2111 = vst [vmem:[%s1153 + $0x778] sm:$0xff] %v2110
                  %v2112 = vld [vmem:[%s1152 + $0xef8] sm:$0xff]
                  %2113 = vst [vmem:[%s1153 + $0x77c] sm:$0xff] %v2112
                  %s2114 = sadd.s32 1, %s1151
                  %p2115 = scmp.ge.s32.totalorder %s2114, 0
                  %s2116 = scalar_select %p2115, 0, %s2114
                  %s2117 = smul.u32 %s2116, 8
                  %s2118 = smul.u32 %s2116, 8
                  %s2119 = scalar_lea.vmem %s166, %s2117
                  %s2120 = scalar_lea.vmem %s161, %s2118 [#allocation3]
                $region52: #{cnn_forward.3} parent=46 // loop_footer
                  %s1150 = sadd.s32 1, %s1146
                $region53: #{cnn_forward.3} parent=46 // loop_footer_branch
                  %1145 = sbr.rel target = $region49
                $region54: #{cnn_forward.3} parent=46 // loop_exit
                  _
              $region47: #{cnn_forward.3} parent=31 // pred_fallthru
                _
              // Predicated region
              $region55: #{cnn_forward.3} parent=31 // pred_check
                _
              $region56: #{cnn_forward.3} parent=31 // pred_check_branch
                %2122 = sbr.rel (0) target = $region58
              $region57: #{cnn_forward.3} parent=31 // pred_region
                loop: start=0, step=1, limit=0
                $region59: #{cnn_forward.3} parent=57 // loop_pre_header
                  _
                $region60: #{cnn_forward.3} parent=57 // loop_header
                  %s2124 = sphi 0, %s2128
                  %p2125 = scmp.ge.s32.totalorder %s2124, 0
                  %s2129 = sphi 0, %s3094
                  %s2130 = sphi %s166, %s3097
                  %s2131 = sphi %s161, %s3098
                $region61: #{cnn_forward.3} parent=57 // loop_header_branch
                  %2127 = sbr.rel (%p2125) target = $region65
                $region62: #{cnn_forward.3} parent=57 // loop_body
                  %v2132 = vld [vmem:[%s2130] sm:$0xff]
                  %2133 = vst [vmem:[%s2131] sm:$0xff] %v2132
                  %v2134 = vld [vmem:[%s2130 + $0x8] sm:$0xff]
                  %2135 = vst [vmem:[%s2131 + $0x4] sm:$0xff] %v2134
                  %v2136 = vld [vmem:[%s2130 + $0x10] sm:$0xff]
                  %2137 = vst [vmem:[%s2131 + $0x8] sm:$0xff] %v2136
                  %v2138 = vld [vmem:[%s2130 + $0x18] sm:$0xff]
                  %2139 = vst [vmem:[%s2131 + $0xc] sm:$0xff] %v2138
                  %v2140 = vld [vmem:[%s2130 + $0x20] sm:$0xff]
                  %2141 = vst [vmem:[%s2131 + $0x10] sm:$0xff] %v2140
                  %v2142 = vld [vmem:[%s2130 + $0x28] sm:$0xff]
                  %2143 = vst [vmem:[%s2131 + $0x14] sm:$0xff] %v2142
                  %v2144 = vld [vmem:[%s2130 + $0x30] sm:$0xff]
                  %2145 = vst [vmem:[%s2131 + $0x18] sm:$0xff] %v2144
                  %v2146 = vld [vmem:[%s2130 + $0x38] sm:$0xff]
                  %2147 = vst [vmem:[%s2131 + $0x1c] sm:$0xff] %v2146
                  %v2148 = vld [vmem:[%s2130 + $0x40] sm:$0xff]
                  %2149 = vst [vmem:[%s2131 + $0x20] sm:$0xff] %v2148
                  %v2150 = vld [vmem:[%s2130 + $0x48] sm:$0xff]
                  %2151 = vst [vmem:[%s2131 + $0x24] sm:$0xff] %v2150
                  %v2152 = vld [vmem:[%s2130 + $0x50] sm:$0xff]
                  %2153 = vst [vmem:[%s2131 + $0x28] sm:$0xff] %v2152
                  %v2154 = vld [vmem:[%s2130 + $0x58] sm:$0xff]
                  %2155 = vst [vmem:[%s2131 + $0x2c] sm:$0xff] %v2154
                  %v2156 = vld [vmem:[%s2130 + $0x60] sm:$0xff]
                  %2157 = vst [vmem:[%s2131 + $0x30] sm:$0xff] %v2156
                  %v2158 = vld [vmem:[%s2130 + $0x68] sm:$0xff]
                  %2159 = vst [vmem:[%s2131 + $0x34] sm:$0xff] %v2158
                  %v2160 = vld [vmem:[%s2130 + $0x70] sm:$0xff]
                  %2161 = vst [vmem:[%s2131 + $0x38] sm:$0xff] %v2160
                  %v2162 = vld [vmem:[%s2130 + $0x78] sm:$0xff]
                  %2163 = vst [vmem:[%s2131 + $0x3c] sm:$0xff] %v2162
                  %v2164 = vld [vmem:[%s2130 + $0x80] sm:$0xff]
                  %2165 = vst [vmem:[%s2131 + $0x40] sm:$0xff] %v2164
                  %v2166 = vld [vmem:[%s2130 + $0x88] sm:$0xff]
                  %2167 = vst [vmem:[%s2131 + $0x44] sm:$0xff] %v2166
                  %v2168 = vld [vmem:[%s2130 + $0x90] sm:$0xff]
                  %2169 = vst [vmem:[%s2131 + $0x48] sm:$0xff] %v2168
                  %v2170 = vld [vmem:[%s2130 + $0x98] sm:$0xff]
                  %2171 = vst [vmem:[%s2131 + $0x4c] sm:$0xff] %v2170
                  %v2172 = vld [vmem:[%s2130 + $0xa0] sm:$0xff]
                  %2173 = vst [vmem:[%s2131 + $0x50] sm:$0xff] %v2172
                  %v2174 = vld [vmem:[%s2130 + $0xa8] sm:$0xff]
                  %2175 = vst [vmem:[%s2131 + $0x54] sm:$0xff] %v2174
                  %v2176 = vld [vmem:[%s2130 + $0xb0] sm:$0xff]
                  %2177 = vst [vmem:[%s2131 + $0x58] sm:$0xff] %v2176
                  %v2178 = vld [vmem:[%s2130 + $0xb8] sm:$0xff]
                  %2179 = vst [vmem:[%s2131 + $0x5c] sm:$0xff] %v2178
                  %v2180 = vld [vmem:[%s2130 + $0xc0] sm:$0xff]
                  %2181 = vst [vmem:[%s2131 + $0x60] sm:$0xff] %v2180
                  %v2182 = vld [vmem:[%s2130 + $0xc8] sm:$0xff]
                  %2183 = vst [vmem:[%s2131 + $0x64] sm:$0xff] %v2182
                  %v2184 = vld [vmem:[%s2130 + $0xd0] sm:$0xff]
                  %2185 = vst [vmem:[%s2131 + $0x68] sm:$0xff] %v2184
                  %v2186 = vld [vmem:[%s2130 + $0xd8] sm:$0xff]
                  %2187 = vst [vmem:[%s2131 + $0x6c] sm:$0xff] %v2186
                  %v2188 = vld [vmem:[%s2130 + $0xe0] sm:$0xff]
                  %2189 = vst [vmem:[%s2131 + $0x70] sm:$0xff] %v2188
                  %v2190 = vld [vmem:[%s2130 + $0xe8] sm:$0xff]
                  %2191 = vst [vmem:[%s2131 + $0x74] sm:$0xff] %v2190
                  %v2192 = vld [vmem:[%s2130 + $0xf0] sm:$0xff]
                  %2193 = vst [vmem:[%s2131 + $0x78] sm:$0xff] %v2192
                  %v2194 = vld [vmem:[%s2130 + $0xf8] sm:$0xff]
                  %2195 = vst [vmem:[%s2131 + $0x7c] sm:$0xff] %v2194
                  %v2196 = vld [vmem:[%s2130 + $0x100] sm:$0xff]
                  %2197 = vst [vmem:[%s2131 + $0x80] sm:$0xff] %v2196
                  %v2198 = vld [vmem:[%s2130 + $0x108] sm:$0xff]
                  %2199 = vst [vmem:[%s2131 + $0x84] sm:$0xff] %v2198
                  %v2200 = vld [vmem:[%s2130 + $0x110] sm:$0xff]
                  %2201 = vst [vmem:[%s2131 + $0x88] sm:$0xff] %v2200
                  %v2202 = vld [vmem:[%s2130 + $0x118] sm:$0xff]
                  %2203 = vst [vmem:[%s2131 + $0x8c] sm:$0xff] %v2202
                  %v2204 = vld [vmem:[%s2130 + $0x120] sm:$0xff]
                  %2205 = vst [vmem:[%s2131 + $0x90] sm:$0xff] %v2204
                  %v2206 = vld [vmem:[%s2130 + $0x128] sm:$0xff]
                  %2207 = vst [vmem:[%s2131 + $0x94] sm:$0xff] %v2206
                  %v2208 = vld [vmem:[%s2130 + $0x130] sm:$0xff]
                  %2209 = vst [vmem:[%s2131 + $0x98] sm:$0xff] %v2208
                  %v2210 = vld [vmem:[%s2130 + $0x138] sm:$0xff]
                  %2211 = vst [vmem:[%s2131 + $0x9c] sm:$0xff] %v2210
                  %v2212 = vld [vmem:[%s2130 + $0x140] sm:$0xff]
                  %2213 = vst [vmem:[%s2131 + $0xa0] sm:$0xff] %v2212
                  %v2214 = vld [vmem:[%s2130 + $0x148] sm:$0xff]
                  %2215 = vst [vmem:[%s2131 + $0xa4] sm:$0xff] %v2214
                  %v2216 = vld [vmem:[%s2130 + $0x150] sm:$0xff]
                  %2217 = vst [vmem:[%s2131 + $0xa8] sm:$0xff] %v2216
                  %v2218 = vld [vmem:[%s2130 + $0x158] sm:$0xff]
                  %2219 = vst [vmem:[%s2131 + $0xac] sm:$0xff] %v2218
                  %v2220 = vld [vmem:[%s2130 + $0x160] sm:$0xff]
                  %2221 = vst [vmem:[%s2131 + $0xb0] sm:$0xff] %v2220
                  %v2222 = vld [vmem:[%s2130 + $0x168] sm:$0xff]
                  %2223 = vst [vmem:[%s2131 + $0xb4] sm:$0xff] %v2222
                  %v2224 = vld [vmem:[%s2130 + $0x170] sm:$0xff]
                  %2225 = vst [vmem:[%s2131 + $0xb8] sm:$0xff] %v2224
                  %v2226 = vld [vmem:[%s2130 + $0x178] sm:$0xff]
                  %2227 = vst [vmem:[%s2131 + $0xbc] sm:$0xff] %v2226
                  %v2228 = vld [vmem:[%s2130 + $0x180] sm:$0xff]
                  %2229 = vst [vmem:[%s2131 + $0xc0] sm:$0xff] %v2228
                  %v2230 = vld [vmem:[%s2130 + $0x188] sm:$0xff]
                  %2231 = vst [vmem:[%s2131 + $0xc4] sm:$0xff] %v2230
                  %v2232 = vld [vmem:[%s2130 + $0x190] sm:$0xff]
                  %2233 = vst [vmem:[%s2131 + $0xc8] sm:$0xff] %v2232
                  %v2234 = vld [vmem:[%s2130 + $0x198] sm:$0xff]
                  %2235 = vst [vmem:[%s2131 + $0xcc] sm:$0xff] %v2234
                  %v2236 = vld [vmem:[%s2130 + $0x1a0] sm:$0xff]
                  %2237 = vst [vmem:[%s2131 + $0xd0] sm:$0xff] %v2236
                  %v2238 = vld [vmem:[%s2130 + $0x1a8] sm:$0xff]
                  %2239 = vst [vmem:[%s2131 + $0xd4] sm:$0xff] %v2238
                  %v2240 = vld [vmem:[%s2130 + $0x1b0] sm:$0xff]
                  %2241 = vst [vmem:[%s2131 + $0xd8] sm:$0xff] %v2240
                  %v2242 = vld [vmem:[%s2130 + $0x1b8] sm:$0xff]
                  %2243 = vst [vmem:[%s2131 + $0xdc] sm:$0xff] %v2242
                  %v2244 = vld [vmem:[%s2130 + $0x1c0] sm:$0xff]
                  %2245 = vst [vmem:[%s2131 + $0xe0] sm:$0xff] %v2244
                  %v2246 = vld [vmem:[%s2130 + $0x1c8] sm:$0xff]
                  %2247 = vst [vmem:[%s2131 + $0xe4] sm:$0xff] %v2246
                  %v2248 = vld [vmem:[%s2130 + $0x1d0] sm:$0xff]
                  %2249 = vst [vmem:[%s2131 + $0xe8] sm:$0xff] %v2248
                  %v2250 = vld [vmem:[%s2130 + $0x1d8] sm:$0xff]
                  %2251 = vst [vmem:[%s2131 + $0xec] sm:$0xff] %v2250
                  %v2252 = vld [vmem:[%s2130 + $0x1e0] sm:$0xff]
                  %2253 = vst [vmem:[%s2131 + $0xf0] sm:$0xff] %v2252
                  %v2254 = vld [vmem:[%s2130 + $0x1e8] sm:$0xff]
                  %2255 = vst [vmem:[%s2131 + $0xf4] sm:$0xff] %v2254
                  %v2256 = vld [vmem:[%s2130 + $0x1f0] sm:$0xff]
                  %2257 = vst [vmem:[%s2131 + $0xf8] sm:$0xff] %v2256
                  %v2258 = vld [vmem:[%s2130 + $0x1f8] sm:$0xff]
                  %2259 = vst [vmem:[%s2131 + $0xfc] sm:$0xff] %v2258
                  %v2260 = vld [vmem:[%s2130 + $0x200] sm:$0xff]
                  %2261 = vst [vmem:[%s2131 + $0x100] sm:$0xff] %v2260
                  %v2262 = vld [vmem:[%s2130 + $0x208] sm:$0xff]
                  %2263 = vst [vmem:[%s2131 + $0x104] sm:$0xff] %v2262
                  %v2264 = vld [vmem:[%s2130 + $0x210] sm:$0xff]
                  %2265 = vst [vmem:[%s2131 + $0x108] sm:$0xff] %v2264
                  %v2266 = vld [vmem:[%s2130 + $0x218] sm:$0xff]
                  %2267 = vst [vmem:[%s2131 + $0x10c] sm:$0xff] %v2266
                  %v2268 = vld [vmem:[%s2130 + $0x220] sm:$0xff]
                  %2269 = vst [vmem:[%s2131 + $0x110] sm:$0xff] %v2268
                  %v2270 = vld [vmem:[%s2130 + $0x228] sm:$0xff]
                  %2271 = vst [vmem:[%s2131 + $0x114] sm:$0xff] %v2270
                  %v2272 = vld [vmem:[%s2130 + $0x230] sm:$0xff]
                  %2273 = vst [vmem:[%s2131 + $0x118] sm:$0xff] %v2272
                  %v2274 = vld [vmem:[%s2130 + $0x238] sm:$0xff]
                  %2275 = vst [vmem:[%s2131 + $0x11c] sm:$0xff] %v2274
                  %v2276 = vld [vmem:[%s2130 + $0x240] sm:$0xff]
                  %2277 = vst [vmem:[%s2131 + $0x120] sm:$0xff] %v2276
                  %v2278 = vld [vmem:[%s2130 + $0x248] sm:$0xff]
                  %2279 = vst [vmem:[%s2131 + $0x124] sm:$0xff] %v2278
                  %v2280 = vld [vmem:[%s2130 + $0x250] sm:$0xff]
                  %2281 = vst [vmem:[%s2131 + $0x128] sm:$0xff] %v2280
                  %v2282 = vld [vmem:[%s2130 + $0x258] sm:$0xff]
                  %2283 = vst [vmem:[%s2131 + $0x12c] sm:$0xff] %v2282
                  %v2284 = vld [vmem:[%s2130 + $0x260] sm:$0xff]
                  %2285 = vst [vmem:[%s2131 + $0x130] sm:$0xff] %v2284
                  %v2286 = vld [vmem:[%s2130 + $0x268] sm:$0xff]
                  %2287 = vst [vmem:[%s2131 + $0x134] sm:$0xff] %v2286
                  %v2288 = vld [vmem:[%s2130 + $0x270] sm:$0xff]
                  %2289 = vst [vmem:[%s2131 + $0x138] sm:$0xff] %v2288
                  %v2290 = vld [vmem:[%s2130 + $0x278] sm:$0xff]
                  %2291 = vst [vmem:[%s2131 + $0x13c] sm:$0xff] %v2290
                  %v2292 = vld [vmem:[%s2130 + $0x280] sm:$0xff]
                  %2293 = vst [vmem:[%s2131 + $0x140] sm:$0xff] %v2292
                  %v2294 = vld [vmem:[%s2130 + $0x288] sm:$0xff]
                  %2295 = vst [vmem:[%s2131 + $0x144] sm:$0xff] %v2294
                  %v2296 = vld [vmem:[%s2130 + $0x290] sm:$0xff]
                  %2297 = vst [vmem:[%s2131 + $0x148] sm:$0xff] %v2296
                  %v2298 = vld [vmem:[%s2130 + $0x298] sm:$0xff]
                  %2299 = vst [vmem:[%s2131 + $0x14c] sm:$0xff] %v2298
                  %v2300 = vld [vmem:[%s2130 + $0x2a0] sm:$0xff]
                  %2301 = vst [vmem:[%s2131 + $0x150] sm:$0xff] %v2300
                  %v2302 = vld [vmem:[%s2130 + $0x2a8] sm:$0xff]
                  %2303 = vst [vmem:[%s2131 + $0x154] sm:$0xff] %v2302
                  %v2304 = vld [vmem:[%s2130 + $0x2b0] sm:$0xff]
                  %2305 = vst [vmem:[%s2131 + $0x158] sm:$0xff] %v2304
                  %v2306 = vld [vmem:[%s2130 + $0x2b8] sm:$0xff]
                  %2307 = vst [vmem:[%s2131 + $0x15c] sm:$0xff] %v2306
                  %v2308 = vld [vmem:[%s2130 + $0x2c0] sm:$0xff]
                  %2309 = vst [vmem:[%s2131 + $0x160] sm:$0xff] %v2308
                  %v2310 = vld [vmem:[%s2130 + $0x2c8] sm:$0xff]
                  %2311 = vst [vmem:[%s2131 + $0x164] sm:$0xff] %v2310
                  %v2312 = vld [vmem:[%s2130 + $0x2d0] sm:$0xff]
                  %2313 = vst [vmem:[%s2131 + $0x168] sm:$0xff] %v2312
                  %v2314 = vld [vmem:[%s2130 + $0x2d8] sm:$0xff]
                  %2315 = vst [vmem:[%s2131 + $0x16c] sm:$0xff] %v2314
                  %v2316 = vld [vmem:[%s2130 + $0x2e0] sm:$0xff]
                  %2317 = vst [vmem:[%s2131 + $0x170] sm:$0xff] %v2316
                  %v2318 = vld [vmem:[%s2130 + $0x2e8] sm:$0xff]
                  %2319 = vst [vmem:[%s2131 + $0x174] sm:$0xff] %v2318
                  %v2320 = vld [vmem:[%s2130 + $0x2f0] sm:$0xff]
                  %2321 = vst [vmem:[%s2131 + $0x178] sm:$0xff] %v2320
                  %v2322 = vld [vmem:[%s2130 + $0x2f8] sm:$0xff]
                  %2323 = vst [vmem:[%s2131 + $0x17c] sm:$0xff] %v2322
                  %v2324 = vld [vmem:[%s2130 + $0x300] sm:$0xff]
                  %2325 = vst [vmem:[%s2131 + $0x180] sm:$0xff] %v2324
                  %v2326 = vld [vmem:[%s2130 + $0x308] sm:$0xff]
                  %2327 = vst [vmem:[%s2131 + $0x184] sm:$0xff] %v2326
                  %v2328 = vld [vmem:[%s2130 + $0x310] sm:$0xff]
                  %2329 = vst [vmem:[%s2131 + $0x188] sm:$0xff] %v2328
                  %v2330 = vld [vmem:[%s2130 + $0x318] sm:$0xff]
                  %2331 = vst [vmem:[%s2131 + $0x18c] sm:$0xff] %v2330
                  %v2332 = vld [vmem:[%s2130 + $0x320] sm:$0xff]
                  %2333 = vst [vmem:[%s2131 + $0x190] sm:$0xff] %v2332
                  %v2334 = vld [vmem:[%s2130 + $0x328] sm:$0xff]
                  %2335 = vst [vmem:[%s2131 + $0x194] sm:$0xff] %v2334
                  %v2336 = vld [vmem:[%s2130 + $0x330] sm:$0xff]
                  %2337 = vst [vmem:[%s2131 + $0x198] sm:$0xff] %v2336
                  %v2338 = vld [vmem:[%s2130 + $0x338] sm:$0xff]
                  %2339 = vst [vmem:[%s2131 + $0x19c] sm:$0xff] %v2338
                  %v2340 = vld [vmem:[%s2130 + $0x340] sm:$0xff]
                  %2341 = vst [vmem:[%s2131 + $0x1a0] sm:$0xff] %v2340
                  %v2342 = vld [vmem:[%s2130 + $0x348] sm:$0xff]
                  %2343 = vst [vmem:[%s2131 + $0x1a4] sm:$0xff] %v2342
                  %v2344 = vld [vmem:[%s2130 + $0x350] sm:$0xff]
                  %2345 = vst [vmem:[%s2131 + $0x1a8] sm:$0xff] %v2344
                  %v2346 = vld [vmem:[%s2130 + $0x358] sm:$0xff]
                  %2347 = vst [vmem:[%s2131 + $0x1ac] sm:$0xff] %v2346
                  %v2348 = vld [vmem:[%s2130 + $0x360] sm:$0xff]
                  %2349 = vst [vmem:[%s2131 + $0x1b0] sm:$0xff] %v2348
                  %v2350 = vld [vmem:[%s2130 + $0x368] sm:$0xff]
                  %2351 = vst [vmem:[%s2131 + $0x1b4] sm:$0xff] %v2350
                  %v2352 = vld [vmem:[%s2130 + $0x370] sm:$0xff]
                  %2353 = vst [vmem:[%s2131 + $0x1b8] sm:$0xff] %v2352
                  %v2354 = vld [vmem:[%s2130 + $0x378] sm:$0xff]
                  %2355 = vst [vmem:[%s2131 + $0x1bc] sm:$0xff] %v2354
                  %v2356 = vld [vmem:[%s2130 + $0x380] sm:$0xff]
                  %2357 = vst [vmem:[%s2131 + $0x1c0] sm:$0xff] %v2356
                  %v2358 = vld [vmem:[%s2130 + $0x388] sm:$0xff]
                  %2359 = vst [vmem:[%s2131 + $0x1c4] sm:$0xff] %v2358
                  %v2360 = vld [vmem:[%s2130 + $0x390] sm:$0xff]
                  %2361 = vst [vmem:[%s2131 + $0x1c8] sm:$0xff] %v2360
                  %v2362 = vld [vmem:[%s2130 + $0x398] sm:$0xff]
                  %2363 = vst [vmem:[%s2131 + $0x1cc] sm:$0xff] %v2362
                  %v2364 = vld [vmem:[%s2130 + $0x3a0] sm:$0xff]
                  %2365 = vst [vmem:[%s2131 + $0x1d0] sm:$0xff] %v2364
                  %v2366 = vld [vmem:[%s2130 + $0x3a8] sm:$0xff]
                  %2367 = vst [vmem:[%s2131 + $0x1d4] sm:$0xff] %v2366
                  %v2368 = vld [vmem:[%s2130 + $0x3b0] sm:$0xff]
                  %2369 = vst [vmem:[%s2131 + $0x1d8] sm:$0xff] %v2368
                  %v2370 = vld [vmem:[%s2130 + $0x3b8] sm:$0xff]
                  %2371 = vst [vmem:[%s2131 + $0x1dc] sm:$0xff] %v2370
                  %v2372 = vld [vmem:[%s2130 + $0x3c0] sm:$0xff]
                  %2373 = vst [vmem:[%s2131 + $0x1e0] sm:$0xff] %v2372
                  %v2374 = vld [vmem:[%s2130 + $0x3c8] sm:$0xff]
                  %2375 = vst [vmem:[%s2131 + $0x1e4] sm:$0xff] %v2374
                  %v2376 = vld [vmem:[%s2130 + $0x3d0] sm:$0xff]
                  %2377 = vst [vmem:[%s2131 + $0x1e8] sm:$0xff] %v2376
                  %v2378 = vld [vmem:[%s2130 + $0x3d8] sm:$0xff]
                  %2379 = vst [vmem:[%s2131 + $0x1ec] sm:$0xff] %v2378
                  %v2380 = vld [vmem:[%s2130 + $0x3e0] sm:$0xff]
                  %2381 = vst [vmem:[%s2131 + $0x1f0] sm:$0xff] %v2380
                  %v2382 = vld [vmem:[%s2130 + $0x3e8] sm:$0xff]
                  %2383 = vst [vmem:[%s2131 + $0x1f4] sm:$0xff] %v2382
                  %v2384 = vld [vmem:[%s2130 + $0x3f0] sm:$0xff]
                  %2385 = vst [vmem:[%s2131 + $0x1f8] sm:$0xff] %v2384
                  %v2386 = vld [vmem:[%s2130 + $0x3f8] sm:$0xff]
                  %2387 = vst [vmem:[%s2131 + $0x1fc] sm:$0xff] %v2386
                  %v2388 = vld [vmem:[%s2130 + $0x400] sm:$0xff]
                  %2389 = vst [vmem:[%s2131 + $0x200] sm:$0xff] %v2388
                  %v2390 = vld [vmem:[%s2130 + $0x408] sm:$0xff]
                  %2391 = vst [vmem:[%s2131 + $0x204] sm:$0xff] %v2390
                  %v2392 = vld [vmem:[%s2130 + $0x410] sm:$0xff]
                  %2393 = vst [vmem:[%s2131 + $0x208] sm:$0xff] %v2392
                  %v2394 = vld [vmem:[%s2130 + $0x418] sm:$0xff]
                  %2395 = vst [vmem:[%s2131 + $0x20c] sm:$0xff] %v2394
                  %v2396 = vld [vmem:[%s2130 + $0x420] sm:$0xff]
                  %2397 = vst [vmem:[%s2131 + $0x210] sm:$0xff] %v2396
                  %v2398 = vld [vmem:[%s2130 + $0x428] sm:$0xff]
                  %2399 = vst [vmem:[%s2131 + $0x214] sm:$0xff] %v2398
                  %v2400 = vld [vmem:[%s2130 + $0x430] sm:$0xff]
                  %2401 = vst [vmem:[%s2131 + $0x218] sm:$0xff] %v2400
                  %v2402 = vld [vmem:[%s2130 + $0x438] sm:$0xff]
                  %2403 = vst [vmem:[%s2131 + $0x21c] sm:$0xff] %v2402
                  %v2404 = vld [vmem:[%s2130 + $0x440] sm:$0xff]
                  %2405 = vst [vmem:[%s2131 + $0x220] sm:$0xff] %v2404
                  %v2406 = vld [vmem:[%s2130 + $0x448] sm:$0xff]
                  %2407 = vst [vmem:[%s2131 + $0x224] sm:$0xff] %v2406
                  %v2408 = vld [vmem:[%s2130 + $0x450] sm:$0xff]
                  %2409 = vst [vmem:[%s2131 + $0x228] sm:$0xff] %v2408
                  %v2410 = vld [vmem:[%s2130 + $0x458] sm:$0xff]
                  %2411 = vst [vmem:[%s2131 + $0x22c] sm:$0xff] %v2410
                  %v2412 = vld [vmem:[%s2130 + $0x460] sm:$0xff]
                  %2413 = vst [vmem:[%s2131 + $0x230] sm:$0xff] %v2412
                  %v2414 = vld [vmem:[%s2130 + $0x468] sm:$0xff]
                  %2415 = vst [vmem:[%s2131 + $0x234] sm:$0xff] %v2414
                  %v2416 = vld [vmem:[%s2130 + $0x470] sm:$0xff]
                  %2417 = vst [vmem:[%s2131 + $0x238] sm:$0xff] %v2416
                  %v2418 = vld [vmem:[%s2130 + $0x478] sm:$0xff]
                  %2419 = vst [vmem:[%s2131 + $0x23c] sm:$0xff] %v2418
                  %v2420 = vld [vmem:[%s2130 + $0x480] sm:$0xff]
                  %2421 = vst [vmem:[%s2131 + $0x240] sm:$0xff] %v2420
                  %v2422 = vld [vmem:[%s2130 + $0x488] sm:$0xff]
                  %2423 = vst [vmem:[%s2131 + $0x244] sm:$0xff] %v2422
                  %v2424 = vld [vmem:[%s2130 + $0x490] sm:$0xff]
                  %2425 = vst [vmem:[%s2131 + $0x248] sm:$0xff] %v2424
                  %v2426 = vld [vmem:[%s2130 + $0x498] sm:$0xff]
                  %2427 = vst [vmem:[%s2131 + $0x24c] sm:$0xff] %v2426
                  %v2428 = vld [vmem:[%s2130 + $0x4a0] sm:$0xff]
                  %2429 = vst [vmem:[%s2131 + $0x250] sm:$0xff] %v2428
                  %v2430 = vld [vmem:[%s2130 + $0x4a8] sm:$0xff]
                  %2431 = vst [vmem:[%s2131 + $0x254] sm:$0xff] %v2430
                  %v2432 = vld [vmem:[%s2130 + $0x4b0] sm:$0xff]
                  %2433 = vst [vmem:[%s2131 + $0x258] sm:$0xff] %v2432
                  %v2434 = vld [vmem:[%s2130 + $0x4b8] sm:$0xff]
                  %2435 = vst [vmem:[%s2131 + $0x25c] sm:$0xff] %v2434
                  %v2436 = vld [vmem:[%s2130 + $0x4c0] sm:$0xff]
                  %2437 = vst [vmem:[%s2131 + $0x260] sm:$0xff] %v2436
                  %v2438 = vld [vmem:[%s2130 + $0x4c8] sm:$0xff]
                  %2439 = vst [vmem:[%s2131 + $0x264] sm:$0xff] %v2438
                  %v2440 = vld [vmem:[%s2130 + $0x4d0] sm:$0xff]
                  %2441 = vst [vmem:[%s2131 + $0x268] sm:$0xff] %v2440
                  %v2442 = vld [vmem:[%s2130 + $0x4d8] sm:$0xff]
                  %2443 = vst [vmem:[%s2131 + $0x26c] sm:$0xff] %v2442
                  %v2444 = vld [vmem:[%s2130 + $0x4e0] sm:$0xff]
                  %2445 = vst [vmem:[%s2131 + $0x270] sm:$0xff] %v2444
                  %v2446 = vld [vmem:[%s2130 + $0x4e8] sm:$0xff]
                  %2447 = vst [vmem:[%s2131 + $0x274] sm:$0xff] %v2446
                  %v2448 = vld [vmem:[%s2130 + $0x4f0] sm:$0xff]
                  %2449 = vst [vmem:[%s2131 + $0x278] sm:$0xff] %v2448
                  %v2450 = vld [vmem:[%s2130 + $0x4f8] sm:$0xff]
                  %2451 = vst [vmem:[%s2131 + $0x27c] sm:$0xff] %v2450
                  %v2452 = vld [vmem:[%s2130 + $0x500] sm:$0xff]
                  %2453 = vst [vmem:[%s2131 + $0x280] sm:$0xff] %v2452
                  %v2454 = vld [vmem:[%s2130 + $0x508] sm:$0xff]
                  %2455 = vst [vmem:[%s2131 + $0x284] sm:$0xff] %v2454
                  %v2456 = vld [vmem:[%s2130 + $0x510] sm:$0xff]
                  %2457 = vst [vmem:[%s2131 + $0x288] sm:$0xff] %v2456
                  %v2458 = vld [vmem:[%s2130 + $0x518] sm:$0xff]
                  %2459 = vst [vmem:[%s2131 + $0x28c] sm:$0xff] %v2458
                  %v2460 = vld [vmem:[%s2130 + $0x520] sm:$0xff]
                  %2461 = vst [vmem:[%s2131 + $0x290] sm:$0xff] %v2460
                  %v2462 = vld [vmem:[%s2130 + $0x528] sm:$0xff]
                  %2463 = vst [vmem:[%s2131 + $0x294] sm:$0xff] %v2462
                  %v2464 = vld [vmem:[%s2130 + $0x530] sm:$0xff]
                  %2465 = vst [vmem:[%s2131 + $0x298] sm:$0xff] %v2464
                  %v2466 = vld [vmem:[%s2130 + $0x538] sm:$0xff]
                  %2467 = vst [vmem:[%s2131 + $0x29c] sm:$0xff] %v2466
                  %v2468 = vld [vmem:[%s2130 + $0x540] sm:$0xff]
                  %2469 = vst [vmem:[%s2131 + $0x2a0] sm:$0xff] %v2468
                  %v2470 = vld [vmem:[%s2130 + $0x548] sm:$0xff]
                  %2471 = vst [vmem:[%s2131 + $0x2a4] sm:$0xff] %v2470
                  %v2472 = vld [vmem:[%s2130 + $0x550] sm:$0xff]
                  %2473 = vst [vmem:[%s2131 + $0x2a8] sm:$0xff] %v2472
                  %v2474 = vld [vmem:[%s2130 + $0x558] sm:$0xff]
                  %2475 = vst [vmem:[%s2131 + $0x2ac] sm:$0xff] %v2474
                  %v2476 = vld [vmem:[%s2130 + $0x560] sm:$0xff]
                  %2477 = vst [vmem:[%s2131 + $0x2b0] sm:$0xff] %v2476
                  %v2478 = vld [vmem:[%s2130 + $0x568] sm:$0xff]
                  %2479 = vst [vmem:[%s2131 + $0x2b4] sm:$0xff] %v2478
                  %v2480 = vld [vmem:[%s2130 + $0x570] sm:$0xff]
                  %2481 = vst [vmem:[%s2131 + $0x2b8] sm:$0xff] %v2480
                  %v2482 = vld [vmem:[%s2130 + $0x578] sm:$0xff]
                  %2483 = vst [vmem:[%s2131 + $0x2bc] sm:$0xff] %v2482
                  %v2484 = vld [vmem:[%s2130 + $0x580] sm:$0xff]
                  %2485 = vst [vmem:[%s2131 + $0x2c0] sm:$0xff] %v2484
                  %v2486 = vld [vmem:[%s2130 + $0x588] sm:$0xff]
                  %2487 = vst [vmem:[%s2131 + $0x2c4] sm:$0xff] %v2486
                  %v2488 = vld [vmem:[%s2130 + $0x590] sm:$0xff]
                  %2489 = vst [vmem:[%s2131 + $0x2c8] sm:$0xff] %v2488
                  %v2490 = vld [vmem:[%s2130 + $0x598] sm:$0xff]
                  %2491 = vst [vmem:[%s2131 + $0x2cc] sm:$0xff] %v2490
                  %v2492 = vld [vmem:[%s2130 + $0x5a0] sm:$0xff]
                  %2493 = vst [vmem:[%s2131 + $0x2d0] sm:$0xff] %v2492
                  %v2494 = vld [vmem:[%s2130 + $0x5a8] sm:$0xff]
                  %2495 = vst [vmem:[%s2131 + $0x2d4] sm:$0xff] %v2494
                  %v2496 = vld [vmem:[%s2130 + $0x5b0] sm:$0xff]
                  %2497 = vst [vmem:[%s2131 + $0x2d8] sm:$0xff] %v2496
                  %v2498 = vld [vmem:[%s2130 + $0x5b8] sm:$0xff]
                  %2499 = vst [vmem:[%s2131 + $0x2dc] sm:$0xff] %v2498
                  %v2500 = vld [vmem:[%s2130 + $0x5c0] sm:$0xff]
                  %2501 = vst [vmem:[%s2131 + $0x2e0] sm:$0xff] %v2500
                  %v2502 = vld [vmem:[%s2130 + $0x5c8] sm:$0xff]
                  %2503 = vst [vmem:[%s2131 + $0x2e4] sm:$0xff] %v2502
                  %v2504 = vld [vmem:[%s2130 + $0x5d0] sm:$0xff]
                  %2505 = vst [vmem:[%s2131 + $0x2e8] sm:$0xff] %v2504
                  %v2506 = vld [vmem:[%s2130 + $0x5d8] sm:$0xff]
                  %2507 = vst [vmem:[%s2131 + $0x2ec] sm:$0xff] %v2506
                  %v2508 = vld [vmem:[%s2130 + $0x5e0] sm:$0xff]
                  %2509 = vst [vmem:[%s2131 + $0x2f0] sm:$0xff] %v2508
                  %v2510 = vld [vmem:[%s2130 + $0x5e8] sm:$0xff]
                  %2511 = vst [vmem:[%s2131 + $0x2f4] sm:$0xff] %v2510
                  %v2512 = vld [vmem:[%s2130 + $0x5f0] sm:$0xff]
                  %2513 = vst [vmem:[%s2131 + $0x2f8] sm:$0xff] %v2512
                  %v2514 = vld [vmem:[%s2130 + $0x5f8] sm:$0xff]
                  %2515 = vst [vmem:[%s2131 + $0x2fc] sm:$0xff] %v2514
                  %v2516 = vld [vmem:[%s2130 + $0x600] sm:$0xff]
                  %2517 = vst [vmem:[%s2131 + $0x300] sm:$0xff] %v2516
                  %v2518 = vld [vmem:[%s2130 + $0x608] sm:$0xff]
                  %2519 = vst [vmem:[%s2131 + $0x304] sm:$0xff] %v2518
                  %v2520 = vld [vmem:[%s2130 + $0x610] sm:$0xff]
                  %2521 = vst [vmem:[%s2131 + $0x308] sm:$0xff] %v2520
                  %v2522 = vld [vmem:[%s2130 + $0x618] sm:$0xff]
                  %2523 = vst [vmem:[%s2131 + $0x30c] sm:$0xff] %v2522
                  %v2524 = vld [vmem:[%s2130 + $0x620] sm:$0xff]
                  %2525 = vst [vmem:[%s2131 + $0x310] sm:$0xff] %v2524
                  %v2526 = vld [vmem:[%s2130 + $0x628] sm:$0xff]
                  %2527 = vst [vmem:[%s2131 + $0x314] sm:$0xff] %v2526
                  %v2528 = vld [vmem:[%s2130 + $0x630] sm:$0xff]
                  %2529 = vst [vmem:[%s2131 + $0x318] sm:$0xff] %v2528
                  %v2530 = vld [vmem:[%s2130 + $0x638] sm:$0xff]
                  %2531 = vst [vmem:[%s2131 + $0x31c] sm:$0xff] %v2530
                  %v2532 = vld [vmem:[%s2130 + $0x640] sm:$0xff]
                  %2533 = vst [vmem:[%s2131 + $0x320] sm:$0xff] %v2532
                  %v2534 = vld [vmem:[%s2130 + $0x648] sm:$0xff]
                  %2535 = vst [vmem:[%s2131 + $0x324] sm:$0xff] %v2534
                  %v2536 = vld [vmem:[%s2130 + $0x650] sm:$0xff]
                  %2537 = vst [vmem:[%s2131 + $0x328] sm:$0xff] %v2536
                  %v2538 = vld [vmem:[%s2130 + $0x658] sm:$0xff]
                  %2539 = vst [vmem:[%s2131 + $0x32c] sm:$0xff] %v2538
                  %v2540 = vld [vmem:[%s2130 + $0x660] sm:$0xff]
                  %2541 = vst [vmem:[%s2131 + $0x330] sm:$0xff] %v2540
                  %v2542 = vld [vmem:[%s2130 + $0x668] sm:$0xff]
                  %2543 = vst [vmem:[%s2131 + $0x334] sm:$0xff] %v2542
                  %v2544 = vld [vmem:[%s2130 + $0x670] sm:$0xff]
                  %2545 = vst [vmem:[%s2131 + $0x338] sm:$0xff] %v2544
                  %v2546 = vld [vmem:[%s2130 + $0x678] sm:$0xff]
                  %2547 = vst [vmem:[%s2131 + $0x33c] sm:$0xff] %v2546
                  %v2548 = vld [vmem:[%s2130 + $0x680] sm:$0xff]
                  %2549 = vst [vmem:[%s2131 + $0x340] sm:$0xff] %v2548
                  %v2550 = vld [vmem:[%s2130 + $0x688] sm:$0xff]
                  %2551 = vst [vmem:[%s2131 + $0x344] sm:$0xff] %v2550
                  %v2552 = vld [vmem:[%s2130 + $0x690] sm:$0xff]
                  %2553 = vst [vmem:[%s2131 + $0x348] sm:$0xff] %v2552
                  %v2554 = vld [vmem:[%s2130 + $0x698] sm:$0xff]
                  %2555 = vst [vmem:[%s2131 + $0x34c] sm:$0xff] %v2554
                  %v2556 = vld [vmem:[%s2130 + $0x6a0] sm:$0xff]
                  %2557 = vst [vmem:[%s2131 + $0x350] sm:$0xff] %v2556
                  %v2558 = vld [vmem:[%s2130 + $0x6a8] sm:$0xff]
                  %2559 = vst [vmem:[%s2131 + $0x354] sm:$0xff] %v2558
                  %v2560 = vld [vmem:[%s2130 + $0x6b0] sm:$0xff]
                  %2561 = vst [vmem:[%s2131 + $0x358] sm:$0xff] %v2560
                  %v2562 = vld [vmem:[%s2130 + $0x6b8] sm:$0xff]
                  %2563 = vst [vmem:[%s2131 + $0x35c] sm:$0xff] %v2562
                  %v2564 = vld [vmem:[%s2130 + $0x6c0] sm:$0xff]
                  %2565 = vst [vmem:[%s2131 + $0x360] sm:$0xff] %v2564
                  %v2566 = vld [vmem:[%s2130 + $0x6c8] sm:$0xff]
                  %2567 = vst [vmem:[%s2131 + $0x364] sm:$0xff] %v2566
                  %v2568 = vld [vmem:[%s2130 + $0x6d0] sm:$0xff]
                  %2569 = vst [vmem:[%s2131 + $0x368] sm:$0xff] %v2568
                  %v2570 = vld [vmem:[%s2130 + $0x6d8] sm:$0xff]
                  %2571 = vst [vmem:[%s2131 + $0x36c] sm:$0xff] %v2570
                  %v2572 = vld [vmem:[%s2130 + $0x6e0] sm:$0xff]
                  %2573 = vst [vmem:[%s2131 + $0x370] sm:$0xff] %v2572
                  %v2574 = vld [vmem:[%s2130 + $0x6e8] sm:$0xff]
                  %2575 = vst [vmem:[%s2131 + $0x374] sm:$0xff] %v2574
                  %v2576 = vld [vmem:[%s2130 + $0x6f0] sm:$0xff]
                  %2577 = vst [vmem:[%s2131 + $0x378] sm:$0xff] %v2576
                  %v2578 = vld [vmem:[%s2130 + $0x6f8] sm:$0xff]
                  %2579 = vst [vmem:[%s2131 + $0x37c] sm:$0xff] %v2578
                  %v2580 = vld [vmem:[%s2130 + $0x700] sm:$0xff]
                  %2581 = vst [vmem:[%s2131 + $0x380] sm:$0xff] %v2580
                  %v2582 = vld [vmem:[%s2130 + $0x708] sm:$0xff]
                  %2583 = vst [vmem:[%s2131 + $0x384] sm:$0xff] %v2582
                  %v2584 = vld [vmem:[%s2130 + $0x710] sm:$0xff]
                  %2585 = vst [vmem:[%s2131 + $0x388] sm:$0xff] %v2584
                  %v2586 = vld [vmem:[%s2130 + $0x718] sm:$0xff]
                  %2587 = vst [vmem:[%s2131 + $0x38c] sm:$0xff] %v2586
                  %v2588 = vld [vmem:[%s2130 + $0x720] sm:$0xff]
                  %2589 = vst [vmem:[%s2131 + $0x390] sm:$0xff] %v2588
                  %v2590 = vld [vmem:[%s2130 + $0x728] sm:$0xff]
                  %2591 = vst [vmem:[%s2131 + $0x394] sm:$0xff] %v2590
                  %v2592 = vld [vmem:[%s2130 + $0x730] sm:$0xff]
                  %2593 = vst [vmem:[%s2131 + $0x398] sm:$0xff] %v2592
                  %v2594 = vld [vmem:[%s2130 + $0x738] sm:$0xff]
                  %2595 = vst [vmem:[%s2131 + $0x39c] sm:$0xff] %v2594
                  %v2596 = vld [vmem:[%s2130 + $0x740] sm:$0xff]
                  %2597 = vst [vmem:[%s2131 + $0x3a0] sm:$0xff] %v2596
                  %v2598 = vld [vmem:[%s2130 + $0x748] sm:$0xff]
                  %2599 = vst [vmem:[%s2131 + $0x3a4] sm:$0xff] %v2598
                  %v2600 = vld [vmem:[%s2130 + $0x750] sm:$0xff]
                  %2601 = vst [vmem:[%s2131 + $0x3a8] sm:$0xff] %v2600
                  %v2602 = vld [vmem:[%s2130 + $0x758] sm:$0xff]
                  %2603 = vst [vmem:[%s2131 + $0x3ac] sm:$0xff] %v2602
                  %v2604 = vld [vmem:[%s2130 + $0x760] sm:$0xff]
                  %2605 = vst [vmem:[%s2131 + $0x3b0] sm:$0xff] %v2604
                  %v2606 = vld [vmem:[%s2130 + $0x768] sm:$0xff]
                  %2607 = vst [vmem:[%s2131 + $0x3b4] sm:$0xff] %v2606
                  %v2608 = vld [vmem:[%s2130 + $0x770] sm:$0xff]
                  %2609 = vst [vmem:[%s2131 + $0x3b8] sm:$0xff] %v2608
                  %v2610 = vld [vmem:[%s2130 + $0x778] sm:$0xff]
                  %2611 = vst [vmem:[%s2131 + $0x3bc] sm:$0xff] %v2610
                  %v2612 = vld [vmem:[%s2130 + $0x780] sm:$0xff]
                  %2613 = vst [vmem:[%s2131 + $0x3c0] sm:$0xff] %v2612
                  %v2614 = vld [vmem:[%s2130 + $0x788] sm:$0xff]
                  %2615 = vst [vmem:[%s2131 + $0x3c4] sm:$0xff] %v2614
                  %v2616 = vld [vmem:[%s2130 + $0x790] sm:$0xff]
                  %2617 = vst [vmem:[%s2131 + $0x3c8] sm:$0xff] %v2616
                  %v2618 = vld [vmem:[%s2130 + $0x798] sm:$0xff]
                  %2619 = vst [vmem:[%s2131 + $0x3cc] sm:$0xff] %v2618
                  %v2620 = vld [vmem:[%s2130 + $0x7a0] sm:$0xff]
                  %2621 = vst [vmem:[%s2131 + $0x3d0] sm:$0xff] %v2620
                  %v2622 = vld [vmem:[%s2130 + $0x7a8] sm:$0xff]
                  %2623 = vst [vmem:[%s2131 + $0x3d4] sm:$0xff] %v2622
                  %v2624 = vld [vmem:[%s2130 + $0x7b0] sm:$0xff]
                  %2625 = vst [vmem:[%s2131 + $0x3d8] sm:$0xff] %v2624
                  %v2626 = vld [vmem:[%s2130 + $0x7b8] sm:$0xff]
                  %2627 = vst [vmem:[%s2131 + $0x3dc] sm:$0xff] %v2626
                  %v2628 = vld [vmem:[%s2130 + $0x7c0] sm:$0xff]
                  %2629 = vst [vmem:[%s2131 + $0x3e0] sm:$0xff] %v2628
                  %v2630 = vld [vmem:[%s2130 + $0x7c8] sm:$0xff]
                  %2631 = vst [vmem:[%s2131 + $0x3e4] sm:$0xff] %v2630
                  %v2632 = vld [vmem:[%s2130 + $0x7d0] sm:$0xff]
                  %2633 = vst [vmem:[%s2131 + $0x3e8] sm:$0xff] %v2632
                  %v2634 = vld [vmem:[%s2130 + $0x7d8] sm:$0xff]
                  %2635 = vst [vmem:[%s2131 + $0x3ec] sm:$0xff] %v2634
                  %v2636 = vld [vmem:[%s2130 + $0x7e0] sm:$0xff]
                  %2637 = vst [vmem:[%s2131 + $0x3f0] sm:$0xff] %v2636
                  %v2638 = vld [vmem:[%s2130 + $0x7e8] sm:$0xff]
                  %2639 = vst [vmem:[%s2131 + $0x3f4] sm:$0xff] %v2638
                  %v2640 = vld [vmem:[%s2130 + $0x7f0] sm:$0xff]
                  %2641 = vst [vmem:[%s2131 + $0x3f8] sm:$0xff] %v2640
                  %v2642 = vld [vmem:[%s2130 + $0x7f8] sm:$0xff]
                  %2643 = vst [vmem:[%s2131 + $0x3fc] sm:$0xff] %v2642
                  %v2644 = vld [vmem:[%s2130 + $0x800] sm:$0xff]
                  %2645 = vst [vmem:[%s2131 + $0x400] sm:$0xff] %v2644
                  %v2646 = vld [vmem:[%s2130 + $0x808] sm:$0xff]
                  %2647 = vst [vmem:[%s2131 + $0x404] sm:$0xff] %v2646
                  %v2648 = vld [vmem:[%s2130 + $0x810] sm:$0xff]
                  %2649 = vst [vmem:[%s2131 + $0x408] sm:$0xff] %v2648
                  %v2650 = vld [vmem:[%s2130 + $0x818] sm:$0xff]
                  %2651 = vst [vmem:[%s2131 + $0x40c] sm:$0xff] %v2650
                  %v2652 = vld [vmem:[%s2130 + $0x820] sm:$0xff]
                  %2653 = vst [vmem:[%s2131 + $0x410] sm:$0xff] %v2652
                  %v2654 = vld [vmem:[%s2130 + $0x828] sm:$0xff]
                  %2655 = vst [vmem:[%s2131 + $0x414] sm:$0xff] %v2654
                  %v2656 = vld [vmem:[%s2130 + $0x830] sm:$0xff]
                  %2657 = vst [vmem:[%s2131 + $0x418] sm:$0xff] %v2656
                  %v2658 = vld [vmem:[%s2130 + $0x838] sm:$0xff]
                  %2659 = vst [vmem:[%s2131 + $0x41c] sm:$0xff] %v2658
                  %v2660 = vld [vmem:[%s2130 + $0x840] sm:$0xff]
                  %2661 = vst [vmem:[%s2131 + $0x420] sm:$0xff] %v2660
                  %v2662 = vld [vmem:[%s2130 + $0x848] sm:$0xff]
                  %2663 = vst [vmem:[%s2131 + $0x424] sm:$0xff] %v2662
                  %v2664 = vld [vmem:[%s2130 + $0x850] sm:$0xff]
                  %2665 = vst [vmem:[%s2131 + $0x428] sm:$0xff] %v2664
                  %v2666 = vld [vmem:[%s2130 + $0x858] sm:$0xff]
                  %2667 = vst [vmem:[%s2131 + $0x42c] sm:$0xff] %v2666
                  %v2668 = vld [vmem:[%s2130 + $0x860] sm:$0xff]
                  %2669 = vst [vmem:[%s2131 + $0x430] sm:$0xff] %v2668
                  %v2670 = vld [vmem:[%s2130 + $0x868] sm:$0xff]
                  %2671 = vst [vmem:[%s2131 + $0x434] sm:$0xff] %v2670
                  %v2672 = vld [vmem:[%s2130 + $0x870] sm:$0xff]
                  %2673 = vst [vmem:[%s2131 + $0x438] sm:$0xff] %v2672
                  %v2674 = vld [vmem:[%s2130 + $0x878] sm:$0xff]
                  %2675 = vst [vmem:[%s2131 + $0x43c] sm:$0xff] %v2674
                  %v2676 = vld [vmem:[%s2130 + $0x880] sm:$0xff]
                  %2677 = vst [vmem:[%s2131 + $0x440] sm:$0xff] %v2676
                  %v2678 = vld [vmem:[%s2130 + $0x888] sm:$0xff]
                  %2679 = vst [vmem:[%s2131 + $0x444] sm:$0xff] %v2678
                  %v2680 = vld [vmem:[%s2130 + $0x890] sm:$0xff]
                  %2681 = vst [vmem:[%s2131 + $0x448] sm:$0xff] %v2680
                  %v2682 = vld [vmem:[%s2130 + $0x898] sm:$0xff]
                  %2683 = vst [vmem:[%s2131 + $0x44c] sm:$0xff] %v2682
                  %v2684 = vld [vmem:[%s2130 + $0x8a0] sm:$0xff]
                  %2685 = vst [vmem:[%s2131 + $0x450] sm:$0xff] %v2684
                  %v2686 = vld [vmem:[%s2130 + $0x8a8] sm:$0xff]
                  %2687 = vst [vmem:[%s2131 + $0x454] sm:$0xff] %v2686
                  %v2688 = vld [vmem:[%s2130 + $0x8b0] sm:$0xff]
                  %2689 = vst [vmem:[%s2131 + $0x458] sm:$0xff] %v2688
                  %v2690 = vld [vmem:[%s2130 + $0x8b8] sm:$0xff]
                  %2691 = vst [vmem:[%s2131 + $0x45c] sm:$0xff] %v2690
                  %v2692 = vld [vmem:[%s2130 + $0x8c0] sm:$0xff]
                  %2693 = vst [vmem:[%s2131 + $0x460] sm:$0xff] %v2692
                  %v2694 = vld [vmem:[%s2130 + $0x8c8] sm:$0xff]
                  %2695 = vst [vmem:[%s2131 + $0x464] sm:$0xff] %v2694
                  %v2696 = vld [vmem:[%s2130 + $0x8d0] sm:$0xff]
                  %2697 = vst [vmem:[%s2131 + $0x468] sm:$0xff] %v2696
                  %v2698 = vld [vmem:[%s2130 + $0x8d8] sm:$0xff]
                  %2699 = vst [vmem:[%s2131 + $0x46c] sm:$0xff] %v2698
                  %v2700 = vld [vmem:[%s2130 + $0x8e0] sm:$0xff]
                  %2701 = vst [vmem:[%s2131 + $0x470] sm:$0xff] %v2700
                  %v2702 = vld [vmem:[%s2130 + $0x8e8] sm:$0xff]
                  %2703 = vst [vmem:[%s2131 + $0x474] sm:$0xff] %v2702
                  %v2704 = vld [vmem:[%s2130 + $0x8f0] sm:$0xff]
                  %2705 = vst [vmem:[%s2131 + $0x478] sm:$0xff] %v2704
                  %v2706 = vld [vmem:[%s2130 + $0x8f8] sm:$0xff]
                  %2707 = vst [vmem:[%s2131 + $0x47c] sm:$0xff] %v2706
                  %v2708 = vld [vmem:[%s2130 + $0x900] sm:$0xff]
                  %2709 = vst [vmem:[%s2131 + $0x480] sm:$0xff] %v2708
                  %v2710 = vld [vmem:[%s2130 + $0x908] sm:$0xff]
                  %2711 = vst [vmem:[%s2131 + $0x484] sm:$0xff] %v2710
                  %v2712 = vld [vmem:[%s2130 + $0x910] sm:$0xff]
                  %2713 = vst [vmem:[%s2131 + $0x488] sm:$0xff] %v2712
                  %v2714 = vld [vmem:[%s2130 + $0x918] sm:$0xff]
                  %2715 = vst [vmem:[%s2131 + $0x48c] sm:$0xff] %v2714
                  %v2716 = vld [vmem:[%s2130 + $0x920] sm:$0xff]
                  %2717 = vst [vmem:[%s2131 + $0x490] sm:$0xff] %v2716
                  %v2718 = vld [vmem:[%s2130 + $0x928] sm:$0xff]
                  %2719 = vst [vmem:[%s2131 + $0x494] sm:$0xff] %v2718
                  %v2720 = vld [vmem:[%s2130 + $0x930] sm:$0xff]
                  %2721 = vst [vmem:[%s2131 + $0x498] sm:$0xff] %v2720
                  %v2722 = vld [vmem:[%s2130 + $0x938] sm:$0xff]
                  %2723 = vst [vmem:[%s2131 + $0x49c] sm:$0xff] %v2722
                  %v2724 = vld [vmem:[%s2130 + $0x940] sm:$0xff]
                  %2725 = vst [vmem:[%s2131 + $0x4a0] sm:$0xff] %v2724
                  %v2726 = vld [vmem:[%s2130 + $0x948] sm:$0xff]
                  %2727 = vst [vmem:[%s2131 + $0x4a4] sm:$0xff] %v2726
                  %v2728 = vld [vmem:[%s2130 + $0x950] sm:$0xff]
                  %2729 = vst [vmem:[%s2131 + $0x4a8] sm:$0xff] %v2728
                  %v2730 = vld [vmem:[%s2130 + $0x958] sm:$0xff]
                  %2731 = vst [vmem:[%s2131 + $0x4ac] sm:$0xff] %v2730
                  %v2732 = vld [vmem:[%s2130 + $0x960] sm:$0xff]
                  %2733 = vst [vmem:[%s2131 + $0x4b0] sm:$0xff] %v2732
                  %v2734 = vld [vmem:[%s2130 + $0x968] sm:$0xff]
                  %2735 = vst [vmem:[%s2131 + $0x4b4] sm:$0xff] %v2734
                  %v2736 = vld [vmem:[%s2130 + $0x970] sm:$0xff]
                  %2737 = vst [vmem:[%s2131 + $0x4b8] sm:$0xff] %v2736
                  %v2738 = vld [vmem:[%s2130 + $0x978] sm:$0xff]
                  %2739 = vst [vmem:[%s2131 + $0x4bc] sm:$0xff] %v2738
                  %v2740 = vld [vmem:[%s2130 + $0x980] sm:$0xff]
                  %2741 = vst [vmem:[%s2131 + $0x4c0] sm:$0xff] %v2740
                  %v2742 = vld [vmem:[%s2130 + $0x988] sm:$0xff]
                  %2743 = vst [vmem:[%s2131 + $0x4c4] sm:$0xff] %v2742
                  %v2744 = vld [vmem:[%s2130 + $0x990] sm:$0xff]
                  %2745 = vst [vmem:[%s2131 + $0x4c8] sm:$0xff] %v2744
                  %v2746 = vld [vmem:[%s2130 + $0x998] sm:$0xff]
                  %2747 = vst [vmem:[%s2131 + $0x4cc] sm:$0xff] %v2746
                  %v2748 = vld [vmem:[%s2130 + $0x9a0] sm:$0xff]
                  %2749 = vst [vmem:[%s2131 + $0x4d0] sm:$0xff] %v2748
                  %v2750 = vld [vmem:[%s2130 + $0x9a8] sm:$0xff]
                  %2751 = vst [vmem:[%s2131 + $0x4d4] sm:$0xff] %v2750
                  %v2752 = vld [vmem:[%s2130 + $0x9b0] sm:$0xff]
                  %2753 = vst [vmem:[%s2131 + $0x4d8] sm:$0xff] %v2752
                  %v2754 = vld [vmem:[%s2130 + $0x9b8] sm:$0xff]
                  %2755 = vst [vmem:[%s2131 + $0x4dc] sm:$0xff] %v2754
                  %v2756 = vld [vmem:[%s2130 + $0x9c0] sm:$0xff]
                  %2757 = vst [vmem:[%s2131 + $0x4e0] sm:$0xff] %v2756
                  %v2758 = vld [vmem:[%s2130 + $0x9c8] sm:$0xff]
                  %2759 = vst [vmem:[%s2131 + $0x4e4] sm:$0xff] %v2758
                  %v2760 = vld [vmem:[%s2130 + $0x9d0] sm:$0xff]
                  %2761 = vst [vmem:[%s2131 + $0x4e8] sm:$0xff] %v2760
                  %v2762 = vld [vmem:[%s2130 + $0x9d8] sm:$0xff]
                  %2763 = vst [vmem:[%s2131 + $0x4ec] sm:$0xff] %v2762
                  %v2764 = vld [vmem:[%s2130 + $0x9e0] sm:$0xff]
                  %2765 = vst [vmem:[%s2131 + $0x4f0] sm:$0xff] %v2764
                  %v2766 = vld [vmem:[%s2130 + $0x9e8] sm:$0xff]
                  %2767 = vst [vmem:[%s2131 + $0x4f4] sm:$0xff] %v2766
                  %v2768 = vld [vmem:[%s2130 + $0x9f0] sm:$0xff]
                  %2769 = vst [vmem:[%s2131 + $0x4f8] sm:$0xff] %v2768
                  %v2770 = vld [vmem:[%s2130 + $0x9f8] sm:$0xff]
                  %2771 = vst [vmem:[%s2131 + $0x4fc] sm:$0xff] %v2770
                  %v2772 = vld [vmem:[%s2130 + $0xa00] sm:$0xff]
                  %2773 = vst [vmem:[%s2131 + $0x500] sm:$0xff] %v2772
                  %v2774 = vld [vmem:[%s2130 + $0xa08] sm:$0xff]
                  %2775 = vst [vmem:[%s2131 + $0x504] sm:$0xff] %v2774
                  %v2776 = vld [vmem:[%s2130 + $0xa10] sm:$0xff]
                  %2777 = vst [vmem:[%s2131 + $0x508] sm:$0xff] %v2776
                  %v2778 = vld [vmem:[%s2130 + $0xa18] sm:$0xff]
                  %2779 = vst [vmem:[%s2131 + $0x50c] sm:$0xff] %v2778
                  %v2780 = vld [vmem:[%s2130 + $0xa20] sm:$0xff]
                  %2781 = vst [vmem:[%s2131 + $0x510] sm:$0xff] %v2780
                  %v2782 = vld [vmem:[%s2130 + $0xa28] sm:$0xff]
                  %2783 = vst [vmem:[%s2131 + $0x514] sm:$0xff] %v2782
                  %v2784 = vld [vmem:[%s2130 + $0xa30] sm:$0xff]
                  %2785 = vst [vmem:[%s2131 + $0x518] sm:$0xff] %v2784
                  %v2786 = vld [vmem:[%s2130 + $0xa38] sm:$0xff]
                  %2787 = vst [vmem:[%s2131 + $0x51c] sm:$0xff] %v2786
                  %v2788 = vld [vmem:[%s2130 + $0xa40] sm:$0xff]
                  %2789 = vst [vmem:[%s2131 + $0x520] sm:$0xff] %v2788
                  %v2790 = vld [vmem:[%s2130 + $0xa48] sm:$0xff]
                  %2791 = vst [vmem:[%s2131 + $0x524] sm:$0xff] %v2790
                  %v2792 = vld [vmem:[%s2130 + $0xa50] sm:$0xff]
                  %2793 = vst [vmem:[%s2131 + $0x528] sm:$0xff] %v2792
                  %v2794 = vld [vmem:[%s2130 + $0xa58] sm:$0xff]
                  %2795 = vst [vmem:[%s2131 + $0x52c] sm:$0xff] %v2794
                  %v2796 = vld [vmem:[%s2130 + $0xa60] sm:$0xff]
                  %2797 = vst [vmem:[%s2131 + $0x530] sm:$0xff] %v2796
                  %v2798 = vld [vmem:[%s2130 + $0xa68] sm:$0xff]
                  %2799 = vst [vmem:[%s2131 + $0x534] sm:$0xff] %v2798
                  %v2800 = vld [vmem:[%s2130 + $0xa70] sm:$0xff]
                  %2801 = vst [vmem:[%s2131 + $0x538] sm:$0xff] %v2800
                  %v2802 = vld [vmem:[%s2130 + $0xa78] sm:$0xff]
                  %2803 = vst [vmem:[%s2131 + $0x53c] sm:$0xff] %v2802
                  %v2804 = vld [vmem:[%s2130 + $0xa80] sm:$0xff]
                  %2805 = vst [vmem:[%s2131 + $0x540] sm:$0xff] %v2804
                  %v2806 = vld [vmem:[%s2130 + $0xa88] sm:$0xff]
                  %2807 = vst [vmem:[%s2131 + $0x544] sm:$0xff] %v2806
                  %v2808 = vld [vmem:[%s2130 + $0xa90] sm:$0xff]
                  %2809 = vst [vmem:[%s2131 + $0x548] sm:$0xff] %v2808
                  %v2810 = vld [vmem:[%s2130 + $0xa98] sm:$0xff]
                  %2811 = vst [vmem:[%s2131 + $0x54c] sm:$0xff] %v2810
                  %v2812 = vld [vmem:[%s2130 + $0xaa0] sm:$0xff]
                  %2813 = vst [vmem:[%s2131 + $0x550] sm:$0xff] %v2812
                  %v2814 = vld [vmem:[%s2130 + $0xaa8] sm:$0xff]
                  %2815 = vst [vmem:[%s2131 + $0x554] sm:$0xff] %v2814
                  %v2816 = vld [vmem:[%s2130 + $0xab0] sm:$0xff]
                  %2817 = vst [vmem:[%s2131 + $0x558] sm:$0xff] %v2816
                  %v2818 = vld [vmem:[%s2130 + $0xab8] sm:$0xff]
                  %2819 = vst [vmem:[%s2131 + $0x55c] sm:$0xff] %v2818
                  %v2820 = vld [vmem:[%s2130 + $0xac0] sm:$0xff]
                  %2821 = vst [vmem:[%s2131 + $0x560] sm:$0xff] %v2820
                  %v2822 = vld [vmem:[%s2130 + $0xac8] sm:$0xff]
                  %2823 = vst [vmem:[%s2131 + $0x564] sm:$0xff] %v2822
                  %v2824 = vld [vmem:[%s2130 + $0xad0] sm:$0xff]
                  %2825 = vst [vmem:[%s2131 + $0x568] sm:$0xff] %v2824
                  %v2826 = vld [vmem:[%s2130 + $0xad8] sm:$0xff]
                  %2827 = vst [vmem:[%s2131 + $0x56c] sm:$0xff] %v2826
                  %v2828 = vld [vmem:[%s2130 + $0xae0] sm:$0xff]
                  %2829 = vst [vmem:[%s2131 + $0x570] sm:$0xff] %v2828
                  %v2830 = vld [vmem:[%s2130 + $0xae8] sm:$0xff]
                  %2831 = vst [vmem:[%s2131 + $0x574] sm:$0xff] %v2830
                  %v2832 = vld [vmem:[%s2130 + $0xaf0] sm:$0xff]
                  %2833 = vst [vmem:[%s2131 + $0x578] sm:$0xff] %v2832
                  %v2834 = vld [vmem:[%s2130 + $0xaf8] sm:$0xff]
                  %2835 = vst [vmem:[%s2131 + $0x57c] sm:$0xff] %v2834
                  %v2836 = vld [vmem:[%s2130 + $0xb00] sm:$0xff]
                  %2837 = vst [vmem:[%s2131 + $0x580] sm:$0xff] %v2836
                  %v2838 = vld [vmem:[%s2130 + $0xb08] sm:$0xff]
                  %2839 = vst [vmem:[%s2131 + $0x584] sm:$0xff] %v2838
                  %v2840 = vld [vmem:[%s2130 + $0xb10] sm:$0xff]
                  %2841 = vst [vmem:[%s2131 + $0x588] sm:$0xff] %v2840
                  %v2842 = vld [vmem:[%s2130 + $0xb18] sm:$0xff]
                  %2843 = vst [vmem:[%s2131 + $0x58c] sm:$0xff] %v2842
                  %v2844 = vld [vmem:[%s2130 + $0xb20] sm:$0xff]
                  %2845 = vst [vmem:[%s2131 + $0x590] sm:$0xff] %v2844
                  %v2846 = vld [vmem:[%s2130 + $0xb28] sm:$0xff]
                  %2847 = vst [vmem:[%s2131 + $0x594] sm:$0xff] %v2846
                  %v2848 = vld [vmem:[%s2130 + $0xb30] sm:$0xff]
                  %2849 = vst [vmem:[%s2131 + $0x598] sm:$0xff] %v2848
                  %v2850 = vld [vmem:[%s2130 + $0xb38] sm:$0xff]
                  %2851 = vst [vmem:[%s2131 + $0x59c] sm:$0xff] %v2850
                  %v2852 = vld [vmem:[%s2130 + $0xb40] sm:$0xff]
                  %2853 = vst [vmem:[%s2131 + $0x5a0] sm:$0xff] %v2852
                  %v2854 = vld [vmem:[%s2130 + $0xb48] sm:$0xff]
                  %2855 = vst [vmem:[%s2131 + $0x5a4] sm:$0xff] %v2854
                  %v2856 = vld [vmem:[%s2130 + $0xb50] sm:$0xff]
                  %2857 = vst [vmem:[%s2131 + $0x5a8] sm:$0xff] %v2856
                  %v2858 = vld [vmem:[%s2130 + $0xb58] sm:$0xff]
                  %2859 = vst [vmem:[%s2131 + $0x5ac] sm:$0xff] %v2858
                  %v2860 = vld [vmem:[%s2130 + $0xb60] sm:$0xff]
                  %2861 = vst [vmem:[%s2131 + $0x5b0] sm:$0xff] %v2860
                  %v2862 = vld [vmem:[%s2130 + $0xb68] sm:$0xff]
                  %2863 = vst [vmem:[%s2131 + $0x5b4] sm:$0xff] %v2862
                  %v2864 = vld [vmem:[%s2130 + $0xb70] sm:$0xff]
                  %2865 = vst [vmem:[%s2131 + $0x5b8] sm:$0xff] %v2864
                  %v2866 = vld [vmem:[%s2130 + $0xb78] sm:$0xff]
                  %2867 = vst [vmem:[%s2131 + $0x5bc] sm:$0xff] %v2866
                  %v2868 = vld [vmem:[%s2130 + $0xb80] sm:$0xff]
                  %2869 = vst [vmem:[%s2131 + $0x5c0] sm:$0xff] %v2868
                  %v2870 = vld [vmem:[%s2130 + $0xb88] sm:$0xff]
                  %2871 = vst [vmem:[%s2131 + $0x5c4] sm:$0xff] %v2870
                  %v2872 = vld [vmem:[%s2130 + $0xb90] sm:$0xff]
                  %2873 = vst [vmem:[%s2131 + $0x5c8] sm:$0xff] %v2872
                  %v2874 = vld [vmem:[%s2130 + $0xb98] sm:$0xff]
                  %2875 = vst [vmem:[%s2131 + $0x5cc] sm:$0xff] %v2874
                  %v2876 = vld [vmem:[%s2130 + $0xba0] sm:$0xff]
                  %2877 = vst [vmem:[%s2131 + $0x5d0] sm:$0xff] %v2876
                  %v2878 = vld [vmem:[%s2130 + $0xba8] sm:$0xff]
                  %2879 = vst [vmem:[%s2131 + $0x5d4] sm:$0xff] %v2878
                  %v2880 = vld [vmem:[%s2130 + $0xbb0] sm:$0xff]
                  %2881 = vst [vmem:[%s2131 + $0x5d8] sm:$0xff] %v2880
                  %v2882 = vld [vmem:[%s2130 + $0xbb8] sm:$0xff]
                  %2883 = vst [vmem:[%s2131 + $0x5dc] sm:$0xff] %v2882
                  %v2884 = vld [vmem:[%s2130 + $0xbc0] sm:$0xff]
                  %2885 = vst [vmem:[%s2131 + $0x5e0] sm:$0xff] %v2884
                  %v2886 = vld [vmem:[%s2130 + $0xbc8] sm:$0xff]
                  %2887 = vst [vmem:[%s2131 + $0x5e4] sm:$0xff] %v2886
                  %v2888 = vld [vmem:[%s2130 + $0xbd0] sm:$0xff]
                  %2889 = vst [vmem:[%s2131 + $0x5e8] sm:$0xff] %v2888
                  %v2890 = vld [vmem:[%s2130 + $0xbd8] sm:$0xff]
                  %2891 = vst [vmem:[%s2131 + $0x5ec] sm:$0xff] %v2890
                  %v2892 = vld [vmem:[%s2130 + $0xbe0] sm:$0xff]
                  %2893 = vst [vmem:[%s2131 + $0x5f0] sm:$0xff] %v2892
                  %v2894 = vld [vmem:[%s2130 + $0xbe8] sm:$0xff]
                  %2895 = vst [vmem:[%s2131 + $0x5f4] sm:$0xff] %v2894
                  %v2896 = vld [vmem:[%s2130 + $0xbf0] sm:$0xff]
                  %2897 = vst [vmem:[%s2131 + $0x5f8] sm:$0xff] %v2896
                  %v2898 = vld [vmem:[%s2130 + $0xbf8] sm:$0xff]
                  %2899 = vst [vmem:[%s2131 + $0x5fc] sm:$0xff] %v2898
                  %v2900 = vld [vmem:[%s2130 + $0xc00] sm:$0xff]
                  %2901 = vst [vmem:[%s2131 + $0x600] sm:$0xff] %v2900
                  %v2902 = vld [vmem:[%s2130 + $0xc08] sm:$0xff]
                  %2903 = vst [vmem:[%s2131 + $0x604] sm:$0xff] %v2902
                  %v2904 = vld [vmem:[%s2130 + $0xc10] sm:$0xff]
                  %2905 = vst [vmem:[%s2131 + $0x608] sm:$0xff] %v2904
                  %v2906 = vld [vmem:[%s2130 + $0xc18] sm:$0xff]
                  %2907 = vst [vmem:[%s2131 + $0x60c] sm:$0xff] %v2906
                  %v2908 = vld [vmem:[%s2130 + $0xc20] sm:$0xff]
                  %2909 = vst [vmem:[%s2131 + $0x610] sm:$0xff] %v2908
                  %v2910 = vld [vmem:[%s2130 + $0xc28] sm:$0xff]
                  %2911 = vst [vmem:[%s2131 + $0x614] sm:$0xff] %v2910
                  %v2912 = vld [vmem:[%s2130 + $0xc30] sm:$0xff]
                  %2913 = vst [vmem:[%s2131 + $0x618] sm:$0xff] %v2912
                  %v2914 = vld [vmem:[%s2130 + $0xc38] sm:$0xff]
                  %2915 = vst [vmem:[%s2131 + $0x61c] sm:$0xff] %v2914
                  %v2916 = vld [vmem:[%s2130 + $0xc40] sm:$0xff]
                  %2917 = vst [vmem:[%s2131 + $0x620] sm:$0xff] %v2916
                  %v2918 = vld [vmem:[%s2130 + $0xc48] sm:$0xff]
                  %2919 = vst [vmem:[%s2131 + $0x624] sm:$0xff] %v2918
                  %v2920 = vld [vmem:[%s2130 + $0xc50] sm:$0xff]
                  %2921 = vst [vmem:[%s2131 + $0x628] sm:$0xff] %v2920
                  %v2922 = vld [vmem:[%s2130 + $0xc58] sm:$0xff]
                  %2923 = vst [vmem:[%s2131 + $0x62c] sm:$0xff] %v2922
                  %v2924 = vld [vmem:[%s2130 + $0xc60] sm:$0xff]
                  %2925 = vst [vmem:[%s2131 + $0x630] sm:$0xff] %v2924
                  %v2926 = vld [vmem:[%s2130 + $0xc68] sm:$0xff]
                  %2927 = vst [vmem:[%s2131 + $0x634] sm:$0xff] %v2926
                  %v2928 = vld [vmem:[%s2130 + $0xc70] sm:$0xff]
                  %2929 = vst [vmem:[%s2131 + $0x638] sm:$0xff] %v2928
                  %v2930 = vld [vmem:[%s2130 + $0xc78] sm:$0xff]
                  %2931 = vst [vmem:[%s2131 + $0x63c] sm:$0xff] %v2930
                  %v2932 = vld [vmem:[%s2130 + $0xc80] sm:$0xff]
                  %2933 = vst [vmem:[%s2131 + $0x640] sm:$0xff] %v2932
                  %v2934 = vld [vmem:[%s2130 + $0xc88] sm:$0xff]
                  %2935 = vst [vmem:[%s2131 + $0x644] sm:$0xff] %v2934
                  %v2936 = vld [vmem:[%s2130 + $0xc90] sm:$0xff]
                  %2937 = vst [vmem:[%s2131 + $0x648] sm:$0xff] %v2936
                  %v2938 = vld [vmem:[%s2130 + $0xc98] sm:$0xff]
                  %2939 = vst [vmem:[%s2131 + $0x64c] sm:$0xff] %v2938
                  %v2940 = vld [vmem:[%s2130 + $0xca0] sm:$0xff]
                  %2941 = vst [vmem:[%s2131 + $0x650] sm:$0xff] %v2940
                  %v2942 = vld [vmem:[%s2130 + $0xca8] sm:$0xff]
                  %2943 = vst [vmem:[%s2131 + $0x654] sm:$0xff] %v2942
                  %v2944 = vld [vmem:[%s2130 + $0xcb0] sm:$0xff]
                  %2945 = vst [vmem:[%s2131 + $0x658] sm:$0xff] %v2944
                  %v2946 = vld [vmem:[%s2130 + $0xcb8] sm:$0xff]
                  %2947 = vst [vmem:[%s2131 + $0x65c] sm:$0xff] %v2946
                  %v2948 = vld [vmem:[%s2130 + $0xcc0] sm:$0xff]
                  %2949 = vst [vmem:[%s2131 + $0x660] sm:$0xff] %v2948
                  %v2950 = vld [vmem:[%s2130 + $0xcc8] sm:$0xff]
                  %2951 = vst [vmem:[%s2131 + $0x664] sm:$0xff] %v2950
                  %v2952 = vld [vmem:[%s2130 + $0xcd0] sm:$0xff]
                  %2953 = vst [vmem:[%s2131 + $0x668] sm:$0xff] %v2952
                  %v2954 = vld [vmem:[%s2130 + $0xcd8] sm:$0xff]
                  %2955 = vst [vmem:[%s2131 + $0x66c] sm:$0xff] %v2954
                  %v2956 = vld [vmem:[%s2130 + $0xce0] sm:$0xff]
                  %2957 = vst [vmem:[%s2131 + $0x670] sm:$0xff] %v2956
                  %v2958 = vld [vmem:[%s2130 + $0xce8] sm:$0xff]
                  %2959 = vst [vmem:[%s2131 + $0x674] sm:$0xff] %v2958
                  %v2960 = vld [vmem:[%s2130 + $0xcf0] sm:$0xff]
                  %2961 = vst [vmem:[%s2131 + $0x678] sm:$0xff] %v2960
                  %v2962 = vld [vmem:[%s2130 + $0xcf8] sm:$0xff]
                  %2963 = vst [vmem:[%s2131 + $0x67c] sm:$0xff] %v2962
                  %v2964 = vld [vmem:[%s2130 + $0xd00] sm:$0xff]
                  %2965 = vst [vmem:[%s2131 + $0x680] sm:$0xff] %v2964
                  %v2966 = vld [vmem:[%s2130 + $0xd08] sm:$0xff]
                  %2967 = vst [vmem:[%s2131 + $0x684] sm:$0xff] %v2966
                  %v2968 = vld [vmem:[%s2130 + $0xd10] sm:$0xff]
                  %2969 = vst [vmem:[%s2131 + $0x688] sm:$0xff] %v2968
                  %v2970 = vld [vmem:[%s2130 + $0xd18] sm:$0xff]
                  %2971 = vst [vmem:[%s2131 + $0x68c] sm:$0xff] %v2970
                  %v2972 = vld [vmem:[%s2130 + $0xd20] sm:$0xff]
                  %2973 = vst [vmem:[%s2131 + $0x690] sm:$0xff] %v2972
                  %v2974 = vld [vmem:[%s2130 + $0xd28] sm:$0xff]
                  %2975 = vst [vmem:[%s2131 + $0x694] sm:$0xff] %v2974
                  %v2976 = vld [vmem:[%s2130 + $0xd30] sm:$0xff]
                  %2977 = vst [vmem:[%s2131 + $0x698] sm:$0xff] %v2976
                  %v2978 = vld [vmem:[%s2130 + $0xd38] sm:$0xff]
                  %2979 = vst [vmem:[%s2131 + $0x69c] sm:$0xff] %v2978
                  %v2980 = vld [vmem:[%s2130 + $0xd40] sm:$0xff]
                  %2981 = vst [vmem:[%s2131 + $0x6a0] sm:$0xff] %v2980
                  %v2982 = vld [vmem:[%s2130 + $0xd48] sm:$0xff]
                  %2983 = vst [vmem:[%s2131 + $0x6a4] sm:$0xff] %v2982
                  %v2984 = vld [vmem:[%s2130 + $0xd50] sm:$0xff]
                  %2985 = vst [vmem:[%s2131 + $0x6a8] sm:$0xff] %v2984
                  %v2986 = vld [vmem:[%s2130 + $0xd58] sm:$0xff]
                  %2987 = vst [vmem:[%s2131 + $0x6ac] sm:$0xff] %v2986
                  %v2988 = vld [vmem:[%s2130 + $0xd60] sm:$0xff]
                  %2989 = vst [vmem:[%s2131 + $0x6b0] sm:$0xff] %v2988
                  %v2990 = vld [vmem:[%s2130 + $0xd68] sm:$0xff]
                  %2991 = vst [vmem:[%s2131 + $0x6b4] sm:$0xff] %v2990
                  %v2992 = vld [vmem:[%s2130 + $0xd70] sm:$0xff]
                  %2993 = vst [vmem:[%s2131 + $0x6b8] sm:$0xff] %v2992
                  %v2994 = vld [vmem:[%s2130 + $0xd78] sm:$0xff]
                  %2995 = vst [vmem:[%s2131 + $0x6bc] sm:$0xff] %v2994
                  %v2996 = vld [vmem:[%s2130 + $0xd80] sm:$0xff]
                  %2997 = vst [vmem:[%s2131 + $0x6c0] sm:$0xff] %v2996
                  %v2998 = vld [vmem:[%s2130 + $0xd88] sm:$0xff]
                  %2999 = vst [vmem:[%s2131 + $0x6c4] sm:$0xff] %v2998
                  %v3000 = vld [vmem:[%s2130 + $0xd90] sm:$0xff]
                  %3001 = vst [vmem:[%s2131 + $0x6c8] sm:$0xff] %v3000
                  %v3002 = vld [vmem:[%s2130 + $0xd98] sm:$0xff]
                  %3003 = vst [vmem:[%s2131 + $0x6cc] sm:$0xff] %v3002
                  %v3004 = vld [vmem:[%s2130 + $0xda0] sm:$0xff]
                  %3005 = vst [vmem:[%s2131 + $0x6d0] sm:$0xff] %v3004
                  %v3006 = vld [vmem:[%s2130 + $0xda8] sm:$0xff]
                  %3007 = vst [vmem:[%s2131 + $0x6d4] sm:$0xff] %v3006
                  %v3008 = vld [vmem:[%s2130 + $0xdb0] sm:$0xff]
                  %3009 = vst [vmem:[%s2131 + $0x6d8] sm:$0xff] %v3008
                  %v3010 = vld [vmem:[%s2130 + $0xdb8] sm:$0xff]
                  %3011 = vst [vmem:[%s2131 + $0x6dc] sm:$0xff] %v3010
                  %v3012 = vld [vmem:[%s2130 + $0xdc0] sm:$0xff]
                  %3013 = vst [vmem:[%s2131 + $0x6e0] sm:$0xff] %v3012
                  %v3014 = vld [vmem:[%s2130 + $0xdc8] sm:$0xff]
                  %3015 = vst [vmem:[%s2131 + $0x6e4] sm:$0xff] %v3014
                  %v3016 = vld [vmem:[%s2130 + $0xdd0] sm:$0xff]
                  %3017 = vst [vmem:[%s2131 + $0x6e8] sm:$0xff] %v3016
                  %v3018 = vld [vmem:[%s2130 + $0xdd8] sm:$0xff]
                  %3019 = vst [vmem:[%s2131 + $0x6ec] sm:$0xff] %v3018
                  %v3020 = vld [vmem:[%s2130 + $0xde0] sm:$0xff]
                  %3021 = vst [vmem:[%s2131 + $0x6f0] sm:$0xff] %v3020
                  %v3022 = vld [vmem:[%s2130 + $0xde8] sm:$0xff]
                  %3023 = vst [vmem:[%s2131 + $0x6f4] sm:$0xff] %v3022
                  %v3024 = vld [vmem:[%s2130 + $0xdf0] sm:$0xff]
                  %3025 = vst [vmem:[%s2131 + $0x6f8] sm:$0xff] %v3024
                  %v3026 = vld [vmem:[%s2130 + $0xdf8] sm:$0xff]
                  %3027 = vst [vmem:[%s2131 + $0x6fc] sm:$0xff] %v3026
                  %v3028 = vld [vmem:[%s2130 + $0xe00] sm:$0xff]
                  %3029 = vst [vmem:[%s2131 + $0x700] sm:$0xff] %v3028
                  %v3030 = vld [vmem:[%s2130 + $0xe08] sm:$0xff]
                  %3031 = vst [vmem:[%s2131 + $0x704] sm:$0xff] %v3030
                  %v3032 = vld [vmem:[%s2130 + $0xe10] sm:$0xff]
                  %3033 = vst [vmem:[%s2131 + $0x708] sm:$0xff] %v3032
                  %v3034 = vld [vmem:[%s2130 + $0xe18] sm:$0xff]
                  %3035 = vst [vmem:[%s2131 + $0x70c] sm:$0xff] %v3034
                  %v3036 = vld [vmem:[%s2130 + $0xe20] sm:$0xff]
                  %3037 = vst [vmem:[%s2131 + $0x710] sm:$0xff] %v3036
                  %v3038 = vld [vmem:[%s2130 + $0xe28] sm:$0xff]
                  %3039 = vst [vmem:[%s2131 + $0x714] sm:$0xff] %v3038
                  %v3040 = vld [vmem:[%s2130 + $0xe30] sm:$0xff]
                  %3041 = vst [vmem:[%s2131 + $0x718] sm:$0xff] %v3040
                  %v3042 = vld [vmem:[%s2130 + $0xe38] sm:$0xff]
                  %3043 = vst [vmem:[%s2131 + $0x71c] sm:$0xff] %v3042
                  %v3044 = vld [vmem:[%s2130 + $0xe40] sm:$0xff]
                  %3045 = vst [vmem:[%s2131 + $0x720] sm:$0xff] %v3044
                  %v3046 = vld [vmem:[%s2130 + $0xe48] sm:$0xff]
                  %3047 = vst [vmem:[%s2131 + $0x724] sm:$0xff] %v3046
                  %v3048 = vld [vmem:[%s2130 + $0xe50] sm:$0xff]
                  %3049 = vst [vmem:[%s2131 + $0x728] sm:$0xff] %v3048
                  %v3050 = vld [vmem:[%s2130 + $0xe58] sm:$0xff]
                  %3051 = vst [vmem:[%s2131 + $0x72c] sm:$0xff] %v3050
                  %v3052 = vld [vmem:[%s2130 + $0xe60] sm:$0xff]
                  %3053 = vst [vmem:[%s2131 + $0x730] sm:$0xff] %v3052
                  %v3054 = vld [vmem:[%s2130 + $0xe68] sm:$0xff]
                  %3055 = vst [vmem:[%s2131 + $0x734] sm:$0xff] %v3054
                  %v3056 = vld [vmem:[%s2130 + $0xe70] sm:$0xff]
                  %3057 = vst [vmem:[%s2131 + $0x738] sm:$0xff] %v3056
                  %v3058 = vld [vmem:[%s2130 + $0xe78] sm:$0xff]
                  %3059 = vst [vmem:[%s2131 + $0x73c] sm:$0xff] %v3058
                  %v3060 = vld [vmem:[%s2130 + $0xe80] sm:$0xff]
                  %3061 = vst [vmem:[%s2131 + $0x740] sm:$0xff] %v3060
                  %v3062 = vld [vmem:[%s2130 + $0xe88] sm:$0xff]
                  %3063 = vst [vmem:[%s2131 + $0x744] sm:$0xff] %v3062
                  %v3064 = vld [vmem:[%s2130 + $0xe90] sm:$0xff]
                  %3065 = vst [vmem:[%s2131 + $0x748] sm:$0xff] %v3064
                  %v3066 = vld [vmem:[%s2130 + $0xe98] sm:$0xff]
                  %3067 = vst [vmem:[%s2131 + $0x74c] sm:$0xff] %v3066
                  %v3068 = vld [vmem:[%s2130 + $0xea0] sm:$0xff]
                  %3069 = vst [vmem:[%s2131 + $0x750] sm:$0xff] %v3068
                  %v3070 = vld [vmem:[%s2130 + $0xea8] sm:$0xff]
                  %3071 = vst [vmem:[%s2131 + $0x754] sm:$0xff] %v3070
                  %v3072 = vld [vmem:[%s2130 + $0xeb0] sm:$0xff]
                  %3073 = vst [vmem:[%s2131 + $0x758] sm:$0xff] %v3072
                  %v3074 = vld [vmem:[%s2130 + $0xeb8] sm:$0xff]
                  %3075 = vst [vmem:[%s2131 + $0x75c] sm:$0xff] %v3074
                  %v3076 = vld [vmem:[%s2130 + $0xec0] sm:$0xff]
                  %3077 = vst [vmem:[%s2131 + $0x760] sm:$0xff] %v3076
                  %v3078 = vld [vmem:[%s2130 + $0xec8] sm:$0xff]
                  %3079 = vst [vmem:[%s2131 + $0x764] sm:$0xff] %v3078
                  %v3080 = vld [vmem:[%s2130 + $0xed0] sm:$0xff]
                  %3081 = vst [vmem:[%s2131 + $0x768] sm:$0xff] %v3080
                  %v3082 = vld [vmem:[%s2130 + $0xed8] sm:$0xff]
                  %3083 = vst [vmem:[%s2131 + $0x76c] sm:$0xff] %v3082
                  %v3084 = vld [vmem:[%s2130 + $0xee0] sm:$0xff]
                  %3085 = vst [vmem:[%s2131 + $0x770] sm:$0xff] %v3084
                  %v3086 = vld [vmem:[%s2130 + $0xee8] sm:$0xff]
                  %3087 = vst [vmem:[%s2131 + $0x774] sm:$0xff] %v3086
                  %v3088 = vld [vmem:[%s2130 + $0xef0] sm:$0xff]
                  %3089 = vst [vmem:[%s2131 + $0x778] sm:$0xff] %v3088
                  %v3090 = vld [vmem:[%s2130 + $0xef8] sm:$0xff]
                  %3091 = vst [vmem:[%s2131 + $0x77c] sm:$0xff] %v3090
                  %s3092 = sadd.s32 1, %s2129
                  %p3093 = scmp.ge.s32.totalorder %s3092, 0
                  %s3094 = scalar_select %p3093, 0, %s3092
                  %s3095 = smul.u32 %s3094, 8
                  %s3096 = smul.u32 %s3094, 8
                  %s3097 = scalar_lea.vmem %s166, %s3095
                  %s3098 = scalar_lea.vmem %s161, %s3096 [#allocation3]
                $region63: #{cnn_forward.3} parent=57 // loop_footer
                  %s2128 = sadd.s32 1, %s2124
                $region64: #{cnn_forward.3} parent=57 // loop_footer_branch
                  %2123 = sbr.rel target = $region60
                $region65: #{cnn_forward.3} parent=57 // loop_exit
                  _
                %s3100 = ssub.s32 16, 1
                loop: start=0, step=1, limit=1
                $region66: #{cnn_forward.3} parent=57 // loop_pre_header
                  _
                $region67: #{cnn_forward.3} parent=57 // loop_header
                  %s3102 = sphi 0, %s3106
                  %p3103 = scmp.ge.s32.totalorder %s3102, 1
                  %s3107 = sphi %s166, %s166
                  %s3108 = sphi %s161, %s161
                $region68: #{cnn_forward.3} parent=57 // loop_header_branch
                  %3105 = sbr.rel (%p3103) target = $region72
                $region69: #{cnn_forward.3} parent=57 // loop_body
                  %v3109 = vld [vmem:[%s3107] sm:%s3100]
                  %3110 = vst [vmem:[%s3108] sm:%s3100] %v3109
                  %v3111 = vld [vmem:[%s3107 + $0x8] sm:%s3100]
                  %3112 = vst [vmem:[%s3108 + $0x4] sm:%s3100] %v3111
                  %v3113 = vld [vmem:[%s3107 + $0x10] sm:%s3100]
                  %3114 = vst [vmem:[%s3108 + $0x8] sm:%s3100] %v3113
                  %v3115 = vld [vmem:[%s3107 + $0x18] sm:%s3100]
                  %3116 = vst [vmem:[%s3108 + $0xc] sm:%s3100] %v3115
                  %v3117 = vld [vmem:[%s3107 + $0x20] sm:%s3100]
                  %3118 = vst [vmem:[%s3108 + $0x10] sm:%s3100] %v3117
                  %v3119 = vld [vmem:[%s3107 + $0x28] sm:%s3100]
                  %3120 = vst [vmem:[%s3108 + $0x14] sm:%s3100] %v3119
                  %v3121 = vld [vmem:[%s3107 + $0x30] sm:%s3100]
                  %3122 = vst [vmem:[%s3108 + $0x18] sm:%s3100] %v3121
                  %v3123 = vld [vmem:[%s3107 + $0x38] sm:%s3100]
                  %3124 = vst [vmem:[%s3108 + $0x1c] sm:%s3100] %v3123
                  %v3125 = vld [vmem:[%s3107 + $0x40] sm:%s3100]
                  %3126 = vst [vmem:[%s3108 + $0x20] sm:%s3100] %v3125
                  %v3127 = vld [vmem:[%s3107 + $0x48] sm:%s3100]
                  %3128 = vst [vmem:[%s3108 + $0x24] sm:%s3100] %v3127
                  %v3129 = vld [vmem:[%s3107 + $0x50] sm:%s3100]
                  %3130 = vst [vmem:[%s3108 + $0x28] sm:%s3100] %v3129
                  %v3131 = vld [vmem:[%s3107 + $0x58] sm:%s3100]
                  %3132 = vst [vmem:[%s3108 + $0x2c] sm:%s3100] %v3131
                  %v3133 = vld [vmem:[%s3107 + $0x60] sm:%s3100]
                  %3134 = vst [vmem:[%s3108 + $0x30] sm:%s3100] %v3133
                  %v3135 = vld [vmem:[%s3107 + $0x68] sm:%s3100]
                  %3136 = vst [vmem:[%s3108 + $0x34] sm:%s3100] %v3135
                  %v3137 = vld [vmem:[%s3107 + $0x70] sm:%s3100]
                  %3138 = vst [vmem:[%s3108 + $0x38] sm:%s3100] %v3137
                  %v3139 = vld [vmem:[%s3107 + $0x78] sm:%s3100]
                  %3140 = vst [vmem:[%s3108 + $0x3c] sm:%s3100] %v3139
                  %v3141 = vld [vmem:[%s3107 + $0x80] sm:%s3100]
                  %3142 = vst [vmem:[%s3108 + $0x40] sm:%s3100] %v3141
                  %v3143 = vld [vmem:[%s3107 + $0x88] sm:%s3100]
                  %3144 = vst [vmem:[%s3108 + $0x44] sm:%s3100] %v3143
                  %v3145 = vld [vmem:[%s3107 + $0x90] sm:%s3100]
                  %3146 = vst [vmem:[%s3108 + $0x48] sm:%s3100] %v3145
                  %v3147 = vld [vmem:[%s3107 + $0x98] sm:%s3100]
                  %3148 = vst [vmem:[%s3108 + $0x4c] sm:%s3100] %v3147
                  %v3149 = vld [vmem:[%s3107 + $0xa0] sm:%s3100]
                  %3150 = vst [vmem:[%s3108 + $0x50] sm:%s3100] %v3149
                  %v3151 = vld [vmem:[%s3107 + $0xa8] sm:%s3100]
                  %3152 = vst [vmem:[%s3108 + $0x54] sm:%s3100] %v3151
                  %v3153 = vld [vmem:[%s3107 + $0xb0] sm:%s3100]
                  %3154 = vst [vmem:[%s3108 + $0x58] sm:%s3100] %v3153
                  %v3155 = vld [vmem:[%s3107 + $0xb8] sm:%s3100]
                  %3156 = vst [vmem:[%s3108 + $0x5c] sm:%s3100] %v3155
                  %v3157 = vld [vmem:[%s3107 + $0xc0] sm:%s3100]
                  %3158 = vst [vmem:[%s3108 + $0x60] sm:%s3100] %v3157
                  %v3159 = vld [vmem:[%s3107 + $0xc8] sm:%s3100]
                  %3160 = vst [vmem:[%s3108 + $0x64] sm:%s3100] %v3159
                  %v3161 = vld [vmem:[%s3107 + $0xd0] sm:%s3100]
                  %3162 = vst [vmem:[%s3108 + $0x68] sm:%s3100] %v3161
                  %v3163 = vld [vmem:[%s3107 + $0xd8] sm:%s3100]
                  %3164 = vst [vmem:[%s3108 + $0x6c] sm:%s3100] %v3163
                  %v3165 = vld [vmem:[%s3107 + $0xe0] sm:%s3100]
                  %3166 = vst [vmem:[%s3108 + $0x70] sm:%s3100] %v3165
                  %v3167 = vld [vmem:[%s3107 + $0xe8] sm:%s3100]
                  %3168 = vst [vmem:[%s3108 + $0x74] sm:%s3100] %v3167
                  %v3169 = vld [vmem:[%s3107 + $0xf0] sm:%s3100]
                  %3170 = vst [vmem:[%s3108 + $0x78] sm:%s3100] %v3169
                  %v3171 = vld [vmem:[%s3107 + $0xf8] sm:%s3100]
                  %3172 = vst [vmem:[%s3108 + $0x7c] sm:%s3100] %v3171
                  %v3173 = vld [vmem:[%s3107 + $0x100] sm:%s3100]
                  %3174 = vst [vmem:[%s3108 + $0x80] sm:%s3100] %v3173
                  %v3175 = vld [vmem:[%s3107 + $0x108] sm:%s3100]
                  %3176 = vst [vmem:[%s3108 + $0x84] sm:%s3100] %v3175
                  %v3177 = vld [vmem:[%s3107 + $0x110] sm:%s3100]
                  %3178 = vst [vmem:[%s3108 + $0x88] sm:%s3100] %v3177
                  %v3179 = vld [vmem:[%s3107 + $0x118] sm:%s3100]
                  %3180 = vst [vmem:[%s3108 + $0x8c] sm:%s3100] %v3179
                  %v3181 = vld [vmem:[%s3107 + $0x120] sm:%s3100]
                  %3182 = vst [vmem:[%s3108 + $0x90] sm:%s3100] %v3181
                  %v3183 = vld [vmem:[%s3107 + $0x128] sm:%s3100]
                  %3184 = vst [vmem:[%s3108 + $0x94] sm:%s3100] %v3183
                  %v3185 = vld [vmem:[%s3107 + $0x130] sm:%s3100]
                  %3186 = vst [vmem:[%s3108 + $0x98] sm:%s3100] %v3185
                  %v3187 = vld [vmem:[%s3107 + $0x138] sm:%s3100]
                  %3188 = vst [vmem:[%s3108 + $0x9c] sm:%s3100] %v3187
                  %v3189 = vld [vmem:[%s3107 + $0x140] sm:%s3100]
                  %3190 = vst [vmem:[%s3108 + $0xa0] sm:%s3100] %v3189
                  %v3191 = vld [vmem:[%s3107 + $0x148] sm:%s3100]
                  %3192 = vst [vmem:[%s3108 + $0xa4] sm:%s3100] %v3191
                  %v3193 = vld [vmem:[%s3107 + $0x150] sm:%s3100]
                  %3194 = vst [vmem:[%s3108 + $0xa8] sm:%s3100] %v3193
                  %v3195 = vld [vmem:[%s3107 + $0x158] sm:%s3100]
                  %3196 = vst [vmem:[%s3108 + $0xac] sm:%s3100] %v3195
                  %v3197 = vld [vmem:[%s3107 + $0x160] sm:%s3100]
                  %3198 = vst [vmem:[%s3108 + $0xb0] sm:%s3100] %v3197
                  %v3199 = vld [vmem:[%s3107 + $0x168] sm:%s3100]
                  %3200 = vst [vmem:[%s3108 + $0xb4] sm:%s3100] %v3199
                  %v3201 = vld [vmem:[%s3107 + $0x170] sm:%s3100]
                  %3202 = vst [vmem:[%s3108 + $0xb8] sm:%s3100] %v3201
                  %v3203 = vld [vmem:[%s3107 + $0x178] sm:%s3100]
                  %3204 = vst [vmem:[%s3108 + $0xbc] sm:%s3100] %v3203
                  %v3205 = vld [vmem:[%s3107 + $0x180] sm:%s3100]
                  %3206 = vst [vmem:[%s3108 + $0xc0] sm:%s3100] %v3205
                  %v3207 = vld [vmem:[%s3107 + $0x188] sm:%s3100]
                  %3208 = vst [vmem:[%s3108 + $0xc4] sm:%s3100] %v3207
                  %v3209 = vld [vmem:[%s3107 + $0x190] sm:%s3100]
                  %3210 = vst [vmem:[%s3108 + $0xc8] sm:%s3100] %v3209
                  %v3211 = vld [vmem:[%s3107 + $0x198] sm:%s3100]
                  %3212 = vst [vmem:[%s3108 + $0xcc] sm:%s3100] %v3211
                  %v3213 = vld [vmem:[%s3107 + $0x1a0] sm:%s3100]
                  %3214 = vst [vmem:[%s3108 + $0xd0] sm:%s3100] %v3213
                  %v3215 = vld [vmem:[%s3107 + $0x1a8] sm:%s3100]
                  %3216 = vst [vmem:[%s3108 + $0xd4] sm:%s3100] %v3215
                  %v3217 = vld [vmem:[%s3107 + $0x1b0] sm:%s3100]
                  %3218 = vst [vmem:[%s3108 + $0xd8] sm:%s3100] %v3217
                  %v3219 = vld [vmem:[%s3107 + $0x1b8] sm:%s3100]
                  %3220 = vst [vmem:[%s3108 + $0xdc] sm:%s3100] %v3219
                  %v3221 = vld [vmem:[%s3107 + $0x1c0] sm:%s3100]
                  %3222 = vst [vmem:[%s3108 + $0xe0] sm:%s3100] %v3221
                  %v3223 = vld [vmem:[%s3107 + $0x1c8] sm:%s3100]
                  %3224 = vst [vmem:[%s3108 + $0xe4] sm:%s3100] %v3223
                  %v3225 = vld [vmem:[%s3107 + $0x1d0] sm:%s3100]
                  %3226 = vst [vmem:[%s3108 + $0xe8] sm:%s3100] %v3225
                  %v3227 = vld [vmem:[%s3107 + $0x1d8] sm:%s3100]
                  %3228 = vst [vmem:[%s3108 + $0xec] sm:%s3100] %v3227
                  %v3229 = vld [vmem:[%s3107 + $0x1e0] sm:%s3100]
                  %3230 = vst [vmem:[%s3108 + $0xf0] sm:%s3100] %v3229
                  %v3231 = vld [vmem:[%s3107 + $0x1e8] sm:%s3100]
                  %3232 = vst [vmem:[%s3108 + $0xf4] sm:%s3100] %v3231
                  %v3233 = vld [vmem:[%s3107 + $0x1f0] sm:%s3100]
                  %3234 = vst [vmem:[%s3108 + $0xf8] sm:%s3100] %v3233
                  %v3235 = vld [vmem:[%s3107 + $0x1f8] sm:%s3100]
                  %3236 = vst [vmem:[%s3108 + $0xfc] sm:%s3100] %v3235
                  %v3237 = vld [vmem:[%s3107 + $0x200] sm:%s3100]
                  %3238 = vst [vmem:[%s3108 + $0x100] sm:%s3100] %v3237
                  %v3239 = vld [vmem:[%s3107 + $0x208] sm:%s3100]
                  %3240 = vst [vmem:[%s3108 + $0x104] sm:%s3100] %v3239
                  %v3241 = vld [vmem:[%s3107 + $0x210] sm:%s3100]
                  %3242 = vst [vmem:[%s3108 + $0x108] sm:%s3100] %v3241
                  %v3243 = vld [vmem:[%s3107 + $0x218] sm:%s3100]
                  %3244 = vst [vmem:[%s3108 + $0x10c] sm:%s3100] %v3243
                  %v3245 = vld [vmem:[%s3107 + $0x220] sm:%s3100]
                  %3246 = vst [vmem:[%s3108 + $0x110] sm:%s3100] %v3245
                  %v3247 = vld [vmem:[%s3107 + $0x228] sm:%s3100]
                  %3248 = vst [vmem:[%s3108 + $0x114] sm:%s3100] %v3247
                  %v3249 = vld [vmem:[%s3107 + $0x230] sm:%s3100]
                  %3250 = vst [vmem:[%s3108 + $0x118] sm:%s3100] %v3249
                  %v3251 = vld [vmem:[%s3107 + $0x238] sm:%s3100]
                  %3252 = vst [vmem:[%s3108 + $0x11c] sm:%s3100] %v3251
                  %v3253 = vld [vmem:[%s3107 + $0x240] sm:%s3100]
                  %3254 = vst [vmem:[%s3108 + $0x120] sm:%s3100] %v3253
                  %v3255 = vld [vmem:[%s3107 + $0x248] sm:%s3100]
                  %3256 = vst [vmem:[%s3108 + $0x124] sm:%s3100] %v3255
                  %v3257 = vld [vmem:[%s3107 + $0x250] sm:%s3100]
                  %3258 = vst [vmem:[%s3108 + $0x128] sm:%s3100] %v3257
                  %v3259 = vld [vmem:[%s3107 + $0x258] sm:%s3100]
                  %3260 = vst [vmem:[%s3108 + $0x12c] sm:%s3100] %v3259
                  %v3261 = vld [vmem:[%s3107 + $0x260] sm:%s3100]
                  %3262 = vst [vmem:[%s3108 + $0x130] sm:%s3100] %v3261
                  %v3263 = vld [vmem:[%s3107 + $0x268] sm:%s3100]
                  %3264 = vst [vmem:[%s3108 + $0x134] sm:%s3100] %v3263
                  %v3265 = vld [vmem:[%s3107 + $0x270] sm:%s3100]
                  %3266 = vst [vmem:[%s3108 + $0x138] sm:%s3100] %v3265
                  %v3267 = vld [vmem:[%s3107 + $0x278] sm:%s3100]
                  %3268 = vst [vmem:[%s3108 + $0x13c] sm:%s3100] %v3267
                  %v3269 = vld [vmem:[%s3107 + $0x280] sm:%s3100]
                  %3270 = vst [vmem:[%s3108 + $0x140] sm:%s3100] %v3269
                  %v3271 = vld [vmem:[%s3107 + $0x288] sm:%s3100]
                  %3272 = vst [vmem:[%s3108 + $0x144] sm:%s3100] %v3271
                  %v3273 = vld [vmem:[%s3107 + $0x290] sm:%s3100]
                  %3274 = vst [vmem:[%s3108 + $0x148] sm:%s3100] %v3273
                  %v3275 = vld [vmem:[%s3107 + $0x298] sm:%s3100]
                  %3276 = vst [vmem:[%s3108 + $0x14c] sm:%s3100] %v3275
                  %v3277 = vld [vmem:[%s3107 + $0x2a0] sm:%s3100]
                  %3278 = vst [vmem:[%s3108 + $0x150] sm:%s3100] %v3277
                  %v3279 = vld [vmem:[%s3107 + $0x2a8] sm:%s3100]
                  %3280 = vst [vmem:[%s3108 + $0x154] sm:%s3100] %v3279
                  %v3281 = vld [vmem:[%s3107 + $0x2b0] sm:%s3100]
                  %3282 = vst [vmem:[%s3108 + $0x158] sm:%s3100] %v3281
                  %v3283 = vld [vmem:[%s3107 + $0x2b8] sm:%s3100]
                  %3284 = vst [vmem:[%s3108 + $0x15c] sm:%s3100] %v3283
                  %v3285 = vld [vmem:[%s3107 + $0x2c0] sm:%s3100]
                  %3286 = vst [vmem:[%s3108 + $0x160] sm:%s3100] %v3285
                  %v3287 = vld [vmem:[%s3107 + $0x2c8] sm:%s3100]
                  %3288 = vst [vmem:[%s3108 + $0x164] sm:%s3100] %v3287
                  %v3289 = vld [vmem:[%s3107 + $0x2d0] sm:%s3100]
                  %3290 = vst [vmem:[%s3108 + $0x168] sm:%s3100] %v3289
                  %v3291 = vld [vmem:[%s3107 + $0x2d8] sm:%s3100]
                  %3292 = vst [vmem:[%s3108 + $0x16c] sm:%s3100] %v3291
                  %v3293 = vld [vmem:[%s3107 + $0x2e0] sm:%s3100]
                  %3294 = vst [vmem:[%s3108 + $0x170] sm:%s3100] %v3293
                  %v3295 = vld [vmem:[%s3107 + $0x2e8] sm:%s3100]
                  %3296 = vst [vmem:[%s3108 + $0x174] sm:%s3100] %v3295
                  %v3297 = vld [vmem:[%s3107 + $0x2f0] sm:%s3100]
                  %3298 = vst [vmem:[%s3108 + $0x178] sm:%s3100] %v3297
                  %v3299 = vld [vmem:[%s3107 + $0x2f8] sm:%s3100]
                  %3300 = vst [vmem:[%s3108 + $0x17c] sm:%s3100] %v3299
                  %v3301 = vld [vmem:[%s3107 + $0x300] sm:%s3100]
                  %3302 = vst [vmem:[%s3108 + $0x180] sm:%s3100] %v3301
                  %v3303 = vld [vmem:[%s3107 + $0x308] sm:%s3100]
                  %3304 = vst [vmem:[%s3108 + $0x184] sm:%s3100] %v3303
                  %v3305 = vld [vmem:[%s3107 + $0x310] sm:%s3100]
                  %3306 = vst [vmem:[%s3108 + $0x188] sm:%s3100] %v3305
                  %v3307 = vld [vmem:[%s3107 + $0x318] sm:%s3100]
                  %3308 = vst [vmem:[%s3108 + $0x18c] sm:%s3100] %v3307
                  %v3309 = vld [vmem:[%s3107 + $0x320] sm:%s3100]
                  %3310 = vst [vmem:[%s3108 + $0x190] sm:%s3100] %v3309
                  %v3311 = vld [vmem:[%s3107 + $0x328] sm:%s3100]
                  %3312 = vst [vmem:[%s3108 + $0x194] sm:%s3100] %v3311
                  %v3313 = vld [vmem:[%s3107 + $0x330] sm:%s3100]
                  %3314 = vst [vmem:[%s3108 + $0x198] sm:%s3100] %v3313
                  %v3315 = vld [vmem:[%s3107 + $0x338] sm:%s3100]
                  %3316 = vst [vmem:[%s3108 + $0x19c] sm:%s3100] %v3315
                  %v3317 = vld [vmem:[%s3107 + $0x340] sm:%s3100]
                  %3318 = vst [vmem:[%s3108 + $0x1a0] sm:%s3100] %v3317
                  %v3319 = vld [vmem:[%s3107 + $0x348] sm:%s3100]
                  %3320 = vst [vmem:[%s3108 + $0x1a4] sm:%s3100] %v3319
                  %v3321 = vld [vmem:[%s3107 + $0x350] sm:%s3100]
                  %3322 = vst [vmem:[%s3108 + $0x1a8] sm:%s3100] %v3321
                  %v3323 = vld [vmem:[%s3107 + $0x358] sm:%s3100]
                  %3324 = vst [vmem:[%s3108 + $0x1ac] sm:%s3100] %v3323
                  %v3325 = vld [vmem:[%s3107 + $0x360] sm:%s3100]
                  %3326 = vst [vmem:[%s3108 + $0x1b0] sm:%s3100] %v3325
                  %v3327 = vld [vmem:[%s3107 + $0x368] sm:%s3100]
                  %3328 = vst [vmem:[%s3108 + $0x1b4] sm:%s3100] %v3327
                  %v3329 = vld [vmem:[%s3107 + $0x370] sm:%s3100]
                  %3330 = vst [vmem:[%s3108 + $0x1b8] sm:%s3100] %v3329
                  %v3331 = vld [vmem:[%s3107 + $0x378] sm:%s3100]
                  %3332 = vst [vmem:[%s3108 + $0x1bc] sm:%s3100] %v3331
                  %v3333 = vld [vmem:[%s3107 + $0x380] sm:%s3100]
                  %3334 = vst [vmem:[%s3108 + $0x1c0] sm:%s3100] %v3333
                  %v3335 = vld [vmem:[%s3107 + $0x388] sm:%s3100]
                  %3336 = vst [vmem:[%s3108 + $0x1c4] sm:%s3100] %v3335
                  %v3337 = vld [vmem:[%s3107 + $0x390] sm:%s3100]
                  %3338 = vst [vmem:[%s3108 + $0x1c8] sm:%s3100] %v3337
                  %v3339 = vld [vmem:[%s3107 + $0x398] sm:%s3100]
                  %3340 = vst [vmem:[%s3108 + $0x1cc] sm:%s3100] %v3339
                  %v3341 = vld [vmem:[%s3107 + $0x3a0] sm:%s3100]
                  %3342 = vst [vmem:[%s3108 + $0x1d0] sm:%s3100] %v3341
                  %v3343 = vld [vmem:[%s3107 + $0x3a8] sm:%s3100]
                  %3344 = vst [vmem:[%s3108 + $0x1d4] sm:%s3100] %v3343
                  %v3345 = vld [vmem:[%s3107 + $0x3b0] sm:%s3100]
                  %3346 = vst [vmem:[%s3108 + $0x1d8] sm:%s3100] %v3345
                  %v3347 = vld [vmem:[%s3107 + $0x3b8] sm:%s3100]
                  %3348 = vst [vmem:[%s3108 + $0x1dc] sm:%s3100] %v3347
                  %v3349 = vld [vmem:[%s3107 + $0x3c0] sm:%s3100]
                  %3350 = vst [vmem:[%s3108 + $0x1e0] sm:%s3100] %v3349
                  %v3351 = vld [vmem:[%s3107 + $0x3c8] sm:%s3100]
                  %3352 = vst [vmem:[%s3108 + $0x1e4] sm:%s3100] %v3351
                  %v3353 = vld [vmem:[%s3107 + $0x3d0] sm:%s3100]
                  %3354 = vst [vmem:[%s3108 + $0x1e8] sm:%s3100] %v3353
                  %v3355 = vld [vmem:[%s3107 + $0x3d8] sm:%s3100]
                  %3356 = vst [vmem:[%s3108 + $0x1ec] sm:%s3100] %v3355
                  %v3357 = vld [vmem:[%s3107 + $0x3e0] sm:%s3100]
                  %3358 = vst [vmem:[%s3108 + $0x1f0] sm:%s3100] %v3357
                  %v3359 = vld [vmem:[%s3107 + $0x3e8] sm:%s3100]
                  %3360 = vst [vmem:[%s3108 + $0x1f4] sm:%s3100] %v3359
                  %v3361 = vld [vmem:[%s3107 + $0x3f0] sm:%s3100]
                  %3362 = vst [vmem:[%s3108 + $0x1f8] sm:%s3100] %v3361
                  %v3363 = vld [vmem:[%s3107 + $0x3f8] sm:%s3100]
                  %3364 = vst [vmem:[%s3108 + $0x1fc] sm:%s3100] %v3363
                  %v3365 = vld [vmem:[%s3107 + $0x400] sm:%s3100]
                  %3366 = vst [vmem:[%s3108 + $0x200] sm:%s3100] %v3365
                  %v3367 = vld [vmem:[%s3107 + $0x408] sm:%s3100]
                  %3368 = vst [vmem:[%s3108 + $0x204] sm:%s3100] %v3367
                  %v3369 = vld [vmem:[%s3107 + $0x410] sm:%s3100]
                  %3370 = vst [vmem:[%s3108 + $0x208] sm:%s3100] %v3369
                  %v3371 = vld [vmem:[%s3107 + $0x418] sm:%s3100]
                  %3372 = vst [vmem:[%s3108 + $0x20c] sm:%s3100] %v3371
                  %v3373 = vld [vmem:[%s3107 + $0x420] sm:%s3100]
                  %3374 = vst [vmem:[%s3108 + $0x210] sm:%s3100] %v3373
                  %v3375 = vld [vmem:[%s3107 + $0x428] sm:%s3100]
                  %3376 = vst [vmem:[%s3108 + $0x214] sm:%s3100] %v3375
                  %v3377 = vld [vmem:[%s3107 + $0x430] sm:%s3100]
                  %3378 = vst [vmem:[%s3108 + $0x218] sm:%s3100] %v3377
                  %v3379 = vld [vmem:[%s3107 + $0x438] sm:%s3100]
                  %3380 = vst [vmem:[%s3108 + $0x21c] sm:%s3100] %v3379
                  %v3381 = vld [vmem:[%s3107 + $0x440] sm:%s3100]
                  %3382 = vst [vmem:[%s3108 + $0x220] sm:%s3100] %v3381
                  %v3383 = vld [vmem:[%s3107 + $0x448] sm:%s3100]
                  %3384 = vst [vmem:[%s3108 + $0x224] sm:%s3100] %v3383
                  %v3385 = vld [vmem:[%s3107 + $0x450] sm:%s3100]
                  %3386 = vst [vmem:[%s3108 + $0x228] sm:%s3100] %v3385
                  %v3387 = vld [vmem:[%s3107 + $0x458] sm:%s3100]
                  %3388 = vst [vmem:[%s3108 + $0x22c] sm:%s3100] %v3387
                  %v3389 = vld [vmem:[%s3107 + $0x460] sm:%s3100]
                  %3390 = vst [vmem:[%s3108 + $0x230] sm:%s3100] %v3389
                  %v3391 = vld [vmem:[%s3107 + $0x468] sm:%s3100]
                  %3392 = vst [vmem:[%s3108 + $0x234] sm:%s3100] %v3391
                  %v3393 = vld [vmem:[%s3107 + $0x470] sm:%s3100]
                  %3394 = vst [vmem:[%s3108 + $0x238] sm:%s3100] %v3393
                  %v3395 = vld [vmem:[%s3107 + $0x478] sm:%s3100]
                  %3396 = vst [vmem:[%s3108 + $0x23c] sm:%s3100] %v3395
                  %v3397 = vld [vmem:[%s3107 + $0x480] sm:%s3100]
                  %3398 = vst [vmem:[%s3108 + $0x240] sm:%s3100] %v3397
                  %v3399 = vld [vmem:[%s3107 + $0x488] sm:%s3100]
                  %3400 = vst [vmem:[%s3108 + $0x244] sm:%s3100] %v3399
                  %v3401 = vld [vmem:[%s3107 + $0x490] sm:%s3100]
                  %3402 = vst [vmem:[%s3108 + $0x248] sm:%s3100] %v3401
                  %v3403 = vld [vmem:[%s3107 + $0x498] sm:%s3100]
                  %3404 = vst [vmem:[%s3108 + $0x24c] sm:%s3100] %v3403
                  %v3405 = vld [vmem:[%s3107 + $0x4a0] sm:%s3100]
                  %3406 = vst [vmem:[%s3108 + $0x250] sm:%s3100] %v3405
                  %v3407 = vld [vmem:[%s3107 + $0x4a8] sm:%s3100]
                  %3408 = vst [vmem:[%s3108 + $0x254] sm:%s3100] %v3407
                  %v3409 = vld [vmem:[%s3107 + $0x4b0] sm:%s3100]
                  %3410 = vst [vmem:[%s3108 + $0x258] sm:%s3100] %v3409
                  %v3411 = vld [vmem:[%s3107 + $0x4b8] sm:%s3100]
                  %3412 = vst [vmem:[%s3108 + $0x25c] sm:%s3100] %v3411
                  %v3413 = vld [vmem:[%s3107 + $0x4c0] sm:%s3100]
                  %3414 = vst [vmem:[%s3108 + $0x260] sm:%s3100] %v3413
                  %v3415 = vld [vmem:[%s3107 + $0x4c8] sm:%s3100]
                  %3416 = vst [vmem:[%s3108 + $0x264] sm:%s3100] %v3415
                  %v3417 = vld [vmem:[%s3107 + $0x4d0] sm:%s3100]
                  %3418 = vst [vmem:[%s3108 + $0x268] sm:%s3100] %v3417
                  %v3419 = vld [vmem:[%s3107 + $0x4d8] sm:%s3100]
                  %3420 = vst [vmem:[%s3108 + $0x26c] sm:%s3100] %v3419
                  %v3421 = vld [vmem:[%s3107 + $0x4e0] sm:%s3100]
                  %3422 = vst [vmem:[%s3108 + $0x270] sm:%s3100] %v3421
                  %v3423 = vld [vmem:[%s3107 + $0x4e8] sm:%s3100]
                  %3424 = vst [vmem:[%s3108 + $0x274] sm:%s3100] %v3423
                  %v3425 = vld [vmem:[%s3107 + $0x4f0] sm:%s3100]
                  %3426 = vst [vmem:[%s3108 + $0x278] sm:%s3100] %v3425
                  %v3427 = vld [vmem:[%s3107 + $0x4f8] sm:%s3100]
                  %3428 = vst [vmem:[%s3108 + $0x27c] sm:%s3100] %v3427
                  %v3429 = vld [vmem:[%s3107 + $0x500] sm:%s3100]
                  %3430 = vst [vmem:[%s3108 + $0x280] sm:%s3100] %v3429
                  %v3431 = vld [vmem:[%s3107 + $0x508] sm:%s3100]
                  %3432 = vst [vmem:[%s3108 + $0x284] sm:%s3100] %v3431
                  %v3433 = vld [vmem:[%s3107 + $0x510] sm:%s3100]
                  %3434 = vst [vmem:[%s3108 + $0x288] sm:%s3100] %v3433
                  %v3435 = vld [vmem:[%s3107 + $0x518] sm:%s3100]
                  %3436 = vst [vmem:[%s3108 + $0x28c] sm:%s3100] %v3435
                  %v3437 = vld [vmem:[%s3107 + $0x520] sm:%s3100]
                  %3438 = vst [vmem:[%s3108 + $0x290] sm:%s3100] %v3437
                  %v3439 = vld [vmem:[%s3107 + $0x528] sm:%s3100]
                  %3440 = vst [vmem:[%s3108 + $0x294] sm:%s3100] %v3439
                  %v3441 = vld [vmem:[%s3107 + $0x530] sm:%s3100]
                  %3442 = vst [vmem:[%s3108 + $0x298] sm:%s3100] %v3441
                  %v3443 = vld [vmem:[%s3107 + $0x538] sm:%s3100]
                  %3444 = vst [vmem:[%s3108 + $0x29c] sm:%s3100] %v3443
                  %v3445 = vld [vmem:[%s3107 + $0x540] sm:%s3100]
                  %3446 = vst [vmem:[%s3108 + $0x2a0] sm:%s3100] %v3445
                  %v3447 = vld [vmem:[%s3107 + $0x548] sm:%s3100]
                  %3448 = vst [vmem:[%s3108 + $0x2a4] sm:%s3100] %v3447
                  %v3449 = vld [vmem:[%s3107 + $0x550] sm:%s3100]
                  %3450 = vst [vmem:[%s3108 + $0x2a8] sm:%s3100] %v3449
                  %v3451 = vld [vmem:[%s3107 + $0x558] sm:%s3100]
                  %3452 = vst [vmem:[%s3108 + $0x2ac] sm:%s3100] %v3451
                  %v3453 = vld [vmem:[%s3107 + $0x560] sm:%s3100]
                  %3454 = vst [vmem:[%s3108 + $0x2b0] sm:%s3100] %v3453
                  %v3455 = vld [vmem:[%s3107 + $0x568] sm:%s3100]
                  %3456 = vst [vmem:[%s3108 + $0x2b4] sm:%s3100] %v3455
                  %v3457 = vld [vmem:[%s3107 + $0x570] sm:%s3100]
                  %3458 = vst [vmem:[%s3108 + $0x2b8] sm:%s3100] %v3457
                  %v3459 = vld [vmem:[%s3107 + $0x578] sm:%s3100]
                  %3460 = vst [vmem:[%s3108 + $0x2bc] sm:%s3100] %v3459
                  %v3461 = vld [vmem:[%s3107 + $0x580] sm:%s3100]
                  %3462 = vst [vmem:[%s3108 + $0x2c0] sm:%s3100] %v3461
                  %v3463 = vld [vmem:[%s3107 + $0x588] sm:%s3100]
                  %3464 = vst [vmem:[%s3108 + $0x2c4] sm:%s3100] %v3463
                  %v3465 = vld [vmem:[%s3107 + $0x590] sm:%s3100]
                  %3466 = vst [vmem:[%s3108 + $0x2c8] sm:%s3100] %v3465
                  %v3467 = vld [vmem:[%s3107 + $0x598] sm:%s3100]
                  %3468 = vst [vmem:[%s3108 + $0x2cc] sm:%s3100] %v3467
                  %v3469 = vld [vmem:[%s3107 + $0x5a0] sm:%s3100]
                  %3470 = vst [vmem:[%s3108 + $0x2d0] sm:%s3100] %v3469
                  %v3471 = vld [vmem:[%s3107 + $0x5a8] sm:%s3100]
                  %3472 = vst [vmem:[%s3108 + $0x2d4] sm:%s3100] %v3471
                  %v3473 = vld [vmem:[%s3107 + $0x5b0] sm:%s3100]
                  %3474 = vst [vmem:[%s3108 + $0x2d8] sm:%s3100] %v3473
                  %v3475 = vld [vmem:[%s3107 + $0x5b8] sm:%s3100]
                  %3476 = vst [vmem:[%s3108 + $0x2dc] sm:%s3100] %v3475
                  %v3477 = vld [vmem:[%s3107 + $0x5c0] sm:%s3100]
                  %3478 = vst [vmem:[%s3108 + $0x2e0] sm:%s3100] %v3477
                  %v3479 = vld [vmem:[%s3107 + $0x5c8] sm:%s3100]
                  %3480 = vst [vmem:[%s3108 + $0x2e4] sm:%s3100] %v3479
                  %v3481 = vld [vmem:[%s3107 + $0x5d0] sm:%s3100]
                  %3482 = vst [vmem:[%s3108 + $0x2e8] sm:%s3100] %v3481
                  %v3483 = vld [vmem:[%s3107 + $0x5d8] sm:%s3100]
                  %3484 = vst [vmem:[%s3108 + $0x2ec] sm:%s3100] %v3483
                  %v3485 = vld [vmem:[%s3107 + $0x5e0] sm:%s3100]
                  %3486 = vst [vmem:[%s3108 + $0x2f0] sm:%s3100] %v3485
                  %v3487 = vld [vmem:[%s3107 + $0x5e8] sm:%s3100]
                  %3488 = vst [vmem:[%s3108 + $0x2f4] sm:%s3100] %v3487
                  %v3489 = vld [vmem:[%s3107 + $0x5f0] sm:%s3100]
                  %3490 = vst [vmem:[%s3108 + $0x2f8] sm:%s3100] %v3489
                  %v3491 = vld [vmem:[%s3107 + $0x5f8] sm:%s3100]
                  %3492 = vst [vmem:[%s3108 + $0x2fc] sm:%s3100] %v3491
                  %v3493 = vld [vmem:[%s3107 + $0x600] sm:%s3100]
                  %3494 = vst [vmem:[%s3108 + $0x300] sm:%s3100] %v3493
                  %v3495 = vld [vmem:[%s3107 + $0x608] sm:%s3100]
                  %3496 = vst [vmem:[%s3108 + $0x304] sm:%s3100] %v3495
                  %v3497 = vld [vmem:[%s3107 + $0x610] sm:%s3100]
                  %3498 = vst [vmem:[%s3108 + $0x308] sm:%s3100] %v3497
                  %v3499 = vld [vmem:[%s3107 + $0x618] sm:%s3100]
                  %3500 = vst [vmem:[%s3108 + $0x30c] sm:%s3100] %v3499
                  %v3501 = vld [vmem:[%s3107 + $0x620] sm:%s3100]
                  %3502 = vst [vmem:[%s3108 + $0x310] sm:%s3100] %v3501
                  %v3503 = vld [vmem:[%s3107 + $0x628] sm:%s3100]
                  %3504 = vst [vmem:[%s3108 + $0x314] sm:%s3100] %v3503
                  %v3505 = vld [vmem:[%s3107 + $0x630] sm:%s3100]
                  %3506 = vst [vmem:[%s3108 + $0x318] sm:%s3100] %v3505
                  %v3507 = vld [vmem:[%s3107 + $0x638] sm:%s3100]
                  %3508 = vst [vmem:[%s3108 + $0x31c] sm:%s3100] %v3507
                  %v3509 = vld [vmem:[%s3107 + $0x640] sm:%s3100]
                  %3510 = vst [vmem:[%s3108 + $0x320] sm:%s3100] %v3509
                  %v3511 = vld [vmem:[%s3107 + $0x648] sm:%s3100]
                  %3512 = vst [vmem:[%s3108 + $0x324] sm:%s3100] %v3511
                  %v3513 = vld [vmem:[%s3107 + $0x650] sm:%s3100]
                  %3514 = vst [vmem:[%s3108 + $0x328] sm:%s3100] %v3513
                  %v3515 = vld [vmem:[%s3107 + $0x658] sm:%s3100]
                  %3516 = vst [vmem:[%s3108 + $0x32c] sm:%s3100] %v3515
                  %v3517 = vld [vmem:[%s3107 + $0x660] sm:%s3100]
                  %3518 = vst [vmem:[%s3108 + $0x330] sm:%s3100] %v3517
                  %v3519 = vld [vmem:[%s3107 + $0x668] sm:%s3100]
                  %3520 = vst [vmem:[%s3108 + $0x334] sm:%s3100] %v3519
                  %v3521 = vld [vmem:[%s3107 + $0x670] sm:%s3100]
                  %3522 = vst [vmem:[%s3108 + $0x338] sm:%s3100] %v3521
                  %v3523 = vld [vmem:[%s3107 + $0x678] sm:%s3100]
                  %3524 = vst [vmem:[%s3108 + $0x33c] sm:%s3100] %v3523
                  %v3525 = vld [vmem:[%s3107 + $0x680] sm:%s3100]
                  %3526 = vst [vmem:[%s3108 + $0x340] sm:%s3100] %v3525
                  %v3527 = vld [vmem:[%s3107 + $0x688] sm:%s3100]
                  %3528 = vst [vmem:[%s3108 + $0x344] sm:%s3100] %v3527
                  %v3529 = vld [vmem:[%s3107 + $0x690] sm:%s3100]
                  %3530 = vst [vmem:[%s3108 + $0x348] sm:%s3100] %v3529
                  %v3531 = vld [vmem:[%s3107 + $0x698] sm:%s3100]
                  %3532 = vst [vmem:[%s3108 + $0x34c] sm:%s3100] %v3531
                  %v3533 = vld [vmem:[%s3107 + $0x6a0] sm:%s3100]
                  %3534 = vst [vmem:[%s3108 + $0x350] sm:%s3100] %v3533
                  %v3535 = vld [vmem:[%s3107 + $0x6a8] sm:%s3100]
                  %3536 = vst [vmem:[%s3108 + $0x354] sm:%s3100] %v3535
                  %v3537 = vld [vmem:[%s3107 + $0x6b0] sm:%s3100]
                  %3538 = vst [vmem:[%s3108 + $0x358] sm:%s3100] %v3537
                  %v3539 = vld [vmem:[%s3107 + $0x6b8] sm:%s3100]
                  %3540 = vst [vmem:[%s3108 + $0x35c] sm:%s3100] %v3539
                  %v3541 = vld [vmem:[%s3107 + $0x6c0] sm:%s3100]
                  %3542 = vst [vmem:[%s3108 + $0x360] sm:%s3100] %v3541
                  %v3543 = vld [vmem:[%s3107 + $0x6c8] sm:%s3100]
                  %3544 = vst [vmem:[%s3108 + $0x364] sm:%s3100] %v3543
                  %v3545 = vld [vmem:[%s3107 + $0x6d0] sm:%s3100]
                  %3546 = vst [vmem:[%s3108 + $0x368] sm:%s3100] %v3545
                  %v3547 = vld [vmem:[%s3107 + $0x6d8] sm:%s3100]
                  %3548 = vst [vmem:[%s3108 + $0x36c] sm:%s3100] %v3547
                  %v3549 = vld [vmem:[%s3107 + $0x6e0] sm:%s3100]
                  %3550 = vst [vmem:[%s3108 + $0x370] sm:%s3100] %v3549
                  %v3551 = vld [vmem:[%s3107 + $0x6e8] sm:%s3100]
                  %3552 = vst [vmem:[%s3108 + $0x374] sm:%s3100] %v3551
                  %v3553 = vld [vmem:[%s3107 + $0x6f0] sm:%s3100]
                  %3554 = vst [vmem:[%s3108 + $0x378] sm:%s3100] %v3553
                  %v3555 = vld [vmem:[%s3107 + $0x6f8] sm:%s3100]
                  %3556 = vst [vmem:[%s3108 + $0x37c] sm:%s3100] %v3555
                  %v3557 = vld [vmem:[%s3107 + $0x700] sm:%s3100]
                  %3558 = vst [vmem:[%s3108 + $0x380] sm:%s3100] %v3557
                  %v3559 = vld [vmem:[%s3107 + $0x708] sm:%s3100]
                  %3560 = vst [vmem:[%s3108 + $0x384] sm:%s3100] %v3559
                  %v3561 = vld [vmem:[%s3107 + $0x710] sm:%s3100]
                  %3562 = vst [vmem:[%s3108 + $0x388] sm:%s3100] %v3561
                  %v3563 = vld [vmem:[%s3107 + $0x718] sm:%s3100]
                  %3564 = vst [vmem:[%s3108 + $0x38c] sm:%s3100] %v3563
                  %v3565 = vld [vmem:[%s3107 + $0x720] sm:%s3100]
                  %3566 = vst [vmem:[%s3108 + $0x390] sm:%s3100] %v3565
                  %v3567 = vld [vmem:[%s3107 + $0x728] sm:%s3100]
                  %3568 = vst [vmem:[%s3108 + $0x394] sm:%s3100] %v3567
                  %v3569 = vld [vmem:[%s3107 + $0x730] sm:%s3100]
                  %3570 = vst [vmem:[%s3108 + $0x398] sm:%s3100] %v3569
                  %v3571 = vld [vmem:[%s3107 + $0x738] sm:%s3100]
                  %3572 = vst [vmem:[%s3108 + $0x39c] sm:%s3100] %v3571
                  %v3573 = vld [vmem:[%s3107 + $0x740] sm:%s3100]
                  %3574 = vst [vmem:[%s3108 + $0x3a0] sm:%s3100] %v3573
                  %v3575 = vld [vmem:[%s3107 + $0x748] sm:%s3100]
                  %3576 = vst [vmem:[%s3108 + $0x3a4] sm:%s3100] %v3575
                  %v3577 = vld [vmem:[%s3107 + $0x750] sm:%s3100]
                  %3578 = vst [vmem:[%s3108 + $0x3a8] sm:%s3100] %v3577
                  %v3579 = vld [vmem:[%s3107 + $0x758] sm:%s3100]
                  %3580 = vst [vmem:[%s3108 + $0x3ac] sm:%s3100] %v3579
                  %v3581 = vld [vmem:[%s3107 + $0x760] sm:%s3100]
                  %3582 = vst [vmem:[%s3108 + $0x3b0] sm:%s3100] %v3581
                  %v3583 = vld [vmem:[%s3107 + $0x768] sm:%s3100]
                  %3584 = vst [vmem:[%s3108 + $0x3b4] sm:%s3100] %v3583
                  %v3585 = vld [vmem:[%s3107 + $0x770] sm:%s3100]
                  %3586 = vst [vmem:[%s3108 + $0x3b8] sm:%s3100] %v3585
                  %v3587 = vld [vmem:[%s3107 + $0x778] sm:%s3100]
                  %3588 = vst [vmem:[%s3108 + $0x3bc] sm:%s3100] %v3587
                  %v3589 = vld [vmem:[%s3107 + $0x780] sm:%s3100]
                  %3590 = vst [vmem:[%s3108 + $0x3c0] sm:%s3100] %v3589
                  %v3591 = vld [vmem:[%s3107 + $0x788] sm:%s3100]
                  %3592 = vst [vmem:[%s3108 + $0x3c4] sm:%s3100] %v3591
                  %v3593 = vld [vmem:[%s3107 + $0x790] sm:%s3100]
                  %3594 = vst [vmem:[%s3108 + $0x3c8] sm:%s3100] %v3593
                  %v3595 = vld [vmem:[%s3107 + $0x798] sm:%s3100]
                  %3596 = vst [vmem:[%s3108 + $0x3cc] sm:%s3100] %v3595
                  %v3597 = vld [vmem:[%s3107 + $0x7a0] sm:%s3100]
                  %3598 = vst [vmem:[%s3108 + $0x3d0] sm:%s3100] %v3597
                  %v3599 = vld [vmem:[%s3107 + $0x7a8] sm:%s3100]
                  %3600 = vst [vmem:[%s3108 + $0x3d4] sm:%s3100] %v3599
                  %v3601 = vld [vmem:[%s3107 + $0x7b0] sm:%s3100]
                  %3602 = vst [vmem:[%s3108 + $0x3d8] sm:%s3100] %v3601
                  %v3603 = vld [vmem:[%s3107 + $0x7b8] sm:%s3100]
                  %3604 = vst [vmem:[%s3108 + $0x3dc] sm:%s3100] %v3603
                  %v3605 = vld [vmem:[%s3107 + $0x7c0] sm:%s3100]
                  %3606 = vst [vmem:[%s3108 + $0x3e0] sm:%s3100] %v3605
                  %v3607 = vld [vmem:[%s3107 + $0x7c8] sm:%s3100]
                  %3608 = vst [vmem:[%s3108 + $0x3e4] sm:%s3100] %v3607
                  %v3609 = vld [vmem:[%s3107 + $0x7d0] sm:%s3100]
                  %3610 = vst [vmem:[%s3108 + $0x3e8] sm:%s3100] %v3609
                  %v3611 = vld [vmem:[%s3107 + $0x7d8] sm:%s3100]
                  %3612 = vst [vmem:[%s3108 + $0x3ec] sm:%s3100] %v3611
                  %v3613 = vld [vmem:[%s3107 + $0x7e0] sm:%s3100]
                  %3614 = vst [vmem:[%s3108 + $0x3f0] sm:%s3100] %v3613
                  %v3615 = vld [vmem:[%s3107 + $0x7e8] sm:%s3100]
                  %3616 = vst [vmem:[%s3108 + $0x3f4] sm:%s3100] %v3615
                  %v3617 = vld [vmem:[%s3107 + $0x7f0] sm:%s3100]
                  %3618 = vst [vmem:[%s3108 + $0x3f8] sm:%s3100] %v3617
                  %v3619 = vld [vmem:[%s3107 + $0x7f8] sm:%s3100]
                  %3620 = vst [vmem:[%s3108 + $0x3fc] sm:%s3100] %v3619
                  %v3621 = vld [vmem:[%s3107 + $0x800] sm:%s3100]
                  %3622 = vst [vmem:[%s3108 + $0x400] sm:%s3100] %v3621
                  %v3623 = vld [vmem:[%s3107 + $0x808] sm:%s3100]
                  %3624 = vst [vmem:[%s3108 + $0x404] sm:%s3100] %v3623
                  %v3625 = vld [vmem:[%s3107 + $0x810] sm:%s3100]
                  %3626 = vst [vmem:[%s3108 + $0x408] sm:%s3100] %v3625
                  %v3627 = vld [vmem:[%s3107 + $0x818] sm:%s3100]
                  %3628 = vst [vmem:[%s3108 + $0x40c] sm:%s3100] %v3627
                  %v3629 = vld [vmem:[%s3107 + $0x820] sm:%s3100]
                  %3630 = vst [vmem:[%s3108 + $0x410] sm:%s3100] %v3629
                  %v3631 = vld [vmem:[%s3107 + $0x828] sm:%s3100]
                  %3632 = vst [vmem:[%s3108 + $0x414] sm:%s3100] %v3631
                  %v3633 = vld [vmem:[%s3107 + $0x830] sm:%s3100]
                  %3634 = vst [vmem:[%s3108 + $0x418] sm:%s3100] %v3633
                  %v3635 = vld [vmem:[%s3107 + $0x838] sm:%s3100]
                  %3636 = vst [vmem:[%s3108 + $0x41c] sm:%s3100] %v3635
                  %v3637 = vld [vmem:[%s3107 + $0x840] sm:%s3100]
                  %3638 = vst [vmem:[%s3108 + $0x420] sm:%s3100] %v3637
                  %v3639 = vld [vmem:[%s3107 + $0x848] sm:%s3100]
                  %3640 = vst [vmem:[%s3108 + $0x424] sm:%s3100] %v3639
                  %v3641 = vld [vmem:[%s3107 + $0x850] sm:%s3100]
                  %3642 = vst [vmem:[%s3108 + $0x428] sm:%s3100] %v3641
                  %v3643 = vld [vmem:[%s3107 + $0x858] sm:%s3100]
                  %3644 = vst [vmem:[%s3108 + $0x42c] sm:%s3100] %v3643
                  %v3645 = vld [vmem:[%s3107 + $0x860] sm:%s3100]
                  %3646 = vst [vmem:[%s3108 + $0x430] sm:%s3100] %v3645
                  %v3647 = vld [vmem:[%s3107 + $0x868] sm:%s3100]
                  %3648 = vst [vmem:[%s3108 + $0x434] sm:%s3100] %v3647
                  %v3649 = vld [vmem:[%s3107 + $0x870] sm:%s3100]
                  %3650 = vst [vmem:[%s3108 + $0x438] sm:%s3100] %v3649
                  %v3651 = vld [vmem:[%s3107 + $0x878] sm:%s3100]
                  %3652 = vst [vmem:[%s3108 + $0x43c] sm:%s3100] %v3651
                  %v3653 = vld [vmem:[%s3107 + $0x880] sm:%s3100]
                  %3654 = vst [vmem:[%s3108 + $0x440] sm:%s3100] %v3653
                  %v3655 = vld [vmem:[%s3107 + $0x888] sm:%s3100]
                  %3656 = vst [vmem:[%s3108 + $0x444] sm:%s3100] %v3655
                  %v3657 = vld [vmem:[%s3107 + $0x890] sm:%s3100]
                  %3658 = vst [vmem:[%s3108 + $0x448] sm:%s3100] %v3657
                  %v3659 = vld [vmem:[%s3107 + $0x898] sm:%s3100]
                  %3660 = vst [vmem:[%s3108 + $0x44c] sm:%s3100] %v3659
                  %v3661 = vld [vmem:[%s3107 + $0x8a0] sm:%s3100]
                  %3662 = vst [vmem:[%s3108 + $0x450] sm:%s3100] %v3661
                  %v3663 = vld [vmem:[%s3107 + $0x8a8] sm:%s3100]
                  %3664 = vst [vmem:[%s3108 + $0x454] sm:%s3100] %v3663
                  %v3665 = vld [vmem:[%s3107 + $0x8b0] sm:%s3100]
                  %3666 = vst [vmem:[%s3108 + $0x458] sm:%s3100] %v3665
                  %v3667 = vld [vmem:[%s3107 + $0x8b8] sm:%s3100]
                  %3668 = vst [vmem:[%s3108 + $0x45c] sm:%s3100] %v3667
                  %v3669 = vld [vmem:[%s3107 + $0x8c0] sm:%s3100]
                  %3670 = vst [vmem:[%s3108 + $0x460] sm:%s3100] %v3669
                  %v3671 = vld [vmem:[%s3107 + $0x8c8] sm:%s3100]
                  %3672 = vst [vmem:[%s3108 + $0x464] sm:%s3100] %v3671
                  %v3673 = vld [vmem:[%s3107 + $0x8d0] sm:%s3100]
                  %3674 = vst [vmem:[%s3108 + $0x468] sm:%s3100] %v3673
                  %v3675 = vld [vmem:[%s3107 + $0x8d8] sm:%s3100]
                  %3676 = vst [vmem:[%s3108 + $0x46c] sm:%s3100] %v3675
                  %v3677 = vld [vmem:[%s3107 + $0x8e0] sm:%s3100]
                  %3678 = vst [vmem:[%s3108 + $0x470] sm:%s3100] %v3677
                  %v3679 = vld [vmem:[%s3107 + $0x8e8] sm:%s3100]
                  %3680 = vst [vmem:[%s3108 + $0x474] sm:%s3100] %v3679
                  %v3681 = vld [vmem:[%s3107 + $0x8f0] sm:%s3100]
                  %3682 = vst [vmem:[%s3108 + $0x478] sm:%s3100] %v3681
                  %v3683 = vld [vmem:[%s3107 + $0x8f8] sm:%s3100]
                  %3684 = vst [vmem:[%s3108 + $0x47c] sm:%s3100] %v3683
                  %v3685 = vld [vmem:[%s3107 + $0x900] sm:%s3100]
                  %3686 = vst [vmem:[%s3108 + $0x480] sm:%s3100] %v3685
                  %v3687 = vld [vmem:[%s3107 + $0x908] sm:%s3100]
                  %3688 = vst [vmem:[%s3108 + $0x484] sm:%s3100] %v3687
                  %v3689 = vld [vmem:[%s3107 + $0x910] sm:%s3100]
                  %3690 = vst [vmem:[%s3108 + $0x488] sm:%s3100] %v3689
                  %v3691 = vld [vmem:[%s3107 + $0x918] sm:%s3100]
                  %3692 = vst [vmem:[%s3108 + $0x48c] sm:%s3100] %v3691
                  %v3693 = vld [vmem:[%s3107 + $0x920] sm:%s3100]
                  %3694 = vst [vmem:[%s3108 + $0x490] sm:%s3100] %v3693
                  %v3695 = vld [vmem:[%s3107 + $0x928] sm:%s3100]
                  %3696 = vst [vmem:[%s3108 + $0x494] sm:%s3100] %v3695
                  %v3697 = vld [vmem:[%s3107 + $0x930] sm:%s3100]
                  %3698 = vst [vmem:[%s3108 + $0x498] sm:%s3100] %v3697
                  %v3699 = vld [vmem:[%s3107 + $0x938] sm:%s3100]
                  %3700 = vst [vmem:[%s3108 + $0x49c] sm:%s3100] %v3699
                  %v3701 = vld [vmem:[%s3107 + $0x940] sm:%s3100]
                  %3702 = vst [vmem:[%s3108 + $0x4a0] sm:%s3100] %v3701
                  %v3703 = vld [vmem:[%s3107 + $0x948] sm:%s3100]
                  %3704 = vst [vmem:[%s3108 + $0x4a4] sm:%s3100] %v3703
                  %v3705 = vld [vmem:[%s3107 + $0x950] sm:%s3100]
                  %3706 = vst [vmem:[%s3108 + $0x4a8] sm:%s3100] %v3705
                  %v3707 = vld [vmem:[%s3107 + $0x958] sm:%s3100]
                  %3708 = vst [vmem:[%s3108 + $0x4ac] sm:%s3100] %v3707
                  %v3709 = vld [vmem:[%s3107 + $0x960] sm:%s3100]
                  %3710 = vst [vmem:[%s3108 + $0x4b0] sm:%s3100] %v3709
                  %v3711 = vld [vmem:[%s3107 + $0x968] sm:%s3100]
                  %3712 = vst [vmem:[%s3108 + $0x4b4] sm:%s3100] %v3711
                  %v3713 = vld [vmem:[%s3107 + $0x970] sm:%s3100]
                  %3714 = vst [vmem:[%s3108 + $0x4b8] sm:%s3100] %v3713
                  %v3715 = vld [vmem:[%s3107 + $0x978] sm:%s3100]
                  %3716 = vst [vmem:[%s3108 + $0x4bc] sm:%s3100] %v3715
                  %v3717 = vld [vmem:[%s3107 + $0x980] sm:%s3100]
                  %3718 = vst [vmem:[%s3108 + $0x4c0] sm:%s3100] %v3717
                  %v3719 = vld [vmem:[%s3107 + $0x988] sm:%s3100]
                  %3720 = vst [vmem:[%s3108 + $0x4c4] sm:%s3100] %v3719
                  %v3721 = vld [vmem:[%s3107 + $0x990] sm:%s3100]
                  %3722 = vst [vmem:[%s3108 + $0x4c8] sm:%s3100] %v3721
                  %v3723 = vld [vmem:[%s3107 + $0x998] sm:%s3100]
                  %3724 = vst [vmem:[%s3108 + $0x4cc] sm:%s3100] %v3723
                  %v3725 = vld [vmem:[%s3107 + $0x9a0] sm:%s3100]
                  %3726 = vst [vmem:[%s3108 + $0x4d0] sm:%s3100] %v3725
                  %v3727 = vld [vmem:[%s3107 + $0x9a8] sm:%s3100]
                  %3728 = vst [vmem:[%s3108 + $0x4d4] sm:%s3100] %v3727
                  %v3729 = vld [vmem:[%s3107 + $0x9b0] sm:%s3100]
                  %3730 = vst [vmem:[%s3108 + $0x4d8] sm:%s3100] %v3729
                  %v3731 = vld [vmem:[%s3107 + $0x9b8] sm:%s3100]
                  %3732 = vst [vmem:[%s3108 + $0x4dc] sm:%s3100] %v3731
                  %v3733 = vld [vmem:[%s3107 + $0x9c0] sm:%s3100]
                  %3734 = vst [vmem:[%s3108 + $0x4e0] sm:%s3100] %v3733
                  %v3735 = vld [vmem:[%s3107 + $0x9c8] sm:%s3100]
                  %3736 = vst [vmem:[%s3108 + $0x4e4] sm:%s3100] %v3735
                  %v3737 = vld [vmem:[%s3107 + $0x9d0] sm:%s3100]
                  %3738 = vst [vmem:[%s3108 + $0x4e8] sm:%s3100] %v3737
                  %v3739 = vld [vmem:[%s3107 + $0x9d8] sm:%s3100]
                  %3740 = vst [vmem:[%s3108 + $0x4ec] sm:%s3100] %v3739
                  %v3741 = vld [vmem:[%s3107 + $0x9e0] sm:%s3100]
                  %3742 = vst [vmem:[%s3108 + $0x4f0] sm:%s3100] %v3741
                  %v3743 = vld [vmem:[%s3107 + $0x9e8] sm:%s3100]
                  %3744 = vst [vmem:[%s3108 + $0x4f4] sm:%s3100] %v3743
                  %v3745 = vld [vmem:[%s3107 + $0x9f0] sm:%s3100]
                  %3746 = vst [vmem:[%s3108 + $0x4f8] sm:%s3100] %v3745
                  %v3747 = vld [vmem:[%s3107 + $0x9f8] sm:%s3100]
                  %3748 = vst [vmem:[%s3108 + $0x4fc] sm:%s3100] %v3747
                  %v3749 = vld [vmem:[%s3107 + $0xa00] sm:%s3100]
                  %3750 = vst [vmem:[%s3108 + $0x500] sm:%s3100] %v3749
                  %v3751 = vld [vmem:[%s3107 + $0xa08] sm:%s3100]
                  %3752 = vst [vmem:[%s3108 + $0x504] sm:%s3100] %v3751
                  %v3753 = vld [vmem:[%s3107 + $0xa10] sm:%s3100]
                  %3754 = vst [vmem:[%s3108 + $0x508] sm:%s3100] %v3753
                  %v3755 = vld [vmem:[%s3107 + $0xa18] sm:%s3100]
                  %3756 = vst [vmem:[%s3108 + $0x50c] sm:%s3100] %v3755
                  %v3757 = vld [vmem:[%s3107 + $0xa20] sm:%s3100]
                  %3758 = vst [vmem:[%s3108 + $0x510] sm:%s3100] %v3757
                  %v3759 = vld [vmem:[%s3107 + $0xa28] sm:%s3100]
                  %3760 = vst [vmem:[%s3108 + $0x514] sm:%s3100] %v3759
                  %v3761 = vld [vmem:[%s3107 + $0xa30] sm:%s3100]
                  %3762 = vst [vmem:[%s3108 + $0x518] sm:%s3100] %v3761
                  %v3763 = vld [vmem:[%s3107 + $0xa38] sm:%s3100]
                  %3764 = vst [vmem:[%s3108 + $0x51c] sm:%s3100] %v3763
                  %v3765 = vld [vmem:[%s3107 + $0xa40] sm:%s3100]
                  %3766 = vst [vmem:[%s3108 + $0x520] sm:%s3100] %v3765
                  %v3767 = vld [vmem:[%s3107 + $0xa48] sm:%s3100]
                  %3768 = vst [vmem:[%s3108 + $0x524] sm:%s3100] %v3767
                  %v3769 = vld [vmem:[%s3107 + $0xa50] sm:%s3100]
                  %3770 = vst [vmem:[%s3108 + $0x528] sm:%s3100] %v3769
                  %v3771 = vld [vmem:[%s3107 + $0xa58] sm:%s3100]
                  %3772 = vst [vmem:[%s3108 + $0x52c] sm:%s3100] %v3771
                  %v3773 = vld [vmem:[%s3107 + $0xa60] sm:%s3100]
                  %3774 = vst [vmem:[%s3108 + $0x530] sm:%s3100] %v3773
                  %v3775 = vld [vmem:[%s3107 + $0xa68] sm:%s3100]
                  %3776 = vst [vmem:[%s3108 + $0x534] sm:%s3100] %v3775
                  %v3777 = vld [vmem:[%s3107 + $0xa70] sm:%s3100]
                  %3778 = vst [vmem:[%s3108 + $0x538] sm:%s3100] %v3777
                  %v3779 = vld [vmem:[%s3107 + $0xa78] sm:%s3100]
                  %3780 = vst [vmem:[%s3108 + $0x53c] sm:%s3100] %v3779
                  %v3781 = vld [vmem:[%s3107 + $0xa80] sm:%s3100]
                  %3782 = vst [vmem:[%s3108 + $0x540] sm:%s3100] %v3781
                  %v3783 = vld [vmem:[%s3107 + $0xa88] sm:%s3100]
                  %3784 = vst [vmem:[%s3108 + $0x544] sm:%s3100] %v3783
                  %v3785 = vld [vmem:[%s3107 + $0xa90] sm:%s3100]
                  %3786 = vst [vmem:[%s3108 + $0x548] sm:%s3100] %v3785
                  %v3787 = vld [vmem:[%s3107 + $0xa98] sm:%s3100]
                  %3788 = vst [vmem:[%s3108 + $0x54c] sm:%s3100] %v3787
                  %v3789 = vld [vmem:[%s3107 + $0xaa0] sm:%s3100]
                  %3790 = vst [vmem:[%s3108 + $0x550] sm:%s3100] %v3789
                  %v3791 = vld [vmem:[%s3107 + $0xaa8] sm:%s3100]
                  %3792 = vst [vmem:[%s3108 + $0x554] sm:%s3100] %v3791
                  %v3793 = vld [vmem:[%s3107 + $0xab0] sm:%s3100]
                  %3794 = vst [vmem:[%s3108 + $0x558] sm:%s3100] %v3793
                  %v3795 = vld [vmem:[%s3107 + $0xab8] sm:%s3100]
                  %3796 = vst [vmem:[%s3108 + $0x55c] sm:%s3100] %v3795
                  %v3797 = vld [vmem:[%s3107 + $0xac0] sm:%s3100]
                  %3798 = vst [vmem:[%s3108 + $0x560] sm:%s3100] %v3797
                  %v3799 = vld [vmem:[%s3107 + $0xac8] sm:%s3100]
                  %3800 = vst [vmem:[%s3108 + $0x564] sm:%s3100] %v3799
                  %v3801 = vld [vmem:[%s3107 + $0xad0] sm:%s3100]
                  %3802 = vst [vmem:[%s3108 + $0x568] sm:%s3100] %v3801
                  %v3803 = vld [vmem:[%s3107 + $0xad8] sm:%s3100]
                  %3804 = vst [vmem:[%s3108 + $0x56c] sm:%s3100] %v3803
                  %v3805 = vld [vmem:[%s3107 + $0xae0] sm:%s3100]
                  %3806 = vst [vmem:[%s3108 + $0x570] sm:%s3100] %v3805
                  %v3807 = vld [vmem:[%s3107 + $0xae8] sm:%s3100]
                  %3808 = vst [vmem:[%s3108 + $0x574] sm:%s3100] %v3807
                  %v3809 = vld [vmem:[%s3107 + $0xaf0] sm:%s3100]
                  %3810 = vst [vmem:[%s3108 + $0x578] sm:%s3100] %v3809
                  %v3811 = vld [vmem:[%s3107 + $0xaf8] sm:%s3100]
                  %3812 = vst [vmem:[%s3108 + $0x57c] sm:%s3100] %v3811
                  %v3813 = vld [vmem:[%s3107 + $0xb00] sm:%s3100]
                  %3814 = vst [vmem:[%s3108 + $0x580] sm:%s3100] %v3813
                  %v3815 = vld [vmem:[%s3107 + $0xb08] sm:%s3100]
                  %3816 = vst [vmem:[%s3108 + $0x584] sm:%s3100] %v3815
                  %v3817 = vld [vmem:[%s3107 + $0xb10] sm:%s3100]
                  %3818 = vst [vmem:[%s3108 + $0x588] sm:%s3100] %v3817
                  %v3819 = vld [vmem:[%s3107 + $0xb18] sm:%s3100]
                  %3820 = vst [vmem:[%s3108 + $0x58c] sm:%s3100] %v3819
                  %v3821 = vld [vmem:[%s3107 + $0xb20] sm:%s3100]
                  %3822 = vst [vmem:[%s3108 + $0x590] sm:%s3100] %v3821
                  %v3823 = vld [vmem:[%s3107 + $0xb28] sm:%s3100]
                  %3824 = vst [vmem:[%s3108 + $0x594] sm:%s3100] %v3823
                  %v3825 = vld [vmem:[%s3107 + $0xb30] sm:%s3100]
                  %3826 = vst [vmem:[%s3108 + $0x598] sm:%s3100] %v3825
                  %v3827 = vld [vmem:[%s3107 + $0xb38] sm:%s3100]
                  %3828 = vst [vmem:[%s3108 + $0x59c] sm:%s3100] %v3827
                  %v3829 = vld [vmem:[%s3107 + $0xb40] sm:%s3100]
                  %3830 = vst [vmem:[%s3108 + $0x5a0] sm:%s3100] %v3829
                  %v3831 = vld [vmem:[%s3107 + $0xb48] sm:%s3100]
                  %3832 = vst [vmem:[%s3108 + $0x5a4] sm:%s3100] %v3831
                  %v3833 = vld [vmem:[%s3107 + $0xb50] sm:%s3100]
                  %3834 = vst [vmem:[%s3108 + $0x5a8] sm:%s3100] %v3833
                  %v3835 = vld [vmem:[%s3107 + $0xb58] sm:%s3100]
                  %3836 = vst [vmem:[%s3108 + $0x5ac] sm:%s3100] %v3835
                  %v3837 = vld [vmem:[%s3107 + $0xb60] sm:%s3100]
                  %3838 = vst [vmem:[%s3108 + $0x5b0] sm:%s3100] %v3837
                  %v3839 = vld [vmem:[%s3107 + $0xb68] sm:%s3100]
                  %3840 = vst [vmem:[%s3108 + $0x5b4] sm:%s3100] %v3839
                  %v3841 = vld [vmem:[%s3107 + $0xb70] sm:%s3100]
                  %3842 = vst [vmem:[%s3108 + $0x5b8] sm:%s3100] %v3841
                  %v3843 = vld [vmem:[%s3107 + $0xb78] sm:%s3100]
                  %3844 = vst [vmem:[%s3108 + $0x5bc] sm:%s3100] %v3843
                  %v3845 = vld [vmem:[%s3107 + $0xb80] sm:%s3100]
                  %3846 = vst [vmem:[%s3108 + $0x5c0] sm:%s3100] %v3845
                  %v3847 = vld [vmem:[%s3107 + $0xb88] sm:%s3100]
                  %3848 = vst [vmem:[%s3108 + $0x5c4] sm:%s3100] %v3847
                  %v3849 = vld [vmem:[%s3107 + $0xb90] sm:%s3100]
                  %3850 = vst [vmem:[%s3108 + $0x5c8] sm:%s3100] %v3849
                  %v3851 = vld [vmem:[%s3107 + $0xb98] sm:%s3100]
                  %3852 = vst [vmem:[%s3108 + $0x5cc] sm:%s3100] %v3851
                  %v3853 = vld [vmem:[%s3107 + $0xba0] sm:%s3100]
                  %3854 = vst [vmem:[%s3108 + $0x5d0] sm:%s3100] %v3853
                  %v3855 = vld [vmem:[%s3107 + $0xba8] sm:%s3100]
                  %3856 = vst [vmem:[%s3108 + $0x5d4] sm:%s3100] %v3855
                  %v3857 = vld [vmem:[%s3107 + $0xbb0] sm:%s3100]
                  %3858 = vst [vmem:[%s3108 + $0x5d8] sm:%s3100] %v3857
                  %v3859 = vld [vmem:[%s3107 + $0xbb8] sm:%s3100]
                  %3860 = vst [vmem:[%s3108 + $0x5dc] sm:%s3100] %v3859
                  %v3861 = vld [vmem:[%s3107 + $0xbc0] sm:%s3100]
                  %3862 = vst [vmem:[%s3108 + $0x5e0] sm:%s3100] %v3861
                  %v3863 = vld [vmem:[%s3107 + $0xbc8] sm:%s3100]
                  %3864 = vst [vmem:[%s3108 + $0x5e4] sm:%s3100] %v3863
                  %v3865 = vld [vmem:[%s3107 + $0xbd0] sm:%s3100]
                  %3866 = vst [vmem:[%s3108 + $0x5e8] sm:%s3100] %v3865
                  %v3867 = vld [vmem:[%s3107 + $0xbd8] sm:%s3100]
                  %3868 = vst [vmem:[%s3108 + $0x5ec] sm:%s3100] %v3867
                  %v3869 = vld [vmem:[%s3107 + $0xbe0] sm:%s3100]
                  %3870 = vst [vmem:[%s3108 + $0x5f0] sm:%s3100] %v3869
                  %v3871 = vld [vmem:[%s3107 + $0xbe8] sm:%s3100]
                  %3872 = vst [vmem:[%s3108 + $0x5f4] sm:%s3100] %v3871
                  %v3873 = vld [vmem:[%s3107 + $0xbf0] sm:%s3100]
                  %3874 = vst [vmem:[%s3108 + $0x5f8] sm:%s3100] %v3873
                  %v3875 = vld [vmem:[%s3107 + $0xbf8] sm:%s3100]
                  %3876 = vst [vmem:[%s3108 + $0x5fc] sm:%s3100] %v3875
                  %v3877 = vld [vmem:[%s3107 + $0xc00] sm:%s3100]
                  %3878 = vst [vmem:[%s3108 + $0x600] sm:%s3100] %v3877
                  %v3879 = vld [vmem:[%s3107 + $0xc08] sm:%s3100]
                  %3880 = vst [vmem:[%s3108 + $0x604] sm:%s3100] %v3879
                  %v3881 = vld [vmem:[%s3107 + $0xc10] sm:%s3100]
                  %3882 = vst [vmem:[%s3108 + $0x608] sm:%s3100] %v3881
                  %v3883 = vld [vmem:[%s3107 + $0xc18] sm:%s3100]
                  %3884 = vst [vmem:[%s3108 + $0x60c] sm:%s3100] %v3883
                  %v3885 = vld [vmem:[%s3107 + $0xc20] sm:%s3100]
                  %3886 = vst [vmem:[%s3108 + $0x610] sm:%s3100] %v3885
                  %v3887 = vld [vmem:[%s3107 + $0xc28] sm:%s3100]
                  %3888 = vst [vmem:[%s3108 + $0x614] sm:%s3100] %v3887
                  %v3889 = vld [vmem:[%s3107 + $0xc30] sm:%s3100]
                  %3890 = vst [vmem:[%s3108 + $0x618] sm:%s3100] %v3889
                  %v3891 = vld [vmem:[%s3107 + $0xc38] sm:%s3100]
                  %3892 = vst [vmem:[%s3108 + $0x61c] sm:%s3100] %v3891
                  %v3893 = vld [vmem:[%s3107 + $0xc40] sm:%s3100]
                  %3894 = vst [vmem:[%s3108 + $0x620] sm:%s3100] %v3893
                  %v3895 = vld [vmem:[%s3107 + $0xc48] sm:%s3100]
                  %3896 = vst [vmem:[%s3108 + $0x624] sm:%s3100] %v3895
                  %v3897 = vld [vmem:[%s3107 + $0xc50] sm:%s3100]
                  %3898 = vst [vmem:[%s3108 + $0x628] sm:%s3100] %v3897
                  %v3899 = vld [vmem:[%s3107 + $0xc58] sm:%s3100]
                  %3900 = vst [vmem:[%s3108 + $0x62c] sm:%s3100] %v3899
                  %v3901 = vld [vmem:[%s3107 + $0xc60] sm:%s3100]
                  %3902 = vst [vmem:[%s3108 + $0x630] sm:%s3100] %v3901
                  %v3903 = vld [vmem:[%s3107 + $0xc68] sm:%s3100]
                  %3904 = vst [vmem:[%s3108 + $0x634] sm:%s3100] %v3903
                  %v3905 = vld [vmem:[%s3107 + $0xc70] sm:%s3100]
                  %3906 = vst [vmem:[%s3108 + $0x638] sm:%s3100] %v3905
                  %v3907 = vld [vmem:[%s3107 + $0xc78] sm:%s3100]
                  %3908 = vst [vmem:[%s3108 + $0x63c] sm:%s3100] %v3907
                  %v3909 = vld [vmem:[%s3107 + $0xc80] sm:%s3100]
                  %3910 = vst [vmem:[%s3108 + $0x640] sm:%s3100] %v3909
                  %v3911 = vld [vmem:[%s3107 + $0xc88] sm:%s3100]
                  %3912 = vst [vmem:[%s3108 + $0x644] sm:%s3100] %v3911
                  %v3913 = vld [vmem:[%s3107 + $0xc90] sm:%s3100]
                  %3914 = vst [vmem:[%s3108 + $0x648] sm:%s3100] %v3913
                  %v3915 = vld [vmem:[%s3107 + $0xc98] sm:%s3100]
                  %3916 = vst [vmem:[%s3108 + $0x64c] sm:%s3100] %v3915
                  %v3917 = vld [vmem:[%s3107 + $0xca0] sm:%s3100]
                  %3918 = vst [vmem:[%s3108 + $0x650] sm:%s3100] %v3917
                  %v3919 = vld [vmem:[%s3107 + $0xca8] sm:%s3100]
                  %3920 = vst [vmem:[%s3108 + $0x654] sm:%s3100] %v3919
                  %v3921 = vld [vmem:[%s3107 + $0xcb0] sm:%s3100]
                  %3922 = vst [vmem:[%s3108 + $0x658] sm:%s3100] %v3921
                  %v3923 = vld [vmem:[%s3107 + $0xcb8] sm:%s3100]
                  %3924 = vst [vmem:[%s3108 + $0x65c] sm:%s3100] %v3923
                  %v3925 = vld [vmem:[%s3107 + $0xcc0] sm:%s3100]
                  %3926 = vst [vmem:[%s3108 + $0x660] sm:%s3100] %v3925
                  %v3927 = vld [vmem:[%s3107 + $0xcc8] sm:%s3100]
                  %3928 = vst [vmem:[%s3108 + $0x664] sm:%s3100] %v3927
                  %v3929 = vld [vmem:[%s3107 + $0xcd0] sm:%s3100]
                  %3930 = vst [vmem:[%s3108 + $0x668] sm:%s3100] %v3929
                  %v3931 = vld [vmem:[%s3107 + $0xcd8] sm:%s3100]
                  %3932 = vst [vmem:[%s3108 + $0x66c] sm:%s3100] %v3931
                  %v3933 = vld [vmem:[%s3107 + $0xce0] sm:%s3100]
                  %3934 = vst [vmem:[%s3108 + $0x670] sm:%s3100] %v3933
                  %v3935 = vld [vmem:[%s3107 + $0xce8] sm:%s3100]
                  %3936 = vst [vmem:[%s3108 + $0x674] sm:%s3100] %v3935
                  %v3937 = vld [vmem:[%s3107 + $0xcf0] sm:%s3100]
                  %3938 = vst [vmem:[%s3108 + $0x678] sm:%s3100] %v3937
                  %v3939 = vld [vmem:[%s3107 + $0xcf8] sm:%s3100]
                  %3940 = vst [vmem:[%s3108 + $0x67c] sm:%s3100] %v3939
                  %v3941 = vld [vmem:[%s3107 + $0xd00] sm:%s3100]
                  %3942 = vst [vmem:[%s3108 + $0x680] sm:%s3100] %v3941
                  %v3943 = vld [vmem:[%s3107 + $0xd08] sm:%s3100]
                  %3944 = vst [vmem:[%s3108 + $0x684] sm:%s3100] %v3943
                  %v3945 = vld [vmem:[%s3107 + $0xd10] sm:%s3100]
                  %3946 = vst [vmem:[%s3108 + $0x688] sm:%s3100] %v3945
                  %v3947 = vld [vmem:[%s3107 + $0xd18] sm:%s3100]
                  %3948 = vst [vmem:[%s3108 + $0x68c] sm:%s3100] %v3947
                  %v3949 = vld [vmem:[%s3107 + $0xd20] sm:%s3100]
                  %3950 = vst [vmem:[%s3108 + $0x690] sm:%s3100] %v3949
                  %v3951 = vld [vmem:[%s3107 + $0xd28] sm:%s3100]
                  %3952 = vst [vmem:[%s3108 + $0x694] sm:%s3100] %v3951
                  %v3953 = vld [vmem:[%s3107 + $0xd30] sm:%s3100]
                  %3954 = vst [vmem:[%s3108 + $0x698] sm:%s3100] %v3953
                  %v3955 = vld [vmem:[%s3107 + $0xd38] sm:%s3100]
                  %3956 = vst [vmem:[%s3108 + $0x69c] sm:%s3100] %v3955
                  %v3957 = vld [vmem:[%s3107 + $0xd40] sm:%s3100]
                  %3958 = vst [vmem:[%s3108 + $0x6a0] sm:%s3100] %v3957
                  %v3959 = vld [vmem:[%s3107 + $0xd48] sm:%s3100]
                  %3960 = vst [vmem:[%s3108 + $0x6a4] sm:%s3100] %v3959
                  %v3961 = vld [vmem:[%s3107 + $0xd50] sm:%s3100]
                  %3962 = vst [vmem:[%s3108 + $0x6a8] sm:%s3100] %v3961
                  %v3963 = vld [vmem:[%s3107 + $0xd58] sm:%s3100]
                  %3964 = vst [vmem:[%s3108 + $0x6ac] sm:%s3100] %v3963
                  %v3965 = vld [vmem:[%s3107 + $0xd60] sm:%s3100]
                  %3966 = vst [vmem:[%s3108 + $0x6b0] sm:%s3100] %v3965
                  %v3967 = vld [vmem:[%s3107 + $0xd68] sm:%s3100]
                  %3968 = vst [vmem:[%s3108 + $0x6b4] sm:%s3100] %v3967
                  %v3969 = vld [vmem:[%s3107 + $0xd70] sm:%s3100]
                  %3970 = vst [vmem:[%s3108 + $0x6b8] sm:%s3100] %v3969
                  %v3971 = vld [vmem:[%s3107 + $0xd78] sm:%s3100]
                  %3972 = vst [vmem:[%s3108 + $0x6bc] sm:%s3100] %v3971
                  %v3973 = vld [vmem:[%s3107 + $0xd80] sm:%s3100]
                  %3974 = vst [vmem:[%s3108 + $0x6c0] sm:%s3100] %v3973
                  %v3975 = vld [vmem:[%s3107 + $0xd88] sm:%s3100]
                  %3976 = vst [vmem:[%s3108 + $0x6c4] sm:%s3100] %v3975
                  %v3977 = vld [vmem:[%s3107 + $0xd90] sm:%s3100]
                  %3978 = vst [vmem:[%s3108 + $0x6c8] sm:%s3100] %v3977
                  %v3979 = vld [vmem:[%s3107 + $0xd98] sm:%s3100]
                  %3980 = vst [vmem:[%s3108 + $0x6cc] sm:%s3100] %v3979
                  %v3981 = vld [vmem:[%s3107 + $0xda0] sm:%s3100]
                  %3982 = vst [vmem:[%s3108 + $0x6d0] sm:%s3100] %v3981
                  %v3983 = vld [vmem:[%s3107 + $0xda8] sm:%s3100]
                  %3984 = vst [vmem:[%s3108 + $0x6d4] sm:%s3100] %v3983
                  %v3985 = vld [vmem:[%s3107 + $0xdb0] sm:%s3100]
                  %3986 = vst [vmem:[%s3108 + $0x6d8] sm:%s3100] %v3985
                  %v3987 = vld [vmem:[%s3107 + $0xdb8] sm:%s3100]
                  %3988 = vst [vmem:[%s3108 + $0x6dc] sm:%s3100] %v3987
                  %v3989 = vld [vmem:[%s3107 + $0xdc0] sm:%s3100]
                  %3990 = vst [vmem:[%s3108 + $0x6e0] sm:%s3100] %v3989
                  %v3991 = vld [vmem:[%s3107 + $0xdc8] sm:%s3100]
                  %3992 = vst [vmem:[%s3108 + $0x6e4] sm:%s3100] %v3991
                  %v3993 = vld [vmem:[%s3107 + $0xdd0] sm:%s3100]
                  %3994 = vst [vmem:[%s3108 + $0x6e8] sm:%s3100] %v3993
                  %v3995 = vld [vmem:[%s3107 + $0xdd8] sm:%s3100]
                  %3996 = vst [vmem:[%s3108 + $0x6ec] sm:%s3100] %v3995
                  %v3997 = vld [vmem:[%s3107 + $0xde0] sm:%s3100]
                  %3998 = vst [vmem:[%s3108 + $0x6f0] sm:%s3100] %v3997
                  %v3999 = vld [vmem:[%s3107 + $0xde8] sm:%s3100]
                  %4000 = vst [vmem:[%s3108 + $0x6f4] sm:%s3100] %v3999
                  %v4001 = vld [vmem:[%s3107 + $0xdf0] sm:%s3100]
                  %4002 = vst [vmem:[%s3108 + $0x6f8] sm:%s3100] %v4001
                  %v4003 = vld [vmem:[%s3107 + $0xdf8] sm:%s3100]
                  %4004 = vst [vmem:[%s3108 + $0x6fc] sm:%s3100] %v4003
                  %v4005 = vld [vmem:[%s3107 + $0xe00] sm:%s3100]
                  %4006 = vst [vmem:[%s3108 + $0x700] sm:%s3100] %v4005
                  %v4007 = vld [vmem:[%s3107 + $0xe08] sm:%s3100]
                  %4008 = vst [vmem:[%s3108 + $0x704] sm:%s3100] %v4007
                  %v4009 = vld [vmem:[%s3107 + $0xe10] sm:%s3100]
                  %4010 = vst [vmem:[%s3108 + $0x708] sm:%s3100] %v4009
                  %v4011 = vld [vmem:[%s3107 + $0xe18] sm:%s3100]
                  %4012 = vst [vmem:[%s3108 + $0x70c] sm:%s3100] %v4011
                  %v4013 = vld [vmem:[%s3107 + $0xe20] sm:%s3100]
                  %4014 = vst [vmem:[%s3108 + $0x710] sm:%s3100] %v4013
                  %v4015 = vld [vmem:[%s3107 + $0xe28] sm:%s3100]
                  %4016 = vst [vmem:[%s3108 + $0x714] sm:%s3100] %v4015
                  %v4017 = vld [vmem:[%s3107 + $0xe30] sm:%s3100]
                  %4018 = vst [vmem:[%s3108 + $0x718] sm:%s3100] %v4017
                  %v4019 = vld [vmem:[%s3107 + $0xe38] sm:%s3100]
                  %4020 = vst [vmem:[%s3108 + $0x71c] sm:%s3100] %v4019
                  %v4021 = vld [vmem:[%s3107 + $0xe40] sm:%s3100]
                  %4022 = vst [vmem:[%s3108 + $0x720] sm:%s3100] %v4021
                  %v4023 = vld [vmem:[%s3107 + $0xe48] sm:%s3100]
                  %4024 = vst [vmem:[%s3108 + $0x724] sm:%s3100] %v4023
                  %v4025 = vld [vmem:[%s3107 + $0xe50] sm:%s3100]
                  %4026 = vst [vmem:[%s3108 + $0x728] sm:%s3100] %v4025
                  %v4027 = vld [vmem:[%s3107 + $0xe58] sm:%s3100]
                  %4028 = vst [vmem:[%s3108 + $0x72c] sm:%s3100] %v4027
                  %v4029 = vld [vmem:[%s3107 + $0xe60] sm:%s3100]
                  %4030 = vst [vmem:[%s3108 + $0x730] sm:%s3100] %v4029
                  %v4031 = vld [vmem:[%s3107 + $0xe68] sm:%s3100]
                  %4032 = vst [vmem:[%s3108 + $0x734] sm:%s3100] %v4031
                  %v4033 = vld [vmem:[%s3107 + $0xe70] sm:%s3100]
                  %4034 = vst [vmem:[%s3108 + $0x738] sm:%s3100] %v4033
                  %v4035 = vld [vmem:[%s3107 + $0xe78] sm:%s3100]
                  %4036 = vst [vmem:[%s3108 + $0x73c] sm:%s3100] %v4035
                  %v4037 = vld [vmem:[%s3107 + $0xe80] sm:%s3100]
                  %4038 = vst [vmem:[%s3108 + $0x740] sm:%s3100] %v4037
                  %v4039 = vld [vmem:[%s3107 + $0xe88] sm:%s3100]
                  %4040 = vst [vmem:[%s3108 + $0x744] sm:%s3100] %v4039
                  %v4041 = vld [vmem:[%s3107 + $0xe90] sm:%s3100]
                  %4042 = vst [vmem:[%s3108 + $0x748] sm:%s3100] %v4041
                  %v4043 = vld [vmem:[%s3107 + $0xe98] sm:%s3100]
                  %4044 = vst [vmem:[%s3108 + $0x74c] sm:%s3100] %v4043
                  %v4045 = vld [vmem:[%s3107 + $0xea0] sm:%s3100]
                  %4046 = vst [vmem:[%s3108 + $0x750] sm:%s3100] %v4045
                  %v4047 = vld [vmem:[%s3107 + $0xea8] sm:%s3100]
                  %4048 = vst [vmem:[%s3108 + $0x754] sm:%s3100] %v4047
                  %v4049 = vld [vmem:[%s3107 + $0xeb0] sm:%s3100]
                  %4050 = vst [vmem:[%s3108 + $0x758] sm:%s3100] %v4049
                  %v4051 = vld [vmem:[%s3107 + $0xeb8] sm:%s3100]
                  %4052 = vst [vmem:[%s3108 + $0x75c] sm:%s3100] %v4051
                  %v4053 = vld [vmem:[%s3107 + $0xec0] sm:%s3100]
                  %4054 = vst [vmem:[%s3108 + $0x760] sm:%s3100] %v4053
                  %v4055 = vld [vmem:[%s3107 + $0xec8] sm:%s3100]
                  %4056 = vst [vmem:[%s3108 + $0x764] sm:%s3100] %v4055
                  %v4057 = vld [vmem:[%s3107 + $0xed0] sm:%s3100]
                  %4058 = vst [vmem:[%s3108 + $0x768] sm:%s3100] %v4057
                  %v4059 = vld [vmem:[%s3107 + $0xed8] sm:%s3100]
                  %4060 = vst [vmem:[%s3108 + $0x76c] sm:%s3100] %v4059
                  %v4061 = vld [vmem:[%s3107 + $0xee0] sm:%s3100]
                  %4062 = vst [vmem:[%s3108 + $0x770] sm:%s3100] %v4061
                  %v4063 = vld [vmem:[%s3107 + $0xee8] sm:%s3100]
                  %4064 = vst [vmem:[%s3108 + $0x774] sm:%s3100] %v4063
                  %v4065 = vld [vmem:[%s3107 + $0xef0] sm:%s3100]
                  %4066 = vst [vmem:[%s3108 + $0x778] sm:%s3100] %v4065
                  %v4067 = vld [vmem:[%s3107 + $0xef8] sm:%s3100]
                  %4068 = vst [vmem:[%s3108 + $0x77c] sm:%s3100] %v4067
                $region70: #{cnn_forward.3} parent=57 // loop_footer
                  %s3106 = sadd.s32 1, %s3102
                $region71: #{cnn_forward.3} parent=57 // loop_footer_branch
                  %3101 = sbr.rel target = $region67
                $region72: #{cnn_forward.3} parent=57 // loop_exit
                  _
              $region58: #{cnn_forward.3} parent=31 // pred_fallthru
                _
            $region32: #{cnn_forward.3} parent=27 // pred_fallthru
              _
            // Predicated region
            $region33: #{cnn_forward.3} parent=27 // pred_check
              _
            $region34: #{cnn_forward.3} parent=27 // pred_check_branch
              %172 = sbr.rel (0) target = $region36
            $region35: #{cnn_forward.3} parent=27 // pred_region
              %s174 = ssub.s32 16, 1
              loop: start=0, step=1, limit=1
              $region37: #{cnn_forward.3} parent=35 // loop_pre_header
                _
              $region38: #{cnn_forward.3} parent=35 // loop_header
                %s176 = sphi 0, %s180
                %p177 = scmp.ge.s32.totalorder %s176, 1
                %s181 = sphi %s166, %s166
                %s182 = sphi %s161, %s161
              $region39: #{cnn_forward.3} parent=35 // loop_header_branch
                %179 = sbr.rel (%p177) target = $region43
              $region40: #{cnn_forward.3} parent=35 // loop_body
                %v183 = vld [vmem:[%s181] sm:%s174]
                %184 = vst [vmem:[%s182] sm:%s174] %v183
                %v185 = vld [vmem:[%s181 + $0x8] sm:%s174]
                %186 = vst [vmem:[%s182 + $0x4] sm:%s174] %v185
                %v187 = vld [vmem:[%s181 + $0x10] sm:%s174]
                %188 = vst [vmem:[%s182 + $0x8] sm:%s174] %v187
                %v189 = vld [vmem:[%s181 + $0x18] sm:%s174]
                %190 = vst [vmem:[%s182 + $0xc] sm:%s174] %v189
                %v191 = vld [vmem:[%s181 + $0x20] sm:%s174]
                %192 = vst [vmem:[%s182 + $0x10] sm:%s174] %v191
                %v193 = vld [vmem:[%s181 + $0x28] sm:%s174]
                %194 = vst [vmem:[%s182 + $0x14] sm:%s174] %v193
                %v195 = vld [vmem:[%s181 + $0x30] sm:%s174]
                %196 = vst [vmem:[%s182 + $0x18] sm:%s174] %v195
                %v197 = vld [vmem:[%s181 + $0x38] sm:%s174]
                %198 = vst [vmem:[%s182 + $0x1c] sm:%s174] %v197
                %v199 = vld [vmem:[%s181 + $0x40] sm:%s174]
                %200 = vst [vmem:[%s182 + $0x20] sm:%s174] %v199
                %v201 = vld [vmem:[%s181 + $0x48] sm:%s174]
                %202 = vst [vmem:[%s182 + $0x24] sm:%s174] %v201
                %v203 = vld [vmem:[%s181 + $0x50] sm:%s174]
                %204 = vst [vmem:[%s182 + $0x28] sm:%s174] %v203
                %v205 = vld [vmem:[%s181 + $0x58] sm:%s174]
                %206 = vst [vmem:[%s182 + $0x2c] sm:%s174] %v205
                %v207 = vld [vmem:[%s181 + $0x60] sm:%s174]
                %208 = vst [vmem:[%s182 + $0x30] sm:%s174] %v207
                %v209 = vld [vmem:[%s181 + $0x68] sm:%s174]
                %210 = vst [vmem:[%s182 + $0x34] sm:%s174] %v209
                %v211 = vld [vmem:[%s181 + $0x70] sm:%s174]
                %212 = vst [vmem:[%s182 + $0x38] sm:%s174] %v211
                %v213 = vld [vmem:[%s181 + $0x78] sm:%s174]
                %214 = vst [vmem:[%s182 + $0x3c] sm:%s174] %v213
                %v215 = vld [vmem:[%s181 + $0x80] sm:%s174]
                %216 = vst [vmem:[%s182 + $0x40] sm:%s174] %v215
                %v217 = vld [vmem:[%s181 + $0x88] sm:%s174]
                %218 = vst [vmem:[%s182 + $0x44] sm:%s174] %v217
                %v219 = vld [vmem:[%s181 + $0x90] sm:%s174]
                %220 = vst [vmem:[%s182 + $0x48] sm:%s174] %v219
                %v221 = vld [vmem:[%s181 + $0x98] sm:%s174]
                %222 = vst [vmem:[%s182 + $0x4c] sm:%s174] %v221
                %v223 = vld [vmem:[%s181 + $0xa0] sm:%s174]
                %224 = vst [vmem:[%s182 + $0x50] sm:%s174] %v223
                %v225 = vld [vmem:[%s181 + $0xa8] sm:%s174]
                %226 = vst [vmem:[%s182 + $0x54] sm:%s174] %v225
                %v227 = vld [vmem:[%s181 + $0xb0] sm:%s174]
                %228 = vst [vmem:[%s182 + $0x58] sm:%s174] %v227
                %v229 = vld [vmem:[%s181 + $0xb8] sm:%s174]
                %230 = vst [vmem:[%s182 + $0x5c] sm:%s174] %v229
                %v231 = vld [vmem:[%s181 + $0xc0] sm:%s174]
                %232 = vst [vmem:[%s182 + $0x60] sm:%s174] %v231
                %v233 = vld [vmem:[%s181 + $0xc8] sm:%s174]
                %234 = vst [vmem:[%s182 + $0x64] sm:%s174] %v233
                %v235 = vld [vmem:[%s181 + $0xd0] sm:%s174]
                %236 = vst [vmem:[%s182 + $0x68] sm:%s174] %v235
                %v237 = vld [vmem:[%s181 + $0xd8] sm:%s174]
                %238 = vst [vmem:[%s182 + $0x6c] sm:%s174] %v237
                %v239 = vld [vmem:[%s181 + $0xe0] sm:%s174]
                %240 = vst [vmem:[%s182 + $0x70] sm:%s174] %v239
                %v241 = vld [vmem:[%s181 + $0xe8] sm:%s174]
                %242 = vst [vmem:[%s182 + $0x74] sm:%s174] %v241
                %v243 = vld [vmem:[%s181 + $0xf0] sm:%s174]
                %244 = vst [vmem:[%s182 + $0x78] sm:%s174] %v243
                %v245 = vld [vmem:[%s181 + $0xf8] sm:%s174]
                %246 = vst [vmem:[%s182 + $0x7c] sm:%s174] %v245
                %v247 = vld [vmem:[%s181 + $0x100] sm:%s174]
                %248 = vst [vmem:[%s182 + $0x80] sm:%s174] %v247
                %v249 = vld [vmem:[%s181 + $0x108] sm:%s174]
                %250 = vst [vmem:[%s182 + $0x84] sm:%s174] %v249
                %v251 = vld [vmem:[%s181 + $0x110] sm:%s174]
                %252 = vst [vmem:[%s182 + $0x88] sm:%s174] %v251
                %v253 = vld [vmem:[%s181 + $0x118] sm:%s174]
                %254 = vst [vmem:[%s182 + $0x8c] sm:%s174] %v253
                %v255 = vld [vmem:[%s181 + $0x120] sm:%s174]
                %256 = vst [vmem:[%s182 + $0x90] sm:%s174] %v255
                %v257 = vld [vmem:[%s181 + $0x128] sm:%s174]
                %258 = vst [vmem:[%s182 + $0x94] sm:%s174] %v257
                %v259 = vld [vmem:[%s181 + $0x130] sm:%s174]
                %260 = vst [vmem:[%s182 + $0x98] sm:%s174] %v259
                %v261 = vld [vmem:[%s181 + $0x138] sm:%s174]
                %262 = vst [vmem:[%s182 + $0x9c] sm:%s174] %v261
                %v263 = vld [vmem:[%s181 + $0x140] sm:%s174]
                %264 = vst [vmem:[%s182 + $0xa0] sm:%s174] %v263
                %v265 = vld [vmem:[%s181 + $0x148] sm:%s174]
                %266 = vst [vmem:[%s182 + $0xa4] sm:%s174] %v265
                %v267 = vld [vmem:[%s181 + $0x150] sm:%s174]
                %268 = vst [vmem:[%s182 + $0xa8] sm:%s174] %v267
                %v269 = vld [vmem:[%s181 + $0x158] sm:%s174]
                %270 = vst [vmem:[%s182 + $0xac] sm:%s174] %v269
                %v271 = vld [vmem:[%s181 + $0x160] sm:%s174]
                %272 = vst [vmem:[%s182 + $0xb0] sm:%s174] %v271
                %v273 = vld [vmem:[%s181 + $0x168] sm:%s174]
                %274 = vst [vmem:[%s182 + $0xb4] sm:%s174] %v273
                %v275 = vld [vmem:[%s181 + $0x170] sm:%s174]
                %276 = vst [vmem:[%s182 + $0xb8] sm:%s174] %v275
                %v277 = vld [vmem:[%s181 + $0x178] sm:%s174]
                %278 = vst [vmem:[%s182 + $0xbc] sm:%s174] %v277
                %v279 = vld [vmem:[%s181 + $0x180] sm:%s174]
                %280 = vst [vmem:[%s182 + $0xc0] sm:%s174] %v279
                %v281 = vld [vmem:[%s181 + $0x188] sm:%s174]
                %282 = vst [vmem:[%s182 + $0xc4] sm:%s174] %v281
                %v283 = vld [vmem:[%s181 + $0x190] sm:%s174]
                %284 = vst [vmem:[%s182 + $0xc8] sm:%s174] %v283
                %v285 = vld [vmem:[%s181 + $0x198] sm:%s174]
                %286 = vst [vmem:[%s182 + $0xcc] sm:%s174] %v285
                %v287 = vld [vmem:[%s181 + $0x1a0] sm:%s174]
                %288 = vst [vmem:[%s182 + $0xd0] sm:%s174] %v287
                %v289 = vld [vmem:[%s181 + $0x1a8] sm:%s174]
                %290 = vst [vmem:[%s182 + $0xd4] sm:%s174] %v289
                %v291 = vld [vmem:[%s181 + $0x1b0] sm:%s174]
                %292 = vst [vmem:[%s182 + $0xd8] sm:%s174] %v291
                %v293 = vld [vmem:[%s181 + $0x1b8] sm:%s174]
                %294 = vst [vmem:[%s182 + $0xdc] sm:%s174] %v293
                %v295 = vld [vmem:[%s181 + $0x1c0] sm:%s174]
                %296 = vst [vmem:[%s182 + $0xe0] sm:%s174] %v295
                %v297 = vld [vmem:[%s181 + $0x1c8] sm:%s174]
                %298 = vst [vmem:[%s182 + $0xe4] sm:%s174] %v297
                %v299 = vld [vmem:[%s181 + $0x1d0] sm:%s174]
                %300 = vst [vmem:[%s182 + $0xe8] sm:%s174] %v299
                %v301 = vld [vmem:[%s181 + $0x1d8] sm:%s174]
                %302 = vst [vmem:[%s182 + $0xec] sm:%s174] %v301
                %v303 = vld [vmem:[%s181 + $0x1e0] sm:%s174]
                %304 = vst [vmem:[%s182 + $0xf0] sm:%s174] %v303
                %v305 = vld [vmem:[%s181 + $0x1e8] sm:%s174]
                %306 = vst [vmem:[%s182 + $0xf4] sm:%s174] %v305
                %v307 = vld [vmem:[%s181 + $0x1f0] sm:%s174]
                %308 = vst [vmem:[%s182 + $0xf8] sm:%s174] %v307
                %v309 = vld [vmem:[%s181 + $0x1f8] sm:%s174]
                %310 = vst [vmem:[%s182 + $0xfc] sm:%s174] %v309
                %v311 = vld [vmem:[%s181 + $0x200] sm:%s174]
                %312 = vst [vmem:[%s182 + $0x100] sm:%s174] %v311
                %v313 = vld [vmem:[%s181 + $0x208] sm:%s174]
                %314 = vst [vmem:[%s182 + $0x104] sm:%s174] %v313
                %v315 = vld [vmem:[%s181 + $0x210] sm:%s174]
                %316 = vst [vmem:[%s182 + $0x108] sm:%s174] %v315
                %v317 = vld [vmem:[%s181 + $0x218] sm:%s174]
                %318 = vst [vmem:[%s182 + $0x10c] sm:%s174] %v317
                %v319 = vld [vmem:[%s181 + $0x220] sm:%s174]
                %320 = vst [vmem:[%s182 + $0x110] sm:%s174] %v319
                %v321 = vld [vmem:[%s181 + $0x228] sm:%s174]
                %322 = vst [vmem:[%s182 + $0x114] sm:%s174] %v321
                %v323 = vld [vmem:[%s181 + $0x230] sm:%s174]
                %324 = vst [vmem:[%s182 + $0x118] sm:%s174] %v323
                %v325 = vld [vmem:[%s181 + $0x238] sm:%s174]
                %326 = vst [vmem:[%s182 + $0x11c] sm:%s174] %v325
                %v327 = vld [vmem:[%s181 + $0x240] sm:%s174]
                %328 = vst [vmem:[%s182 + $0x120] sm:%s174] %v327
                %v329 = vld [vmem:[%s181 + $0x248] sm:%s174]
                %330 = vst [vmem:[%s182 + $0x124] sm:%s174] %v329
                %v331 = vld [vmem:[%s181 + $0x250] sm:%s174]
                %332 = vst [vmem:[%s182 + $0x128] sm:%s174] %v331
                %v333 = vld [vmem:[%s181 + $0x258] sm:%s174]
                %334 = vst [vmem:[%s182 + $0x12c] sm:%s174] %v333
                %v335 = vld [vmem:[%s181 + $0x260] sm:%s174]
                %336 = vst [vmem:[%s182 + $0x130] sm:%s174] %v335
                %v337 = vld [vmem:[%s181 + $0x268] sm:%s174]
                %338 = vst [vmem:[%s182 + $0x134] sm:%s174] %v337
                %v339 = vld [vmem:[%s181 + $0x270] sm:%s174]
                %340 = vst [vmem:[%s182 + $0x138] sm:%s174] %v339
                %v341 = vld [vmem:[%s181 + $0x278] sm:%s174]
                %342 = vst [vmem:[%s182 + $0x13c] sm:%s174] %v341
                %v343 = vld [vmem:[%s181 + $0x280] sm:%s174]
                %344 = vst [vmem:[%s182 + $0x140] sm:%s174] %v343
                %v345 = vld [vmem:[%s181 + $0x288] sm:%s174]
                %346 = vst [vmem:[%s182 + $0x144] sm:%s174] %v345
                %v347 = vld [vmem:[%s181 + $0x290] sm:%s174]
                %348 = vst [vmem:[%s182 + $0x148] sm:%s174] %v347
                %v349 = vld [vmem:[%s181 + $0x298] sm:%s174]
                %350 = vst [vmem:[%s182 + $0x14c] sm:%s174] %v349
                %v351 = vld [vmem:[%s181 + $0x2a0] sm:%s174]
                %352 = vst [vmem:[%s182 + $0x150] sm:%s174] %v351
                %v353 = vld [vmem:[%s181 + $0x2a8] sm:%s174]
                %354 = vst [vmem:[%s182 + $0x154] sm:%s174] %v353
                %v355 = vld [vmem:[%s181 + $0x2b0] sm:%s174]
                %356 = vst [vmem:[%s182 + $0x158] sm:%s174] %v355
                %v357 = vld [vmem:[%s181 + $0x2b8] sm:%s174]
                %358 = vst [vmem:[%s182 + $0x15c] sm:%s174] %v357
                %v359 = vld [vmem:[%s181 + $0x2c0] sm:%s174]
                %360 = vst [vmem:[%s182 + $0x160] sm:%s174] %v359
                %v361 = vld [vmem:[%s181 + $0x2c8] sm:%s174]
                %362 = vst [vmem:[%s182 + $0x164] sm:%s174] %v361
                %v363 = vld [vmem:[%s181 + $0x2d0] sm:%s174]
                %364 = vst [vmem:[%s182 + $0x168] sm:%s174] %v363
                %v365 = vld [vmem:[%s181 + $0x2d8] sm:%s174]
                %366 = vst [vmem:[%s182 + $0x16c] sm:%s174] %v365
                %v367 = vld [vmem:[%s181 + $0x2e0] sm:%s174]
                %368 = vst [vmem:[%s182 + $0x170] sm:%s174] %v367
                %v369 = vld [vmem:[%s181 + $0x2e8] sm:%s174]
                %370 = vst [vmem:[%s182 + $0x174] sm:%s174] %v369
                %v371 = vld [vmem:[%s181 + $0x2f0] sm:%s174]
                %372 = vst [vmem:[%s182 + $0x178] sm:%s174] %v371
                %v373 = vld [vmem:[%s181 + $0x2f8] sm:%s174]
                %374 = vst [vmem:[%s182 + $0x17c] sm:%s174] %v373
                %v375 = vld [vmem:[%s181 + $0x300] sm:%s174]
                %376 = vst [vmem:[%s182 + $0x180] sm:%s174] %v375
                %v377 = vld [vmem:[%s181 + $0x308] sm:%s174]
                %378 = vst [vmem:[%s182 + $0x184] sm:%s174] %v377
                %v379 = vld [vmem:[%s181 + $0x310] sm:%s174]
                %380 = vst [vmem:[%s182 + $0x188] sm:%s174] %v379
                %v381 = vld [vmem:[%s181 + $0x318] sm:%s174]
                %382 = vst [vmem:[%s182 + $0x18c] sm:%s174] %v381
                %v383 = vld [vmem:[%s181 + $0x320] sm:%s174]
                %384 = vst [vmem:[%s182 + $0x190] sm:%s174] %v383
                %v385 = vld [vmem:[%s181 + $0x328] sm:%s174]
                %386 = vst [vmem:[%s182 + $0x194] sm:%s174] %v385
                %v387 = vld [vmem:[%s181 + $0x330] sm:%s174]
                %388 = vst [vmem:[%s182 + $0x198] sm:%s174] %v387
                %v389 = vld [vmem:[%s181 + $0x338] sm:%s174]
                %390 = vst [vmem:[%s182 + $0x19c] sm:%s174] %v389
                %v391 = vld [vmem:[%s181 + $0x340] sm:%s174]
                %392 = vst [vmem:[%s182 + $0x1a0] sm:%s174] %v391
                %v393 = vld [vmem:[%s181 + $0x348] sm:%s174]
                %394 = vst [vmem:[%s182 + $0x1a4] sm:%s174] %v393
                %v395 = vld [vmem:[%s181 + $0x350] sm:%s174]
                %396 = vst [vmem:[%s182 + $0x1a8] sm:%s174] %v395
                %v397 = vld [vmem:[%s181 + $0x358] sm:%s174]
                %398 = vst [vmem:[%s182 + $0x1ac] sm:%s174] %v397
                %v399 = vld [vmem:[%s181 + $0x360] sm:%s174]
                %400 = vst [vmem:[%s182 + $0x1b0] sm:%s174] %v399
                %v401 = vld [vmem:[%s181 + $0x368] sm:%s174]
                %402 = vst [vmem:[%s182 + $0x1b4] sm:%s174] %v401
                %v403 = vld [vmem:[%s181 + $0x370] sm:%s174]
                %404 = vst [vmem:[%s182 + $0x1b8] sm:%s174] %v403
                %v405 = vld [vmem:[%s181 + $0x378] sm:%s174]
                %406 = vst [vmem:[%s182 + $0x1bc] sm:%s174] %v405
                %v407 = vld [vmem:[%s181 + $0x380] sm:%s174]
                %408 = vst [vmem:[%s182 + $0x1c0] sm:%s174] %v407
                %v409 = vld [vmem:[%s181 + $0x388] sm:%s174]
                %410 = vst [vmem:[%s182 + $0x1c4] sm:%s174] %v409
                %v411 = vld [vmem:[%s181 + $0x390] sm:%s174]
                %412 = vst [vmem:[%s182 + $0x1c8] sm:%s174] %v411
                %v413 = vld [vmem:[%s181 + $0x398] sm:%s174]
                %414 = vst [vmem:[%s182 + $0x1cc] sm:%s174] %v413
                %v415 = vld [vmem:[%s181 + $0x3a0] sm:%s174]
                %416 = vst [vmem:[%s182 + $0x1d0] sm:%s174] %v415
                %v417 = vld [vmem:[%s181 + $0x3a8] sm:%s174]
                %418 = vst [vmem:[%s182 + $0x1d4] sm:%s174] %v417
                %v419 = vld [vmem:[%s181 + $0x3b0] sm:%s174]
                %420 = vst [vmem:[%s182 + $0x1d8] sm:%s174] %v419
                %v421 = vld [vmem:[%s181 + $0x3b8] sm:%s174]
                %422 = vst [vmem:[%s182 + $0x1dc] sm:%s174] %v421
                %v423 = vld [vmem:[%s181 + $0x3c0] sm:%s174]
                %424 = vst [vmem:[%s182 + $0x1e0] sm:%s174] %v423
                %v425 = vld [vmem:[%s181 + $0x3c8] sm:%s174]
                %426 = vst [vmem:[%s182 + $0x1e4] sm:%s174] %v425
                %v427 = vld [vmem:[%s181 + $0x3d0] sm:%s174]
                %428 = vst [vmem:[%s182 + $0x1e8] sm:%s174] %v427
                %v429 = vld [vmem:[%s181 + $0x3d8] sm:%s174]
                %430 = vst [vmem:[%s182 + $0x1ec] sm:%s174] %v429
                %v431 = vld [vmem:[%s181 + $0x3e0] sm:%s174]
                %432 = vst [vmem:[%s182 + $0x1f0] sm:%s174] %v431
                %v433 = vld [vmem:[%s181 + $0x3e8] sm:%s174]
                %434 = vst [vmem:[%s182 + $0x1f4] sm:%s174] %v433
                %v435 = vld [vmem:[%s181 + $0x3f0] sm:%s174]
                %436 = vst [vmem:[%s182 + $0x1f8] sm:%s174] %v435
                %v437 = vld [vmem:[%s181 + $0x3f8] sm:%s174]
                %438 = vst [vmem:[%s182 + $0x1fc] sm:%s174] %v437
                %v439 = vld [vmem:[%s181 + $0x400] sm:%s174]
                %440 = vst [vmem:[%s182 + $0x200] sm:%s174] %v439
                %v441 = vld [vmem:[%s181 + $0x408] sm:%s174]
                %442 = vst [vmem:[%s182 + $0x204] sm:%s174] %v441
                %v443 = vld [vmem:[%s181 + $0x410] sm:%s174]
                %444 = vst [vmem:[%s182 + $0x208] sm:%s174] %v443
                %v445 = vld [vmem:[%s181 + $0x418] sm:%s174]
                %446 = vst [vmem:[%s182 + $0x20c] sm:%s174] %v445
                %v447 = vld [vmem:[%s181 + $0x420] sm:%s174]
                %448 = vst [vmem:[%s182 + $0x210] sm:%s174] %v447
                %v449 = vld [vmem:[%s181 + $0x428] sm:%s174]
                %450 = vst [vmem:[%s182 + $0x214] sm:%s174] %v449
                %v451 = vld [vmem:[%s181 + $0x430] sm:%s174]
                %452 = vst [vmem:[%s182 + $0x218] sm:%s174] %v451
                %v453 = vld [vmem:[%s181 + $0x438] sm:%s174]
                %454 = vst [vmem:[%s182 + $0x21c] sm:%s174] %v453
                %v455 = vld [vmem:[%s181 + $0x440] sm:%s174]
                %456 = vst [vmem:[%s182 + $0x220] sm:%s174] %v455
                %v457 = vld [vmem:[%s181 + $0x448] sm:%s174]
                %458 = vst [vmem:[%s182 + $0x224] sm:%s174] %v457
                %v459 = vld [vmem:[%s181 + $0x450] sm:%s174]
                %460 = vst [vmem:[%s182 + $0x228] sm:%s174] %v459
                %v461 = vld [vmem:[%s181 + $0x458] sm:%s174]
                %462 = vst [vmem:[%s182 + $0x22c] sm:%s174] %v461
                %v463 = vld [vmem:[%s181 + $0x460] sm:%s174]
                %464 = vst [vmem:[%s182 + $0x230] sm:%s174] %v463
                %v465 = vld [vmem:[%s181 + $0x468] sm:%s174]
                %466 = vst [vmem:[%s182 + $0x234] sm:%s174] %v465
                %v467 = vld [vmem:[%s181 + $0x470] sm:%s174]
                %468 = vst [vmem:[%s182 + $0x238] sm:%s174] %v467
                %v469 = vld [vmem:[%s181 + $0x478] sm:%s174]
                %470 = vst [vmem:[%s182 + $0x23c] sm:%s174] %v469
                %v471 = vld [vmem:[%s181 + $0x480] sm:%s174]
                %472 = vst [vmem:[%s182 + $0x240] sm:%s174] %v471
                %v473 = vld [vmem:[%s181 + $0x488] sm:%s174]
                %474 = vst [vmem:[%s182 + $0x244] sm:%s174] %v473
                %v475 = vld [vmem:[%s181 + $0x490] sm:%s174]
                %476 = vst [vmem:[%s182 + $0x248] sm:%s174] %v475
                %v477 = vld [vmem:[%s181 + $0x498] sm:%s174]
                %478 = vst [vmem:[%s182 + $0x24c] sm:%s174] %v477
                %v479 = vld [vmem:[%s181 + $0x4a0] sm:%s174]
                %480 = vst [vmem:[%s182 + $0x250] sm:%s174] %v479
                %v481 = vld [vmem:[%s181 + $0x4a8] sm:%s174]
                %482 = vst [vmem:[%s182 + $0x254] sm:%s174] %v481
                %v483 = vld [vmem:[%s181 + $0x4b0] sm:%s174]
                %484 = vst [vmem:[%s182 + $0x258] sm:%s174] %v483
                %v485 = vld [vmem:[%s181 + $0x4b8] sm:%s174]
                %486 = vst [vmem:[%s182 + $0x25c] sm:%s174] %v485
                %v487 = vld [vmem:[%s181 + $0x4c0] sm:%s174]
                %488 = vst [vmem:[%s182 + $0x260] sm:%s174] %v487
                %v489 = vld [vmem:[%s181 + $0x4c8] sm:%s174]
                %490 = vst [vmem:[%s182 + $0x264] sm:%s174] %v489
                %v491 = vld [vmem:[%s181 + $0x4d0] sm:%s174]
                %492 = vst [vmem:[%s182 + $0x268] sm:%s174] %v491
                %v493 = vld [vmem:[%s181 + $0x4d8] sm:%s174]
                %494 = vst [vmem:[%s182 + $0x26c] sm:%s174] %v493
                %v495 = vld [vmem:[%s181 + $0x4e0] sm:%s174]
                %496 = vst [vmem:[%s182 + $0x270] sm:%s174] %v495
                %v497 = vld [vmem:[%s181 + $0x4e8] sm:%s174]
                %498 = vst [vmem:[%s182 + $0x274] sm:%s174] %v497
                %v499 = vld [vmem:[%s181 + $0x4f0] sm:%s174]
                %500 = vst [vmem:[%s182 + $0x278] sm:%s174] %v499
                %v501 = vld [vmem:[%s181 + $0x4f8] sm:%s174]
                %502 = vst [vmem:[%s182 + $0x27c] sm:%s174] %v501
                %v503 = vld [vmem:[%s181 + $0x500] sm:%s174]
                %504 = vst [vmem:[%s182 + $0x280] sm:%s174] %v503
                %v505 = vld [vmem:[%s181 + $0x508] sm:%s174]
                %506 = vst [vmem:[%s182 + $0x284] sm:%s174] %v505
                %v507 = vld [vmem:[%s181 + $0x510] sm:%s174]
                %508 = vst [vmem:[%s182 + $0x288] sm:%s174] %v507
                %v509 = vld [vmem:[%s181 + $0x518] sm:%s174]
                %510 = vst [vmem:[%s182 + $0x28c] sm:%s174] %v509
                %v511 = vld [vmem:[%s181 + $0x520] sm:%s174]
                %512 = vst [vmem:[%s182 + $0x290] sm:%s174] %v511
                %v513 = vld [vmem:[%s181 + $0x528] sm:%s174]
                %514 = vst [vmem:[%s182 + $0x294] sm:%s174] %v513
                %v515 = vld [vmem:[%s181 + $0x530] sm:%s174]
                %516 = vst [vmem:[%s182 + $0x298] sm:%s174] %v515
                %v517 = vld [vmem:[%s181 + $0x538] sm:%s174]
                %518 = vst [vmem:[%s182 + $0x29c] sm:%s174] %v517
                %v519 = vld [vmem:[%s181 + $0x540] sm:%s174]
                %520 = vst [vmem:[%s182 + $0x2a0] sm:%s174] %v519
                %v521 = vld [vmem:[%s181 + $0x548] sm:%s174]
                %522 = vst [vmem:[%s182 + $0x2a4] sm:%s174] %v521
                %v523 = vld [vmem:[%s181 + $0x550] sm:%s174]
                %524 = vst [vmem:[%s182 + $0x2a8] sm:%s174] %v523
                %v525 = vld [vmem:[%s181 + $0x558] sm:%s174]
                %526 = vst [vmem:[%s182 + $0x2ac] sm:%s174] %v525
                %v527 = vld [vmem:[%s181 + $0x560] sm:%s174]
                %528 = vst [vmem:[%s182 + $0x2b0] sm:%s174] %v527
                %v529 = vld [vmem:[%s181 + $0x568] sm:%s174]
                %530 = vst [vmem:[%s182 + $0x2b4] sm:%s174] %v529
                %v531 = vld [vmem:[%s181 + $0x570] sm:%s174]
                %532 = vst [vmem:[%s182 + $0x2b8] sm:%s174] %v531
                %v533 = vld [vmem:[%s181 + $0x578] sm:%s174]
                %534 = vst [vmem:[%s182 + $0x2bc] sm:%s174] %v533
                %v535 = vld [vmem:[%s181 + $0x580] sm:%s174]
                %536 = vst [vmem:[%s182 + $0x2c0] sm:%s174] %v535
                %v537 = vld [vmem:[%s181 + $0x588] sm:%s174]
                %538 = vst [vmem:[%s182 + $0x2c4] sm:%s174] %v537
                %v539 = vld [vmem:[%s181 + $0x590] sm:%s174]
                %540 = vst [vmem:[%s182 + $0x2c8] sm:%s174] %v539
                %v541 = vld [vmem:[%s181 + $0x598] sm:%s174]
                %542 = vst [vmem:[%s182 + $0x2cc] sm:%s174] %v541
                %v543 = vld [vmem:[%s181 + $0x5a0] sm:%s174]
                %544 = vst [vmem:[%s182 + $0x2d0] sm:%s174] %v543
                %v545 = vld [vmem:[%s181 + $0x5a8] sm:%s174]
                %546 = vst [vmem:[%s182 + $0x2d4] sm:%s174] %v545
                %v547 = vld [vmem:[%s181 + $0x5b0] sm:%s174]
                %548 = vst [vmem:[%s182 + $0x2d8] sm:%s174] %v547
                %v549 = vld [vmem:[%s181 + $0x5b8] sm:%s174]
                %550 = vst [vmem:[%s182 + $0x2dc] sm:%s174] %v549
                %v551 = vld [vmem:[%s181 + $0x5c0] sm:%s174]
                %552 = vst [vmem:[%s182 + $0x2e0] sm:%s174] %v551
                %v553 = vld [vmem:[%s181 + $0x5c8] sm:%s174]
                %554 = vst [vmem:[%s182 + $0x2e4] sm:%s174] %v553
                %v555 = vld [vmem:[%s181 + $0x5d0] sm:%s174]
                %556 = vst [vmem:[%s182 + $0x2e8] sm:%s174] %v555
                %v557 = vld [vmem:[%s181 + $0x5d8] sm:%s174]
                %558 = vst [vmem:[%s182 + $0x2ec] sm:%s174] %v557
                %v559 = vld [vmem:[%s181 + $0x5e0] sm:%s174]
                %560 = vst [vmem:[%s182 + $0x2f0] sm:%s174] %v559
                %v561 = vld [vmem:[%s181 + $0x5e8] sm:%s174]
                %562 = vst [vmem:[%s182 + $0x2f4] sm:%s174] %v561
                %v563 = vld [vmem:[%s181 + $0x5f0] sm:%s174]
                %564 = vst [vmem:[%s182 + $0x2f8] sm:%s174] %v563
                %v565 = vld [vmem:[%s181 + $0x5f8] sm:%s174]
                %566 = vst [vmem:[%s182 + $0x2fc] sm:%s174] %v565
                %v567 = vld [vmem:[%s181 + $0x600] sm:%s174]
                %568 = vst [vmem:[%s182 + $0x300] sm:%s174] %v567
                %v569 = vld [vmem:[%s181 + $0x608] sm:%s174]
                %570 = vst [vmem:[%s182 + $0x304] sm:%s174] %v569
                %v571 = vld [vmem:[%s181 + $0x610] sm:%s174]
                %572 = vst [vmem:[%s182 + $0x308] sm:%s174] %v571
                %v573 = vld [vmem:[%s181 + $0x618] sm:%s174]
                %574 = vst [vmem:[%s182 + $0x30c] sm:%s174] %v573
                %v575 = vld [vmem:[%s181 + $0x620] sm:%s174]
                %576 = vst [vmem:[%s182 + $0x310] sm:%s174] %v575
                %v577 = vld [vmem:[%s181 + $0x628] sm:%s174]
                %578 = vst [vmem:[%s182 + $0x314] sm:%s174] %v577
                %v579 = vld [vmem:[%s181 + $0x630] sm:%s174]
                %580 = vst [vmem:[%s182 + $0x318] sm:%s174] %v579
                %v581 = vld [vmem:[%s181 + $0x638] sm:%s174]
                %582 = vst [vmem:[%s182 + $0x31c] sm:%s174] %v581
                %v583 = vld [vmem:[%s181 + $0x640] sm:%s174]
                %584 = vst [vmem:[%s182 + $0x320] sm:%s174] %v583
                %v585 = vld [vmem:[%s181 + $0x648] sm:%s174]
                %586 = vst [vmem:[%s182 + $0x324] sm:%s174] %v585
                %v587 = vld [vmem:[%s181 + $0x650] sm:%s174]
                %588 = vst [vmem:[%s182 + $0x328] sm:%s174] %v587
                %v589 = vld [vmem:[%s181 + $0x658] sm:%s174]
                %590 = vst [vmem:[%s182 + $0x32c] sm:%s174] %v589
                %v591 = vld [vmem:[%s181 + $0x660] sm:%s174]
                %592 = vst [vmem:[%s182 + $0x330] sm:%s174] %v591
                %v593 = vld [vmem:[%s181 + $0x668] sm:%s174]
                %594 = vst [vmem:[%s182 + $0x334] sm:%s174] %v593
                %v595 = vld [vmem:[%s181 + $0x670] sm:%s174]
                %596 = vst [vmem:[%s182 + $0x338] sm:%s174] %v595
                %v597 = vld [vmem:[%s181 + $0x678] sm:%s174]
                %598 = vst [vmem:[%s182 + $0x33c] sm:%s174] %v597
                %v599 = vld [vmem:[%s181 + $0x680] sm:%s174]
                %600 = vst [vmem:[%s182 + $0x340] sm:%s174] %v599
                %v601 = vld [vmem:[%s181 + $0x688] sm:%s174]
                %602 = vst [vmem:[%s182 + $0x344] sm:%s174] %v601
                %v603 = vld [vmem:[%s181 + $0x690] sm:%s174]
                %604 = vst [vmem:[%s182 + $0x348] sm:%s174] %v603
                %v605 = vld [vmem:[%s181 + $0x698] sm:%s174]
                %606 = vst [vmem:[%s182 + $0x34c] sm:%s174] %v605
                %v607 = vld [vmem:[%s181 + $0x6a0] sm:%s174]
                %608 = vst [vmem:[%s182 + $0x350] sm:%s174] %v607
                %v609 = vld [vmem:[%s181 + $0x6a8] sm:%s174]
                %610 = vst [vmem:[%s182 + $0x354] sm:%s174] %v609
                %v611 = vld [vmem:[%s181 + $0x6b0] sm:%s174]
                %612 = vst [vmem:[%s182 + $0x358] sm:%s174] %v611
                %v613 = vld [vmem:[%s181 + $0x6b8] sm:%s174]
                %614 = vst [vmem:[%s182 + $0x35c] sm:%s174] %v613
                %v615 = vld [vmem:[%s181 + $0x6c0] sm:%s174]
                %616 = vst [vmem:[%s182 + $0x360] sm:%s174] %v615
                %v617 = vld [vmem:[%s181 + $0x6c8] sm:%s174]
                %618 = vst [vmem:[%s182 + $0x364] sm:%s174] %v617
                %v619 = vld [vmem:[%s181 + $0x6d0] sm:%s174]
                %620 = vst [vmem:[%s182 + $0x368] sm:%s174] %v619
                %v621 = vld [vmem:[%s181 + $0x6d8] sm:%s174]
                %622 = vst [vmem:[%s182 + $0x36c] sm:%s174] %v621
                %v623 = vld [vmem:[%s181 + $0x6e0] sm:%s174]
                %624 = vst [vmem:[%s182 + $0x370] sm:%s174] %v623
                %v625 = vld [vmem:[%s181 + $0x6e8] sm:%s174]
                %626 = vst [vmem:[%s182 + $0x374] sm:%s174] %v625
                %v627 = vld [vmem:[%s181 + $0x6f0] sm:%s174]
                %628 = vst [vmem:[%s182 + $0x378] sm:%s174] %v627
                %v629 = vld [vmem:[%s181 + $0x6f8] sm:%s174]
                %630 = vst [vmem:[%s182 + $0x37c] sm:%s174] %v629
                %v631 = vld [vmem:[%s181 + $0x700] sm:%s174]
                %632 = vst [vmem:[%s182 + $0x380] sm:%s174] %v631
                %v633 = vld [vmem:[%s181 + $0x708] sm:%s174]
                %634 = vst [vmem:[%s182 + $0x384] sm:%s174] %v633
                %v635 = vld [vmem:[%s181 + $0x710] sm:%s174]
                %636 = vst [vmem:[%s182 + $0x388] sm:%s174] %v635
                %v637 = vld [vmem:[%s181 + $0x718] sm:%s174]
                %638 = vst [vmem:[%s182 + $0x38c] sm:%s174] %v637
                %v639 = vld [vmem:[%s181 + $0x720] sm:%s174]
                %640 = vst [vmem:[%s182 + $0x390] sm:%s174] %v639
                %v641 = vld [vmem:[%s181 + $0x728] sm:%s174]
                %642 = vst [vmem:[%s182 + $0x394] sm:%s174] %v641
                %v643 = vld [vmem:[%s181 + $0x730] sm:%s174]
                %644 = vst [vmem:[%s182 + $0x398] sm:%s174] %v643
                %v645 = vld [vmem:[%s181 + $0x738] sm:%s174]
                %646 = vst [vmem:[%s182 + $0x39c] sm:%s174] %v645
                %v647 = vld [vmem:[%s181 + $0x740] sm:%s174]
                %648 = vst [vmem:[%s182 + $0x3a0] sm:%s174] %v647
                %v649 = vld [vmem:[%s181 + $0x748] sm:%s174]
                %650 = vst [vmem:[%s182 + $0x3a4] sm:%s174] %v649
                %v651 = vld [vmem:[%s181 + $0x750] sm:%s174]
                %652 = vst [vmem:[%s182 + $0x3a8] sm:%s174] %v651
                %v653 = vld [vmem:[%s181 + $0x758] sm:%s174]
                %654 = vst [vmem:[%s182 + $0x3ac] sm:%s174] %v653
                %v655 = vld [vmem:[%s181 + $0x760] sm:%s174]
                %656 = vst [vmem:[%s182 + $0x3b0] sm:%s174] %v655
                %v657 = vld [vmem:[%s181 + $0x768] sm:%s174]
                %658 = vst [vmem:[%s182 + $0x3b4] sm:%s174] %v657
                %v659 = vld [vmem:[%s181 + $0x770] sm:%s174]
                %660 = vst [vmem:[%s182 + $0x3b8] sm:%s174] %v659
                %v661 = vld [vmem:[%s181 + $0x778] sm:%s174]
                %662 = vst [vmem:[%s182 + $0x3bc] sm:%s174] %v661
                %v663 = vld [vmem:[%s181 + $0x780] sm:%s174]
                %664 = vst [vmem:[%s182 + $0x3c0] sm:%s174] %v663
                %v665 = vld [vmem:[%s181 + $0x788] sm:%s174]
                %666 = vst [vmem:[%s182 + $0x3c4] sm:%s174] %v665
                %v667 = vld [vmem:[%s181 + $0x790] sm:%s174]
                %668 = vst [vmem:[%s182 + $0x3c8] sm:%s174] %v667
                %v669 = vld [vmem:[%s181 + $0x798] sm:%s174]
                %670 = vst [vmem:[%s182 + $0x3cc] sm:%s174] %v669
                %v671 = vld [vmem:[%s181 + $0x7a0] sm:%s174]
                %672 = vst [vmem:[%s182 + $0x3d0] sm:%s174] %v671
                %v673 = vld [vmem:[%s181 + $0x7a8] sm:%s174]
                %674 = vst [vmem:[%s182 + $0x3d4] sm:%s174] %v673
                %v675 = vld [vmem:[%s181 + $0x7b0] sm:%s174]
                %676 = vst [vmem:[%s182 + $0x3d8] sm:%s174] %v675
                %v677 = vld [vmem:[%s181 + $0x7b8] sm:%s174]
                %678 = vst [vmem:[%s182 + $0x3dc] sm:%s174] %v677
                %v679 = vld [vmem:[%s181 + $0x7c0] sm:%s174]
                %680 = vst [vmem:[%s182 + $0x3e0] sm:%s174] %v679
                %v681 = vld [vmem:[%s181 + $0x7c8] sm:%s174]
                %682 = vst [vmem:[%s182 + $0x3e4] sm:%s174] %v681
                %v683 = vld [vmem:[%s181 + $0x7d0] sm:%s174]
                %684 = vst [vmem:[%s182 + $0x3e8] sm:%s174] %v683
                %v685 = vld [vmem:[%s181 + $0x7d8] sm:%s174]
                %686 = vst [vmem:[%s182 + $0x3ec] sm:%s174] %v685
                %v687 = vld [vmem:[%s181 + $0x7e0] sm:%s174]
                %688 = vst [vmem:[%s182 + $0x3f0] sm:%s174] %v687
                %v689 = vld [vmem:[%s181 + $0x7e8] sm:%s174]
                %690 = vst [vmem:[%s182 + $0x3f4] sm:%s174] %v689
                %v691 = vld [vmem:[%s181 + $0x7f0] sm:%s174]
                %692 = vst [vmem:[%s182 + $0x3f8] sm:%s174] %v691
                %v693 = vld [vmem:[%s181 + $0x7f8] sm:%s174]
                %694 = vst [vmem:[%s182 + $0x3fc] sm:%s174] %v693
                %v695 = vld [vmem:[%s181 + $0x800] sm:%s174]
                %696 = vst [vmem:[%s182 + $0x400] sm:%s174] %v695
                %v697 = vld [vmem:[%s181 + $0x808] sm:%s174]
                %698 = vst [vmem:[%s182 + $0x404] sm:%s174] %v697
                %v699 = vld [vmem:[%s181 + $0x810] sm:%s174]
                %700 = vst [vmem:[%s182 + $0x408] sm:%s174] %v699
                %v701 = vld [vmem:[%s181 + $0x818] sm:%s174]
                %702 = vst [vmem:[%s182 + $0x40c] sm:%s174] %v701
                %v703 = vld [vmem:[%s181 + $0x820] sm:%s174]
                %704 = vst [vmem:[%s182 + $0x410] sm:%s174] %v703
                %v705 = vld [vmem:[%s181 + $0x828] sm:%s174]
                %706 = vst [vmem:[%s182 + $0x414] sm:%s174] %v705
                %v707 = vld [vmem:[%s181 + $0x830] sm:%s174]
                %708 = vst [vmem:[%s182 + $0x418] sm:%s174] %v707
                %v709 = vld [vmem:[%s181 + $0x838] sm:%s174]
                %710 = vst [vmem:[%s182 + $0x41c] sm:%s174] %v709
                %v711 = vld [vmem:[%s181 + $0x840] sm:%s174]
                %712 = vst [vmem:[%s182 + $0x420] sm:%s174] %v711
                %v713 = vld [vmem:[%s181 + $0x848] sm:%s174]
                %714 = vst [vmem:[%s182 + $0x424] sm:%s174] %v713
                %v715 = vld [vmem:[%s181 + $0x850] sm:%s174]
                %716 = vst [vmem:[%s182 + $0x428] sm:%s174] %v715
                %v717 = vld [vmem:[%s181 + $0x858] sm:%s174]
                %718 = vst [vmem:[%s182 + $0x42c] sm:%s174] %v717
                %v719 = vld [vmem:[%s181 + $0x860] sm:%s174]
                %720 = vst [vmem:[%s182 + $0x430] sm:%s174] %v719
                %v721 = vld [vmem:[%s181 + $0x868] sm:%s174]
                %722 = vst [vmem:[%s182 + $0x434] sm:%s174] %v721
                %v723 = vld [vmem:[%s181 + $0x870] sm:%s174]
                %724 = vst [vmem:[%s182 + $0x438] sm:%s174] %v723
                %v725 = vld [vmem:[%s181 + $0x878] sm:%s174]
                %726 = vst [vmem:[%s182 + $0x43c] sm:%s174] %v725
                %v727 = vld [vmem:[%s181 + $0x880] sm:%s174]
                %728 = vst [vmem:[%s182 + $0x440] sm:%s174] %v727
                %v729 = vld [vmem:[%s181 + $0x888] sm:%s174]
                %730 = vst [vmem:[%s182 + $0x444] sm:%s174] %v729
                %v731 = vld [vmem:[%s181 + $0x890] sm:%s174]
                %732 = vst [vmem:[%s182 + $0x448] sm:%s174] %v731
                %v733 = vld [vmem:[%s181 + $0x898] sm:%s174]
                %734 = vst [vmem:[%s182 + $0x44c] sm:%s174] %v733
                %v735 = vld [vmem:[%s181 + $0x8a0] sm:%s174]
                %736 = vst [vmem:[%s182 + $0x450] sm:%s174] %v735
                %v737 = vld [vmem:[%s181 + $0x8a8] sm:%s174]
                %738 = vst [vmem:[%s182 + $0x454] sm:%s174] %v737
                %v739 = vld [vmem:[%s181 + $0x8b0] sm:%s174]
                %740 = vst [vmem:[%s182 + $0x458] sm:%s174] %v739
                %v741 = vld [vmem:[%s181 + $0x8b8] sm:%s174]
                %742 = vst [vmem:[%s182 + $0x45c] sm:%s174] %v741
                %v743 = vld [vmem:[%s181 + $0x8c0] sm:%s174]
                %744 = vst [vmem:[%s182 + $0x460] sm:%s174] %v743
                %v745 = vld [vmem:[%s181 + $0x8c8] sm:%s174]
                %746 = vst [vmem:[%s182 + $0x464] sm:%s174] %v745
                %v747 = vld [vmem:[%s181 + $0x8d0] sm:%s174]
                %748 = vst [vmem:[%s182 + $0x468] sm:%s174] %v747
                %v749 = vld [vmem:[%s181 + $0x8d8] sm:%s174]
                %750 = vst [vmem:[%s182 + $0x46c] sm:%s174] %v749
                %v751 = vld [vmem:[%s181 + $0x8e0] sm:%s174]
                %752 = vst [vmem:[%s182 + $0x470] sm:%s174] %v751
                %v753 = vld [vmem:[%s181 + $0x8e8] sm:%s174]
                %754 = vst [vmem:[%s182 + $0x474] sm:%s174] %v753
                %v755 = vld [vmem:[%s181 + $0x8f0] sm:%s174]
                %756 = vst [vmem:[%s182 + $0x478] sm:%s174] %v755
                %v757 = vld [vmem:[%s181 + $0x8f8] sm:%s174]
                %758 = vst [vmem:[%s182 + $0x47c] sm:%s174] %v757
                %v759 = vld [vmem:[%s181 + $0x900] sm:%s174]
                %760 = vst [vmem:[%s182 + $0x480] sm:%s174] %v759
                %v761 = vld [vmem:[%s181 + $0x908] sm:%s174]
                %762 = vst [vmem:[%s182 + $0x484] sm:%s174] %v761
                %v763 = vld [vmem:[%s181 + $0x910] sm:%s174]
                %764 = vst [vmem:[%s182 + $0x488] sm:%s174] %v763
                %v765 = vld [vmem:[%s181 + $0x918] sm:%s174]
                %766 = vst [vmem:[%s182 + $0x48c] sm:%s174] %v765
                %v767 = vld [vmem:[%s181 + $0x920] sm:%s174]
                %768 = vst [vmem:[%s182 + $0x490] sm:%s174] %v767
                %v769 = vld [vmem:[%s181 + $0x928] sm:%s174]
                %770 = vst [vmem:[%s182 + $0x494] sm:%s174] %v769
                %v771 = vld [vmem:[%s181 + $0x930] sm:%s174]
                %772 = vst [vmem:[%s182 + $0x498] sm:%s174] %v771
                %v773 = vld [vmem:[%s181 + $0x938] sm:%s174]
                %774 = vst [vmem:[%s182 + $0x49c] sm:%s174] %v773
                %v775 = vld [vmem:[%s181 + $0x940] sm:%s174]
                %776 = vst [vmem:[%s182 + $0x4a0] sm:%s174] %v775
                %v777 = vld [vmem:[%s181 + $0x948] sm:%s174]
                %778 = vst [vmem:[%s182 + $0x4a4] sm:%s174] %v777
                %v779 = vld [vmem:[%s181 + $0x950] sm:%s174]
                %780 = vst [vmem:[%s182 + $0x4a8] sm:%s174] %v779
                %v781 = vld [vmem:[%s181 + $0x958] sm:%s174]
                %782 = vst [vmem:[%s182 + $0x4ac] sm:%s174] %v781
                %v783 = vld [vmem:[%s181 + $0x960] sm:%s174]
                %784 = vst [vmem:[%s182 + $0x4b0] sm:%s174] %v783
                %v785 = vld [vmem:[%s181 + $0x968] sm:%s174]
                %786 = vst [vmem:[%s182 + $0x4b4] sm:%s174] %v785
                %v787 = vld [vmem:[%s181 + $0x970] sm:%s174]
                %788 = vst [vmem:[%s182 + $0x4b8] sm:%s174] %v787
                %v789 = vld [vmem:[%s181 + $0x978] sm:%s174]
                %790 = vst [vmem:[%s182 + $0x4bc] sm:%s174] %v789
                %v791 = vld [vmem:[%s181 + $0x980] sm:%s174]
                %792 = vst [vmem:[%s182 + $0x4c0] sm:%s174] %v791
                %v793 = vld [vmem:[%s181 + $0x988] sm:%s174]
                %794 = vst [vmem:[%s182 + $0x4c4] sm:%s174] %v793
                %v795 = vld [vmem:[%s181 + $0x990] sm:%s174]
                %796 = vst [vmem:[%s182 + $0x4c8] sm:%s174] %v795
                %v797 = vld [vmem:[%s181 + $0x998] sm:%s174]
                %798 = vst [vmem:[%s182 + $0x4cc] sm:%s174] %v797
                %v799 = vld [vmem:[%s181 + $0x9a0] sm:%s174]
                %800 = vst [vmem:[%s182 + $0x4d0] sm:%s174] %v799
                %v801 = vld [vmem:[%s181 + $0x9a8] sm:%s174]
                %802 = vst [vmem:[%s182 + $0x4d4] sm:%s174] %v801
                %v803 = vld [vmem:[%s181 + $0x9b0] sm:%s174]
                %804 = vst [vmem:[%s182 + $0x4d8] sm:%s174] %v803
                %v805 = vld [vmem:[%s181 + $0x9b8] sm:%s174]
                %806 = vst [vmem:[%s182 + $0x4dc] sm:%s174] %v805
                %v807 = vld [vmem:[%s181 + $0x9c0] sm:%s174]
                %808 = vst [vmem:[%s182 + $0x4e0] sm:%s174] %v807
                %v809 = vld [vmem:[%s181 + $0x9c8] sm:%s174]
                %810 = vst [vmem:[%s182 + $0x4e4] sm:%s174] %v809
                %v811 = vld [vmem:[%s181 + $0x9d0] sm:%s174]
                %812 = vst [vmem:[%s182 + $0x4e8] sm:%s174] %v811
                %v813 = vld [vmem:[%s181 + $0x9d8] sm:%s174]
                %814 = vst [vmem:[%s182 + $0x4ec] sm:%s174] %v813
                %v815 = vld [vmem:[%s181 + $0x9e0] sm:%s174]
                %816 = vst [vmem:[%s182 + $0x4f0] sm:%s174] %v815
                %v817 = vld [vmem:[%s181 + $0x9e8] sm:%s174]
                %818 = vst [vmem:[%s182 + $0x4f4] sm:%s174] %v817
                %v819 = vld [vmem:[%s181 + $0x9f0] sm:%s174]
                %820 = vst [vmem:[%s182 + $0x4f8] sm:%s174] %v819
                %v821 = vld [vmem:[%s181 + $0x9f8] sm:%s174]
                %822 = vst [vmem:[%s182 + $0x4fc] sm:%s174] %v821
                %v823 = vld [vmem:[%s181 + $0xa00] sm:%s174]
                %824 = vst [vmem:[%s182 + $0x500] sm:%s174] %v823
                %v825 = vld [vmem:[%s181 + $0xa08] sm:%s174]
                %826 = vst [vmem:[%s182 + $0x504] sm:%s174] %v825
                %v827 = vld [vmem:[%s181 + $0xa10] sm:%s174]
                %828 = vst [vmem:[%s182 + $0x508] sm:%s174] %v827
                %v829 = vld [vmem:[%s181 + $0xa18] sm:%s174]
                %830 = vst [vmem:[%s182 + $0x50c] sm:%s174] %v829
                %v831 = vld [vmem:[%s181 + $0xa20] sm:%s174]
                %832 = vst [vmem:[%s182 + $0x510] sm:%s174] %v831
                %v833 = vld [vmem:[%s181 + $0xa28] sm:%s174]
                %834 = vst [vmem:[%s182 + $0x514] sm:%s174] %v833
                %v835 = vld [vmem:[%s181 + $0xa30] sm:%s174]
                %836 = vst [vmem:[%s182 + $0x518] sm:%s174] %v835
                %v837 = vld [vmem:[%s181 + $0xa38] sm:%s174]
                %838 = vst [vmem:[%s182 + $0x51c] sm:%s174] %v837
                %v839 = vld [vmem:[%s181 + $0xa40] sm:%s174]
                %840 = vst [vmem:[%s182 + $0x520] sm:%s174] %v839
                %v841 = vld [vmem:[%s181 + $0xa48] sm:%s174]
                %842 = vst [vmem:[%s182 + $0x524] sm:%s174] %v841
                %v843 = vld [vmem:[%s181 + $0xa50] sm:%s174]
                %844 = vst [vmem:[%s182 + $0x528] sm:%s174] %v843
                %v845 = vld [vmem:[%s181 + $0xa58] sm:%s174]
                %846 = vst [vmem:[%s182 + $0x52c] sm:%s174] %v845
                %v847 = vld [vmem:[%s181 + $0xa60] sm:%s174]
                %848 = vst [vmem:[%s182 + $0x530] sm:%s174] %v847
                %v849 = vld [vmem:[%s181 + $0xa68] sm:%s174]
                %850 = vst [vmem:[%s182 + $0x534] sm:%s174] %v849
                %v851 = vld [vmem:[%s181 + $0xa70] sm:%s174]
                %852 = vst [vmem:[%s182 + $0x538] sm:%s174] %v851
                %v853 = vld [vmem:[%s181 + $0xa78] sm:%s174]
                %854 = vst [vmem:[%s182 + $0x53c] sm:%s174] %v853
                %v855 = vld [vmem:[%s181 + $0xa80] sm:%s174]
                %856 = vst [vmem:[%s182 + $0x540] sm:%s174] %v855
                %v857 = vld [vmem:[%s181 + $0xa88] sm:%s174]
                %858 = vst [vmem:[%s182 + $0x544] sm:%s174] %v857
                %v859 = vld [vmem:[%s181 + $0xa90] sm:%s174]
                %860 = vst [vmem:[%s182 + $0x548] sm:%s174] %v859
                %v861 = vld [vmem:[%s181 + $0xa98] sm:%s174]
                %862 = vst [vmem:[%s182 + $0x54c] sm:%s174] %v861
                %v863 = vld [vmem:[%s181 + $0xaa0] sm:%s174]
                %864 = vst [vmem:[%s182 + $0x550] sm:%s174] %v863
                %v865 = vld [vmem:[%s181 + $0xaa8] sm:%s174]
                %866 = vst [vmem:[%s182 + $0x554] sm:%s174] %v865
                %v867 = vld [vmem:[%s181 + $0xab0] sm:%s174]
                %868 = vst [vmem:[%s182 + $0x558] sm:%s174] %v867
                %v869 = vld [vmem:[%s181 + $0xab8] sm:%s174]
                %870 = vst [vmem:[%s182 + $0x55c] sm:%s174] %v869
                %v871 = vld [vmem:[%s181 + $0xac0] sm:%s174]
                %872 = vst [vmem:[%s182 + $0x560] sm:%s174] %v871
                %v873 = vld [vmem:[%s181 + $0xac8] sm:%s174]
                %874 = vst [vmem:[%s182 + $0x564] sm:%s174] %v873
                %v875 = vld [vmem:[%s181 + $0xad0] sm:%s174]
                %876 = vst [vmem:[%s182 + $0x568] sm:%s174] %v875
                %v877 = vld [vmem:[%s181 + $0xad8] sm:%s174]
                %878 = vst [vmem:[%s182 + $0x56c] sm:%s174] %v877
                %v879 = vld [vmem:[%s181 + $0xae0] sm:%s174]
                %880 = vst [vmem:[%s182 + $0x570] sm:%s174] %v879
                %v881 = vld [vmem:[%s181 + $0xae8] sm:%s174]
                %882 = vst [vmem:[%s182 + $0x574] sm:%s174] %v881
                %v883 = vld [vmem:[%s181 + $0xaf0] sm:%s174]
                %884 = vst [vmem:[%s182 + $0x578] sm:%s174] %v883
                %v885 = vld [vmem:[%s181 + $0xaf8] sm:%s174]
                %886 = vst [vmem:[%s182 + $0x57c] sm:%s174] %v885
                %v887 = vld [vmem:[%s181 + $0xb00] sm:%s174]
                %888 = vst [vmem:[%s182 + $0x580] sm:%s174] %v887
                %v889 = vld [vmem:[%s181 + $0xb08] sm:%s174]
                %890 = vst [vmem:[%s182 + $0x584] sm:%s174] %v889
                %v891 = vld [vmem:[%s181 + $0xb10] sm:%s174]
                %892 = vst [vmem:[%s182 + $0x588] sm:%s174] %v891
                %v893 = vld [vmem:[%s181 + $0xb18] sm:%s174]
                %894 = vst [vmem:[%s182 + $0x58c] sm:%s174] %v893
                %v895 = vld [vmem:[%s181 + $0xb20] sm:%s174]
                %896 = vst [vmem:[%s182 + $0x590] sm:%s174] %v895
                %v897 = vld [vmem:[%s181 + $0xb28] sm:%s174]
                %898 = vst [vmem:[%s182 + $0x594] sm:%s174] %v897
                %v899 = vld [vmem:[%s181 + $0xb30] sm:%s174]
                %900 = vst [vmem:[%s182 + $0x598] sm:%s174] %v899
                %v901 = vld [vmem:[%s181 + $0xb38] sm:%s174]
                %902 = vst [vmem:[%s182 + $0x59c] sm:%s174] %v901
                %v903 = vld [vmem:[%s181 + $0xb40] sm:%s174]
                %904 = vst [vmem:[%s182 + $0x5a0] sm:%s174] %v903
                %v905 = vld [vmem:[%s181 + $0xb48] sm:%s174]
                %906 = vst [vmem:[%s182 + $0x5a4] sm:%s174] %v905
                %v907 = vld [vmem:[%s181 + $0xb50] sm:%s174]
                %908 = vst [vmem:[%s182 + $0x5a8] sm:%s174] %v907
                %v909 = vld [vmem:[%s181 + $0xb58] sm:%s174]
                %910 = vst [vmem:[%s182 + $0x5ac] sm:%s174] %v909
                %v911 = vld [vmem:[%s181 + $0xb60] sm:%s174]
                %912 = vst [vmem:[%s182 + $0x5b0] sm:%s174] %v911
                %v913 = vld [vmem:[%s181 + $0xb68] sm:%s174]
                %914 = vst [vmem:[%s182 + $0x5b4] sm:%s174] %v913
                %v915 = vld [vmem:[%s181 + $0xb70] sm:%s174]
                %916 = vst [vmem:[%s182 + $0x5b8] sm:%s174] %v915
                %v917 = vld [vmem:[%s181 + $0xb78] sm:%s174]
                %918 = vst [vmem:[%s182 + $0x5bc] sm:%s174] %v917
                %v919 = vld [vmem:[%s181 + $0xb80] sm:%s174]
                %920 = vst [vmem:[%s182 + $0x5c0] sm:%s174] %v919
                %v921 = vld [vmem:[%s181 + $0xb88] sm:%s174]
                %922 = vst [vmem:[%s182 + $0x5c4] sm:%s174] %v921
                %v923 = vld [vmem:[%s181 + $0xb90] sm:%s174]
                %924 = vst [vmem:[%s182 + $0x5c8] sm:%s174] %v923
                %v925 = vld [vmem:[%s181 + $0xb98] sm:%s174]
                %926 = vst [vmem:[%s182 + $0x5cc] sm:%s174] %v925
                %v927 = vld [vmem:[%s181 + $0xba0] sm:%s174]
                %928 = vst [vmem:[%s182 + $0x5d0] sm:%s174] %v927
                %v929 = vld [vmem:[%s181 + $0xba8] sm:%s174]
                %930 = vst [vmem:[%s182 + $0x5d4] sm:%s174] %v929
                %v931 = vld [vmem:[%s181 + $0xbb0] sm:%s174]
                %932 = vst [vmem:[%s182 + $0x5d8] sm:%s174] %v931
                %v933 = vld [vmem:[%s181 + $0xbb8] sm:%s174]
                %934 = vst [vmem:[%s182 + $0x5dc] sm:%s174] %v933
                %v935 = vld [vmem:[%s181 + $0xbc0] sm:%s174]
                %936 = vst [vmem:[%s182 + $0x5e0] sm:%s174] %v935
                %v937 = vld [vmem:[%s181 + $0xbc8] sm:%s174]
                %938 = vst [vmem:[%s182 + $0x5e4] sm:%s174] %v937
                %v939 = vld [vmem:[%s181 + $0xbd0] sm:%s174]
                %940 = vst [vmem:[%s182 + $0x5e8] sm:%s174] %v939
                %v941 = vld [vmem:[%s181 + $0xbd8] sm:%s174]
                %942 = vst [vmem:[%s182 + $0x5ec] sm:%s174] %v941
                %v943 = vld [vmem:[%s181 + $0xbe0] sm:%s174]
                %944 = vst [vmem:[%s182 + $0x5f0] sm:%s174] %v943
                %v945 = vld [vmem:[%s181 + $0xbe8] sm:%s174]
                %946 = vst [vmem:[%s182 + $0x5f4] sm:%s174] %v945
                %v947 = vld [vmem:[%s181 + $0xbf0] sm:%s174]
                %948 = vst [vmem:[%s182 + $0x5f8] sm:%s174] %v947
                %v949 = vld [vmem:[%s181 + $0xbf8] sm:%s174]
                %950 = vst [vmem:[%s182 + $0x5fc] sm:%s174] %v949
                %v951 = vld [vmem:[%s181 + $0xc00] sm:%s174]
                %952 = vst [vmem:[%s182 + $0x600] sm:%s174] %v951
                %v953 = vld [vmem:[%s181 + $0xc08] sm:%s174]
                %954 = vst [vmem:[%s182 + $0x604] sm:%s174] %v953
                %v955 = vld [vmem:[%s181 + $0xc10] sm:%s174]
                %956 = vst [vmem:[%s182 + $0x608] sm:%s174] %v955
                %v957 = vld [vmem:[%s181 + $0xc18] sm:%s174]
                %958 = vst [vmem:[%s182 + $0x60c] sm:%s174] %v957
                %v959 = vld [vmem:[%s181 + $0xc20] sm:%s174]
                %960 = vst [vmem:[%s182 + $0x610] sm:%s174] %v959
                %v961 = vld [vmem:[%s181 + $0xc28] sm:%s174]
                %962 = vst [vmem:[%s182 + $0x614] sm:%s174] %v961
                %v963 = vld [vmem:[%s181 + $0xc30] sm:%s174]
                %964 = vst [vmem:[%s182 + $0x618] sm:%s174] %v963
                %v965 = vld [vmem:[%s181 + $0xc38] sm:%s174]
                %966 = vst [vmem:[%s182 + $0x61c] sm:%s174] %v965
                %v967 = vld [vmem:[%s181 + $0xc40] sm:%s174]
                %968 = vst [vmem:[%s182 + $0x620] sm:%s174] %v967
                %v969 = vld [vmem:[%s181 + $0xc48] sm:%s174]
                %970 = vst [vmem:[%s182 + $0x624] sm:%s174] %v969
                %v971 = vld [vmem:[%s181 + $0xc50] sm:%s174]
                %972 = vst [vmem:[%s182 + $0x628] sm:%s174] %v971
                %v973 = vld [vmem:[%s181 + $0xc58] sm:%s174]
                %974 = vst [vmem:[%s182 + $0x62c] sm:%s174] %v973
                %v975 = vld [vmem:[%s181 + $0xc60] sm:%s174]
                %976 = vst [vmem:[%s182 + $0x630] sm:%s174] %v975
                %v977 = vld [vmem:[%s181 + $0xc68] sm:%s174]
                %978 = vst [vmem:[%s182 + $0x634] sm:%s174] %v977
                %v979 = vld [vmem:[%s181 + $0xc70] sm:%s174]
                %980 = vst [vmem:[%s182 + $0x638] sm:%s174] %v979
                %v981 = vld [vmem:[%s181 + $0xc78] sm:%s174]
                %982 = vst [vmem:[%s182 + $0x63c] sm:%s174] %v981
                %v983 = vld [vmem:[%s181 + $0xc80] sm:%s174]
                %984 = vst [vmem:[%s182 + $0x640] sm:%s174] %v983
                %v985 = vld [vmem:[%s181 + $0xc88] sm:%s174]
                %986 = vst [vmem:[%s182 + $0x644] sm:%s174] %v985
                %v987 = vld [vmem:[%s181 + $0xc90] sm:%s174]
                %988 = vst [vmem:[%s182 + $0x648] sm:%s174] %v987
                %v989 = vld [vmem:[%s181 + $0xc98] sm:%s174]
                %990 = vst [vmem:[%s182 + $0x64c] sm:%s174] %v989
                %v991 = vld [vmem:[%s181 + $0xca0] sm:%s174]
                %992 = vst [vmem:[%s182 + $0x650] sm:%s174] %v991
                %v993 = vld [vmem:[%s181 + $0xca8] sm:%s174]
                %994 = vst [vmem:[%s182 + $0x654] sm:%s174] %v993
                %v995 = vld [vmem:[%s181 + $0xcb0] sm:%s174]
                %996 = vst [vmem:[%s182 + $0x658] sm:%s174] %v995
                %v997 = vld [vmem:[%s181 + $0xcb8] sm:%s174]
                %998 = vst [vmem:[%s182 + $0x65c] sm:%s174] %v997
                %v999 = vld [vmem:[%s181 + $0xcc0] sm:%s174]
                %1000 = vst [vmem:[%s182 + $0x660] sm:%s174] %v999
                %v1001 = vld [vmem:[%s181 + $0xcc8] sm:%s174]
                %1002 = vst [vmem:[%s182 + $0x664] sm:%s174] %v1001
                %v1003 = vld [vmem:[%s181 + $0xcd0] sm:%s174]
                %1004 = vst [vmem:[%s182 + $0x668] sm:%s174] %v1003
                %v1005 = vld [vmem:[%s181 + $0xcd8] sm:%s174]
                %1006 = vst [vmem:[%s182 + $0x66c] sm:%s174] %v1005
                %v1007 = vld [vmem:[%s181 + $0xce0] sm:%s174]
                %1008 = vst [vmem:[%s182 + $0x670] sm:%s174] %v1007
                %v1009 = vld [vmem:[%s181 + $0xce8] sm:%s174]
                %1010 = vst [vmem:[%s182 + $0x674] sm:%s174] %v1009
                %v1011 = vld [vmem:[%s181 + $0xcf0] sm:%s174]
                %1012 = vst [vmem:[%s182 + $0x678] sm:%s174] %v1011
                %v1013 = vld [vmem:[%s181 + $0xcf8] sm:%s174]
                %1014 = vst [vmem:[%s182 + $0x67c] sm:%s174] %v1013
                %v1015 = vld [vmem:[%s181 + $0xd00] sm:%s174]
                %1016 = vst [vmem:[%s182 + $0x680] sm:%s174] %v1015
                %v1017 = vld [vmem:[%s181 + $0xd08] sm:%s174]
                %1018 = vst [vmem:[%s182 + $0x684] sm:%s174] %v1017
                %v1019 = vld [vmem:[%s181 + $0xd10] sm:%s174]
                %1020 = vst [vmem:[%s182 + $0x688] sm:%s174] %v1019
                %v1021 = vld [vmem:[%s181 + $0xd18] sm:%s174]
                %1022 = vst [vmem:[%s182 + $0x68c] sm:%s174] %v1021
                %v1023 = vld [vmem:[%s181 + $0xd20] sm:%s174]
                %1024 = vst [vmem:[%s182 + $0x690] sm:%s174] %v1023
                %v1025 = vld [vmem:[%s181 + $0xd28] sm:%s174]
                %1026 = vst [vmem:[%s182 + $0x694] sm:%s174] %v1025
                %v1027 = vld [vmem:[%s181 + $0xd30] sm:%s174]
                %1028 = vst [vmem:[%s182 + $0x698] sm:%s174] %v1027
                %v1029 = vld [vmem:[%s181 + $0xd38] sm:%s174]
                %1030 = vst [vmem:[%s182 + $0x69c] sm:%s174] %v1029
                %v1031 = vld [vmem:[%s181 + $0xd40] sm:%s174]
                %1032 = vst [vmem:[%s182 + $0x6a0] sm:%s174] %v1031
                %v1033 = vld [vmem:[%s181 + $0xd48] sm:%s174]
                %1034 = vst [vmem:[%s182 + $0x6a4] sm:%s174] %v1033
                %v1035 = vld [vmem:[%s181 + $0xd50] sm:%s174]
                %1036 = vst [vmem:[%s182 + $0x6a8] sm:%s174] %v1035
                %v1037 = vld [vmem:[%s181 + $0xd58] sm:%s174]
                %1038 = vst [vmem:[%s182 + $0x6ac] sm:%s174] %v1037
                %v1039 = vld [vmem:[%s181 + $0xd60] sm:%s174]
                %1040 = vst [vmem:[%s182 + $0x6b0] sm:%s174] %v1039
                %v1041 = vld [vmem:[%s181 + $0xd68] sm:%s174]
                %1042 = vst [vmem:[%s182 + $0x6b4] sm:%s174] %v1041
                %v1043 = vld [vmem:[%s181 + $0xd70] sm:%s174]
                %1044 = vst [vmem:[%s182 + $0x6b8] sm:%s174] %v1043
                %v1045 = vld [vmem:[%s181 + $0xd78] sm:%s174]
                %1046 = vst [vmem:[%s182 + $0x6bc] sm:%s174] %v1045
                %v1047 = vld [vmem:[%s181 + $0xd80] sm:%s174]
                %1048 = vst [vmem:[%s182 + $0x6c0] sm:%s174] %v1047
                %v1049 = vld [vmem:[%s181 + $0xd88] sm:%s174]
                %1050 = vst [vmem:[%s182 + $0x6c4] sm:%s174] %v1049
                %v1051 = vld [vmem:[%s181 + $0xd90] sm:%s174]
                %1052 = vst [vmem:[%s182 + $0x6c8] sm:%s174] %v1051
                %v1053 = vld [vmem:[%s181 + $0xd98] sm:%s174]
                %1054 = vst [vmem:[%s182 + $0x6cc] sm:%s174] %v1053
                %v1055 = vld [vmem:[%s181 + $0xda0] sm:%s174]
                %1056 = vst [vmem:[%s182 + $0x6d0] sm:%s174] %v1055
                %v1057 = vld [vmem:[%s181 + $0xda8] sm:%s174]
                %1058 = vst [vmem:[%s182 + $0x6d4] sm:%s174] %v1057
                %v1059 = vld [vmem:[%s181 + $0xdb0] sm:%s174]
                %1060 = vst [vmem:[%s182 + $0x6d8] sm:%s174] %v1059
                %v1061 = vld [vmem:[%s181 + $0xdb8] sm:%s174]
                %1062 = vst [vmem:[%s182 + $0x6dc] sm:%s174] %v1061
                %v1063 = vld [vmem:[%s181 + $0xdc0] sm:%s174]
                %1064 = vst [vmem:[%s182 + $0x6e0] sm:%s174] %v1063
                %v1065 = vld [vmem:[%s181 + $0xdc8] sm:%s174]
                %1066 = vst [vmem:[%s182 + $0x6e4] sm:%s174] %v1065
                %v1067 = vld [vmem:[%s181 + $0xdd0] sm:%s174]
                %1068 = vst [vmem:[%s182 + $0x6e8] sm:%s174] %v1067
                %v1069 = vld [vmem:[%s181 + $0xdd8] sm:%s174]
                %1070 = vst [vmem:[%s182 + $0x6ec] sm:%s174] %v1069
                %v1071 = vld [vmem:[%s181 + $0xde0] sm:%s174]
                %1072 = vst [vmem:[%s182 + $0x6f0] sm:%s174] %v1071
                %v1073 = vld [vmem:[%s181 + $0xde8] sm:%s174]
                %1074 = vst [vmem:[%s182 + $0x6f4] sm:%s174] %v1073
                %v1075 = vld [vmem:[%s181 + $0xdf0] sm:%s174]
                %1076 = vst [vmem:[%s182 + $0x6f8] sm:%s174] %v1075
                %v1077 = vld [vmem:[%s181 + $0xdf8] sm:%s174]
                %1078 = vst [vmem:[%s182 + $0x6fc] sm:%s174] %v1077
                %v1079 = vld [vmem:[%s181 + $0xe00] sm:%s174]
                %1080 = vst [vmem:[%s182 + $0x700] sm:%s174] %v1079
                %v1081 = vld [vmem:[%s181 + $0xe08] sm:%s174]
                %1082 = vst [vmem:[%s182 + $0x704] sm:%s174] %v1081
                %v1083 = vld [vmem:[%s181 + $0xe10] sm:%s174]
                %1084 = vst [vmem:[%s182 + $0x708] sm:%s174] %v1083
                %v1085 = vld [vmem:[%s181 + $0xe18] sm:%s174]
                %1086 = vst [vmem:[%s182 + $0x70c] sm:%s174] %v1085
                %v1087 = vld [vmem:[%s181 + $0xe20] sm:%s174]
                %1088 = vst [vmem:[%s182 + $0x710] sm:%s174] %v1087
                %v1089 = vld [vmem:[%s181 + $0xe28] sm:%s174]
                %1090 = vst [vmem:[%s182 + $0x714] sm:%s174] %v1089
                %v1091 = vld [vmem:[%s181 + $0xe30] sm:%s174]
                %1092 = vst [vmem:[%s182 + $0x718] sm:%s174] %v1091
                %v1093 = vld [vmem:[%s181 + $0xe38] sm:%s174]
                %1094 = vst [vmem:[%s182 + $0x71c] sm:%s174] %v1093
                %v1095 = vld [vmem:[%s181 + $0xe40] sm:%s174]
                %1096 = vst [vmem:[%s182 + $0x720] sm:%s174] %v1095
                %v1097 = vld [vmem:[%s181 + $0xe48] sm:%s174]
                %1098 = vst [vmem:[%s182 + $0x724] sm:%s174] %v1097
                %v1099 = vld [vmem:[%s181 + $0xe50] sm:%s174]
                %1100 = vst [vmem:[%s182 + $0x728] sm:%s174] %v1099
                %v1101 = vld [vmem:[%s181 + $0xe58] sm:%s174]
                %1102 = vst [vmem:[%s182 + $0x72c] sm:%s174] %v1101
                %v1103 = vld [vmem:[%s181 + $0xe60] sm:%s174]
                %1104 = vst [vmem:[%s182 + $0x730] sm:%s174] %v1103
                %v1105 = vld [vmem:[%s181 + $0xe68] sm:%s174]
                %1106 = vst [vmem:[%s182 + $0x734] sm:%s174] %v1105
                %v1107 = vld [vmem:[%s181 + $0xe70] sm:%s174]
                %1108 = vst [vmem:[%s182 + $0x738] sm:%s174] %v1107
                %v1109 = vld [vmem:[%s181 + $0xe78] sm:%s174]
                %1110 = vst [vmem:[%s182 + $0x73c] sm:%s174] %v1109
                %v1111 = vld [vmem:[%s181 + $0xe80] sm:%s174]
                %1112 = vst [vmem:[%s182 + $0x740] sm:%s174] %v1111
                %v1113 = vld [vmem:[%s181 + $0xe88] sm:%s174]
                %1114 = vst [vmem:[%s182 + $0x744] sm:%s174] %v1113
                %v1115 = vld [vmem:[%s181 + $0xe90] sm:%s174]
                %1116 = vst [vmem:[%s182 + $0x748] sm:%s174] %v1115
                %v1117 = vld [vmem:[%s181 + $0xe98] sm:%s174]
                %1118 = vst [vmem:[%s182 + $0x74c] sm:%s174] %v1117
                %v1119 = vld [vmem:[%s181 + $0xea0] sm:%s174]
                %1120 = vst [vmem:[%s182 + $0x750] sm:%s174] %v1119
                %v1121 = vld [vmem:[%s181 + $0xea8] sm:%s174]
                %1122 = vst [vmem:[%s182 + $0x754] sm:%s174] %v1121
                %v1123 = vld [vmem:[%s181 + $0xeb0] sm:%s174]
                %1124 = vst [vmem:[%s182 + $0x758] sm:%s174] %v1123
                %v1125 = vld [vmem:[%s181 + $0xeb8] sm:%s174]
                %1126 = vst [vmem:[%s182 + $0x75c] sm:%s174] %v1125
                %v1127 = vld [vmem:[%s181 + $0xec0] sm:%s174]
                %1128 = vst [vmem:[%s182 + $0x760] sm:%s174] %v1127
                %v1129 = vld [vmem:[%s181 + $0xec8] sm:%s174]
                %1130 = vst [vmem:[%s182 + $0x764] sm:%s174] %v1129
                %v1131 = vld [vmem:[%s181 + $0xed0] sm:%s174]
                %1132 = vst [vmem:[%s182 + $0x768] sm:%s174] %v1131
                %v1133 = vld [vmem:[%s181 + $0xed8] sm:%s174]
                %1134 = vst [vmem:[%s182 + $0x76c] sm:%s174] %v1133
                %v1135 = vld [vmem:[%s181 + $0xee0] sm:%s174]
                %1136 = vst [vmem:[%s182 + $0x770] sm:%s174] %v1135
                %v1137 = vld [vmem:[%s181 + $0xee8] sm:%s174]
                %1138 = vst [vmem:[%s182 + $0x774] sm:%s174] %v1137
                %v1139 = vld [vmem:[%s181 + $0xef0] sm:%s174]
                %1140 = vst [vmem:[%s182 + $0x778] sm:%s174] %v1139
                %v1141 = vld [vmem:[%s181 + $0xef8] sm:%s174]
                %1142 = vst [vmem:[%s182 + $0x77c] sm:%s174] %v1141
              $region41: #{cnn_forward.3} parent=35 // loop_footer
                %s180 = sadd.s32 1, %s176
              $region42: #{cnn_forward.3} parent=35 // loop_footer_branch
                %175 = sbr.rel target = $region38
              $region43: #{cnn_forward.3} parent=35 // loop_exit
                _
            $region36: #{cnn_forward.3} parent=27 // pred_fallthru
              _
          $region28: #{cnn_forward.3} parent=23 // pred_fallthru
            _
          %4069 = vnop
        $region24: #{cnn_forward.3} parent=15 // pred_fallthru
          _
        // Predicated region
        $region73: #{cnn_forward.3} parent=15 // pred_check
          %p4070 = pneg %p95
        $region74: #{cnn_forward.3} parent=15 // pred_check_branch
          %4072 = sbr.rel (%p4070) target = $region76
        $region75: #{cnn_forward.3} parent=15 // pred_region
          %p4073 = scmp.lt.s32.totalorder %s16, 1
          %s4074 = scalar_select %p4073, %s16, 1
          %s4075 = scalar_lea.vmem %s2, %s4074
        $region76: #{cnn_forward.3} parent=15 // pred_fallthru
          _
      $region16: #{cnn_forward.3} parent=5 // pred_fallthru
        _
      %p4076 = scmp.le.s32.totalorder 1, %s9
      %p4077 = scmp.lt.s32.totalorder %s9, 5
      %p4078 = pnand %p4076, %p4077
      %p4079 = pneg %p4078
      // Predicated region
      $region77: #{cnn_forward.3} parent=5 // pred_check
        _
      $region78: #{cnn_forward.3} parent=5 // pred_check_branch
        %4081 = sbr.rel (%p4078) target = $region80
      $region79: #{cnn_forward.3} parent=5 // pred_region
        %s4082 = ssub.s32 %s9, 1
        %s4083 = sand.u32 %s62, 1
        %s4084 = sand.u32 %s62, 1
        %s4085 = smul.addr %s4084, 1920
        %s4086 = scalar_lea.vmem [#allocation3], %s4085
        // Predicated region
        $region81: #{cnn_forward.3} parent=79 // pred_check
          %p4087 = pneg %p75
        $region82: #{cnn_forward.3} parent=79 // pred_check_branch
          %4089 = sbr.rel (%p4087) target = $region84
        $region83: #{cnn_forward.3} parent=79 // pred_region
          _
        $region84: #{cnn_forward.3} parent=79 // pred_fallthru
          _
        %s4090 = smul.u32 30, %s19
        %p4091 = scmp.lt.s32.totalorder %s4090, 59
        %s4092 = scalar_select %p4091, %s4090, 59
        %s4093 = smul.addr %s4092, 4
        %s4094 = scalar_lea.vmem %s0, %s4093
        %p4095 = pneg %p47
        %p4096 = pneg %p44
        %s4097 = sand.u32 %s62, 1
        %s4098 = sand.u32 %s62, 1
        %s4099 = smul.addr %s4098, 1920
        %s4100 = scalar_lea.vmem [#allocation3], %s4099
        %p4101 = pneg %p75
        %p4102 = pneg %p72
        %p4103 = scmp.lt.s32.totalorder %s18, 1
        %s4104 = scalar_select %p4103, %s18, 1
        %s4105 = scalar_lea.vmem %s2, %s4104
        %p4106 = pneg %p101
        %p4107 = pneg %p98
        %p4108 = pneg %p127
        %p4109 = pneg %p124
        %p4110 = scmp.lt.s32.totalorder %s18, 1
        %s4111 = scalar_select %p4110, %s18, 1
        %s4112 = smul.addr %s4111, 8
        %s4113 = scalar_lea.vmem %s3, %s4112
        %s4114 = smul.u32 30, %s19
        %p4115 = scmp.lt.s32.totalorder %s4114, 59
        %s4116 = scalar_select %p4115, %s4114, 59
        %s4117 = smul.addr %s4116, 4
        %s4118 = scalar_lea.vmem %s0, %s4117
        %s4119 = smul.u32 30, %s19
        %s4120 = smul.u32 480, %s19
        %p4121 = scmp.lt.s32.totalorder %s18, 1
        %s4122 = scalar_select %p4121, %s18, 1
        %s4123 = scalar_lea.vmem %s2, %s4122
        %p4124 = scmp.lt.s32.totalorder %s18, 1
        %s4125 = scalar_select %p4124, %s18, 1
        %s4126 = smul.addr %s4125, 8
        %s4127 = scalar_lea.vmem %s3, %s4126
        %p4128 = scmp.eq.s32.totalorder %s19, 0
        // Predicated region
        $region85: #{cnn_forward.3} parent=79 // pred_check
          %p4129 = pneg %p4128
        $region86: #{cnn_forward.3} parent=79 // pred_check_branch
          %4131 = sbr.rel (%p4129) target = $region88
        $region87: #{cnn_forward.3} parent=79 // pred_region
          %4132 = vst [vmem:[#allocation2] sm:$0x3f] 0.0
        $region88: #{cnn_forward.3} parent=79 // pred_fallthru
          _
        %v4133 = vld [vmem:[#allocation2] sm:$0x3f]
        %v4134 = vld [vmem:[%s4118] sm:$0x77]
        %v4135 = vld [vmem:[%s4118 + $0x8] sm:$0x77]
        %v4136 = vld [vmem:[%s4118 + $0x10] sm:$0x77]
        %v4137 = vld [vmem:[%s4118 + $0x18] sm:$0x77]
        %v4138 = vld [vmem:[%s4118 + $0x20] sm:$0x77]
        %v4139 = vld [vmem:[%s4118 + $0x28] sm:$0x77]
        %v4140 = vld [vmem:[%s4118 + $0x30] sm:$0x77]
        %v4141 = vld [vmem:[%s4118 + $0x38] sm:$0x77]
        %v4142 = vld [vmem:[%s4118 + $0x40] sm:$0x77]
        %v4143 = vld [vmem:[%s4118 + $0x48] sm:$0x77]
        %v4144 = vld [vmem:[%s4118 + $0x50] sm:$0x77]
        %v4145 = vld [vmem:[%s4118 + $0x58] sm:$0x77]
        %v4146 = vld [vmem:[%s4118 + $0x60] sm:$0x77]
        %v4147 = vld [vmem:[%s4118 + $0x68] sm:$0x77]
        %v4148 = vld [vmem:[%s4118 + $0x70] sm:$0x77]
        %v4149 = vld [vmem:[%s4086] sm:$0xf]
        %v4150 = vld [vmem:[%s4086 + $0x4] sm:$0xf]
        %v4151 = vld [vmem:[%s4086 + $0x8] sm:$0xf]
        %v4152 = vld [vmem:[%s4086 + $0xc] sm:$0xf]
        %v4153 = vld [vmem:[%s4086 + $0x10] sm:$0xf]
        %v4154 = vld [vmem:[%s4086 + $0x14] sm:$0xf]
        %v4155 = vld [vmem:[%s4086 + $0x18] sm:$0xf]
        %v4156 = vld [vmem:[%s4086 + $0x1c] sm:$0xf]
        %v4157 = vld [vmem:[%s4086 + $0x20] sm:$0xf]
        %v4158 = vld [vmem:[%s4086 + $0x24] sm:$0xf]
        %v4159 = vld [vmem:[%s4086 + $0x28] sm:$0xf]
        %v4160 = vld [vmem:[%s4086 + $0x2c] sm:$0xf]
        %v4161 = vld [vmem:[%s4086 + $0x30] sm:$0xf]
        %v4162 = vld [vmem:[%s4086 + $0x34] sm:$0xf]
        %v4163 = vld [vmem:[%s4086 + $0x38] sm:$0xf]
        %v4164 = vld [vmem:[%s4086 + $0x3c] sm:$0xf]
        %v4165 = vld [vmem:[%s4086 + $0x40] sm:$0xf]
        %v4166 = vld [vmem:[%s4086 + $0x44] sm:$0xf]
        %v4167 = vld [vmem:[%s4086 + $0x48] sm:$0xf]
        %v4168 = vld [vmem:[%s4086 + $0x4c] sm:$0xf]
        %v4169 = vld [vmem:[%s4086 + $0x50] sm:$0xf]
        %v4170 = vld [vmem:[%s4086 + $0x54] sm:$0xf]
        %v4171 = vld [vmem:[%s4086 + $0x58] sm:$0xf]
        %v4172 = vld [vmem:[%s4086 + $0x5c] sm:$0xf]
        %v4173 = vld [vmem:[%s4086 + $0x60] sm:$0xf]
        %v4174 = vld [vmem:[%s4086 + $0x64] sm:$0xf]
        %v4175 = vld [vmem:[%s4086 + $0x68] sm:$0xf]
        %v4176 = vld [vmem:[%s4086 + $0x6c] sm:$0xf]
        %v4177 = vld [vmem:[%s4086 + $0x70] sm:$0xf]
        %v4178 = vld [vmem:[%s4086 + $0x74] sm:$0xf]
        %v4179 = vld [vmem:[%s4086 + $0x78] sm:$0xf]
        %v4180 = vld [vmem:[%s4086 + $0x7c] sm:$0xf]
        %v4181 = vld [vmem:[%s4086 + $0x80] sm:$0xf]
        %v4182 = vld [vmem:[%s4086 + $0x84] sm:$0xf]
        %v4183 = vld [vmem:[%s4086 + $0x88] sm:$0xf]
        %v4184 = vld [vmem:[%s4086 + $0x8c] sm:$0xf]
        %v4185 = vld [vmem:[%s4086 + $0x90] sm:$0xf]
        %v4186 = vld [vmem:[%s4086 + $0x94] sm:$0xf]
        %v4187 = vld [vmem:[%s4086 + $0x98] sm:$0xf]
        %v4188 = vld [vmem:[%s4086 + $0x9c] sm:$0xf]
        %v4189 = vld [vmem:[%s4086 + $0xa0] sm:$0xf]
        %v4190 = vld [vmem:[%s4086 + $0xa4] sm:$0xf]
        %v4191 = vld [vmem:[%s4086 + $0xa8] sm:$0xf]
        %v4192 = vld [vmem:[%s4086 + $0xac] sm:$0xf]
        %v4193 = vld [vmem:[%s4086 + $0xb0] sm:$0xf]
        %v4194 = vld [vmem:[%s4086 + $0xb4] sm:$0xf]
        %v4195 = vld [vmem:[%s4086 + $0xb8] sm:$0xf]
        %v4196 = vld [vmem:[%s4086 + $0xbc] sm:$0xf]
        %v4197 = vld [vmem:[%s4086 + $0xc0] sm:$0xf]
        %v4198 = vld [vmem:[%s4086 + $0xc4] sm:$0xf]
        %v4199 = vld [vmem:[%s4086 + $0xc8] sm:$0xf]
        %v4200 = vld [vmem:[%s4086 + $0xcc] sm:$0xf]
        %v4201 = vld [vmem:[%s4086 + $0xd0] sm:$0xf]
        %v4202 = vld [vmem:[%s4086 + $0xd4] sm:$0xf]
        %v4203 = vld [vmem:[%s4086 + $0xd8] sm:$0xf]
        %v4204 = vld [vmem:[%s4086 + $0xdc] sm:$0xf]
        %v4205 = vld [vmem:[%s4086 + $0xe0] sm:$0xf]
        %v4206 = vld [vmem:[%s4086 + $0xe4] sm:$0xf]
        %v4207 = vld [vmem:[%s4086 + $0xe8] sm:$0xf]
        %v4208 = vld [vmem:[%s4086 + $0xec] sm:$0xf]
        %v4209 = vld [vmem:[%s4086 + $0xf0] sm:$0xf]
        %v4210 = vld [vmem:[%s4086 + $0xf4] sm:$0xf]
        %v4211 = vld [vmem:[%s4086 + $0xf8] sm:$0xf]
        %v4212 = vld [vmem:[%s4086 + $0xfc] sm:$0xf]
        %v4213 = vld [vmem:[%s4086 + $0x100] sm:$0xf]
        %v4214 = vld [vmem:[%s4086 + $0x104] sm:$0xf]
        %v4215 = vld [vmem:[%s4086 + $0x108] sm:$0xf]
        %v4216 = vld [vmem:[%s4086 + $0x10c] sm:$0xf]
        %v4217 = vld [vmem:[%s4086 + $0x110] sm:$0xf]
        %v4218 = vld [vmem:[%s4086 + $0x114] sm:$0xf]
        %v4219 = vld [vmem:[%s4086 + $0x118] sm:$0xf]
        %v4220 = vld [vmem:[%s4086 + $0x11c] sm:$0xf]
        %v4221 = vld [vmem:[%s4086 + $0x120] sm:$0xf]
        %v4222 = vld [vmem:[%s4086 + $0x124] sm:$0xf]
        %v4223 = vld [vmem:[%s4086 + $0x128] sm:$0xf]
        %v4224 = vld [vmem:[%s4086 + $0x12c] sm:$0xf]
        %v4225 = vld [vmem:[%s4086 + $0x130] sm:$0xf]
        %v4226 = vld [vmem:[%s4086 + $0x134] sm:$0xf]
        %v4227 = vld [vmem:[%s4086 + $0x138] sm:$0xf]
        %v4228 = vld [vmem:[%s4086 + $0x13c] sm:$0xf]
        %v4229 = vld [vmem:[%s4086 + $0x140] sm:$0xf]
        %v4230 = vld [vmem:[%s4086 + $0x144] sm:$0xf]
        %v4231 = vld [vmem:[%s4086 + $0x148] sm:$0xf]
        %v4232 = vld [vmem:[%s4086 + $0x14c] sm:$0xf]
        %v4233 = vld [vmem:[%s4086 + $0x150] sm:$0xf]
        %v4234 = vld [vmem:[%s4086 + $0x154] sm:$0xf]
        %v4235 = vld [vmem:[%s4086 + $0x158] sm:$0xf]
        %v4236 = vld [vmem:[%s4086 + $0x15c] sm:$0xf]
        %v4237 = vld [vmem:[%s4086 + $0x160] sm:$0xf]
        %v4238 = vld [vmem:[%s4086 + $0x164] sm:$0xf]
        %v4239 = vld [vmem:[%s4086 + $0x168] sm:$0xf]
        %v4240 = vld [vmem:[%s4086 + $0x16c] sm:$0xf]
        %v4241 = vld [vmem:[%s4086 + $0x170] sm:$0xf]
        %v4242 = vld [vmem:[%s4086 + $0x174] sm:$0xf]
        %v4243 = vld [vmem:[%s4086 + $0x178] sm:$0xf]
        %v4244 = vld [vmem:[%s4086 + $0x17c] sm:$0xf]
        %v4245 = vld [vmem:[%s4086 + $0x180] sm:$0xf]
        %v4246 = vld [vmem:[%s4086 + $0x184] sm:$0xf]
        %v4247 = vld [vmem:[%s4086 + $0x188] sm:$0xf]
        %v4248 = vld [vmem:[%s4086 + $0x18c] sm:$0xf]
        %v4249 = vld [vmem:[%s4086 + $0x190] sm:$0xf]
        %v4250 = vld [vmem:[%s4086 + $0x194] sm:$0xf]
        %v4251 = vld [vmem:[%s4086 + $0x198] sm:$0xf]
        %v4252 = vld [vmem:[%s4086 + $0x19c] sm:$0xf]
        %v4253 = vld [vmem:[%s4086 + $0x1a0] sm:$0xf]
        %v4254 = vld [vmem:[%s4086 + $0x1a4] sm:$0xf]
        %v4255 = vld [vmem:[%s4086 + $0x1a8] sm:$0xf]
        %v4256 = vld [vmem:[%s4086 + $0x1ac] sm:$0xf]
        %v4257 = vld [vmem:[%s4086 + $0x1b0] sm:$0xf]
        %v4258 = vld [vmem:[%s4086 + $0x1b4] sm:$0xf]
        %v4259 = vld [vmem:[%s4086 + $0x1b8] sm:$0xf]
        %v4260 = vld [vmem:[%s4086 + $0x1bc] sm:$0xf]
        %v4261 = vld [vmem:[%s4086 + $0x1c0] sm:$0xf]
        %v4262 = vld [vmem:[%s4086 + $0x1c4] sm:$0xf]
        %v4263 = vld [vmem:[%s4086 + $0x1c8] sm:$0xf]
        %v4264 = vld [vmem:[%s4086 + $0x1cc] sm:$0xf]
        %v4265 = vld [vmem:[%s4086 + $0x1d0] sm:$0xf]
        %v4266 = vld [vmem:[%s4086 + $0x1d4] sm:$0xf]
        %v4267 = vld [vmem:[%s4086 + $0x1d8] sm:$0xf]
        %v4268 = vld [vmem:[%s4086 + $0x1dc] sm:$0xf]
        %v4269 = vld [vmem:[%s4086 + $0x1e0] sm:$0xf]
        %v4270 = vld [vmem:[%s4086 + $0x1e4] sm:$0xf]
        %v4271 = vld [vmem:[%s4086 + $0x1e8] sm:$0xf]
        %v4272 = vld [vmem:[%s4086 + $0x1ec] sm:$0xf]
        %v4273 = vld [vmem:[%s4086 + $0x1f0] sm:$0xf]
        %v4274 = vld [vmem:[%s4086 + $0x1f4] sm:$0xf]
        %v4275 = vld [vmem:[%s4086 + $0x1f8] sm:$0xf]
        %v4276 = vld [vmem:[%s4086 + $0x1fc] sm:$0xf]
        %v4277 = vld [vmem:[%s4086 + $0x200] sm:$0xf]
        %v4278 = vld [vmem:[%s4086 + $0x204] sm:$0xf]
        %v4279 = vld [vmem:[%s4086 + $0x208] sm:$0xf]
        %v4280 = vld [vmem:[%s4086 + $0x20c] sm:$0xf]
        %v4281 = vld [vmem:[%s4086 + $0x210] sm:$0xf]
        %v4282 = vld [vmem:[%s4086 + $0x214] sm:$0xf]
        %v4283 = vld [vmem:[%s4086 + $0x218] sm:$0xf]
        %v4284 = vld [vmem:[%s4086 + $0x21c] sm:$0xf]
        %v4285 = vld [vmem:[%s4086 + $0x220] sm:$0xf]
        %v4286 = vld [vmem:[%s4086 + $0x224] sm:$0xf]
        %v4287 = vld [vmem:[%s4086 + $0x228] sm:$0xf]
        %v4288 = vld [vmem:[%s4086 + $0x22c] sm:$0xf]
        %v4289 = vld [vmem:[%s4086 + $0x230] sm:$0xf]
        %v4290 = vld [vmem:[%s4086 + $0x234] sm:$0xf]
        %v4291 = vld [vmem:[%s4086 + $0x238] sm:$0xf]
        %v4292 = vld [vmem:[%s4086 + $0x23c] sm:$0xf]
        %v4293 = vld [vmem:[%s4086 + $0x240] sm:$0xf]
        %v4294 = vld [vmem:[%s4086 + $0x244] sm:$0xf]
        %v4295 = vld [vmem:[%s4086 + $0x248] sm:$0xf]
        %v4296 = vld [vmem:[%s4086 + $0x24c] sm:$0xf]
        %v4297 = vld [vmem:[%s4086 + $0x250] sm:$0xf]
        %v4298 = vld [vmem:[%s4086 + $0x254] sm:$0xf]
        %v4299 = vld [vmem:[%s4086 + $0x258] sm:$0xf]
        %v4300 = vld [vmem:[%s4086 + $0x25c] sm:$0xf]
        %v4301 = vld [vmem:[%s4086 + $0x260] sm:$0xf]
        %v4302 = vld [vmem:[%s4086 + $0x264] sm:$0xf]
        %v4303 = vld [vmem:[%s4086 + $0x268] sm:$0xf]
        %v4304 = vld [vmem:[%s4086 + $0x26c] sm:$0xf]
        %v4305 = vld [vmem:[%s4086 + $0x270] sm:$0xf]
        %v4306 = vld [vmem:[%s4086 + $0x274] sm:$0xf]
        %v4307 = vld [vmem:[%s4086 + $0x278] sm:$0xf]
        %v4308 = vld [vmem:[%s4086 + $0x27c] sm:$0xf]
        %v4309 = vld [vmem:[%s4086 + $0x280] sm:$0xf]
        %v4310 = vld [vmem:[%s4086 + $0x284] sm:$0xf]
        %v4311 = vld [vmem:[%s4086 + $0x288] sm:$0xf]
        %v4312 = vld [vmem:[%s4086 + $0x28c] sm:$0xf]
        %v4313 = vld [vmem:[%s4086 + $0x290] sm:$0xf]
        %v4314 = vld [vmem:[%s4086 + $0x294] sm:$0xf]
        %v4315 = vld [vmem:[%s4086 + $0x298] sm:$0xf]
        %v4316 = vld [vmem:[%s4086 + $0x29c] sm:$0xf]
        %v4317 = vld [vmem:[%s4086 + $0x2a0] sm:$0xf]
        %v4318 = vld [vmem:[%s4086 + $0x2a4] sm:$0xf]
        %v4319 = vld [vmem:[%s4086 + $0x2a8] sm:$0xf]
        %v4320 = vld [vmem:[%s4086 + $0x2ac] sm:$0xf]
        %v4321 = vld [vmem:[%s4086 + $0x2b0] sm:$0xf]
        %v4322 = vld [vmem:[%s4086 + $0x2b4] sm:$0xf]
        %v4323 = vld [vmem:[%s4086 + $0x2b8] sm:$0xf]
        %v4324 = vld [vmem:[%s4086 + $0x2bc] sm:$0xf]
        %v4325 = vld [vmem:[%s4086 + $0x2c0] sm:$0xf]
        %v4326 = vld [vmem:[%s4086 + $0x2c4] sm:$0xf]
        %v4327 = vld [vmem:[%s4086 + $0x2c8] sm:$0xf]
        %v4328 = vld [vmem:[%s4086 + $0x2cc] sm:$0xf]
        %v4329 = vld [vmem:[%s4086 + $0x2d0] sm:$0xf]
        %v4330 = vld [vmem:[%s4086 + $0x2d4] sm:$0xf]
        %v4331 = vld [vmem:[%s4086 + $0x2d8] sm:$0xf]
        %v4332 = vld [vmem:[%s4086 + $0x2dc] sm:$0xf]
        %v4333 = vld [vmem:[%s4086 + $0x2e0] sm:$0xf]
        %v4334 = vld [vmem:[%s4086 + $0x2e4] sm:$0xf]
        %v4335 = vld [vmem:[%s4086 + $0x2e8] sm:$0xf]
        %v4336 = vld [vmem:[%s4086 + $0x2ec] sm:$0xf]
        %v4337 = vld [vmem:[%s4086 + $0x2f0] sm:$0xf]
        %v4338 = vld [vmem:[%s4086 + $0x2f4] sm:$0xf]
        %v4339 = vld [vmem:[%s4086 + $0x2f8] sm:$0xf]
        %v4340 = vld [vmem:[%s4086 + $0x2fc] sm:$0xf]
        %v4341 = vld [vmem:[%s4086 + $0x300] sm:$0xf]
        %v4342 = vld [vmem:[%s4086 + $0x304] sm:$0xf]
        %v4343 = vld [vmem:[%s4086 + $0x308] sm:$0xf]
        %v4344 = vld [vmem:[%s4086 + $0x30c] sm:$0xf]
        %v4345 = vld [vmem:[%s4086 + $0x310] sm:$0xf]
        %v4346 = vld [vmem:[%s4086 + $0x314] sm:$0xf]
        %v4347 = vld [vmem:[%s4086 + $0x318] sm:$0xf]
        %v4348 = vld [vmem:[%s4086 + $0x31c] sm:$0xf]
        %v4349 = vld [vmem:[%s4086 + $0x320] sm:$0xf]
        %v4350 = vld [vmem:[%s4086 + $0x324] sm:$0xf]
        %v4351 = vld [vmem:[%s4086 + $0x328] sm:$0xf]
        %v4352 = vld [vmem:[%s4086 + $0x32c] sm:$0xf]
        %v4353 = vld [vmem:[%s4086 + $0x330] sm:$0xf]
        %v4354 = vld [vmem:[%s4086 + $0x334] sm:$0xf]
        %v4355 = vld [vmem:[%s4086 + $0x338] sm:$0xf]
        %v4356 = vld [vmem:[%s4086 + $0x33c] sm:$0xf]
        %v4357 = vld [vmem:[%s4086 + $0x340] sm:$0xf]
        %v4358 = vld [vmem:[%s4086 + $0x344] sm:$0xf]
        %v4359 = vld [vmem:[%s4086 + $0x348] sm:$0xf]
        %v4360 = vld [vmem:[%s4086 + $0x34c] sm:$0xf]
        %v4361 = vld [vmem:[%s4086 + $0x350] sm:$0xf]
        %v4362 = vld [vmem:[%s4086 + $0x354] sm:$0xf]
        %v4363 = vld [vmem:[%s4086 + $0x358] sm:$0xf]
        %v4364 = vld [vmem:[%s4086 + $0x35c] sm:$0xf]
        %v4365 = vld [vmem:[%s4086 + $0x360] sm:$0xf]
        %v4366 = vld [vmem:[%s4086 + $0x364] sm:$0xf]
        %v4367 = vld [vmem:[%s4086 + $0x368] sm:$0xf]
        %v4368 = vld [vmem:[%s4086 + $0x36c] sm:$0xf]
        %v4369 = vld [vmem:[%s4086 + $0x370] sm:$0xf]
        %v4370 = vld [vmem:[%s4086 + $0x374] sm:$0xf]
        %v4371 = vld [vmem:[%s4086 + $0x378] sm:$0xf]
        %v4372 = vld [vmem:[%s4086 + $0x37c] sm:$0xf]
        %v4373 = vld [vmem:[%s4086 + $0x380] sm:$0xf]
        %v4374 = vld [vmem:[%s4086 + $0x384] sm:$0xf]
        %v4375 = vld [vmem:[%s4086 + $0x388] sm:$0xf]
        %v4376 = vld [vmem:[%s4086 + $0x38c] sm:$0xf]
        %v4377 = vld [vmem:[%s4086 + $0x390] sm:$0xf]
        %v4378 = vld [vmem:[%s4086 + $0x394] sm:$0xf]
        %v4379 = vld [vmem:[%s4086 + $0x398] sm:$0xf]
        %v4380 = vld [vmem:[%s4086 + $0x39c] sm:$0xf]
        %v4381 = vld [vmem:[%s4086 + $0x3a0] sm:$0xf]
        %v4382 = vld [vmem:[%s4086 + $0x3a4] sm:$0xf]
        %v4383 = vld [vmem:[%s4086 + $0x3a8] sm:$0xf]
        %v4384 = vld [vmem:[%s4086 + $0x3ac] sm:$0xf]
        %v4385 = vld [vmem:[%s4086 + $0x3b0] sm:$0xf]
        %v4386 = vld [vmem:[%s4086 + $0x3b4] sm:$0xf]
        %v4387 = vld [vmem:[%s4086 + $0x3b8] sm:$0xf]
        %v4388 = vld [vmem:[%s4086 + $0x3bc] sm:$0xf]
        %v4389 = vld [vmem:[%s4086 + $0x3c0] sm:$0xf]
        %v4390 = vld [vmem:[%s4086 + $0x3c4] sm:$0xf]
        %v4391 = vld [vmem:[%s4086 + $0x3c8] sm:$0xf]
        %v4392 = vld [vmem:[%s4086 + $0x3cc] sm:$0xf]
        %v4393 = vld [vmem:[%s4086 + $0x3d0] sm:$0xf]
        %v4394 = vld [vmem:[%s4086 + $0x3d4] sm:$0xf]
        %v4395 = vld [vmem:[%s4086 + $0x3d8] sm:$0xf]
        %v4396 = vld [vmem:[%s4086 + $0x3dc] sm:$0xf]
        %v4397 = vld [vmem:[%s4086 + $0x3e0] sm:$0xf]
        %v4398 = vld [vmem:[%s4086 + $0x3e4] sm:$0xf]
        %v4399 = vld [vmem:[%s4086 + $0x3e8] sm:$0xf]
        %v4400 = vld [vmem:[%s4086 + $0x3ec] sm:$0xf]
        %v4401 = vld [vmem:[%s4086 + $0x3f0] sm:$0xf]
        %v4402 = vld [vmem:[%s4086 + $0x3f4] sm:$0xf]
        %v4403 = vld [vmem:[%s4086 + $0x3f8] sm:$0xf]
        %v4404 = vld [vmem:[%s4086 + $0x3fc] sm:$0xf]
        %v4405 = vld [vmem:[%s4086 + $0x400] sm:$0xf]
        %v4406 = vld [vmem:[%s4086 + $0x404] sm:$0xf]
        %v4407 = vld [vmem:[%s4086 + $0x408] sm:$0xf]
        %v4408 = vld [vmem:[%s4086 + $0x40c] sm:$0xf]
        %v4409 = vld [vmem:[%s4086 + $0x410] sm:$0xf]
        %v4410 = vld [vmem:[%s4086 + $0x414] sm:$0xf]
        %v4411 = vld [vmem:[%s4086 + $0x418] sm:$0xf]
        %v4412 = vld [vmem:[%s4086 + $0x41c] sm:$0xf]
        %v4413 = vld [vmem:[%s4086 + $0x420] sm:$0xf]
        %v4414 = vld [vmem:[%s4086 + $0x424] sm:$0xf]
        %v4415 = vld [vmem:[%s4086 + $0x428] sm:$0xf]
        %v4416 = vld [vmem:[%s4086 + $0x42c] sm:$0xf]
        %v4417 = vld [vmem:[%s4086 + $0x430] sm:$0xf]
        %v4418 = vld [vmem:[%s4086 + $0x434] sm:$0xf]
        %v4419 = vld [vmem:[%s4086 + $0x438] sm:$0xf]
        %v4420 = vld [vmem:[%s4086 + $0x43c] sm:$0xf]
        %v4421 = vld [vmem:[%s4086 + $0x440] sm:$0xf]
        %v4422 = vld [vmem:[%s4086 + $0x444] sm:$0xf]
        %v4423 = vld [vmem:[%s4086 + $0x448] sm:$0xf]
        %v4424 = vld [vmem:[%s4086 + $0x44c] sm:$0xf]
        %v4425 = vld [vmem:[%s4086 + $0x450] sm:$0xf]
        %v4426 = vld [vmem:[%s4086 + $0x454] sm:$0xf]
        %v4427 = vld [vmem:[%s4086 + $0x458] sm:$0xf]
        %v4428 = vld [vmem:[%s4086 + $0x45c] sm:$0xf]
        %v4429 = vld [vmem:[%s4086 + $0x460] sm:$0xf]
        %v4430 = vld [vmem:[%s4086 + $0x464] sm:$0xf]
        %v4431 = vld [vmem:[%s4086 + $0x468] sm:$0xf]
        %v4432 = vld [vmem:[%s4086 + $0x46c] sm:$0xf]
        %v4433 = vld [vmem:[%s4086 + $0x470] sm:$0xf]
        %v4434 = vld [vmem:[%s4086 + $0x474] sm:$0xf]
        %v4435 = vld [vmem:[%s4086 + $0x478] sm:$0xf]
        %v4436 = vld [vmem:[%s4086 + $0x47c] sm:$0xf]
        %v4437 = vld [vmem:[%s4086 + $0x480] sm:$0xf]
        %v4438 = vld [vmem:[%s4086 + $0x484] sm:$0xf]
        %v4439 = vld [vmem:[%s4086 + $0x488] sm:$0xf]
        %v4440 = vld [vmem:[%s4086 + $0x48c] sm:$0xf]
        %v4441 = vld [vmem:[%s4086 + $0x490] sm:$0xf]
        %v4442 = vld [vmem:[%s4086 + $0x494] sm:$0xf]
        %v4443 = vld [vmem:[%s4086 + $0x498] sm:$0xf]
        %v4444 = vld [vmem:[%s4086 + $0x49c] sm:$0xf]
        %v4445 = vld [vmem:[%s4086 + $0x4a0] sm:$0xf]
        %v4446 = vld [vmem:[%s4086 + $0x4a4] sm:$0xf]
        %v4447 = vld [vmem:[%s4086 + $0x4a8] sm:$0xf]
        %v4448 = vld [vmem:[%s4086 + $0x4ac] sm:$0xf]
        %v4449 = vld [vmem:[%s4086 + $0x4b0] sm:$0xf]
        %v4450 = vld [vmem:[%s4086 + $0x4b4] sm:$0xf]
        %v4451 = vld [vmem:[%s4086 + $0x4b8] sm:$0xf]
        %v4452 = vld [vmem:[%s4086 + $0x4bc] sm:$0xf]
        %v4453 = vld [vmem:[%s4086 + $0x4c0] sm:$0xf]
        %v4454 = vld [vmem:[%s4086 + $0x4c4] sm:$0xf]
        %v4455 = vld [vmem:[%s4086 + $0x4c8] sm:$0xf]
        %v4456 = vld [vmem:[%s4086 + $0x4cc] sm:$0xf]
        %v4457 = vld [vmem:[%s4086 + $0x4d0] sm:$0xf]
        %v4458 = vld [vmem:[%s4086 + $0x4d4] sm:$0xf]
        %v4459 = vld [vmem:[%s4086 + $0x4d8] sm:$0xf]
        %v4460 = vld [vmem:[%s4086 + $0x4dc] sm:$0xf]
        %v4461 = vld [vmem:[%s4086 + $0x4e0] sm:$0xf]
        %v4462 = vld [vmem:[%s4086 + $0x4e4] sm:$0xf]
        %v4463 = vld [vmem:[%s4086 + $0x4e8] sm:$0xf]
        %v4464 = vld [vmem:[%s4086 + $0x4ec] sm:$0xf]
        %v4465 = vld [vmem:[%s4086 + $0x4f0] sm:$0xf]
        %v4466 = vld [vmem:[%s4086 + $0x4f4] sm:$0xf]
        %v4467 = vld [vmem:[%s4086 + $0x4f8] sm:$0xf]
        %v4468 = vld [vmem:[%s4086 + $0x4fc] sm:$0xf]
        %v4469 = vld [vmem:[%s4086 + $0x500] sm:$0xf]
        %v4470 = vld [vmem:[%s4086 + $0x504] sm:$0xf]
        %v4471 = vld [vmem:[%s4086 + $0x508] sm:$0xf]
        %v4472 = vld [vmem:[%s4086 + $0x50c] sm:$0xf]
        %v4473 = vld [vmem:[%s4086 + $0x510] sm:$0xf]
        %v4474 = vld [vmem:[%s4086 + $0x514] sm:$0xf]
        %v4475 = vld [vmem:[%s4086 + $0x518] sm:$0xf]
        %v4476 = vld [vmem:[%s4086 + $0x51c] sm:$0xf]
        %v4477 = vld [vmem:[%s4086 + $0x520] sm:$0xf]
        %v4478 = vld [vmem:[%s4086 + $0x524] sm:$0xf]
        %v4479 = vld [vmem:[%s4086 + $0x528] sm:$0xf]
        %v4480 = vld [vmem:[%s4086 + $0x52c] sm:$0xf]
        %v4481 = vld [vmem:[%s4086 + $0x530] sm:$0xf]
        %v4482 = vld [vmem:[%s4086 + $0x534] sm:$0xf]
        %v4483 = vld [vmem:[%s4086 + $0x538] sm:$0xf]
        %v4484 = vld [vmem:[%s4086 + $0x53c] sm:$0xf]
        %v4485 = vld [vmem:[%s4086 + $0x540] sm:$0xf]
        %v4486 = vld [vmem:[%s4086 + $0x544] sm:$0xf]
        %v4487 = vld [vmem:[%s4086 + $0x548] sm:$0xf]
        %v4488 = vld [vmem:[%s4086 + $0x54c] sm:$0xf]
        %v4489 = vld [vmem:[%s4086 + $0x550] sm:$0xf]
        %v4490 = vld [vmem:[%s4086 + $0x554] sm:$0xf]
        %v4491 = vld [vmem:[%s4086 + $0x558] sm:$0xf]
        %v4492 = vld [vmem:[%s4086 + $0x55c] sm:$0xf]
        %v4493 = vld [vmem:[%s4086 + $0x560] sm:$0xf]
        %v4494 = vld [vmem:[%s4086 + $0x564] sm:$0xf]
        %v4495 = vld [vmem:[%s4086 + $0x568] sm:$0xf]
        %v4496 = vld [vmem:[%s4086 + $0x56c] sm:$0xf]
        %v4497 = vld [vmem:[%s4086 + $0x570] sm:$0xf]
        %v4498 = vld [vmem:[%s4086 + $0x574] sm:$0xf]
        %v4499 = vld [vmem:[%s4086 + $0x578] sm:$0xf]
        %v4500 = vld [vmem:[%s4086 + $0x57c] sm:$0xf]
        %v4501 = vld [vmem:[%s4086 + $0x580] sm:$0xf]
        %v4502 = vld [vmem:[%s4086 + $0x584] sm:$0xf]
        %v4503 = vld [vmem:[%s4086 + $0x588] sm:$0xf]
        %v4504 = vld [vmem:[%s4086 + $0x58c] sm:$0xf]
        %v4505 = vld [vmem:[%s4086 + $0x590] sm:$0xf]
        %v4506 = vld [vmem:[%s4086 + $0x594] sm:$0xf]
        %v4507 = vld [vmem:[%s4086 + $0x598] sm:$0xf]
        %v4508 = vld [vmem:[%s4086 + $0x59c] sm:$0xf]
        %v4509 = vld [vmem:[%s4086 + $0x5a0] sm:$0xf]
        %v4510 = vld [vmem:[%s4086 + $0x5a4] sm:$0xf]
        %v4511 = vld [vmem:[%s4086 + $0x5a8] sm:$0xf]
        %v4512 = vld [vmem:[%s4086 + $0x5ac] sm:$0xf]
        %v4513 = vld [vmem:[%s4086 + $0x5b0] sm:$0xf]
        %v4514 = vld [vmem:[%s4086 + $0x5b4] sm:$0xf]
        %v4515 = vld [vmem:[%s4086 + $0x5b8] sm:$0xf]
        %v4516 = vld [vmem:[%s4086 + $0x5bc] sm:$0xf]
        %v4517 = vld [vmem:[%s4086 + $0x5c0] sm:$0xf]
        %v4518 = vld [vmem:[%s4086 + $0x5c4] sm:$0xf]
        %v4519 = vld [vmem:[%s4086 + $0x5c8] sm:$0xf]
        %v4520 = vld [vmem:[%s4086 + $0x5cc] sm:$0xf]
        %v4521 = vld [vmem:[%s4086 + $0x5d0] sm:$0xf]
        %v4522 = vld [vmem:[%s4086 + $0x5d4] sm:$0xf]
        %v4523 = vld [vmem:[%s4086 + $0x5d8] sm:$0xf]
        %v4524 = vld [vmem:[%s4086 + $0x5dc] sm:$0xf]
        %v4525 = vld [vmem:[%s4086 + $0x5e0] sm:$0xf]
        %v4526 = vld [vmem:[%s4086 + $0x5e4] sm:$0xf]
        %v4527 = vld [vmem:[%s4086 + $0x5e8] sm:$0xf]
        %v4528 = vld [vmem:[%s4086 + $0x5ec] sm:$0xf]
        %v4529 = vld [vmem:[%s4086 + $0x5f0] sm:$0xf]
        %v4530 = vld [vmem:[%s4086 + $0x5f4] sm:$0xf]
        %v4531 = vld [vmem:[%s4086 + $0x5f8] sm:$0xf]
        %v4532 = vld [vmem:[%s4086 + $0x5fc] sm:$0xf]
        %v4533 = vld [vmem:[%s4086 + $0x600] sm:$0xf]
        %v4534 = vld [vmem:[%s4086 + $0x604] sm:$0xf]
        %v4535 = vld [vmem:[%s4086 + $0x608] sm:$0xf]
        %v4536 = vld [vmem:[%s4086 + $0x60c] sm:$0xf]
        %v4537 = vld [vmem:[%s4086 + $0x610] sm:$0xf]
        %v4538 = vld [vmem:[%s4086 + $0x614] sm:$0xf]
        %v4539 = vld [vmem:[%s4086 + $0x618] sm:$0xf]
        %v4540 = vld [vmem:[%s4086 + $0x61c] sm:$0xf]
        %v4541 = vld [vmem:[%s4086 + $0x620] sm:$0xf]
        %v4542 = vld [vmem:[%s4086 + $0x624] sm:$0xf]
        %v4543 = vld [vmem:[%s4086 + $0x628] sm:$0xf]
        %v4544 = vld [vmem:[%s4086 + $0x62c] sm:$0xf]
        %v4545 = vld [vmem:[%s4086 + $0x630] sm:$0xf]
        %v4546 = vld [vmem:[%s4086 + $0x634] sm:$0xf]
        %v4547 = vld [vmem:[%s4086 + $0x638] sm:$0xf]
        %v4548 = vld [vmem:[%s4086 + $0x63c] sm:$0xf]
        %v4549 = vld [vmem:[%s4086 + $0x640] sm:$0xf]
        %v4550 = vld [vmem:[%s4086 + $0x644] sm:$0xf]
        %v4551 = vld [vmem:[%s4086 + $0x648] sm:$0xf]
        %v4552 = vld [vmem:[%s4086 + $0x64c] sm:$0xf]
        %v4553 = vld [vmem:[%s4086 + $0x650] sm:$0xf]
        %v4554 = vld [vmem:[%s4086 + $0x654] sm:$0xf]
        %v4555 = vld [vmem:[%s4086 + $0x658] sm:$0xf]
        %v4556 = vld [vmem:[%s4086 + $0x65c] sm:$0xf]
        %v4557 = vld [vmem:[%s4086 + $0x660] sm:$0xf]
        %v4558 = vld [vmem:[%s4086 + $0x664] sm:$0xf]
        %v4559 = vld [vmem:[%s4086 + $0x668] sm:$0xf]
        %v4560 = vld [vmem:[%s4086 + $0x66c] sm:$0xf]
        %v4561 = vld [vmem:[%s4086 + $0x670] sm:$0xf]
        %v4562 = vld [vmem:[%s4086 + $0x674] sm:$0xf]
        %v4563 = vld [vmem:[%s4086 + $0x678] sm:$0xf]
        %v4564 = vld [vmem:[%s4086 + $0x67c] sm:$0xf]
        %v4565 = vld [vmem:[%s4086 + $0x680] sm:$0xf]
        %v4566 = vld [vmem:[%s4086 + $0x684] sm:$0xf]
        %v4567 = vld [vmem:[%s4086 + $0x688] sm:$0xf]
        %v4568 = vld [vmem:[%s4086 + $0x68c] sm:$0xf]
        %v4569 = vld [vmem:[%s4086 + $0x690] sm:$0xf]
        %v4570 = vld [vmem:[%s4086 + $0x694] sm:$0xf]
        %v4571 = vld [vmem:[%s4086 + $0x698] sm:$0xf]
        %v4572 = vld [vmem:[%s4086 + $0x69c] sm:$0xf]
        %v4573 = vld [vmem:[%s4086 + $0x6a0] sm:$0xf]
        %v4574 = vld [vmem:[%s4086 + $0x6a4] sm:$0xf]
        %v4575 = vld [vmem:[%s4086 + $0x6a8] sm:$0xf]
        %v4576 = vld [vmem:[%s4086 + $0x6ac] sm:$0xf]
        %v4577 = vld [vmem:[%s4086 + $0x6b0] sm:$0xf]
        %v4578 = vld [vmem:[%s4086 + $0x6b4] sm:$0xf]
        %v4579 = vld [vmem:[%s4086 + $0x6b8] sm:$0xf]
        %v4580 = vld [vmem:[%s4086 + $0x6bc] sm:$0xf]
        %v4581 = vld [vmem:[%s4086 + $0x6c0] sm:$0xf]
        %v4582 = vld [vmem:[%s4086 + $0x6c4] sm:$0xf]
        %v4583 = vld [vmem:[%s4086 + $0x6c8] sm:$0xf]
        %v4584 = vld [vmem:[%s4086 + $0x6cc] sm:$0xf]
        %v4585 = vld [vmem:[%s4086 + $0x6d0] sm:$0xf]
        %v4586 = vld [vmem:[%s4086 + $0x6d4] sm:$0xf]
        %v4587 = vld [vmem:[%s4086 + $0x6d8] sm:$0xf]
        %v4588 = vld [vmem:[%s4086 + $0x6dc] sm:$0xf]
        %v4589 = vld [vmem:[%s4086 + $0x6e0] sm:$0xf]
        %v4590 = vld [vmem:[%s4086 + $0x6e4] sm:$0xf]
        %v4591 = vld [vmem:[%s4086 + $0x6e8] sm:$0xf]
        %v4592 = vld [vmem:[%s4086 + $0x6ec] sm:$0xf]
        %v4593 = vld [vmem:[%s4086 + $0x6f0] sm:$0xf]
        %v4594 = vld [vmem:[%s4086 + $0x6f4] sm:$0xf]
        %v4595 = vld [vmem:[%s4086 + $0x6f8] sm:$0xf]
        %v4596 = vld [vmem:[%s4086 + $0x6fc] sm:$0xf]
        %v4597 = vld [vmem:[%s4086 + $0x700] sm:$0xf]
        %v4598 = vld [vmem:[%s4086 + $0x704] sm:$0xf]
        %v4599 = vld [vmem:[%s4086 + $0x708] sm:$0xf]
        %v4600 = vld [vmem:[%s4086 + $0x70c] sm:$0xf]
        %v4601 = vld [vmem:[%s4086 + $0x710] sm:$0xf]
        %v4602 = vld [vmem:[%s4086 + $0x714] sm:$0xf]
        %v4603 = vld [vmem:[%s4086 + $0x718] sm:$0xf]
        %v4604 = vld [vmem:[%s4086 + $0x71c] sm:$0xf]
        %v4605 = vld [vmem:[%s4086 + $0x720] sm:$0xf]
        %v4606 = vld [vmem:[%s4086 + $0x724] sm:$0xf]
        %v4607 = vld [vmem:[%s4086 + $0x728] sm:$0xf]
        %v4608 = vld [vmem:[%s4086 + $0x72c] sm:$0xf]
        %v4609 = vld [vmem:[%s4086 + $0x730] sm:$0xf]
        %v4610 = vld [vmem:[%s4086 + $0x734] sm:$0xf]
        %v4611 = vld [vmem:[%s4086 + $0x738] sm:$0xf]
        %v4612 = vld [vmem:[%s4086 + $0x73c] sm:$0xf]
        %v4613 = vld [vmem:[%s4086 + $0x740] sm:$0xf]
        %v4614 = vld [vmem:[%s4086 + $0x744] sm:$0xf]
        %v4615 = vld [vmem:[%s4086 + $0x748] sm:$0xf]
        %v4616 = vld [vmem:[%s4086 + $0x74c] sm:$0xf]
        %v4617 = vld [vmem:[%s4086 + $0x750] sm:$0xf]
        %v4618 = vld [vmem:[%s4086 + $0x754] sm:$0xf]
        %v4619 = vld [vmem:[%s4086 + $0x758] sm:$0xf]
        %v4620 = vld [vmem:[%s4086 + $0x75c] sm:$0xf]
        %v4621 = vld [vmem:[%s4086 + $0x760] sm:$0xf]
        %v4622 = vld [vmem:[%s4086 + $0x764] sm:$0xf]
        %v4623 = vld [vmem:[%s4086 + $0x768] sm:$0xf]
        %v4624 = vld [vmem:[%s4086 + $0x76c] sm:$0xf]
        %v4625 = vld [vmem:[%s4086 + $0x770] sm:$0xf]
        %v4626 = vld [vmem:[%s4086 + $0x774] sm:$0xf]
        %v4627 = vld [vmem:[%s4086 + $0x778] sm:$0xf]
        %v4628 = vld [vmem:[%s4086 + $0x77c] sm:$0xf]
        %v4644 = vunpack.c.l.b16 %v4134
        %v4645 = vunpack.c.h.b16 %v4134
        %v4646 = vunpack.c.l.b16 %v4135
        %v4647 = vunpack.c.h.b16 %v4135
        %v4648 = vunpack.c.l.b16 %v4136
        %v4649 = vunpack.c.h.b16 %v4136
        %v4650 = vunpack.c.l.b16 %v4137
        %v4651 = vunpack.c.h.b16 %v4137
        %v4652 = vunpack.c.l.b16 %v4138
        %v4653 = vunpack.c.h.b16 %v4138
        %v4654 = vunpack.c.l.b16 %v4139
        %v4655 = vunpack.c.h.b16 %v4139
        %v4656 = vunpack.c.l.b16 %v4140
        %v4657 = vunpack.c.h.b16 %v4140
        %v4658 = vunpack.c.l.b16 %v4141
        %v4659 = vunpack.c.h.b16 %v4141
        %v4660 = vunpack.c.l.b16 %v4142
        %v4661 = vunpack.c.h.b16 %v4142
        %v4662 = vunpack.c.l.b16 %v4143
        %v4663 = vunpack.c.h.b16 %v4143
        %v4664 = vunpack.c.l.b16 %v4144
        %v4665 = vunpack.c.h.b16 %v4144
        %v4666 = vunpack.c.l.b16 %v4145
        %v4667 = vunpack.c.h.b16 %v4145
        %v4668 = vunpack.c.l.b16 %v4146
        %v4669 = vunpack.c.h.b16 %v4146
        %v4670 = vunpack.c.l.b16 %v4147
        %v4671 = vunpack.c.h.b16 %v4147
        %v4672 = vunpack.c.l.b16 %v4148
        %v4673 = vunpack.c.h.b16 %v4148
        %v4674 = vpack.c.b16 %v4644, %v4644
        %v4675 = vpack.c.b16 %v4645, %v4645
        %v4676 = vpack.c.b16 %v4646, %v4646
        %v4677 = vpack.c.b16 %v4647, %v4647
        %v4678 = vpack.c.b16 %v4648, %v4648
        %v4679 = vpack.c.b16 %v4649, %v4649
        %v4680 = vpack.c.b16 %v4650, %v4650
        %v4681 = vpack.c.b16 %v4651, %v4651
        %v4682 = vpack.c.b16 %v4652, %v4652
        %v4683 = vpack.c.b16 %v4653, %v4653
        %v4684 = vpack.c.b16 %v4654, %v4654
        %v4685 = vpack.c.b16 %v4655, %v4655
        %v4686 = vpack.c.b16 %v4656, %v4656
        %v4687 = vpack.c.b16 %v4657, %v4657
        %v4688 = vpack.c.b16 %v4658, %v4658
        %v4689 = vpack.c.b16 %v4659, %v4659
        %v4690 = vpack.c.b16 %v4660, %v4660
        %v4691 = vpack.c.b16 %v4661, %v4661
        %v4692 = vpack.c.b16 %v4662, %v4662
        %v4693 = vpack.c.b16 %v4663, %v4663
        %v4694 = vpack.c.b16 %v4664, %v4664
        %v4695 = vpack.c.b16 %v4665, %v4665
        %v4696 = vpack.c.b16 %v4666, %v4666
        %v4697 = vpack.c.b16 %v4667, %v4667
        %v4698 = vpack.c.b16 %v4668, %v4668
        %v4699 = vpack.c.b16 %v4669, %v4669
        %v4700 = vpack.c.b16 %v4670, %v4670
        %v4701 = vpack.c.b16 %v4671, %v4671
        %v4702 = vpack.c.b16 %v4672, %v4672
        %v4703 = vpack.c.b16 %v4673, %v4673
        %v5214 = vunpack.c.l.b16 %v4149
        %v5215 = vunpack.c.l.b16 %v4150
        %v5216 = vunpack.c.l.b16 %v4151
        %v5217 = vunpack.c.l.b16 %v4152
        %v5218 = vunpack.c.l.b16 %v4153
        %v5219 = vunpack.c.l.b16 %v4154
        %v5220 = vunpack.c.l.b16 %v4155
        %v5221 = vunpack.c.l.b16 %v4156
        %v5222 = vunpack.c.l.b16 %v4157
        %v5223 = vunpack.c.l.b16 %v4158
        %v5224 = vunpack.c.l.b16 %v4159
        %v5225 = vunpack.c.l.b16 %v4160
        %v5226 = vunpack.c.l.b16 %v4161
        %v5227 = vunpack.c.l.b16 %v4162
        %v5228 = vunpack.c.l.b16 %v4163
        %v5229 = vunpack.c.l.b16 %v4164
        %v5230 = vunpack.c.l.b16 %v4165
        %v5231 = vunpack.c.l.b16 %v4166
        %v5232 = vunpack.c.l.b16 %v4167
        %v5233 = vunpack.c.l.b16 %v4168
        %v5234 = vunpack.c.l.b16 %v4169
        %v5235 = vunpack.c.l.b16 %v4170
        %v5236 = vunpack.c.l.b16 %v4171
        %v5237 = vunpack.c.l.b16 %v4172
        %v5238 = vunpack.c.l.b16 %v4173
        %v5239 = vunpack.c.l.b16 %v4174
        %v5240 = vunpack.c.l.b16 %v4175
        %v5241 = vunpack.c.l.b16 %v4176
        %v5242 = vunpack.c.l.b16 %v4177
        %v5243 = vunpack.c.l.b16 %v4178
        %v5244 = vunpack.c.l.b16 %v4179
        %v5245 = vunpack.c.l.b16 %v4180
        %v5246 = vunpack.c.l.b16 %v4181
        %v5247 = vunpack.c.l.b16 %v4182
        %v5248 = vunpack.c.l.b16 %v4183
        %v5249 = vunpack.c.l.b16 %v4184
        %v5250 = vunpack.c.l.b16 %v4185
        %v5251 = vunpack.c.l.b16 %v4186
        %v5252 = vunpack.c.l.b16 %v4187
        %v5253 = vunpack.c.l.b16 %v4188
        %v5254 = vunpack.c.l.b16 %v4189
        %v5255 = vunpack.c.l.b16 %v4190
        %v5256 = vunpack.c.l.b16 %v4191
        %v5257 = vunpack.c.l.b16 %v4192
        %v5258 = vunpack.c.l.b16 %v4193
        %v5259 = vunpack.c.l.b16 %v4194
        %v5260 = vunpack.c.l.b16 %v4195
        %v5261 = vunpack.c.l.b16 %v4196
        %v5262 = vunpack.c.l.b16 %v4197
        %v5263 = vunpack.c.l.b16 %v4198
        %v5264 = vunpack.c.l.b16 %v4199
        %v5265 = vunpack.c.l.b16 %v4200
        %v5266 = vunpack.c.l.b16 %v4201
        %v5267 = vunpack.c.l.b16 %v4202
        %v5268 = vunpack.c.l.b16 %v4203
        %v5269 = vunpack.c.l.b16 %v4204
        %v5270 = vunpack.c.l.b16 %v4205
        %v5271 = vunpack.c.l.b16 %v4206
        %v5272 = vunpack.c.l.b16 %v4207
        %v5273 = vunpack.c.l.b16 %v4208
        %v5274 = vunpack.c.l.b16 %v4209
        %v5275 = vunpack.c.l.b16 %v4210
        %v5276 = vunpack.c.l.b16 %v4211
        %v5277 = vunpack.c.l.b16 %v4212
        %v5278 = vunpack.c.l.b16 %v4213
        %v5279 = vunpack.c.l.b16 %v4214
        %v5280 = vunpack.c.l.b16 %v4215
        %v5281 = vunpack.c.l.b16 %v4216
        %v5282 = vunpack.c.l.b16 %v4217
        %v5283 = vunpack.c.l.b16 %v4218
        %v5284 = vunpack.c.l.b16 %v4219
        %v5285 = vunpack.c.l.b16 %v4220
        %v5286 = vunpack.c.l.b16 %v4221
        %v5287 = vunpack.c.l.b16 %v4222
        %v5288 = vunpack.c.l.b16 %v4223
        %v5289 = vunpack.c.l.b16 %v4224
        %v5290 = vunpack.c.l.b16 %v4225
        %v5291 = vunpack.c.l.b16 %v4226
        %v5292 = vunpack.c.l.b16 %v4227
        %v5293 = vunpack.c.l.b16 %v4228
        %v5294 = vunpack.c.l.b16 %v4229
        %v5295 = vunpack.c.l.b16 %v4230
        %v5296 = vunpack.c.l.b16 %v4231
        %v5297 = vunpack.c.l.b16 %v4232
        %v5298 = vunpack.c.l.b16 %v4233
        %v5299 = vunpack.c.l.b16 %v4234
        %v5300 = vunpack.c.l.b16 %v4235
        %v5301 = vunpack.c.l.b16 %v4236
        %v5302 = vunpack.c.l.b16 %v4237
        %v5303 = vunpack.c.l.b16 %v4238
        %v5304 = vunpack.c.l.b16 %v4239
        %v5305 = vunpack.c.l.b16 %v4240
        %v5306 = vunpack.c.l.b16 %v4241
        %v5307 = vunpack.c.l.b16 %v4242
        %v5308 = vunpack.c.l.b16 %v4243
        %v5309 = vunpack.c.l.b16 %v4244
        %v5310 = vunpack.c.l.b16 %v4245
        %v5311 = vunpack.c.l.b16 %v4246
        %v5312 = vunpack.c.l.b16 %v4247
        %v5313 = vunpack.c.l.b16 %v4248
        %v5314 = vunpack.c.l.b16 %v4249
        %v5315 = vunpack.c.l.b16 %v4250
        %v5316 = vunpack.c.l.b16 %v4251
        %v5317 = vunpack.c.l.b16 %v4252
        %v5318 = vunpack.c.l.b16 %v4253
        %v5319 = vunpack.c.l.b16 %v4254
        %v5320 = vunpack.c.l.b16 %v4255
        %v5321 = vunpack.c.l.b16 %v4256
        %v5322 = vunpack.c.l.b16 %v4257
        %v5323 = vunpack.c.l.b16 %v4258
        %v5324 = vunpack.c.l.b16 %v4259
        %v5325 = vunpack.c.l.b16 %v4260
        %v5326 = vunpack.c.l.b16 %v4261
        %v5327 = vunpack.c.l.b16 %v4262
        %v5328 = vunpack.c.l.b16 %v4263
        %v5329 = vunpack.c.l.b16 %v4264
        %v5330 = vunpack.c.l.b16 %v4265
        %v5331 = vunpack.c.l.b16 %v4266
        %v5332 = vunpack.c.l.b16 %v4267
        %v5333 = vunpack.c.l.b16 %v4268
        %v5334 = vunpack.c.l.b16 %v4269
        %v5335 = vunpack.c.l.b16 %v4270
        %v5336 = vunpack.c.l.b16 %v4271
        %v5337 = vunpack.c.l.b16 %v4272
        %v5338 = vunpack.c.l.b16 %v4273
        %v5339 = vunpack.c.l.b16 %v4274
        %v5340 = vunpack.c.l.b16 %v4275
        %v5341 = vunpack.c.l.b16 %v4276
        %v5342 = vunpack.c.l.b16 %v4277
        %v5343 = vunpack.c.l.b16 %v4278
        %v5344 = vunpack.c.l.b16 %v4279
        %v5345 = vunpack.c.l.b16 %v4280
        %v5346 = vunpack.c.l.b16 %v4281
        %v5347 = vunpack.c.l.b16 %v4282
        %v5348 = vunpack.c.l.b16 %v4283
        %v5349 = vunpack.c.l.b16 %v4284
        %v5350 = vunpack.c.l.b16 %v4285
        %v5351 = vunpack.c.l.b16 %v4286
        %v5352 = vunpack.c.l.b16 %v4287
        %v5353 = vunpack.c.l.b16 %v4288
        %v5354 = vunpack.c.l.b16 %v4289
        %v5355 = vunpack.c.l.b16 %v4290
        %v5356 = vunpack.c.l.b16 %v4291
        %v5357 = vunpack.c.l.b16 %v4292
        %v5358 = vunpack.c.l.b16 %v4293
        %v5359 = vunpack.c.l.b16 %v4294
        %v5360 = vunpack.c.l.b16 %v4295
        %v5361 = vunpack.c.l.b16 %v4296
        %v5362 = vunpack.c.l.b16 %v4297
        %v5363 = vunpack.c.l.b16 %v4298
        %v5364 = vunpack.c.l.b16 %v4299
        %v5365 = vunpack.c.l.b16 %v4300
        %v5366 = vunpack.c.l.b16 %v4301
        %v5367 = vunpack.c.l.b16 %v4302
        %v5368 = vunpack.c.l.b16 %v4303
        %v5369 = vunpack.c.l.b16 %v4304
        %v5370 = vunpack.c.l.b16 %v4305
        %v5371 = vunpack.c.l.b16 %v4306
        %v5372 = vunpack.c.l.b16 %v4307
        %v5373 = vunpack.c.l.b16 %v4308
        %v5374 = vunpack.c.l.b16 %v4309
        %v5375 = vunpack.c.l.b16 %v4310
        %v5376 = vunpack.c.l.b16 %v4311
        %v5377 = vunpack.c.l.b16 %v4312
        %v5378 = vunpack.c.l.b16 %v4313
        %v5379 = vunpack.c.l.b16 %v4314
        %v5380 = vunpack.c.l.b16 %v4315
        %v5381 = vunpack.c.l.b16 %v4316
        %v5382 = vunpack.c.l.b16 %v4317
        %v5383 = vunpack.c.l.b16 %v4318
        %v5384 = vunpack.c.l.b16 %v4319
        %v5385 = vunpack.c.l.b16 %v4320
        %v5386 = vunpack.c.l.b16 %v4321
        %v5387 = vunpack.c.l.b16 %v4322
        %v5388 = vunpack.c.l.b16 %v4323
        %v5389 = vunpack.c.l.b16 %v4324
        %v5390 = vunpack.c.l.b16 %v4325
        %v5391 = vunpack.c.l.b16 %v4326
        %v5392 = vunpack.c.l.b16 %v4327
        %v5393 = vunpack.c.l.b16 %v4328
        %v5394 = vunpack.c.l.b16 %v4329
        %v5395 = vunpack.c.l.b16 %v4330
        %v5396 = vunpack.c.l.b16 %v4331
        %v5397 = vunpack.c.l.b16 %v4332
        %v5398 = vunpack.c.l.b16 %v4333
        %v5399 = vunpack.c.l.b16 %v4334
        %v5400 = vunpack.c.l.b16 %v4335
        %v5401 = vunpack.c.l.b16 %v4336
        %v5402 = vunpack.c.l.b16 %v4337
        %v5403 = vunpack.c.l.b16 %v4338
        %v5404 = vunpack.c.l.b16 %v4339
        %v5405 = vunpack.c.l.b16 %v4340
        %v5406 = vunpack.c.l.b16 %v4341
        %v5407 = vunpack.c.l.b16 %v4342
        %v5408 = vunpack.c.l.b16 %v4343
        %v5409 = vunpack.c.l.b16 %v4344
        %v5410 = vunpack.c.l.b16 %v4345
        %v5411 = vunpack.c.l.b16 %v4346
        %v5412 = vunpack.c.l.b16 %v4347
        %v5413 = vunpack.c.l.b16 %v4348
        %v5414 = vunpack.c.l.b16 %v4349
        %v5415 = vunpack.c.l.b16 %v4350
        %v5416 = vunpack.c.l.b16 %v4351
        %v5417 = vunpack.c.l.b16 %v4352
        %v5418 = vunpack.c.l.b16 %v4353
        %v5419 = vunpack.c.l.b16 %v4354
        %v5420 = vunpack.c.l.b16 %v4355
        %v5421 = vunpack.c.l.b16 %v4356
        %v5422 = vunpack.c.l.b16 %v4357
        %v5423 = vunpack.c.l.b16 %v4358
        %v5424 = vunpack.c.l.b16 %v4359
        %v5425 = vunpack.c.l.b16 %v4360
        %v5426 = vunpack.c.l.b16 %v4361
        %v5427 = vunpack.c.l.b16 %v4362
        %v5428 = vunpack.c.l.b16 %v4363
        %v5429 = vunpack.c.l.b16 %v4364
        %v5430 = vunpack.c.l.b16 %v4365
        %v5431 = vunpack.c.l.b16 %v4366
        %v5432 = vunpack.c.l.b16 %v4367
        %v5433 = vunpack.c.l.b16 %v4368
        %v5434 = vunpack.c.l.b16 %v4369
        %v5435 = vunpack.c.l.b16 %v4370
        %v5436 = vunpack.c.l.b16 %v4371
        %v5437 = vunpack.c.l.b16 %v4372
        %v5438 = vunpack.c.l.b16 %v4373
        %v5439 = vunpack.c.l.b16 %v4374
        %v5440 = vunpack.c.l.b16 %v4375
        %v5441 = vunpack.c.l.b16 %v4376
        %v5442 = vunpack.c.l.b16 %v4377
        %v5443 = vunpack.c.l.b16 %v4378
        %v5444 = vunpack.c.l.b16 %v4379
        %v5445 = vunpack.c.l.b16 %v4380
        %v5446 = vunpack.c.l.b16 %v4381
        %v5447 = vunpack.c.l.b16 %v4382
        %v5448 = vunpack.c.l.b16 %v4383
        %v5449 = vunpack.c.l.b16 %v4384
        %v5450 = vunpack.c.l.b16 %v4385
        %v5451 = vunpack.c.l.b16 %v4386
        %v5452 = vunpack.c.l.b16 %v4387
        %v5453 = vunpack.c.l.b16 %v4388
        %v5454 = vunpack.c.l.b16 %v4389
        %v5455 = vunpack.c.l.b16 %v4390
        %v5456 = vunpack.c.l.b16 %v4391
        %v5457 = vunpack.c.l.b16 %v4392
        %v5458 = vunpack.c.l.b16 %v4393
        %v5459 = vunpack.c.l.b16 %v4394
        %v5460 = vunpack.c.l.b16 %v4395
        %v5461 = vunpack.c.l.b16 %v4396
        %v5462 = vunpack.c.l.b16 %v4397
        %v5463 = vunpack.c.l.b16 %v4398
        %v5464 = vunpack.c.l.b16 %v4399
        %v5465 = vunpack.c.l.b16 %v4400
        %v5466 = vunpack.c.l.b16 %v4401
        %v5467 = vunpack.c.l.b16 %v4402
        %v5468 = vunpack.c.l.b16 %v4403
        %v5469 = vunpack.c.l.b16 %v4404
        %v5470 = vunpack.c.l.b16 %v4405
        %v5471 = vunpack.c.l.b16 %v4406
        %v5472 = vunpack.c.l.b16 %v4407
        %v5473 = vunpack.c.l.b16 %v4408
        %v5474 = vunpack.c.l.b16 %v4409
        %v5475 = vunpack.c.l.b16 %v4410
        %v5476 = vunpack.c.l.b16 %v4411
        %v5477 = vunpack.c.l.b16 %v4412
        %v5478 = vunpack.c.l.b16 %v4413
        %v5479 = vunpack.c.l.b16 %v4414
        %v5480 = vunpack.c.l.b16 %v4415
        %v5481 = vunpack.c.l.b16 %v4416
        %v5482 = vunpack.c.l.b16 %v4417
        %v5483 = vunpack.c.l.b16 %v4418
        %v5484 = vunpack.c.l.b16 %v4419
        %v5485 = vunpack.c.l.b16 %v4420
        %v5486 = vunpack.c.l.b16 %v4421
        %v5487 = vunpack.c.l.b16 %v4422
        %v5488 = vunpack.c.l.b16 %v4423
        %v5489 = vunpack.c.l.b16 %v4424
        %v5490 = vunpack.c.l.b16 %v4425
        %v5491 = vunpack.c.l.b16 %v4426
        %v5492 = vunpack.c.l.b16 %v4427
        %v5493 = vunpack.c.l.b16 %v4428
        %v5494 = vunpack.c.l.b16 %v4429
        %v5495 = vunpack.c.l.b16 %v4430
        %v5496 = vunpack.c.l.b16 %v4431
        %v5497 = vunpack.c.l.b16 %v4432
        %v5498 = vunpack.c.l.b16 %v4433
        %v5499 = vunpack.c.l.b16 %v4434
        %v5500 = vunpack.c.l.b16 %v4435
        %v5501 = vunpack.c.l.b16 %v4436
        %v5502 = vunpack.c.l.b16 %v4437
        %v5503 = vunpack.c.l.b16 %v4438
        %v5504 = vunpack.c.l.b16 %v4439
        %v5505 = vunpack.c.l.b16 %v4440
        %v5506 = vunpack.c.l.b16 %v4441
        %v5507 = vunpack.c.l.b16 %v4442
        %v5508 = vunpack.c.l.b16 %v4443
        %v5509 = vunpack.c.l.b16 %v4444
        %v5510 = vunpack.c.l.b16 %v4445
        %v5511 = vunpack.c.l.b16 %v4446
        %v5512 = vunpack.c.l.b16 %v4447
        %v5513 = vunpack.c.l.b16 %v4448
        %v5514 = vunpack.c.l.b16 %v4449
        %v5515 = vunpack.c.l.b16 %v4450
        %v5516 = vunpack.c.l.b16 %v4451
        %v5517 = vunpack.c.l.b16 %v4452
        %v5518 = vunpack.c.l.b16 %v4453
        %v5519 = vunpack.c.l.b16 %v4454
        %v5520 = vunpack.c.l.b16 %v4455
        %v5521 = vunpack.c.l.b16 %v4456
        %v5522 = vunpack.c.l.b16 %v4457
        %v5523 = vunpack.c.l.b16 %v4458
        %v5524 = vunpack.c.l.b16 %v4459
        %v5525 = vunpack.c.l.b16 %v4460
        %v5526 = vunpack.c.l.b16 %v4461
        %v5527 = vunpack.c.l.b16 %v4462
        %v5528 = vunpack.c.l.b16 %v4463
        %v5529 = vunpack.c.l.b16 %v4464
        %v5530 = vunpack.c.l.b16 %v4465
        %v5531 = vunpack.c.l.b16 %v4466
        %v5532 = vunpack.c.l.b16 %v4467
        %v5533 = vunpack.c.l.b16 %v4468
        %v5534 = vunpack.c.l.b16 %v4469
        %v5535 = vunpack.c.l.b16 %v4470
        %v5536 = vunpack.c.l.b16 %v4471
        %v5537 = vunpack.c.l.b16 %v4472
        %v5538 = vunpack.c.l.b16 %v4473
        %v5539 = vunpack.c.l.b16 %v4474
        %v5540 = vunpack.c.l.b16 %v4475
        %v5541 = vunpack.c.l.b16 %v4476
        %v5542 = vunpack.c.l.b16 %v4477
        %v5543 = vunpack.c.l.b16 %v4478
        %v5544 = vunpack.c.l.b16 %v4479
        %v5545 = vunpack.c.l.b16 %v4480
        %v5546 = vunpack.c.l.b16 %v4481
        %v5547 = vunpack.c.l.b16 %v4482
        %v5548 = vunpack.c.l.b16 %v4483
        %v5549 = vunpack.c.l.b16 %v4484
        %v5550 = vunpack.c.l.b16 %v4485
        %v5551 = vunpack.c.l.b16 %v4486
        %v5552 = vunpack.c.l.b16 %v4487
        %v5553 = vunpack.c.l.b16 %v4488
        %v5554 = vunpack.c.l.b16 %v4489
        %v5555 = vunpack.c.l.b16 %v4490
        %v5556 = vunpack.c.l.b16 %v4491
        %v5557 = vunpack.c.l.b16 %v4492
        %v5558 = vunpack.c.l.b16 %v4493
        %v5559 = vunpack.c.l.b16 %v4494
        %v5560 = vunpack.c.l.b16 %v4495
        %v5561 = vunpack.c.l.b16 %v4496
        %v5562 = vunpack.c.l.b16 %v4497
        %v5563 = vunpack.c.l.b16 %v4498
        %v5564 = vunpack.c.l.b16 %v4499
        %v5565 = vunpack.c.l.b16 %v4500
        %v5566 = vunpack.c.l.b16 %v4501
        %v5567 = vunpack.c.l.b16 %v4502
        %v5568 = vunpack.c.l.b16 %v4503
        %v5569 = vunpack.c.l.b16 %v4504
        %v5570 = vunpack.c.l.b16 %v4505
        %v5571 = vunpack.c.l.b16 %v4506
        %v5572 = vunpack.c.l.b16 %v4507
        %v5573 = vunpack.c.l.b16 %v4508
        %v5574 = vunpack.c.l.b16 %v4509
        %v5575 = vunpack.c.l.b16 %v4510
        %v5576 = vunpack.c.l.b16 %v4511
        %v5577 = vunpack.c.l.b16 %v4512
        %v5578 = vunpack.c.l.b16 %v4513
        %v5579 = vunpack.c.l.b16 %v4514
        %v5580 = vunpack.c.l.b16 %v4515
        %v5581 = vunpack.c.l.b16 %v4516
        %v5582 = vunpack.c.l.b16 %v4517
        %v5583 = vunpack.c.l.b16 %v4518
        %v5584 = vunpack.c.l.b16 %v4519
        %v5585 = vunpack.c.l.b16 %v4520
        %v5586 = vunpack.c.l.b16 %v4521
        %v5587 = vunpack.c.l.b16 %v4522
        %v5588 = vunpack.c.l.b16 %v4523
        %v5589 = vunpack.c.l.b16 %v4524
        %v5590 = vunpack.c.l.b16 %v4525
        %v5591 = vunpack.c.l.b16 %v4526
        %v5592 = vunpack.c.l.b16 %v4527
        %v5593 = vunpack.c.l.b16 %v4528
        %v5594 = vunpack.c.l.b16 %v4529
        %v5595 = vunpack.c.l.b16 %v4530
        %v5596 = vunpack.c.l.b16 %v4531
        %v5597 = vunpack.c.l.b16 %v4532
        %v5598 = vunpack.c.l.b16 %v4533
        %v5599 = vunpack.c.l.b16 %v4534
        %v5600 = vunpack.c.l.b16 %v4535
        %v5601 = vunpack.c.l.b16 %v4536
        %v5602 = vunpack.c.l.b16 %v4537
        %v5603 = vunpack.c.l.b16 %v4538
        %v5604 = vunpack.c.l.b16 %v4539
        %v5605 = vunpack.c.l.b16 %v4540
        %v5606 = vunpack.c.l.b16 %v4541
        %v5607 = vunpack.c.l.b16 %v4542
        %v5608 = vunpack.c.l.b16 %v4543
        %v5609 = vunpack.c.l.b16 %v4544
        %v5610 = vunpack.c.l.b16 %v4545
        %v5611 = vunpack.c.l.b16 %v4546
        %v5612 = vunpack.c.l.b16 %v4547
        %v5613 = vunpack.c.l.b16 %v4548
        %v5614 = vunpack.c.l.b16 %v4549
        %v5615 = vunpack.c.l.b16 %v4550
        %v5616 = vunpack.c.l.b16 %v4551
        %v5617 = vunpack.c.l.b16 %v4552
        %v5618 = vunpack.c.l.b16 %v4553
        %v5619 = vunpack.c.l.b16 %v4554
        %v5620 = vunpack.c.l.b16 %v4555
        %v5621 = vunpack.c.l.b16 %v4556
        %v5622 = vunpack.c.l.b16 %v4557
        %v5623 = vunpack.c.l.b16 %v4558
        %v5624 = vunpack.c.l.b16 %v4559
        %v5625 = vunpack.c.l.b16 %v4560
        %v5626 = vunpack.c.l.b16 %v4561
        %v5627 = vunpack.c.l.b16 %v4562
        %v5628 = vunpack.c.l.b16 %v4563
        %v5629 = vunpack.c.l.b16 %v4564
        %v5630 = vunpack.c.l.b16 %v4565
        %v5631 = vunpack.c.l.b16 %v4566
        %v5632 = vunpack.c.l.b16 %v4567
        %v5633 = vunpack.c.l.b16 %v4568
        %v5634 = vunpack.c.l.b16 %v4569
        %v5635 = vunpack.c.l.b16 %v4570
        %v5636 = vunpack.c.l.b16 %v4571
        %v5637 = vunpack.c.l.b16 %v4572
        %v5638 = vunpack.c.l.b16 %v4573
        %v5639 = vunpack.c.l.b16 %v4574
        %v5640 = vunpack.c.l.b16 %v4575
        %v5641 = vunpack.c.l.b16 %v4576
        %v5642 = vunpack.c.l.b16 %v4577
        %v5643 = vunpack.c.l.b16 %v4578
        %v5644 = vunpack.c.l.b16 %v4579
        %v5645 = vunpack.c.l.b16 %v4580
        %v5646 = vunpack.c.l.b16 %v4581
        %v5647 = vunpack.c.l.b16 %v4582
        %v5648 = vunpack.c.l.b16 %v4583
        %v5649 = vunpack.c.l.b16 %v4584
        %v5650 = vunpack.c.l.b16 %v4585
        %v5651 = vunpack.c.l.b16 %v4586
        %v5652 = vunpack.c.l.b16 %v4587
        %v5653 = vunpack.c.l.b16 %v4588
        %v5654 = vunpack.c.l.b16 %v4589
        %v5655 = vunpack.c.l.b16 %v4590
        %v5656 = vunpack.c.l.b16 %v4591
        %v5657 = vunpack.c.l.b16 %v4592
        %v5658 = vunpack.c.l.b16 %v4593
        %v5659 = vunpack.c.l.b16 %v4594
        %v5660 = vunpack.c.l.b16 %v4595
        %v5661 = vunpack.c.l.b16 %v4596
        %v5662 = vunpack.c.l.b16 %v4597
        %v5663 = vunpack.c.l.b16 %v4598
        %v5664 = vunpack.c.l.b16 %v4599
        %v5665 = vunpack.c.l.b16 %v4600
        %v5666 = vunpack.c.l.b16 %v4601
        %v5667 = vunpack.c.l.b16 %v4602
        %v5668 = vunpack.c.l.b16 %v4603
        %v5669 = vunpack.c.l.b16 %v4604
        %v5670 = vunpack.c.l.b16 %v4605
        %v5671 = vunpack.c.l.b16 %v4606
        %v5672 = vunpack.c.l.b16 %v4607
        %v5673 = vunpack.c.l.b16 %v4608
        %v5674 = vunpack.c.l.b16 %v4609
        %v5675 = vunpack.c.l.b16 %v4610
        %v5676 = vunpack.c.l.b16 %v4611
        %v5677 = vunpack.c.l.b16 %v4612
        %v5678 = vunpack.c.l.b16 %v4613
        %v5679 = vunpack.c.l.b16 %v4614
        %v5680 = vunpack.c.l.b16 %v4615
        %v5681 = vunpack.c.l.b16 %v4616
        %v5682 = vunpack.c.l.b16 %v4617
        %v5683 = vunpack.c.l.b16 %v4618
        %v5684 = vunpack.c.l.b16 %v4619
        %v5685 = vunpack.c.l.b16 %v4620
        %v5686 = vunpack.c.l.b16 %v4621
        %v5687 = vunpack.c.l.b16 %v4622
        %v5688 = vunpack.c.l.b16 %v4623
        %v5689 = vunpack.c.l.b16 %v4624
        %v5690 = vunpack.c.l.b16 %v4625
        %v5691 = vunpack.c.l.b16 %v4626
        %v5692 = vunpack.c.l.b16 %v4627
        %v5693 = vunpack.c.l.b16 %v4628
        %v5694 = vpack.c.b16 %v5215, %v5214
        %v5695 = vpack.c.b16 %v5217, %v5216
        %v5696 = vpack.c.b16 %v5219, %v5218
        %v5697 = vpack.c.b16 %v5221, %v5220
        %v5698 = vpack.c.b16 %v5223, %v5222
        %v5699 = vpack.c.b16 %v5225, %v5224
        %v5700 = vpack.c.b16 %v5227, %v5226
        %v5701 = vpack.c.b16 %v5229, %v5228
        %v5702 = vpack.c.b16 %v5231, %v5230
        %v5703 = vpack.c.b16 %v5233, %v5232
        %v5704 = vpack.c.b16 %v5235, %v5234
        %v5705 = vpack.c.b16 %v5237, %v5236
        %v5706 = vpack.c.b16 %v5239, %v5238
        %v5707 = vpack.c.b16 %v5241, %v5240
        %v5708 = vpack.c.b16 %v5243, %v5242
        %v5709 = vpack.c.b16 %v5245, %v5244
        %v5710 = vpack.c.b16 %v5247, %v5246
        %v5711 = vpack.c.b16 %v5249, %v5248
        %v5712 = vpack.c.b16 %v5251, %v5250
        %v5713 = vpack.c.b16 %v5253, %v5252
        %v5714 = vpack.c.b16 %v5255, %v5254
        %v5715 = vpack.c.b16 %v5257, %v5256
        %v5716 = vpack.c.b16 %v5259, %v5258
        %v5717 = vpack.c.b16 %v5261, %v5260
        %v5718 = vpack.c.b16 %v5263, %v5262
        %v5719 = vpack.c.b16 %v5265, %v5264
        %v5720 = vpack.c.b16 %v5267, %v5266
        %v5721 = vpack.c.b16 %v5269, %v5268
        %v5722 = vpack.c.b16 %v5271, %v5270
        %v5723 = vpack.c.b16 %v5273, %v5272
        %v5724 = vpack.c.b16 %v5275, %v5274
        %v5725 = vpack.c.b16 %v5277, %v5276
        %v5726 = vpack.c.b16 %v5279, %v5278
        %v5727 = vpack.c.b16 %v5281, %v5280
        %v5728 = vpack.c.b16 %v5283, %v5282
        %v5729 = vpack.c.b16 %v5285, %v5284
        %v5730 = vpack.c.b16 %v5287, %v5286
        %v5731 = vpack.c.b16 %v5289, %v5288
        %v5732 = vpack.c.b16 %v5291, %v5290
        %v5733 = vpack.c.b16 %v5293, %v5292
        %v5734 = vpack.c.b16 %v5295, %v5294
        %v5735 = vpack.c.b16 %v5297, %v5296
        %v5736 = vpack.c.b16 %v5299, %v5298
        %v5737 = vpack.c.b16 %v5301, %v5300
        %v5738 = vpack.c.b16 %v5303, %v5302
        %v5739 = vpack.c.b16 %v5305, %v5304
        %v5740 = vpack.c.b16 %v5307, %v5306
        %v5741 = vpack.c.b16 %v5309, %v5308
        %v5742 = vpack.c.b16 %v5311, %v5310
        %v5743 = vpack.c.b16 %v5313, %v5312
        %v5744 = vpack.c.b16 %v5315, %v5314
        %v5745 = vpack.c.b16 %v5317, %v5316
        %v5746 = vpack.c.b16 %v5319, %v5318
        %v5747 = vpack.c.b16 %v5321, %v5320
        %v5748 = vpack.c.b16 %v5323, %v5322
        %v5749 = vpack.c.b16 %v5325, %v5324
        %v5750 = vpack.c.b16 %v5327, %v5326
        %v5751 = vpack.c.b16 %v5329, %v5328
        %v5752 = vpack.c.b16 %v5331, %v5330
        %v5753 = vpack.c.b16 %v5333, %v5332
        %v5754 = vpack.c.b16 %v5335, %v5334
        %v5755 = vpack.c.b16 %v5337, %v5336
        %v5756 = vpack.c.b16 %v5339, %v5338
        %v5757 = vpack.c.b16 %v5341, %v5340
        %v5758 = vpack.c.b16 %v5343, %v5342
        %v5759 = vpack.c.b16 %v5345, %v5344
        %v5760 = vpack.c.b16 %v5347, %v5346
        %v5761 = vpack.c.b16 %v5349, %v5348
        %v5762 = vpack.c.b16 %v5351, %v5350
        %v5763 = vpack.c.b16 %v5353, %v5352
        %v5764 = vpack.c.b16 %v5355, %v5354
        %v5765 = vpack.c.b16 %v5357, %v5356
        %v5766 = vpack.c.b16 %v5359, %v5358
        %v5767 = vpack.c.b16 %v5361, %v5360
        %v5768 = vpack.c.b16 %v5363, %v5362
        %v5769 = vpack.c.b16 %v5365, %v5364
        %v5770 = vpack.c.b16 %v5367, %v5366
        %v5771 = vpack.c.b16 %v5369, %v5368
        %v5772 = vpack.c.b16 %v5371, %v5370
        %v5773 = vpack.c.b16 %v5373, %v5372
        %v5774 = vpack.c.b16 %v5375, %v5374
        %v5775 = vpack.c.b16 %v5377, %v5376
        %v5776 = vpack.c.b16 %v5379, %v5378
        %v5777 = vpack.c.b16 %v5381, %v5380
        %v5778 = vpack.c.b16 %v5383, %v5382
        %v5779 = vpack.c.b16 %v5385, %v5384
        %v5780 = vpack.c.b16 %v5387, %v5386
        %v5781 = vpack.c.b16 %v5389, %v5388
        %v5782 = vpack.c.b16 %v5391, %v5390
        %v5783 = vpack.c.b16 %v5393, %v5392
        %v5784 = vpack.c.b16 %v5395, %v5394
        %v5785 = vpack.c.b16 %v5397, %v5396
        %v5786 = vpack.c.b16 %v5399, %v5398
        %v5787 = vpack.c.b16 %v5401, %v5400
        %v5788 = vpack.c.b16 %v5403, %v5402
        %v5789 = vpack.c.b16 %v5405, %v5404
        %v5790 = vpack.c.b16 %v5407, %v5406
        %v5791 = vpack.c.b16 %v5409, %v5408
        %v5792 = vpack.c.b16 %v5411, %v5410
        %v5793 = vpack.c.b16 %v5413, %v5412
        %v5794 = vpack.c.b16 %v5415, %v5414
        %v5795 = vpack.c.b16 %v5417, %v5416
        %v5796 = vpack.c.b16 %v5419, %v5418
        %v5797 = vpack.c.b16 %v5421, %v5420
        %v5798 = vpack.c.b16 %v5423, %v5422
        %v5799 = vpack.c.b16 %v5425, %v5424
        %v5800 = vpack.c.b16 %v5427, %v5426
        %v5801 = vpack.c.b16 %v5429, %v5428
        %v5802 = vpack.c.b16 %v5431, %v5430
        %v5803 = vpack.c.b16 %v5433, %v5432
        %v5804 = vpack.c.b16 %v5435, %v5434
        %v5805 = vpack.c.b16 %v5437, %v5436
        %v5806 = vpack.c.b16 %v5439, %v5438
        %v5807 = vpack.c.b16 %v5441, %v5440
        %v5808 = vpack.c.b16 %v5443, %v5442
        %v5809 = vpack.c.b16 %v5445, %v5444
        %v5810 = vpack.c.b16 %v5447, %v5446
        %v5811 = vpack.c.b16 %v5449, %v5448
        %v5812 = vpack.c.b16 %v5451, %v5450
        %v5813 = vpack.c.b16 %v5453, %v5452
        %v5814 = vpack.c.b16 %v5455, %v5454
        %v5815 = vpack.c.b16 %v5457, %v5456
        %v5816 = vpack.c.b16 %v5459, %v5458
        %v5817 = vpack.c.b16 %v5461, %v5460
        %v5818 = vpack.c.b16 %v5463, %v5462
        %v5819 = vpack.c.b16 %v5465, %v5464
        %v5820 = vpack.c.b16 %v5467, %v5466
        %v5821 = vpack.c.b16 %v5469, %v5468
        %v5822 = vpack.c.b16 %v5471, %v5470
        %v5823 = vpack.c.b16 %v5473, %v5472
        %v5824 = vpack.c.b16 %v5475, %v5474
        %v5825 = vpack.c.b16 %v5477, %v5476
        %v5826 = vpack.c.b16 %v5479, %v5478
        %v5827 = vpack.c.b16 %v5481, %v5480
        %v5828 = vpack.c.b16 %v5483, %v5482
        %v5829 = vpack.c.b16 %v5485, %v5484
        %v5830 = vpack.c.b16 %v5487, %v5486
        %v5831 = vpack.c.b16 %v5489, %v5488
        %v5832 = vpack.c.b16 %v5491, %v5490
        %v5833 = vpack.c.b16 %v5493, %v5492
        %v5834 = vpack.c.b16 %v5495, %v5494
        %v5835 = vpack.c.b16 %v5497, %v5496
        %v5836 = vpack.c.b16 %v5499, %v5498
        %v5837 = vpack.c.b16 %v5501, %v5500
        %v5838 = vpack.c.b16 %v5503, %v5502
        %v5839 = vpack.c.b16 %v5505, %v5504
        %v5840 = vpack.c.b16 %v5507, %v5506
        %v5841 = vpack.c.b16 %v5509, %v5508
        %v5842 = vpack.c.b16 %v5511, %v5510
        %v5843 = vpack.c.b16 %v5513, %v5512
        %v5844 = vpack.c.b16 %v5515, %v5514
        %v5845 = vpack.c.b16 %v5517, %v5516
        %v5846 = vpack.c.b16 %v5519, %v5518
        %v5847 = vpack.c.b16 %v5521, %v5520
        %v5848 = vpack.c.b16 %v5523, %v5522
        %v5849 = vpack.c.b16 %v5525, %v5524
        %v5850 = vpack.c.b16 %v5527, %v5526
        %v5851 = vpack.c.b16 %v5529, %v5528
        %v5852 = vpack.c.b16 %v5531, %v5530
        %v5853 = vpack.c.b16 %v5533, %v5532
        %v5854 = vpack.c.b16 %v5535, %v5534
        %v5855 = vpack.c.b16 %v5537, %v5536
        %v5856 = vpack.c.b16 %v5539, %v5538
        %v5857 = vpack.c.b16 %v5541, %v5540
        %v5858 = vpack.c.b16 %v5543, %v5542
        %v5859 = vpack.c.b16 %v5545, %v5544
        %v5860 = vpack.c.b16 %v5547, %v5546
        %v5861 = vpack.c.b16 %v5549, %v5548
        %v5862 = vpack.c.b16 %v5551, %v5550
        %v5863 = vpack.c.b16 %v5553, %v5552
        %v5864 = vpack.c.b16 %v5555, %v5554
        %v5865 = vpack.c.b16 %v5557, %v5556
        %v5866 = vpack.c.b16 %v5559, %v5558
        %v5867 = vpack.c.b16 %v5561, %v5560
        %v5868 = vpack.c.b16 %v5563, %v5562
        %v5869 = vpack.c.b16 %v5565, %v5564
        %v5870 = vpack.c.b16 %v5567, %v5566
        %v5871 = vpack.c.b16 %v5569, %v5568
        %v5872 = vpack.c.b16 %v5571, %v5570
        %v5873 = vpack.c.b16 %v5573, %v5572
        %v5874 = vpack.c.b16 %v5575, %v5574
        %v5875 = vpack.c.b16 %v5577, %v5576
        %v5876 = vpack.c.b16 %v5579, %v5578
        %v5877 = vpack.c.b16 %v5581, %v5580
        %v5878 = vpack.c.b16 %v5583, %v5582
        %v5879 = vpack.c.b16 %v5585, %v5584
        %v5880 = vpack.c.b16 %v5587, %v5586
        %v5881 = vpack.c.b16 %v5589, %v5588
        %v5882 = vpack.c.b16 %v5591, %v5590
        %v5883 = vpack.c.b16 %v5593, %v5592
        %v5884 = vpack.c.b16 %v5595, %v5594
        %v5885 = vpack.c.b16 %v5597, %v5596
        %v5886 = vpack.c.b16 %v5599, %v5598
        %v5887 = vpack.c.b16 %v5601, %v5600
        %v5888 = vpack.c.b16 %v5603, %v5602
        %v5889 = vpack.c.b16 %v5605, %v5604
        %v5890 = vpack.c.b16 %v5607, %v5606
        %v5891 = vpack.c.b16 %v5609, %v5608
        %v5892 = vpack.c.b16 %v5611, %v5610
        %v5893 = vpack.c.b16 %v5613, %v5612
        %v5894 = vpack.c.b16 %v5615, %v5614
        %v5895 = vpack.c.b16 %v5617, %v5616
        %v5896 = vpack.c.b16 %v5619, %v5618
        %v5897 = vpack.c.b16 %v5621, %v5620
        %v5898 = vpack.c.b16 %v5623, %v5622
        %v5899 = vpack.c.b16 %v5625, %v5624
        %v5900 = vpack.c.b16 %v5627, %v5626
        %v5901 = vpack.c.b16 %v5629, %v5628
        %v5902 = vpack.c.b16 %v5631, %v5630
        %v5903 = vpack.c.b16 %v5633, %v5632
        %v5904 = vpack.c.b16 %v5635, %v5634
        %v5905 = vpack.c.b16 %v5637, %v5636
        %v5906 = vpack.c.b16 %v5639, %v5638
        %v5907 = vpack.c.b16 %v5641, %v5640
        %v5908 = vpack.c.b16 %v5643, %v5642
        %v5909 = vpack.c.b16 %v5645, %v5644
        %v5910 = vpack.c.b16 %v5647, %v5646
        %v5911 = vpack.c.b16 %v5649, %v5648
        %v5912 = vpack.c.b16 %v5651, %v5650
        %v5913 = vpack.c.b16 %v5653, %v5652
        %v5914 = vpack.c.b16 %v5655, %v5654
        %v5915 = vpack.c.b16 %v5657, %v5656
        %v5916 = vpack.c.b16 %v5659, %v5658
        %v5917 = vpack.c.b16 %v5661, %v5660
        %v5918 = vpack.c.b16 %v5663, %v5662
        %v5919 = vpack.c.b16 %v5665, %v5664
        %v5920 = vpack.c.b16 %v5667, %v5666
        %v5921 = vpack.c.b16 %v5669, %v5668
        %v5922 = vpack.c.b16 %v5671, %v5670
        %v5923 = vpack.c.b16 %v5673, %v5672
        %v5924 = vpack.c.b16 %v5675, %v5674
        %v5925 = vpack.c.b16 %v5677, %v5676
        %v5926 = vpack.c.b16 %v5679, %v5678
        %v5927 = vpack.c.b16 %v5681, %v5680
        %v5928 = vpack.c.b16 %v5683, %v5682
        %v5929 = vpack.c.b16 %v5685, %v5684
        %v5930 = vpack.c.b16 %v5687, %v5686
        %v5931 = vpack.c.b16 %v5689, %v5688
        %v5932 = vpack.c.b16 %v5691, %v5690
        %v5933 = vpack.c.b16 %v5693, %v5692
        %6174 = vmatpush.bf16.msra.mxu0 %v5701
        %6175 = vmatpush.bf16.msra.mxu0 %v5700
        %6176 = vmatpush.bf16.msra.mxu0 %v5699
        %6177 = vmatpush.bf16.msra.mxu0 %v5698
        %6178 = vmatpush.bf16.msra.mxu0 %v5697
        %6179 = vmatpush.bf16.msra.mxu0 %v5696
        %6180 = vmatpush.bf16.msra.mxu0 %v5695
        %6181 = vmatpush.bf16.msra.mxu0 %v5694
        %6182 = vmatmul.bf16.gmra.mxu0 %v4674
        %v6183 = vpop.f32.mrf.mxu0
        %v6184 = vadd.f32 0.0, %v6183
        %v6185 = vpop.f32.mrf.mxu0
        %6186 = vdwg.mxu0
        %6187 = vmatpush.bf16.msra.mxu0 %v5709
        %6188 = vmatpush.bf16.msra.mxu0 %v5708
        %6189 = vmatpush.bf16.msra.mxu0 %v5707
        %6190 = vmatpush.bf16.msra.mxu0 %v5706
        %6191 = vmatpush.bf16.msra.mxu0 %v5705
        %6192 = vmatpush.bf16.msra.mxu0 %v5704
        %6193 = vmatpush.bf16.msra.mxu0 %v5703
        %6194 = vmatpush.bf16.msra.mxu0 %v5702
        %6195 = vmatmul.bf16.gmra.mxu0 %v4675
        %v6196 = vpop.f32.mrf.mxu0
        %v6197 = vadd.f32 %v6184, %v6196
        %v6198 = vpop.f32.mrf.mxu0
        %6199 = vdwg.mxu0
        %6200 = vmatpush.bf16.msra.mxu0 %v5717
        %6201 = vmatpush.bf16.msra.mxu0 %v5716
        %6202 = vmatpush.bf16.msra.mxu0 %v5715
        %6203 = vmatpush.bf16.msra.mxu0 %v5714
        %6204 = vmatpush.bf16.msra.mxu0 %v5713
        %6205 = vmatpush.bf16.msra.mxu0 %v5712
        %6206 = vmatpush.bf16.msra.mxu0 %v5711
        %6207 = vmatpush.bf16.msra.mxu0 %v5710
        %6208 = vmatmul.bf16.gmra.mxu0 %v4676
        %v6209 = vpop.f32.mrf.mxu0
        %v6210 = vadd.f32 %v6197, %v6209
        %v6211 = vpop.f32.mrf.mxu0
        %6212 = vdwg.mxu0
        %6213 = vmatpush.bf16.msra.mxu0 %v5725
        %6214 = vmatpush.bf16.msra.mxu0 %v5724
        %6215 = vmatpush.bf16.msra.mxu0 %v5723
        %6216 = vmatpush.bf16.msra.mxu0 %v5722
        %6217 = vmatpush.bf16.msra.mxu0 %v5721
        %6218 = vmatpush.bf16.msra.mxu0 %v5720
        %6219 = vmatpush.bf16.msra.mxu0 %v5719
        %6220 = vmatpush.bf16.msra.mxu0 %v5718
        %6221 = vmatmul.bf16.gmra.mxu0 %v4677
        %v6222 = vpop.f32.mrf.mxu0
        %v6223 = vadd.f32 %v6210, %v6222
        %v6224 = vpop.f32.mrf.mxu0
        %6225 = vdwg.mxu0
        %6226 = vmatpush.bf16.msra.mxu0 %v5733
        %6227 = vmatpush.bf16.msra.mxu0 %v5732
        %6228 = vmatpush.bf16.msra.mxu0 %v5731
        %6229 = vmatpush.bf16.msra.mxu0 %v5730
        %6230 = vmatpush.bf16.msra.mxu0 %v5729
        %6231 = vmatpush.bf16.msra.mxu0 %v5728
        %6232 = vmatpush.bf16.msra.mxu0 %v5727
        %6233 = vmatpush.bf16.msra.mxu0 %v5726
        %6234 = vmatmul.bf16.gmra.mxu0 %v4678
        %v6235 = vpop.f32.mrf.mxu0
        %v6236 = vadd.f32 %v6223, %v6235
        %v6237 = vpop.f32.mrf.mxu0
        %6238 = vdwg.mxu0
        %6239 = vmatpush.bf16.msra.mxu0 %v5741
        %6240 = vmatpush.bf16.msra.mxu0 %v5740
        %6241 = vmatpush.bf16.msra.mxu0 %v5739
        %6242 = vmatpush.bf16.msra.mxu0 %v5738
        %6243 = vmatpush.bf16.msra.mxu0 %v5737
        %6244 = vmatpush.bf16.msra.mxu0 %v5736
        %6245 = vmatpush.bf16.msra.mxu0 %v5735
        %6246 = vmatpush.bf16.msra.mxu0 %v5734
        %6247 = vmatmul.bf16.gmra.mxu0 %v4679
        %v6248 = vpop.f32.mrf.mxu0
        %v6249 = vadd.f32 %v6236, %v6248
        %v6250 = vpop.f32.mrf.mxu0
        %6251 = vdwg.mxu0
        %6252 = vmatpush.bf16.msra.mxu0 %v5749
        %6253 = vmatpush.bf16.msra.mxu0 %v5748
        %6254 = vmatpush.bf16.msra.mxu0 %v5747
        %6255 = vmatpush.bf16.msra.mxu0 %v5746
        %6256 = vmatpush.bf16.msra.mxu0 %v5745
        %6257 = vmatpush.bf16.msra.mxu0 %v5744
        %6258 = vmatpush.bf16.msra.mxu0 %v5743
        %6259 = vmatpush.bf16.msra.mxu0 %v5742
        %6260 = vmatmul.bf16.gmra.mxu0 %v4680
        %v6261 = vpop.f32.mrf.mxu0
        %v6262 = vadd.f32 %v6249, %v6261
        %v6263 = vpop.f32.mrf.mxu0
        %6264 = vdwg.mxu0
        %6265 = vmatpush.bf16.msra.mxu0 %v5757
        %6266 = vmatpush.bf16.msra.mxu0 %v5756
        %6267 = vmatpush.bf16.msra.mxu0 %v5755
        %6268 = vmatpush.bf16.msra.mxu0 %v5754
        %6269 = vmatpush.bf16.msra.mxu0 %v5753
        %6270 = vmatpush.bf16.msra.mxu0 %v5752
        %6271 = vmatpush.bf16.msra.mxu0 %v5751
        %6272 = vmatpush.bf16.msra.mxu0 %v5750
        %6273 = vmatmul.bf16.gmra.mxu0 %v4681
        %v6274 = vpop.f32.mrf.mxu0
        %v6275 = vadd.f32 %v6262, %v6274
        %v6276 = vpop.f32.mrf.mxu0
        %6277 = vdwg.mxu0
        %6278 = vmatpush.bf16.msra.mxu0 %v5765
        %6279 = vmatpush.bf16.msra.mxu0 %v5764
        %6280 = vmatpush.bf16.msra.mxu0 %v5763
        %6281 = vmatpush.bf16.msra.mxu0 %v5762
        %6282 = vmatpush.bf16.msra.mxu0 %v5761
        %6283 = vmatpush.bf16.msra.mxu0 %v5760
        %6284 = vmatpush.bf16.msra.mxu0 %v5759
        %6285 = vmatpush.bf16.msra.mxu0 %v5758
        %6286 = vmatmul.bf16.gmra.mxu0 %v4682
        %v6287 = vpop.f32.mrf.mxu0
        %v6288 = vadd.f32 %v6275, %v6287
        %v6289 = vpop.f32.mrf.mxu0
        %6290 = vdwg.mxu0
        %6291 = vmatpush.bf16.msra.mxu0 %v5773
        %6292 = vmatpush.bf16.msra.mxu0 %v5772
        %6293 = vmatpush.bf16.msra.mxu0 %v5771
        %6294 = vmatpush.bf16.msra.mxu0 %v5770
        %6295 = vmatpush.bf16.msra.mxu0 %v5769
        %6296 = vmatpush.bf16.msra.mxu0 %v5768
        %6297 = vmatpush.bf16.msra.mxu0 %v5767
        %6298 = vmatpush.bf16.msra.mxu0 %v5766
        %6299 = vmatmul.bf16.gmra.mxu0 %v4683
        %v6300 = vpop.f32.mrf.mxu0
        %v6301 = vadd.f32 %v6288, %v6300
        %v6302 = vpop.f32.mrf.mxu0
        %6303 = vdwg.mxu0
        %6304 = vmatpush.bf16.msra.mxu0 %v5781
        %6305 = vmatpush.bf16.msra.mxu0 %v5780
        %6306 = vmatpush.bf16.msra.mxu0 %v5779
        %6307 = vmatpush.bf16.msra.mxu0 %v5778
        %6308 = vmatpush.bf16.msra.mxu0 %v5777
        %6309 = vmatpush.bf16.msra.mxu0 %v5776
        %6310 = vmatpush.bf16.msra.mxu0 %v5775
        %6311 = vmatpush.bf16.msra.mxu0 %v5774
        %6312 = vmatmul.bf16.gmra.mxu0 %v4684
        %v6313 = vpop.f32.mrf.mxu0
        %v6314 = vadd.f32 %v6301, %v6313
        %v6315 = vpop.f32.mrf.mxu0
        %6316 = vdwg.mxu0
        %6317 = vmatpush.bf16.msra.mxu0 %v5789
        %6318 = vmatpush.bf16.msra.mxu0 %v5788
        %6319 = vmatpush.bf16.msra.mxu0 %v5787
        %6320 = vmatpush.bf16.msra.mxu0 %v5786
        %6321 = vmatpush.bf16.msra.mxu0 %v5785
        %6322 = vmatpush.bf16.msra.mxu0 %v5784
        %6323 = vmatpush.bf16.msra.mxu0 %v5783
        %6324 = vmatpush.bf16.msra.mxu0 %v5782
        %6325 = vmatmul.bf16.gmra.mxu0 %v4685
        %v6326 = vpop.f32.mrf.mxu0
        %v6327 = vadd.f32 %v6314, %v6326
        %v6328 = vpop.f32.mrf.mxu0
        %6329 = vdwg.mxu0
        %6330 = vmatpush.bf16.msra.mxu0 %v5797
        %6331 = vmatpush.bf16.msra.mxu0 %v5796
        %6332 = vmatpush.bf16.msra.mxu0 %v5795
        %6333 = vmatpush.bf16.msra.mxu0 %v5794
        %6334 = vmatpush.bf16.msra.mxu0 %v5793
        %6335 = vmatpush.bf16.msra.mxu0 %v5792
        %6336 = vmatpush.bf16.msra.mxu0 %v5791
        %6337 = vmatpush.bf16.msra.mxu0 %v5790
        %6338 = vmatmul.bf16.gmra.mxu0 %v4686
        %v6339 = vpop.f32.mrf.mxu0
        %v6340 = vadd.f32 %v6327, %v6339
        %v6341 = vpop.f32.mrf.mxu0
        %6342 = vdwg.mxu0
        %6343 = vmatpush.bf16.msra.mxu0 %v5805
        %6344 = vmatpush.bf16.msra.mxu0 %v5804
        %6345 = vmatpush.bf16.msra.mxu0 %v5803
        %6346 = vmatpush.bf16.msra.mxu0 %v5802
        %6347 = vmatpush.bf16.msra.mxu0 %v5801
        %6348 = vmatpush.bf16.msra.mxu0 %v5800
        %6349 = vmatpush.bf16.msra.mxu0 %v5799
        %6350 = vmatpush.bf16.msra.mxu0 %v5798
        %6351 = vmatmul.bf16.gmra.mxu0 %v4687
        %v6352 = vpop.f32.mrf.mxu0
        %v6353 = vadd.f32 %v6340, %v6352
        %v6354 = vpop.f32.mrf.mxu0
        %6355 = vdwg.mxu0
        %6356 = vmatpush.bf16.msra.mxu0 %v5813
        %6357 = vmatpush.bf16.msra.mxu0 %v5812
        %6358 = vmatpush.bf16.msra.mxu0 %v5811
        %6359 = vmatpush.bf16.msra.mxu0 %v5810
        %6360 = vmatpush.bf16.msra.mxu0 %v5809
        %6361 = vmatpush.bf16.msra.mxu0 %v5808
        %6362 = vmatpush.bf16.msra.mxu0 %v5807
        %6363 = vmatpush.bf16.msra.mxu0 %v5806
        %6364 = vmatmul.bf16.gmra.mxu0 %v4688
        %v6365 = vpop.f32.mrf.mxu0
        %v6366 = vadd.f32 %v6353, %v6365
        %v6367 = vpop.f32.mrf.mxu0
        %6368 = vdwg.mxu0
        %6369 = vmatpush.bf16.msra.mxu0 %v5821
        %6370 = vmatpush.bf16.msra.mxu0 %v5820
        %6371 = vmatpush.bf16.msra.mxu0 %v5819
        %6372 = vmatpush.bf16.msra.mxu0 %v5818
        %6373 = vmatpush.bf16.msra.mxu0 %v5817
        %6374 = vmatpush.bf16.msra.mxu0 %v5816
        %6375 = vmatpush.bf16.msra.mxu0 %v5815
        %6376 = vmatpush.bf16.msra.mxu0 %v5814
        %6377 = vmatmul.bf16.gmra.mxu0 %v4689
        %v6378 = vpop.f32.mrf.mxu0
        %v6379 = vadd.f32 %v6366, %v6378
        %v6380 = vpop.f32.mrf.mxu0
        %6381 = vdwg.mxu0
        %6382 = vmatpush.bf16.msra.mxu0 %v5829
        %6383 = vmatpush.bf16.msra.mxu0 %v5828
        %6384 = vmatpush.bf16.msra.mxu0 %v5827
        %6385 = vmatpush.bf16.msra.mxu0 %v5826
        %6386 = vmatpush.bf16.msra.mxu0 %v5825
        %6387 = vmatpush.bf16.msra.mxu0 %v5824
        %6388 = vmatpush.bf16.msra.mxu0 %v5823
        %6389 = vmatpush.bf16.msra.mxu0 %v5822
        %6390 = vmatmul.bf16.gmra.mxu0 %v4690
        %v6391 = vpop.f32.mrf.mxu0
        %v6392 = vadd.f32 %v6379, %v6391
        %v6393 = vpop.f32.mrf.mxu0
        %6394 = vdwg.mxu0
        %6395 = vmatpush.bf16.msra.mxu0 %v5837
        %6396 = vmatpush.bf16.msra.mxu0 %v5836
        %6397 = vmatpush.bf16.msra.mxu0 %v5835
        %6398 = vmatpush.bf16.msra.mxu0 %v5834
        %6399 = vmatpush.bf16.msra.mxu0 %v5833
        %6400 = vmatpush.bf16.msra.mxu0 %v5832
        %6401 = vmatpush.bf16.msra.mxu0 %v5831
        %6402 = vmatpush.bf16.msra.mxu0 %v5830
        %6403 = vmatmul.bf16.gmra.mxu0 %v4691
        %v6404 = vpop.f32.mrf.mxu0
        %v6405 = vadd.f32 %v6392, %v6404
        %v6406 = vpop.f32.mrf.mxu0
        %6407 = vdwg.mxu0
        %6408 = vmatpush.bf16.msra.mxu0 %v5845
        %6409 = vmatpush.bf16.msra.mxu0 %v5844
        %6410 = vmatpush.bf16.msra.mxu0 %v5843
        %6411 = vmatpush.bf16.msra.mxu0 %v5842
        %6412 = vmatpush.bf16.msra.mxu0 %v5841
        %6413 = vmatpush.bf16.msra.mxu0 %v5840
        %6414 = vmatpush.bf16.msra.mxu0 %v5839
        %6415 = vmatpush.bf16.msra.mxu0 %v5838
        %6416 = vmatmul.bf16.gmra.mxu0 %v4692
        %v6417 = vpop.f32.mrf.mxu0
        %v6418 = vadd.f32 %v6405, %v6417
        %v6419 = vpop.f32.mrf.mxu0
        %6420 = vdwg.mxu0
        %6421 = vmatpush.bf16.msra.mxu0 %v5853
        %6422 = vmatpush.bf16.msra.mxu0 %v5852
        %6423 = vmatpush.bf16.msra.mxu0 %v5851
        %6424 = vmatpush.bf16.msra.mxu0 %v5850
        %6425 = vmatpush.bf16.msra.mxu0 %v5849
        %6426 = vmatpush.bf16.msra.mxu0 %v5848
        %6427 = vmatpush.bf16.msra.mxu0 %v5847
        %6428 = vmatpush.bf16.msra.mxu0 %v5846
        %6429 = vmatmul.bf16.gmra.mxu0 %v4693
        %v6430 = vpop.f32.mrf.mxu0
        %v6431 = vadd.f32 %v6418, %v6430
        %v6432 = vpop.f32.mrf.mxu0
        %6433 = vdwg.mxu0
        %6434 = vmatpush.bf16.msra.mxu0 %v5861
        %6435 = vmatpush.bf16.msra.mxu0 %v5860
        %6436 = vmatpush.bf16.msra.mxu0 %v5859
        %6437 = vmatpush.bf16.msra.mxu0 %v5858
        %6438 = vmatpush.bf16.msra.mxu0 %v5857
        %6439 = vmatpush.bf16.msra.mxu0 %v5856
        %6440 = vmatpush.bf16.msra.mxu0 %v5855
        %6441 = vmatpush.bf16.msra.mxu0 %v5854
        %6442 = vmatmul.bf16.gmra.mxu0 %v4694
        %v6443 = vpop.f32.mrf.mxu0
        %v6444 = vadd.f32 %v6431, %v6443
        %v6445 = vpop.f32.mrf.mxu0
        %6446 = vdwg.mxu0
        %6447 = vmatpush.bf16.msra.mxu0 %v5869
        %6448 = vmatpush.bf16.msra.mxu0 %v5868
        %6449 = vmatpush.bf16.msra.mxu0 %v5867
        %6450 = vmatpush.bf16.msra.mxu0 %v5866
        %6451 = vmatpush.bf16.msra.mxu0 %v5865
        %6452 = vmatpush.bf16.msra.mxu0 %v5864
        %6453 = vmatpush.bf16.msra.mxu0 %v5863
        %6454 = vmatpush.bf16.msra.mxu0 %v5862
        %6455 = vmatmul.bf16.gmra.mxu0 %v4695
        %v6456 = vpop.f32.mrf.mxu0
        %v6457 = vadd.f32 %v6444, %v6456
        %v6458 = vpop.f32.mrf.mxu0
        %6459 = vdwg.mxu0
        %6460 = vmatpush.bf16.msra.mxu0 %v5877
        %6461 = vmatpush.bf16.msra.mxu0 %v5876
        %6462 = vmatpush.bf16.msra.mxu0 %v5875
        %6463 = vmatpush.bf16.msra.mxu0 %v5874
        %6464 = vmatpush.bf16.msra.mxu0 %v5873
        %6465 = vmatpush.bf16.msra.mxu0 %v5872
        %6466 = vmatpush.bf16.msra.mxu0 %v5871
        %6467 = vmatpush.bf16.msra.mxu0 %v5870
        %6468 = vmatmul.bf16.gmra.mxu0 %v4696
        %v6469 = vpop.f32.mrf.mxu0
        %v6470 = vadd.f32 %v6457, %v6469
        %v6471 = vpop.f32.mrf.mxu0
        %6472 = vdwg.mxu0
        %6473 = vmatpush.bf16.msra.mxu0 %v5885
        %6474 = vmatpush.bf16.msra.mxu0 %v5884
        %6475 = vmatpush.bf16.msra.mxu0 %v5883
        %6476 = vmatpush.bf16.msra.mxu0 %v5882
        %6477 = vmatpush.bf16.msra.mxu0 %v5881
        %6478 = vmatpush.bf16.msra.mxu0 %v5880
        %6479 = vmatpush.bf16.msra.mxu0 %v5879
        %6480 = vmatpush.bf16.msra.mxu0 %v5878
        %6481 = vmatmul.bf16.gmra.mxu0 %v4697
        %v6482 = vpop.f32.mrf.mxu0
        %v6483 = vadd.f32 %v6470, %v6482
        %v6484 = vpop.f32.mrf.mxu0
        %6485 = vdwg.mxu0
        %6486 = vmatpush.bf16.msra.mxu0 %v5893
        %6487 = vmatpush.bf16.msra.mxu0 %v5892
        %6488 = vmatpush.bf16.msra.mxu0 %v5891
        %6489 = vmatpush.bf16.msra.mxu0 %v5890
        %6490 = vmatpush.bf16.msra.mxu0 %v5889
        %6491 = vmatpush.bf16.msra.mxu0 %v5888
        %6492 = vmatpush.bf16.msra.mxu0 %v5887
        %6493 = vmatpush.bf16.msra.mxu0 %v5886
        %6494 = vmatmul.bf16.gmra.mxu0 %v4698
        %v6495 = vpop.f32.mrf.mxu0
        %v6496 = vadd.f32 %v6483, %v6495
        %v6497 = vpop.f32.mrf.mxu0
        %6498 = vdwg.mxu0
        %6499 = vmatpush.bf16.msra.mxu0 %v5901
        %6500 = vmatpush.bf16.msra.mxu0 %v5900
        %6501 = vmatpush.bf16.msra.mxu0 %v5899
        %6502 = vmatpush.bf16.msra.mxu0 %v5898
        %6503 = vmatpush.bf16.msra.mxu0 %v5897
        %6504 = vmatpush.bf16.msra.mxu0 %v5896
        %6505 = vmatpush.bf16.msra.mxu0 %v5895
        %6506 = vmatpush.bf16.msra.mxu0 %v5894
        %6507 = vmatmul.bf16.gmra.mxu0 %v4699
        %v6508 = vpop.f32.mrf.mxu0
        %v6509 = vadd.f32 %v6496, %v6508
        %v6510 = vpop.f32.mrf.mxu0
        %6511 = vdwg.mxu0
        %6512 = vmatpush.bf16.msra.mxu0 %v5909
        %6513 = vmatpush.bf16.msra.mxu0 %v5908
        %6514 = vmatpush.bf16.msra.mxu0 %v5907
        %6515 = vmatpush.bf16.msra.mxu0 %v5906
        %6516 = vmatpush.bf16.msra.mxu0 %v5905
        %6517 = vmatpush.bf16.msra.mxu0 %v5904
        %6518 = vmatpush.bf16.msra.mxu0 %v5903
        %6519 = vmatpush.bf16.msra.mxu0 %v5902
        %6520 = vmatmul.bf16.gmra.mxu0 %v4700
        %v6521 = vpop.f32.mrf.mxu0
        %v6522 = vadd.f32 %v6509, %v6521
        %v6523 = vpop.f32.mrf.mxu0
        %6524 = vdwg.mxu0
        %6525 = vmatpush.bf16.msra.mxu0 %v5917
        %6526 = vmatpush.bf16.msra.mxu0 %v5916
        %6527 = vmatpush.bf16.msra.mxu0 %v5915
        %6528 = vmatpush.bf16.msra.mxu0 %v5914
        %6529 = vmatpush.bf16.msra.mxu0 %v5913
        %6530 = vmatpush.bf16.msra.mxu0 %v5912
        %6531 = vmatpush.bf16.msra.mxu0 %v5911
        %6532 = vmatpush.bf16.msra.mxu0 %v5910
        %6533 = vmatmul.bf16.gmra.mxu0 %v4701
        %v6534 = vpop.f32.mrf.mxu0
        %v6535 = vadd.f32 %v6522, %v6534
        %v6536 = vpop.f32.mrf.mxu0
        %6537 = vdwg.mxu0
        %6538 = vmatpush.bf16.msra.mxu0 %v5925
        %6539 = vmatpush.bf16.msra.mxu0 %v5924
        %6540 = vmatpush.bf16.msra.mxu0 %v5923
        %6541 = vmatpush.bf16.msra.mxu0 %v5922
        %6542 = vmatpush.bf16.msra.mxu0 %v5921
        %6543 = vmatpush.bf16.msra.mxu0 %v5920
        %6544 = vmatpush.bf16.msra.mxu0 %v5919
        %6545 = vmatpush.bf16.msra.mxu0 %v5918
        %6546 = vmatmul.bf16.gmra.mxu0 %v4702
        %v6547 = vpop.f32.mrf.mxu0
        %v6548 = vadd.f32 %v6535, %v6547
        %v6549 = vpop.f32.mrf.mxu0
        %6550 = vdwg.mxu0
        %6551 = vmatpush.bf16.msra.mxu0 %v5933
        %6552 = vmatpush.bf16.msra.mxu0 %v5932
        %6553 = vmatpush.bf16.msra.mxu0 %v5931
        %6554 = vmatpush.bf16.msra.mxu0 %v5930
        %6555 = vmatpush.bf16.msra.mxu0 %v5929
        %6556 = vmatpush.bf16.msra.mxu0 %v5928
        %6557 = vmatpush.bf16.msra.mxu0 %v5927
        %6558 = vmatpush.bf16.msra.mxu0 %v5926
        %6559 = vmatmul.bf16.gmra.mxu0 %v4703
        %v6560 = vpop.f32.mrf.mxu0
        %v6561 = vadd.f32 %v6548, %v6560
        %v6562 = vpop.f32.mrf.mxu0
        %6563 = vdwg.mxu0
        %v6564 = vadd.f32 %v4133, %v6561
        %6565 = vst [vmem:[#allocation2] sm:$0x3f] %v6564
        %p6566 = scmp.eq.s32.totalorder %s19, 1
        // Predicated region
        $region89: #{cnn_forward.3} parent=79 // pred_check
          %p6567 = pneg %p6566
        $region90: #{cnn_forward.3} parent=79 // pred_check_branch
          %6569 = sbr.rel (%p6567) target = $region92
        $region91: #{cnn_forward.3} parent=79 // pred_region
          %v6570 = vld [vmem:[#allocation2] sm:$0x3f]
          %v6571 = vld [vmem:[%s4123] sm:$0x1]
          %v6573 = vperm.slane %v6571, 0
          %v6575 = vadd.f32 %v6570, %v6573
          %v6576 = vxor.u32 %v6575, 2147483648
          %v6577 = vmul.f32 %v6576, 1.442695
          %v6578 = vpow.pop %v6577
          %v6579 = vadd.f32 %v6578, 1.0
          %v6580 = vrcp.pop %v6579
          %v6581 = vmul.f32 %v6579, %v6580
          %v6582 = vsub.f32 1.0, %v6581
          %v6583 = vmul.f32 %v6580, %v6582
          %v6584 = vadd.f32 %v6580, %v6583
          %vm6585 = vweird.f32 %v6579
          %vm6586 = vweird.f32 %v6580
          %vm6587 = vmor %vm6585, %vm6586
          %v6588 = vsel %vm6587, %v6580, %v6584
          %v6589 = vand.u32 2147483647, %v6579
          %vm6590 = vcmp.eq.f32.partialorder %v6589, 8.507059e+37
          %v6591 = vand.u32 %v6579, 2147483648
          %v6592 = vor.u32 1.1754944e-38, %v6591
          %v6593 = vsel %vm6590, %v6592, %v6588
          %v6594 = vmul.f32 1.0, %v6593
          %6595 = vst [vmem:[%s4127] sm:$0x3f] %v6594
        $region92: #{cnn_forward.3} parent=79 // pred_fallthru
          _
        %p6596 = scmp.lt.s32.totalorder %s18, 1
        %s6597 = scalar_select %p6596, %s18, 1
        %s6598 = smul.addr %s6597, 8
        %s6599 = scalar_lea.vmem %s3, %s6598
        // Predicated region
        $region93: #{cnn_forward.3} parent=79 // pred_check
          %p6600 = pneg %p124
        $region94: #{cnn_forward.3} parent=79 // pred_check_branch
          %6602 = sbr.rel (%p6600) target = $region96
        $region95: #{cnn_forward.3} parent=79 // pred_region
          _
        $region96: #{cnn_forward.3} parent=79 // pred_fallthru
          _
      $region80: #{cnn_forward.3} parent=5 // pred_fallthru
        _
      %p6603 = scmp.le.s32.totalorder 2, %s9
      // Predicated region
      $region97: #{cnn_forward.3} parent=5 // pred_check
        %p6604 = pneg %p6603
      $region98: #{cnn_forward.3} parent=5 // pred_check_branch
        %6606 = sbr.rel (%p6604) target = $region100
      $region99: #{cnn_forward.3} parent=5 // pred_region
        %s6607 = ssub.s32 %s9, 2
        // Predicated region
        $region101: #{cnn_forward.3} parent=99 // pred_check
          %p6608 = pneg %p130
        $region102: #{cnn_forward.3} parent=99 // pred_check_branch
          %6610 = sbr.rel (%p6608) target = $region104
        $region103: #{cnn_forward.3} parent=99 // pred_region
          %p6611 = scmp.lt.s32.totalorder %s20, 1
          %s6612 = scalar_select %p6611, %s20, 1
          %s6613 = smul.addr %s6612, 8
          %s6614 = scalar_lea.vmem %s3, %s6613
        $region104: #{cnn_forward.3} parent=99 // pred_fallthru
          _
      $region100: #{cnn_forward.3} parent=5 // pred_fallthru
        _
    $region6: #{cnn_forward.3} parent=1 // loop_footer
      %s13 = sadd.s32 1, %s9
    $region7: #{cnn_forward.3} parent=1 // loop_footer_branch
      %8 = sbr.rel target = $region3
    $region8: #{cnn_forward.3} parent=1 // loop_exit
      _

</llo_original>
